<compile_context>
chip_gen: v7x
topology: tpu7x:2x2x1
jax: 0.10.0
libtpu: 0.0.40
codegen_flags: <defaults>
</compile_context>

<pallas_src>
import jax
import jax.numpy as jnp
from jax.experimental import pallas as pl
from jax.experimental.pallas import tpu as pltpu

HIDDEN = 64
HP = 128                          # hidden padded to one 128-lane vreg per gate
NUM_LAYERS = 3
INPUT_SIZE = 5 + 5 + 5 + 30 + 3   # 48


# ----------------------------- Pallas kernel ------------------------------- #
def fused_gru_kernel(x_ref, wi_ref, wh_ref, bgi_ref, bhn_ref, wo_ref, bo_ref,
                     o_ref, gi_scr):
    # x_ref:   (T*B, 128) bf16   time-major, lane-padded input features (48->128)
    # wi_ref:  (3, 128, 384) bf16  per-layer transposed+padded W_ih (cols r|z|n)
    # wh_ref:  (3, 128, 384) bf16  per-layer transposed+padded W_hh
    # bgi_ref: (3, 1, 384) f32     r/z cols = b_ih+b_hh, n cols = b_ih (padded 0)
    # bhn_ref: (3, 1, 128) f32     n-gate part of b_hh (padded 0)
    # wo_ref:  (128, 128) f32      output head; only [:64, 0] non-zero
    # bo_ref:  (1, 128) f32
    # o_ref:   (B, 128) f32        lane-dense output; column 0 = prediction
    # gi_scr:  (T*B, 384) f32      hoisted layer-0 input projections
    TB = x_ref.shape[0]
    B = o_ref.shape[0]
    T = TB // B
    f32 = jnp.float32

    # Hoisted layer-0 input projection for the whole sequence (one bf16 matmul,
    # off the recurrence critical path). r/z/n biases already folded in bgi[0].
    gi_scr[...] = (
        jnp.dot(x_ref[...], wi_ref[0], preferred_element_type=f32)
        + bgi_ref[0]
    )

    # Hoist per-layer bias broadcasts out of the unrolled loop.
    bgi1 = jnp.broadcast_to(bgi_ref[1], (B, 3 * HP))
    bgi2 = jnp.broadcast_to(bgi_ref[2], (B, 3 * HP))
    bhn0 = jnp.broadcast_to(bhn_ref[0], (B, HP))
    bhn1 = jnp.broadcast_to(bhn_ref[1], (B, HP))
    bhn2 = jnp.broadcast_to(bhn_ref[2], (B, HP))

    def gru_cell(pre_rz, gi_n, gh_n_biased, h_prev):
        # pre_rz: (B, 2*HP) = gi_rz + gh_rz (+ all biases);  all f32.
        r = jax.nn.sigmoid(pre_rz[:, 0:HP])
        z = jax.nn.sigmoid(pre_rz[:, HP:2 * HP])
        n = jnp.tanh(gi_n + r * gh_n_biased)
        return (1.0 - z) * n + z * h_prev          # padded lanes stay exactly 0

    zero = jnp.zeros((B, HP), f32)
    h0, h1, h2 = zero, zero, zero                  # carried in vregs

    # Wavefront: step s -> layer0@t=s, layer1@t=s-1, layer2@t=s-2.
    # All reads use start-of-step state, so per-step matmuls are independent.
    # T is small & static -> full Python unroll (see TODO for long sequences).
    for s in range(T + 2):
        h0b = h0.astype(jnp.bfloat16)
        h1b = h1.astype(jnp.bfloat16)
        h2b = h2.astype(jnp.bfloat16)
        n0 = n1 = n2 = None

        if s < T:                                   # layer 0, time t = s
            gi0 = gi_scr[pl.ds(s * B, B), :]        # biases already folded
            gh0 = jnp.dot(h0b, wh_ref[0], preferred_element_type=f32)
            n0 = gru_cell(gi0[:, :2 * HP] + gh0[:, :2 * HP],
                          gi0[:, 2 * HP:], gh0[:, 2 * HP:] + bhn0, h0)

        if 1 <= s <= T:                             # layer 1, time t = s-1
            gi1 = jnp.dot(h0b, wi_ref[1], preferred_element_type=f32) + bgi1
            gh1 = jnp.dot(h1b, wh_ref[1], preferred_element_type=f32)
            n1 = gru_cell(gi1[:, :2 * HP] + gh1[:, :2 * HP],
                          gi1[:, 2 * HP:], gh1[:, 2 * HP:] + bhn1, h1)

        if 2 <= s <= T + 1:                         # layer 2, time t = s-2
            gi2 = jnp.dot(h1b, wi_ref[2], preferred_element_type=f32) + bgi2
            gh2 = jnp.dot(h2b, wh_ref[2], preferred_element_type=f32)
            n2 = gru_cell(gi2[:, :2 * HP] + gh2[:, :2 * HP],
                          gi2[:, 2 * HP:], gh2[:, 2 * HP:] + bhn2, h2)

        if n0 is not None:
            h0 = n0
        if n1 is not None:
            h1 = n1
        if n2 is not None:
            h2 = n2

    # Tiny off-critical-path output head: column 0 is w_out . h + b_out.
    o_ref[...] = (
        jnp.dot(h2, wo_ref[...], preferred_element_type=f32) + bo_ref[...]
    )


# ------------------------------ Pallas wrapper ------------------------------ #
def _round_up(n, m):
    return ((n + m - 1) // m) * m


def fused_gru_call(feat_seq, kp):
    # feat_seq: (T, B, INPUT_SIZE) time-major float32
    T, B, D = feat_seq.shape
    Bp = max(8, _round_up(B, 8))   # fill f32 sublanes; padded rows trimmed later
    x = jnp.pad(feat_seq, ((0, 0), (0, Bp - B), (0, HP - D)))
    x2d = x.reshape(T * Bp, HP).astype(jnp.bfloat16)   # halves the input DMA too
    vmem = pl.BlockSpec(memory_space=pltpu.MemorySpace.VMEM)
    out = pl.pallas_call(
        fused_gru_kernel,
        out_shape=jax.ShapeDtypeStruct((Bp, HP), jnp.float32),
        in_specs=[vmem] * 7,
        out_specs=vmem,
        scratch_shapes=[
            pltpu.VMEM((T * Bp, 3 * HP), jnp.float32),   # hoisted layer-0 gi
        ],
    )(x2d, kp["wi"], kp["wh"], kp["bgi"], kp["bhn"], kp["wo"], kp["bo"])
    return out[:B, :1]


# --------------------------- Parameter preparation -------------------------- #
def init_params(key, num_adms, num_ethn, num_item, num_adlc):
    ks = jax.random.split(key, 32)
    ki = iter(range(32))
    p = {}
    p["emb_admns"] = jax.random.normal(ks[next(ki)], (num_adms, 5), jnp.float32)
    p["emb_ethns"] = jax.random.normal(ks[next(ki)], (num_ethn, 5), jnp.float32)
    p["emb_adlcs"] = jax.random.normal(ks[next(ki)], (num_adlc, 5), jnp.float32)
    p["emb_items"] = jax.random.normal(ks[next(ki)], (num_item, 30), jnp.float32)
    bound = 1.0 / jnp.sqrt(HIDDEN)
    for layer in range(NUM_LAYERS):
        d_in = INPUT_SIZE if layer == 0 else HIDDEN
        p[f"w_ih_l{layer}"] = jax.random.uniform(
            ks[next(ki)], (3 * HIDDEN, d_in), jnp.float32, -bound, bound)
        p[f"w_hh_l{layer}"] = jax.random.uniform(
            ks[next(ki)], (3 * HIDDEN, HIDDEN), jnp.float32, -bound, bound)
        p[f"b_ih_l{layer}"] = jax.random.uniform(
            ks[next(ki)], (3 * HIDDEN,), jnp.float32, -bound, bound)
        p[f"b_hh_l{layer}"] = jax.random.uniform(
            ks[next(ki)], (3 * HIDDEN,), jnp.float32, -bound, bound)
    lb = 1.0 / jnp.sqrt(HIDDEN)
    p["out_w"] = jax.random.uniform(ks[next(ki)], (1, HIDDEN), jnp.float32, -lb, lb)
    p["out_b"] = jax.random.uniform(ks[next(ki)], (1,), jnp.float32, -lb, lb)
    return p


def prepare_kernel_params(p):
    """Pre-transpose, zero-pad and bf16-cast PyTorch-layout GRU weights once.

    Gate column order per layer is r|z|n at lane offsets 0/128/256.
    bgi holds b_ih+b_hh for the r/z gates and b_ih for the n gate (the n-gate
    b_hh must stay separate because of the r*(W_hh.h + b_hn) term); bhn holds
    the n-gate part of b_hh.  Padded lanes are exactly zero, which keeps the
    padded hidden lanes at 0 for every step (required invariant).
    """
    wi = jnp.zeros((NUM_LAYERS, HP, 3 * HP), jnp.float32)
    wh = jnp.zeros((NUM_LAYERS, HP, 3 * HP), jnp.float32)
    bgi = jnp.zeros((NUM_LAYERS, 1, 3 * HP), jnp.float32)
    bhn = jnp.zeros((NUM_LAYERS, 1, HP), jnp.float32)
    for layer in range(NUM_LAYERS):
        w_ih = p[f"w_ih_l{layer}"]   # (3H, D)  gate order r, z, n
        w_hh = p[f"w_hh_l{layer}"]   # (3H, H)
        b_ih = p[f"b_ih_l{layer}"]   # (3H,)
        b_hh = p[f"b_hh_l{layer}"]   # (3H,)
        d_in = w_ih.shape[1]
        for g in range(3):
            rows = slice(g * HIDDEN, (g + 1) * HIDDEN)
            cols = slice(g * HP, g * HP + HIDDEN)
            wi = wi.at[layer, :d_in, cols].set(w_ih[rows, :].T)
            wh = wh.at[layer, :HIDDEN, cols].set(w_hh[rows, :].T)
            if g < 2:
                bgi = bgi.at[layer, 0, cols].set(b_ih[rows] + b_hh[rows])
            else:
                bgi = bgi.at[layer, 0, cols].set(b_ih[rows])
                bhn = bhn.at[layer, 0, :HIDDEN].set(b_hh[rows])
    wo = jnp.zeros((HP, HP), jnp.float32).at[:HIDDEN, 0].set(p["out_w"][0])
    bo = jnp.zeros((1, HP), jnp.float32).at[0, 0].set(p["out_b"][0])
    # TODO(synk): also try wh as (64,384) with an unpadded-K contraction if
    #             lower_as_mlir shows no relayout for the 64-lane LHS slice.
    return {"wi": wi.astype(jnp.bfloat16), "wh": wh.astype(jnp.bfloat16),
            "bgi": bgi, "bhn": bhn, "wo": wo, "bo": bo}


# ------------------------------ Model forward ------------------------------- #
def gru_forward(params, kparams, x):
    # x: (B, T, 7) float32 -- cols: [0]=numeric, [1..4]=categorical ids, [5,6]=numeric
    x = x.astype(jnp.float32)
    admns = params["emb_admns"][x[:, :, 1].astype(jnp.int32)]  # (B, T, 5)
    ethns = params["emb_ethns"][x[:, :, 2].astype(jnp.int32)]  # (B, T, 5)
    adlcs = params["emb_adlcs"][x[:, :, 3].astype(jnp.int32)]  # (B, T, 5)
    items = params["emb_items"][x[:, :, 4].astype(jnp.int32)]  # (B, T, 30)
    feat = jnp.concatenate(
        [admns, ethns, adlcs, items, x[:, :, jnp.array([0, 5, 6])]], axis=2
    )  # (B, T, 48)
    # PyTorch: `if torch.sum(x) == 0: out = out * 0 - 1` is applied to the
    # concatenated features BEFORE self.gru(out), i.e. it overrides the GRU
    # INPUT with -1 -- replicated exactly here.
    feat = jnp.where(jnp.sum(x) == 0.0, -jnp.ones_like(feat), feat)
    seq = jnp.transpose(feat, (1, 0, 2))  # (T, B, 48) time-major for the kernel
    # TODO(synk): inter-layer dropout(p=0.2) of nn.GRU omitted (inference/eval
    #             semantics; PyTorch applies it only in train mode).
    return fused_gru_call(seq, kparams)   # (B, 1)


if __name__ == "__main__":
    # small synthetic vocab sizes (stand-ins for the CSV-derived counts)
    num_adms, num_ethn, num_item, num_adlc = 5, 6, 12, 4
    B, T = 8, 8   # B multiple of 8 fills f32 sublanes

    key = jax.random.PRNGKey(0)
    kp, kx0, kx1, kx2, kx3, kx4 = jax.random.split(key, 6)
    params = init_params(kp, num_adms, num_ethn, num_item, num_adlc)
    kparams = prepare_kernel_params(params)

    # build (B, T, 7) float input: numeric cols 0,5,6; integer-valued id cols 1..4
    num0 = jax.random.normal(kx0, (B, T, 1), jnp.float32)
    id_admns = jax.random.randint(kx1, (B, T, 1), 0, num_adms).astype(jnp.float32)
    id_ethns = jax.random.randint(kx2, (B, T, 1), 0, num_ethn).astype(jnp.float32)
    id_adlcs = jax.random.randint(kx3, (B, T, 1), 0, num_adlc).astype(jnp.float32)
    id_items = jax.random.randint(kx4, (B, T, 1), 0, num_item).astype(jnp.float32)
    num56 = jax.random.normal(kx0, (B, T, 2), jnp.float32)
    x = jnp.concatenate([num0, id_admns, id_ethns, id_adlcs, id_items, num56], axis=2)

    fwd = jax.jit(gru_forward)
    out = jax.block_until_ready(fwd(params, kparams, x))
    assert out.shape == (B, 1) and out.dtype == jnp.float32
    print("KERNEL_OK")
</pallas_src>

<mosaic_0001>
module attributes {stable_mosaic.version = 11 : i64} {
  func.func @fused_gru_kernel(%arg0: memref<64x128xbf16, #tpu.memory_space<vmem>>, %arg1: memref<3x128x384xbf16, #tpu.memory_space<vmem>>, %arg2: memref<3x128x384xbf16, #tpu.memory_space<vmem>>, %arg3: memref<3x1x384xf32, #tpu.memory_space<vmem>>, %arg4: memref<3x1x128xf32, #tpu.memory_space<vmem>>, %arg5: memref<128x128xf32, #tpu.memory_space<vmem>>, %arg6: memref<1x128xf32, #tpu.memory_space<vmem>>, %arg7: memref<8x128xf32, #tpu.memory_space<vmem>>, %arg8: memref<64x384xf32, #tpu.memory_space<vmem>>) attributes {dimension_semantics = [], scalar_prefetch = 0 : i64, scratch_operands = 1 : i64, tpu.core_type = #tpu.core_type<tc>} {
    %c0 = arith.constant 0 : index
    %c0_0 = arith.constant 0 : index
    %0 = vector.load %arg0[%c0, %c0_0] : memref<64x128xbf16, #tpu.memory_space<vmem>>, vector<64x128xbf16>
    %c0_1 = arith.constant 0 : index
    %c0_2 = arith.constant 0 : index
    %c0_3 = arith.constant 0 : index
    %1 = vector.load %arg1[%c0_1, %c0_2, %c0_3] : memref<3x128x384xbf16, #tpu.memory_space<vmem>>, vector<1x128x384xbf16>
    %2 = vector.shape_cast %1 : vector<1x128x384xbf16> to vector<128x384xbf16>
    %cst = arith.constant dense<0.000000e+00> : vector<64x384xf32>
    %3 = tpu.matmul %0, %2, %cst {dimension_numbers = #tpu.dot_dimension_numbers<[1], [0], [0], [1], [0, 0, 1, 1], [], []>} : vector<64x128xbf16>, vector<128x384xbf16>, vector<64x384xf32> -> vector<64x384xf32>
    %c0_4 = arith.constant 0 : index
    %c0_5 = arith.constant 0 : index
    %c0_6 = arith.constant 0 : index
    %4 = vector.load %arg3[%c0_4, %c0_5, %c0_6] : memref<3x1x384xf32, #tpu.memory_space<vmem>>, vector<1x1x384xf32>
    %5 = vector.shape_cast %4 : vector<1x1x384xf32> to vector<1x384xf32>
    %6 = vector.broadcast %5 : vector<1x384xf32> to vector<64x384xf32>
    %7 = arith.addf %3, %6 : vector<64x384xf32>
    %c0_7 = arith.constant 0 : index
    %c0_8 = arith.constant 0 : index
    %8 = vector.load %arg8[%c0_7, %c0_8] : memref<64x384xf32, #tpu.memory_space<vmem>>, vector<64x384xf32>
    tpu.vector_store %arg8[%c0_7, %c0_8], %7 {strides = array<i32>} : memref<64x384xf32, #tpu.memory_space<vmem>>, vector<64x384xf32>,
    %c1 = arith.constant 1 : index
    %c0_9 = arith.constant 0 : index
    %c0_10 = arith.constant 0 : index
    %9 = vector.load %arg3[%c1, %c0_9, %c0_10] : memref<3x1x384xf32, #tpu.memory_space<vmem>>, vector<1x1x384xf32>
    %10 = vector.shape_cast %9 : vector<1x1x384xf32> to vector<1x384xf32>
    %11 = vector.shape_cast %10 : vector<1x384xf32> to vector<1x384xf32>
    %12 = vector.broadcast %11 : vector<1x384xf32> to vector<8x384xf32>
    %c2 = arith.constant 2 : index
    %c0_11 = arith.constant 0 : index
    %c0_12 = arith.constant 0 : index
    %13 = vector.load %arg3[%c2, %c0_11, %c0_12] : memref<3x1x384xf32, #tpu.memory_space<vmem>>, vector<1x1x384xf32>
    %14 = vector.shape_cast %13 : vector<1x1x384xf32> to vector<1x384xf32>
    %15 = vector.shape_cast %14 : vector<1x384xf32> to vector<1x384xf32>
    %16 = vector.broadcast %15 : vector<1x384xf32> to vector<8x384xf32>
    %c0_13 = arith.constant 0 : index
    %c0_14 = arith.constant 0 : index
    %c0_15 = arith.constant 0 : index
    %17 = vector.load %arg4[%c0_13, %c0_14, %c0_15] : memref<3x1x128xf32, #tpu.memory_space<vmem>>, vector<1x1x128xf32>
    %18 = vector.shape_cast %17 : vector<1x1x128xf32> to vector<1x128xf32>
    %19 = vector.shape_cast %18 : vector<1x128xf32> to vector<1x128xf32>
    %20 = vector.broadcast %19 : vector<1x128xf32> to vector<8x128xf32>
    %c1_16 = arith.constant 1 : index
    %c0_17 = arith.constant 0 : index
    %c0_18 = arith.constant 0 : index
    %21 = vector.load %arg4[%c1_16, %c0_17, %c0_18] : memref<3x1x128xf32, #tpu.memory_space<vmem>>, vector<1x1x128xf32>
    %22 = vector.shape_cast %21 : vector<1x1x128xf32> to vector<1x128xf32>
    %23 = vector.shape_cast %22 : vector<1x128xf32> to vector<1x128xf32>
    %24 = vector.broadcast %23 : vector<1x128xf32> to vector<8x128xf32>
    %c2_19 = arith.constant 2 : index
    %c0_20 = arith.constant 0 : index
    %c0_21 = arith.constant 0 : index
    %25 = vector.load %arg4[%c2_19, %c0_20, %c0_21] : memref<3x1x128xf32, #tpu.memory_space<vmem>>, vector<1x1x128xf32>
    %26 = vector.shape_cast %25 : vector<1x1x128xf32> to vector<1x128xf32>
    %27 = vector.shape_cast %26 : vector<1x128xf32> to vector<1x128xf32>
    %28 = vector.broadcast %27 : vector<1x128xf32> to vector<8x128xf32>
    %cst_22 = arith.constant 0.000000e+00 : f32
    %29 = vector.broadcast %cst_22 : f32 to vector<8x128xf32>
    %30 = arith.truncf %29 : vector<8x128xf32> to vector<8x128xbf16>
    %c0_23 = arith.constant 0 : index
    %c0_24 = arith.constant 0 : index
    %31 = vector.load %arg8[%c0_23, %c0_24] : memref<64x384xf32, #tpu.memory_space<vmem>>, vector<8x384xf32>
    %c0_25 = arith.constant 0 : index
    %c0_26 = arith.constant 0 : index
    %c0_27 = arith.constant 0 : index
    %32 = vector.load %arg2[%c0_25, %c0_26, %c0_27] : memref<3x128x384xbf16, #tpu.memory_space<vmem>>, vector<1x128x384xbf16>
    %33 = vector.shape_cast %32 : vector<1x128x384xbf16> to vector<128x384xbf16>
    %cst_28 = arith.constant dense<0.000000e+00> : vector<8x384xf32>
    %34 = tpu.matmul %30, %33, %cst_28 {dimension_numbers = #tpu.dot_dimension_numbers<[1], [0], [0], [1], [0, 0, 1, 1], [], []>} : vector<8x128xbf16>, vector<128x384xbf16>, vector<8x384xf32> -> vector<8x384xf32>
    %35 = vector.extract_strided_slice %31 {offsets = [0, 0], sizes = [8, 256], strides = [1, 1]} : vector<8x384xf32> to vector<8x256xf32>
    %36 = vector.extract_strided_slice %34 {offsets = [0, 0], sizes = [8, 256], strides = [1, 1]} : vector<8x384xf32> to vector<8x256xf32>
    %37 = arith.addf %35, %36 : vector<8x256xf32>
    %38 = vector.extract_strided_slice %31 {offsets = [0, 256], sizes = [8, 128], strides = [1, 1]} : vector<8x384xf32> to vector<8x128xf32>
    %39 = vector.extract_strided_slice %34 {offsets = [0, 256], sizes = [8, 128], strides = [1, 1]} : vector<8x384xf32> to vector<8x128xf32>
    %40 = arith.addf %39, %20 : vector<8x128xf32>
    %41 = vector.extract_strided_slice %37 {offsets = [0, 0], sizes = [8, 128], strides = [1, 1]} : vector<8x256xf32> to vector<8x128xf32>
    %42 = arith.negf %41 : vector<8x128xf32>
    %43 = math.exp %42 : vector<8x128xf32>
    %cst_29 = arith.constant 1.000000e+00 : f32
    %44 = vector.broadcast %cst_29 : f32 to vector<8x128xf32>
    %45 = arith.addf %44, %43 : vector<8x128xf32>
    %46 = arith.divf %44, %45 : vector<8x128xf32>
    %47 = vector.extract_strided_slice %37 {offsets = [0, 128], sizes = [8, 128], strides = [1, 1]} : vector<8x256xf32> to vector<8x128xf32>
    %48 = arith.negf %47 : vector<8x128xf32>
    %49 = math.exp %48 : vector<8x128xf32>
    %cst_30 = arith.constant 1.000000e+00 : f32
    %50 = vector.broadcast %cst_30 : f32 to vector<8x128xf32>
    %51 = arith.addf %50, %49 : vector<8x128xf32>
    %52 = arith.divf %50, %51 : vector<8x128xf32>
    %53 = arith.mulf %46, %40 : vector<8x128xf32>
    %54 = arith.addf %38, %53 : vector<8x128xf32>
    %55 = math.tanh %54 : vector<8x128xf32>
    %cst_31 = arith.constant 1.000000e+00 : f32
    %56 = vector.broadcast %cst_31 : f32 to vector<8x128xf32>
    %57 = arith.subf %56, %52 : vector<8x128xf32>
    %58 = arith.mulf %57, %55 : vector<8x128xf32>
    %59 = arith.mulf %52, %29 : vector<8x128xf32>
    %60 = arith.addf %58, %59 : vector<8x128xf32>
    %61 = arith.truncf %60 : vector<8x128xf32> to vector<8x128xbf16>
    %62 = arith.truncf %29 : vector<8x128xf32> to vector<8x128xbf16>
    %c8 = arith.constant 8 : index
    %c0_32 = arith.constant 0 : index
    %63 = vector.load %arg8[%c8, %c0_32] : memref<64x384xf32, #tpu.memory_space<vmem>>, vector<8x384xf32>
    %c0_33 = arith.constant 0 : index
    %c0_34 = arith.constant 0 : index
    %c0_35 = arith.constant 0 : index
    %64 = vector.load %arg2[%c0_33, %c0_34, %c0_35] : memref<3x128x384xbf16, #tpu.memory_space<vmem>>, vector<1x128x384xbf16>
    %65 = vector.shape_cast %64 : vector<1x128x384xbf16> to vector<128x384xbf16>
    %cst_36 = arith.constant dense<0.000000e+00> : vector<8x384xf32>
    %66 = tpu.matmul %61, %65, %cst_36 {dimension_numbers = #tpu.dot_dimension_numbers<[1], [0], [0], [1], [0, 0, 1, 1], [], []>} : vector<8x128xbf16>, vector<128x384xbf16>, vector<8x384xf32> -> vector<8x384xf32>
    %67 = vector.extract_strided_slice %63 {offsets = [0, 0], sizes = [8, 256], strides = [1, 1]} : vector<8x384xf32> to vector<8x256xf32>
    %68 = vector.extract_strided_slice %66 {offsets = [0, 0], sizes = [8, 256], strides = [1, 1]} : vector<8x384xf32> to vector<8x256xf32>
    %69 = arith.addf %67, %68 : vector<8x256xf32>
    %70 = vector.extract_strided_slice %63 {offsets = [0, 256], sizes = [8, 128], strides = [1, 1]} : vector<8x384xf32> to vector<8x128xf32>
    %71 = vector.extract_strided_slice %66 {offsets = [0, 256], sizes = [8, 128], strides = [1, 1]} : vector<8x384xf32> to vector<8x128xf32>
    %72 = arith.addf %71, %20 : vector<8x128xf32>
    %73 = vector.extract_strided_slice %69 {offsets = [0, 0], sizes = [8, 128], strides = [1, 1]} : vector<8x256xf32> to vector<8x128xf32>
    %74 = arith.negf %73 : vector<8x128xf32>
    %75 = math.exp %74 : vector<8x128xf32>
    %cst_37 = arith.constant 1.000000e+00 : f32
    %76 = vector.broadcast %cst_37 : f32 to vector<8x128xf32>
    %77 = arith.addf %76, %75 : vector<8x128xf32>
    %78 = arith.divf %76, %77 : vector<8x128xf32>
    %79 = vector.extract_strided_slice %69 {offsets = [0, 128], sizes = [8, 128], strides = [1, 1]} : vector<8x256xf32> to vector<8x128xf32>
    %80 = arith.negf %79 : vector<8x128xf32>
    %81 = math.exp %80 : vector<8x128xf32>
    %cst_38 = arith.constant 1.000000e+00 : f32
    %82 = vector.broadcast %cst_38 : f32 to vector<8x128xf32>
    %83 = arith.addf %82, %81 : vector<8x128xf32>
    %84 = arith.divf %82, %83 : vector<8x128xf32>
    %85 = arith.mulf %78, %72 : vector<8x128xf32>
    %86 = arith.addf %70, %85 : vector<8x128xf32>
    %87 = math.tanh %86 : vector<8x128xf32>
    %cst_39 = arith.constant 1.000000e+00 : f32
    %88 = vector.broadcast %cst_39 : f32 to vector<8x128xf32>
    %89 = arith.subf %88, %84 : vector<8x128xf32>
    %90 = arith.mulf %89, %87 : vector<8x128xf32>
    %91 = arith.mulf %84, %60 : vector<8x128xf32>
    %92 = arith.addf %90, %91 : vector<8x128xf32>
    %c1_40 = arith.constant 1 : index
    %c0_41 = arith.constant 0 : index
    %c0_42 = arith.constant 0 : index
    %93 = vector.load %arg1[%c1_40, %c0_41, %c0_42] : memref<3x128x384xbf16, #tpu.memory_space<vmem>>, vector<1x128x384xbf16>
    %94 = vector.shape_cast %93 : vector<1x128x384xbf16> to vector<128x384xbf16>
    %cst_43 = arith.constant dense<0.000000e+00> : vector<8x384xf32>
    %95 = tpu.matmul %61, %94, %cst_43 {dimension_numbers = #tpu.dot_dimension_numbers<[1], [0], [0], [1], [0, 0, 1, 1], [], []>} : vector<8x128xbf16>, vector<128x384xbf16>, vector<8x384xf32> -> vector<8x384xf32>
    %96 = arith.addf %95, %12 : vector<8x384xf32>
    %c1_44 = arith.constant 1 : index
    %c0_45 = arith.constant 0 : index
    %c0_46 = arith.constant 0 : index
    %97 = vector.load %arg2[%c1_44, %c0_45, %c0_46] : memref<3x128x384xbf16, #tpu.memory_space<vmem>>, vector<1x128x384xbf16>
    %98 = vector.shape_cast %97 : vector<1x128x384xbf16> to vector<128x384xbf16>
    %cst_47 = arith.constant dense<0.000000e+00> : vector<8x384xf32>
    %99 = tpu.matmul %62, %98, %cst_47 {dimension_numbers = #tpu.dot_dimension_numbers<[1], [0], [0], [1], [0, 0, 1, 1], [], []>} : vector<8x128xbf16>, vector<128x384xbf16>, vector<8x384xf32> -> vector<8x384xf32>
    %100 = vector.extract_strided_slice %96 {offsets = [0, 0], sizes = [8, 256], strides = [1, 1]} : vector<8x384xf32> to vector<8x256xf32>
    %101 = vector.extract_strided_slice %99 {offsets = [0, 0], sizes = [8, 256], strides = [1, 1]} : vector<8x384xf32> to vector<8x256xf32>
    %102 = arith.addf %100, %101 : vector<8x256xf32>
    %103 = vector.extract_strided_slice %96 {offsets = [0, 256], sizes = [8, 128], strides = [1, 1]} : vector<8x384xf32> to vector<8x128xf32>
    %104 = vector.extract_strided_slice %99 {offsets = [0, 256], sizes = [8, 128], strides = [1, 1]} : vector<8x384xf32> to vector<8x128xf32>
    %105 = arith.addf %104, %24 : vector<8x128xf32>
    %106 = vector.extract_strided_slice %102 {offsets = [0, 0], sizes = [8, 128], strides = [1, 1]} : vector<8x256xf32> to vector<8x128xf32>
    %107 = arith.negf %106 : vector<8x128xf32>
    %108 = math.exp %107 : vector<8x128xf32>
    %cst_48 = arith.constant 1.000000e+00 : f32
    %109 = vector.broadcast %cst_48 : f32 to vector<8x128xf32>
    %110 = arith.addf %109, %108 : vector<8x128xf32>
    %111 = arith.divf %109, %110 : vector<8x128xf32>
    %112 = vector.extract_strided_slice %102 {offsets = [0, 128], sizes = [8, 128], strides = [1, 1]} : vector<8x256xf32> to vector<8x128xf32>
    %113 = arith.negf %112 : vector<8x128xf32>
    %114 = math.exp %113 : vector<8x128xf32>
    %cst_49 = arith.constant 1.000000e+00 : f32
    %115 = vector.broadcast %cst_49 : f32 to vector<8x128xf32>
    %116 = arith.addf %115, %114 : vector<8x128xf32>
    %117 = arith.divf %115, %116 : vector<8x128xf32>
    %118 = arith.mulf %111, %105 : vector<8x128xf32>
    %119 = arith.addf %103, %118 : vector<8x128xf32>
    %120 = math.tanh %119 : vector<8x128xf32>
    %cst_50 = arith.constant 1.000000e+00 : f32
    %121 = vector.broadcast %cst_50 : f32 to vector<8x128xf32>
    %122 = arith.subf %121, %117 : vector<8x128xf32>
    %123 = arith.mulf %122, %120 : vector<8x128xf32>
    %124 = arith.mulf %117, %29 : vector<8x128xf32>
    %125 = arith.addf %123, %124 : vector<8x128xf32>
    %126 = arith.truncf %92 : vector<8x128xf32> to vector<8x128xbf16>
    %127 = arith.truncf %125 : vector<8x128xf32> to vector<8x128xbf16>
    %128 = arith.truncf %29 : vector<8x128xf32> to vector<8x128xbf16>
    %c16 = arith.constant 16 : index
    %c0_51 = arith.constant 0 : index
    %129 = vector.load %arg8[%c16, %c0_51] : memref<64x384xf32, #tpu.memory_space<vmem>>, vector<8x384xf32>
    %c0_52 = arith.constant 0 : index
    %c0_53 = arith.constant 0 : index
    %c0_54 = arith.constant 0 : index
    %130 = vector.load %arg2[%c0_52, %c0_53, %c0_54] : memref<3x128x384xbf16, #tpu.memory_space<vmem>>, vector<1x128x384xbf16>
    %131 = vector.shape_cast %130 : vector<1x128x384xbf16> to vector<128x384xbf16>
    %cst_55 = arith.constant dense<0.000000e+00> : vector<8x384xf32>
    %132 = tpu.matmul %126, %131, %cst_55 {dimension_numbers = #tpu.dot_dimension_numbers<[1], [0], [0], [1], [0, 0, 1, 1], [], []>} : vector<8x128xbf16>, vector<128x384xbf16>, vector<8x384xf32> -> vector<8x384xf32>
    %133 = vector.extract_strided_slice %129 {offsets = [0, 0], sizes = [8, 256], strides = [1, 1]} : vector<8x384xf32> to vector<8x256xf32>
    %134 = vector.extract_strided_slice %132 {offsets = [0, 0], sizes = [8, 256], strides = [1, 1]} : vector<8x384xf32> to vector<8x256xf32>
    %135 = arith.addf %133, %134 : vector<8x256xf32>
    %136 = vector.extract_strided_slice %129 {offsets = [0, 256], sizes = [8, 128], strides = [1, 1]} : vector<8x384xf32> to vector<8x128xf32>
    %137 = vector.extract_strided_slice %132 {offsets = [0, 256], sizes = [8, 128], strides = [1, 1]} : vector<8x384xf32> to vector<8x128xf32>
    %138 = arith.addf %137, %20 : vector<8x128xf32>
    %139 = vector.extract_strided_slice %135 {offsets = [0, 0], sizes = [8, 128], strides = [1, 1]} : vector<8x256xf32> to vector<8x128xf32>
    %140 = arith.negf %139 : vector<8x128xf32>
    %141 = math.exp %140 : vector<8x128xf32>
    %cst_56 = arith.constant 1.000000e+00 : f32
    %142 = vector.broadcast %cst_56 : f32 to vector<8x128xf32>
    %143 = arith.addf %142, %141 : vector<8x128xf32>
    %144 = arith.divf %142, %143 : vector<8x128xf32>
    %145 = vector.extract_strided_slice %135 {offsets = [0, 128], sizes = [8, 128], strides = [1, 1]} : vector<8x256xf32> to vector<8x128xf32>
    %146 = arith.negf %145 : vector<8x128xf32>
    %147 = math.exp %146 : vector<8x128xf32>
    %cst_57 = arith.constant 1.000000e+00 : f32
    %148 = vector.broadcast %cst_57 : f32 to vector<8x128xf32>
    %149 = arith.addf %148, %147 : vector<8x128xf32>
    %150 = arith.divf %148, %149 : vector<8x128xf32>
    %151 = arith.mulf %144, %138 : vector<8x128xf32>
    %152 = arith.addf %136, %151 : vector<8x128xf32>
    %153 = math.tanh %152 : vector<8x128xf32>
    %cst_58 = arith.constant 1.000000e+00 : f32
    %154 = vector.broadcast %cst_58 : f32 to vector<8x128xf32>
    %155 = arith.subf %154, %150 : vector<8x128xf32>
    %156 = arith.mulf %155, %153 : vector<8x128xf32>
    %157 = arith.mulf %150, %92 : vector<8x128xf32>
    %158 = arith.addf %156, %157 : vector<8x128xf32>
    %c1_59 = arith.constant 1 : index
    %c0_60 = arith.constant 0 : index
    %c0_61 = arith.constant 0 : index
    %159 = vector.load %arg1[%c1_59, %c0_60, %c0_61] : memref<3x128x384xbf16, #tpu.memory_space<vmem>>, vector<1x128x384xbf16>
    %160 = vector.shape_cast %159 : vector<1x128x384xbf16> to vector<128x384xbf16>
    %cst_62 = arith.constant dense<0.000000e+00> : vector<8x384xf32>
    %161 = tpu.matmul %126, %160, %cst_62 {dimension_numbers = #tpu.dot_dimension_numbers<[1], [0], [0], [1], [0, 0, 1, 1], [], []>} : vector<8x128xbf16>, vector<128x384xbf16>, vector<8x384xf32> -> vector<8x384xf32>
    %162 = arith.addf %161, %12 : vector<8x384xf32>
    %c1_63 = arith.constant 1 : index
    %c0_64 = arith.constant 0 : index
    %c0_65 = arith.constant 0 : index
    %163 = vector.load %arg2[%c1_63, %c0_64, %c0_65] : memref<3x128x384xbf16, #tpu.memory_space<vmem>>, vector<1x128x384xbf16>
    %164 = vector.shape_cast %163 : vector<1x128x384xbf16> to vector<128x384xbf16>
    %cst_66 = arith.constant dense<0.000000e+00> : vector<8x384xf32>
    %165 = tpu.matmul %127, %164, %cst_66 {dimension_numbers = #tpu.dot_dimension_numbers<[1], [0], [0], [1], [0, 0, 1, 1], [], []>} : vector<8x128xbf16>, vector<128x384xbf16>, vector<8x384xf32> -> vector<8x384xf32>
    %166 = vector.extract_strided_slice %162 {offsets = [0, 0], sizes = [8, 256], strides = [1, 1]} : vector<8x384xf32> to vector<8x256xf32>
    %167 = vector.extract_strided_slice %165 {offsets = [0, 0], sizes = [8, 256], strides = [1, 1]} : vector<8x384xf32> to vector<8x256xf32>
    %168 = arith.addf %166, %167 : vector<8x256xf32>
    %169 = vector.extract_strided_slice %162 {offsets = [0, 256], sizes = [8, 128], strides = [1, 1]} : vector<8x384xf32> to vector<8x128xf32>
    %170 = vector.extract_strided_slice %165 {offsets = [0, 256], sizes = [8, 128], strides = [1, 1]} : vector<8x384xf32> to vector<8x128xf32>
    %171 = arith.addf %170, %24 : vector<8x128xf32>
    %172 = vector.extract_strided_slice %168 {offsets = [0, 0], sizes = [8, 128], strides = [1, 1]} : vector<8x256xf32> to vector<8x128xf32>
    %173 = arith.negf %172 : vector<8x128xf32>
    %174 = math.exp %173 : vector<8x128xf32>
    %cst_67 = arith.constant 1.000000e+00 : f32
    %175 = vector.broadcast %cst_67 : f32 to vector<8x128xf32>
    %176 = arith.addf %175, %174 : vector<8x128xf32>
    %177 = arith.divf %175, %176 : vector<8x128xf32>
    %178 = vector.extract_strided_slice %168 {offsets = [0, 128], sizes = [8, 128], strides = [1, 1]} : vector<8x256xf32> to vector<8x128xf32>
    %179 = arith.negf %178 : vector<8x128xf32>
    %180 = math.exp %179 : vector<8x128xf32>
    %cst_68 = arith.constant 1.000000e+00 : f32
    %181 = vector.broadcast %cst_68 : f32 to vector<8x128xf32>
    %182 = arith.addf %181, %180 : vector<8x128xf32>
    %183 = arith.divf %181, %182 : vector<8x128xf32>
    %184 = arith.mulf %177, %171 : vector<8x128xf32>
    %185 = arith.addf %169, %184 : vector<8x128xf32>
    %186 = math.tanh %185 : vector<8x128xf32>
    %cst_69 = arith.constant 1.000000e+00 : f32
    %187 = vector.broadcast %cst_69 : f32 to vector<8x128xf32>
    %188 = arith.subf %187, %183 : vector<8x128xf32>
    %189 = arith.mulf %188, %186 : vector<8x128xf32>
    %190 = arith.mulf %183, %125 : vector<8x128xf32>
    %191 = arith.addf %189, %190 : vector<8x128xf32>
    %c2_70 = arith.constant 2 : index
    %c0_71 = arith.constant 0 : index
    %c0_72 = arith.constant 0 : index
    %192 = vector.load %arg1[%c2_70, %c0_71, %c0_72] : memref<3x128x384xbf16, #tpu.memory_space<vmem>>, vector<1x128x384xbf16>
    %193 = vector.shape_cast %192 : vector<1x128x384xbf16> to vector<128x384xbf16>
    %cst_73 = arith.constant dense<0.000000e+00> : vector<8x384xf32>
    %194 = tpu.matmul %127, %193, %cst_73 {dimension_numbers = #tpu.dot_dimension_numbers<[1], [0], [0], [1], [0, 0, 1, 1], [], []>} : vector<8x128xbf16>, vector<128x384xbf16>, vector<8x384xf32> -> vector<8x384xf32>
    %195 = arith.addf %194, %16 : vector<8x384xf32>
    %c2_74 = arith.constant 2 : index
    %c0_75 = arith.constant 0 : index
    %c0_76 = arith.constant 0 : index
    %196 = vector.load %arg2[%c2_74, %c0_75, %c0_76] : memref<3x128x384xbf16, #tpu.memory_space<vmem>>, vector<1x128x384xbf16>
    %197 = vector.shape_cast %196 : vector<1x128x384xbf16> to vector<128x384xbf16>
    %cst_77 = arith.constant dense<0.000000e+00> : vector<8x384xf32>
    %198 = tpu.matmul %128, %197, %cst_77 {dimension_numbers = #tpu.dot_dimension_numbers<[1], [0], [0], [1], [0, 0, 1, 1], [], []>} : vector<8x128xbf16>, vector<128x384xbf16>, vector<8x384xf32> -> vector<8x384xf32>
    %199 = vector.extract_strided_slice %195 {offsets = [0, 0], sizes = [8, 256], strides = [1, 1]} : vector<8x384xf32> to vector<8x256xf32>
    %200 = vector.extract_strided_slice %198 {offsets = [0, 0], sizes = [8, 256], strides = [1, 1]} : vector<8x384xf32> to vector<8x256xf32>
    %201 = arith.addf %199, %200 : vector<8x256xf32>
    %202 = vector.extract_strided_slice %195 {offsets = [0, 256], sizes = [8, 128], strides = [1, 1]} : vector<8x384xf32> to vector<8x128xf32>
    %203 = vector.extract_strided_slice %198 {offsets = [0, 256], sizes = [8, 128], strides = [1, 1]} : vector<8x384xf32> to vector<8x128xf32>
    %204 = arith.addf %203, %28 : vector<8x128xf32>
    %205 = vector.extract_strided_slice %201 {offsets = [0, 0], sizes = [8, 128], strides = [1, 1]} : vector<8x256xf32> to vector<8x128xf32>
    %206 = arith.negf %205 : vector<8x128xf32>
    %207 = math.exp %206 : vector<8x128xf32>
    %cst_78 = arith.constant 1.000000e+00 : f32
    %208 = vector.broadcast %cst_78 : f32 to vector<8x128xf32>
    %209 = arith.addf %208, %207 : vector<8x128xf32>
    %210 = arith.divf %208, %209 : vector<8x128xf32>
    %211 = vector.extract_strided_slice %201 {offsets = [0, 128], sizes = [8, 128], strides = [1, 1]} : vector<8x256xf32> to vector<8x128xf32>
    %212 = arith.negf %211 : vector<8x128xf32>
    %213 = math.exp %212 : vector<8x128xf32>
    %cst_79 = arith.constant 1.000000e+00 : f32
    %214 = vector.broadcast %cst_79 : f32 to vector<8x128xf32>
    %215 = arith.addf %214, %213 : vector<8x128xf32>
    %216 = arith.divf %214, %215 : vector<8x128xf32>
    %217 = arith.mulf %210, %204 : vector<8x128xf32>
    %218 = arith.addf %202, %217 : vector<8x128xf32>
    %219 = math.tanh %218 : vector<8x128xf32>
    %cst_80 = arith.constant 1.000000e+00 : f32
    %220 = vector.broadcast %cst_80 : f32 to vector<8x128xf32>
    %221 = arith.subf %220, %216 : vector<8x128xf32>
    %222 = arith.mulf %221, %219 : vector<8x128xf32>
    %223 = arith.mulf %216, %29 : vector<8x128xf32>
    %224 = arith.addf %222, %223 : vector<8x128xf32>
    %225 = arith.truncf %158 : vector<8x128xf32> to vector<8x128xbf16>
    %226 = arith.truncf %191 : vector<8x128xf32> to vector<8x128xbf16>
    %227 = arith.truncf %224 : vector<8x128xf32> to vector<8x128xbf16>
    %c24 = arith.constant 24 : index
    %c0_81 = arith.constant 0 : index
    %228 = vector.load %arg8[%c24, %c0_81] : memref<64x384xf32, #tpu.memory_space<vmem>>, vector<8x384xf32>
    %c0_82 = arith.constant 0 : index
    %c0_83 = arith.constant 0 : index
    %c0_84 = arith.constant 0 : index
    %229 = vector.load %arg2[%c0_82, %c0_83, %c0_84] : memref<3x128x384xbf16, #tpu.memory_space<vmem>>, vector<1x128x384xbf16>
    %230 = vector.shape_cast %229 : vector<1x128x384xbf16> to vector<128x384xbf16>
    %cst_85 = arith.constant dense<0.000000e+00> : vector<8x384xf32>
    %231 = tpu.matmul %225, %230, %cst_85 {dimension_numbers = #tpu.dot_dimension_numbers<[1], [0], [0], [1], [0, 0, 1, 1], [], []>} : vector<8x128xbf16>, vector<128x384xbf16>, vector<8x384xf32> -> vector<8x384xf32>
    %232 = vector.extract_strided_slice %228 {offsets = [0, 0], sizes = [8, 256], strides = [1, 1]} : vector<8x384xf32> to vector<8x256xf32>
    %233 = vector.extract_strided_slice %231 {offsets = [0, 0], sizes = [8, 256], strides = [1, 1]} : vector<8x384xf32> to vector<8x256xf32>
    %234 = arith.addf %232, %233 : vector<8x256xf32>
    %235 = vector.extract_strided_slice %228 {offsets = [0, 256], sizes = [8, 128], strides = [1, 1]} : vector<8x384xf32> to vector<8x128xf32>
    %236 = vector.extract_strided_slice %231 {offsets = [0, 256], sizes = [8, 128], strides = [1, 1]} : vector<8x384xf32> to vector<8x128xf32>
    %237 = arith.addf %236, %20 : vector<8x128xf32>
    %238 = vector.extract_strided_slice %234 {offsets = [0, 0], sizes = [8, 128], strides = [1, 1]} : vector<8x256xf32> to vector<8x128xf32>
    %239 = arith.negf %238 : vector<8x128xf32>
    %240 = math.exp %239 : vector<8x128xf32>
    %cst_86 = arith.constant 1.000000e+00 : f32
    %241 = vector.broadcast %cst_86 : f32 to vector<8x128xf32>
    %242 = arith.addf %241, %240 : vector<8x128xf32>
    %243 = arith.divf %241, %242 : vector<8x128xf32>
    %244 = vector.extract_strided_slice %234 {offsets = [0, 128], sizes = [8, 128], strides = [1, 1]} : vector<8x256xf32> to vector<8x128xf32>
    %245 = arith.negf %244 : vector<8x128xf32>
    %246 = math.exp %245 : vector<8x128xf32>
    %cst_87 = arith.constant 1.000000e+00 : f32
    %247 = vector.broadcast %cst_87 : f32 to vector<8x128xf32>
    %248 = arith.addf %247, %246 : vector<8x128xf32>
    %249 = arith.divf %247, %248 : vector<8x128xf32>
    %250 = arith.mulf %243, %237 : vector<8x128xf32>
    %251 = arith.addf %235, %250 : vector<8x128xf32>
    %252 = math.tanh %251 : vector<8x128xf32>
    %cst_88 = arith.constant 1.000000e+00 : f32
    %253 = vector.broadcast %cst_88 : f32 to vector<8x128xf32>
    %254 = arith.subf %253, %249 : vector<8x128xf32>
    %255 = arith.mulf %254, %252 : vector<8x128xf32>
    %256 = arith.mulf %249, %158 : vector<8x128xf32>
    %257 = arith.addf %255, %256 : vector<8x128xf32>
    %c1_89 = arith.constant 1 : index
    %c0_90 = arith.constant 0 : index
    %c0_91 = arith.constant 0 : index
    %258 = vector.load %arg1[%c1_89, %c0_90, %c0_91] : memref<3x128x384xbf16, #tpu.memory_space<vmem>>, vector<1x128x384xbf16>
    %259 = vector.shape_cast %258 : vector<1x128x384xbf16> to vector<128x384xbf16>
    %cst_92 = arith.constant dense<0.000000e+00> : vector<8x384xf32>
    %260 = tpu.matmul %225, %259, %cst_92 {dimension_numbers = #tpu.dot_dimension_numbers<[1], [0], [0], [1], [0, 0, 1, 1], [], []>} : vector<8x128xbf16>, vector<128x384xbf16>, vector<8x384xf32> -> vector<8x384xf32>
    %261 = arith.addf %260, %12 : vector<8x384xf32>
    %c1_93 = arith.constant 1 : index
    %c0_94 = arith.constant 0 : index
    %c0_95 = arith.constant 0 : index
    %262 = vector.load %arg2[%c1_93, %c0_94, %c0_95] : memref<3x128x384xbf16, #tpu.memory_space<vmem>>, vector<1x128x384xbf16>
    %263 = vector.shape_cast %262 : vector<1x128x384xbf16> to vector<128x384xbf16>
    %cst_96 = arith.constant dense<0.000000e+00> : vector<8x384xf32>
    %264 = tpu.matmul %226, %263, %cst_96 {dimension_numbers = #tpu.dot_dimension_numbers<[1], [0], [0], [1], [0, 0, 1, 1], [], []>} : vector<8x128xbf16>, vector<128x384xbf16>, vector<8x384xf32> -> vector<8x384xf32>
    %265 = vector.extract_strided_slice %261 {offsets = [0, 0], sizes = [8, 256], strides = [1, 1]} : vector<8x384xf32> to vector<8x256xf32>
    %266 = vector.extract_strided_slice %264 {offsets = [0, 0], sizes = [8, 256], strides = [1, 1]} : vector<8x384xf32> to vector<8x256xf32>
    %267 = arith.addf %265, %266 : vector<8x256xf32>
    %268 = vector.extract_strided_slice %261 {offsets = [0, 256], sizes = [8, 128], strides = [1, 1]} : vector<8x384xf32> to vector<8x128xf32>
    %269 = vector.extract_strided_slice %264 {offsets = [0, 256], sizes = [8, 128], strides = [1, 1]} : vector<8x384xf32> to vector<8x128xf32>
    %270 = arith.addf %269, %24 : vector<8x128xf32>
    %271 = vector.extract_strided_slice %267 {offsets = [0, 0], sizes = [8, 128], strides = [1, 1]} : vector<8x256xf32> to vector<8x128xf32>
    %272 = arith.negf %271 : vector<8x128xf32>
    %273 = math.exp %272 : vector<8x128xf32>
    %cst_97 = arith.constant 1.000000e+00 : f32
    %274 = vector.broadcast %cst_97 : f32 to vector<8x128xf32>
    %275 = arith.addf %274, %273 : vector<8x128xf32>
    %276 = arith.divf %274, %275 : vector<8x128xf32>
    %277 = vector.extract_strided_slice %267 {offsets = [0, 128], sizes = [8, 128], strides = [1, 1]} : vector<8x256xf32> to vector<8x128xf32>
    %278 = arith.negf %277 : vector<8x128xf32>
    %279 = math.exp %278 : vector<8x128xf32>
    %cst_98 = arith.constant 1.000000e+00 : f32
    %280 = vector.broadcast %cst_98 : f32 to vector<8x128xf32>
    %281 = arith.addf %280, %279 : vector<8x128xf32>
    %282 = arith.divf %280, %281 : vector<8x128xf32>
    %283 = arith.mulf %276, %270 : vector<8x128xf32>
    %284 = arith.addf %268, %283 : vector<8x128xf32>
    %285 = math.tanh %284 : vector<8x128xf32>
    %cst_99 = arith.constant 1.000000e+00 : f32
    %286 = vector.broadcast %cst_99 : f32 to vector<8x128xf32>
    %287 = arith.subf %286, %282 : vector<8x128xf32>
    %288 = arith.mulf %287, %285 : vector<8x128xf32>
    %289 = arith.mulf %282, %191 : vector<8x128xf32>
    %290 = arith.addf %288, %289 : vector<8x128xf32>
    %c2_100 = arith.constant 2 : index
    %c0_101 = arith.constant 0 : index
    %c0_102 = arith.constant 0 : index
    %291 = vector.load %arg1[%c2_100, %c0_101, %c0_102] : memref<3x128x384xbf16, #tpu.memory_space<vmem>>, vector<1x128x384xbf16>
    %292 = vector.shape_cast %291 : vector<1x128x384xbf16> to vector<128x384xbf16>
    %cst_103 = arith.constant dense<0.000000e+00> : vector<8x384xf32>
    %293 = tpu.matmul %226, %292, %cst_103 {dimension_numbers = #tpu.dot_dimension_numbers<[1], [0], [0], [1], [0, 0, 1, 1], [], []>} : vector<8x128xbf16>, vector<128x384xbf16>, vector<8x384xf32> -> vector<8x384xf32>
    %294 = arith.addf %293, %16 : vector<8x384xf32>
    %c2_104 = arith.constant 2 : index
    %c0_105 = arith.constant 0 : index
    %c0_106 = arith.constant 0 : index
    %295 = vector.load %arg2[%c2_104, %c0_105, %c0_106] : memref<3x128x384xbf16, #tpu.memory_space<vmem>>, vector<1x128x384xbf16>
    %296 = vector.shape_cast %295 : vector<1x128x384xbf16> to vector<128x384xbf16>
    %cst_107 = arith.constant dense<0.000000e+00> : vector<8x384xf32>
    %297 = tpu.matmul %227, %296, %cst_107 {dimension_numbers = #tpu.dot_dimension_numbers<[1], [0], [0], [1], [0, 0, 1, 1], [], []>} : vector<8x128xbf16>, vector<128x384xbf16>, vector<8x384xf32> -> vector<8x384xf32>
    %298 = vector.extract_strided_slice %294 {offsets = [0, 0], sizes = [8, 256], strides = [1, 1]} : vector<8x384xf32> to vector<8x256xf32>
    %299 = vector.extract_strided_slice %297 {offsets = [0, 0], sizes = [8, 256], strides = [1, 1]} : vector<8x384xf32> to vector<8x256xf32>
    %300 = arith.addf %298, %299 : vector<8x256xf32>
    %301 = vector.extract_strided_slice %294 {offsets = [0, 256], sizes = [8, 128], strides = [1, 1]} : vector<8x384xf32> to vector<8x128xf32>
    %302 = vector.extract_strided_slice %297 {offsets = [0, 256], sizes = [8, 128], strides = [1, 1]} : vector<8x384xf32> to vector<8x128xf32>
    %303 = arith.addf %302, %28 : vector<8x128xf32>
    %304 = vector.extract_strided_slice %300 {offsets = [0, 0], sizes = [8, 128], strides = [1, 1]} : vector<8x256xf32> to vector<8x128xf32>
    %305 = arith.negf %304 : vector<8x128xf32>
    %306 = math.exp %305 : vector<8x128xf32>
    %cst_108 = arith.constant 1.000000e+00 : f32
    %307 = vector.broadcast %cst_108 : f32 to vector<8x128xf32>
    %308 = arith.addf %307, %306 : vector<8x128xf32>
    %309 = arith.divf %307, %308 : vector<8x128xf32>
    %310 = vector.extract_strided_slice %300 {offsets = [0, 128], sizes = [8, 128], strides = [1, 1]} : vector<8x256xf32> to vector<8x128xf32>
    %311 = arith.negf %310 : vector<8x128xf32>
    %312 = math.exp %311 : vector<8x128xf32>
    %cst_109 = arith.constant 1.000000e+00 : f32
    %313 = vector.broadcast %cst_109 : f32 to vector<8x128xf32>
    %314 = arith.addf %313, %312 : vector<8x128xf32>
    %315 = arith.divf %313, %314 : vector<8x128xf32>
    %316 = arith.mulf %309, %303 : vector<8x128xf32>
    %317 = arith.addf %301, %316 : vector<8x128xf32>
    %318 = math.tanh %317 : vector<8x128xf32>
    %cst_110 = arith.constant 1.000000e+00 : f32
    %319 = vector.broadcast %cst_110 : f32 to vector<8x128xf32>
    %320 = arith.subf %319, %315 : vector<8x128xf32>
    %321 = arith.mulf %320, %318 : vector<8x128xf32>
    %322 = arith.mulf %315, %224 : vector<8x128xf32>
    %323 = arith.addf %321, %322 : vector<8x128xf32>
    %324 = arith.truncf %257 : vector<8x128xf32> to vector<8x128xbf16>
    %325 = arith.truncf %290 : vector<8x128xf32> to vector<8x128xbf16>
    %326 = arith.truncf %323 : vector<8x128xf32> to vector<8x128xbf16>
    %c32 = arith.constant 32 : index
    %c0_111 = arith.constant 0 : index
    %327 = vector.load %arg8[%c32, %c0_111] : memref<64x384xf32, #tpu.memory_space<vmem>>, vector<8x384xf32>
    %c0_112 = arith.constant 0 : index
    %c0_113 = arith.constant 0 : index
    %c0_114 = arith.constant 0 : index
    %328 = vector.load %arg2[%c0_112, %c0_113, %c0_114] : memref<3x128x384xbf16, #tpu.memory_space<vmem>>, vector<1x128x384xbf16>
    %329 = vector.shape_cast %328 : vector<1x128x384xbf16> to vector<128x384xbf16>
    %cst_115 = arith.constant dense<0.000000e+00> : vector<8x384xf32>
    %330 = tpu.matmul %324, %329, %cst_115 {dimension_numbers = #tpu.dot_dimension_numbers<[1], [0], [0], [1], [0, 0, 1, 1], [], []>} : vector<8x128xbf16>, vector<128x384xbf16>, vector<8x384xf32> -> vector<8x384xf32>
    %331 = vector.extract_strided_slice %327 {offsets = [0, 0], sizes = [8, 256], strides = [1, 1]} : vector<8x384xf32> to vector<8x256xf32>
    %332 = vector.extract_strided_slice %330 {offsets = [0, 0], sizes = [8, 256], strides = [1, 1]} : vector<8x384xf32> to vector<8x256xf32>
    %333 = arith.addf %331, %332 : vector<8x256xf32>
    %334 = vector.extract_strided_slice %327 {offsets = [0, 256], sizes = [8, 128], strides = [1, 1]} : vector<8x384xf32> to vector<8x128xf32>
    %335 = vector.extract_strided_slice %330 {offsets = [0, 256], sizes = [8, 128], strides = [1, 1]} : vector<8x384xf32> to vector<8x128xf32>
    %336 = arith.addf %335, %20 : vector<8x128xf32>
    %337 = vector.extract_strided_slice %333 {offsets = [0, 0], sizes = [8, 128], strides = [1, 1]} : vector<8x256xf32> to vector<8x128xf32>
    %338 = arith.negf %337 : vector<8x128xf32>
    %339 = math.exp %338 : vector<8x128xf32>
    %cst_116 = arith.constant 1.000000e+00 : f32
    %340 = vector.broadcast %cst_116 : f32 to vector<8x128xf32>
    %341 = arith.addf %340, %339 : vector<8x128xf32>
    %342 = arith.divf %340, %341 : vector<8x128xf32>
    %343 = vector.extract_strided_slice %333 {offsets = [0, 128], sizes = [8, 128], strides = [1, 1]} : vector<8x256xf32> to vector<8x128xf32>
    %344 = arith.negf %343 : vector<8x128xf32>
    %345 = math.exp %344 : vector<8x128xf32>
    %cst_117 = arith.constant 1.000000e+00 : f32
    %346 = vector.broadcast %cst_117 : f32 to vector<8x128xf32>
    %347 = arith.addf %346, %345 : vector<8x128xf32>
    %348 = arith.divf %346, %347 : vector<8x128xf32>
    %349 = arith.mulf %342, %336 : vector<8x128xf32>
    %350 = arith.addf %334, %349 : vector<8x128xf32>
    %351 = math.tanh %350 : vector<8x128xf32>
    %cst_118 = arith.constant 1.000000e+00 : f32
    %352 = vector.broadcast %cst_118 : f32 to vector<8x128xf32>
    %353 = arith.subf %352, %348 : vector<8x128xf32>
    %354 = arith.mulf %353, %351 : vector<8x128xf32>
    %355 = arith.mulf %348, %257 : vector<8x128xf32>
    %356 = arith.addf %354, %355 : vector<8x128xf32>
    %c1_119 = arith.constant 1 : index
    %c0_120 = arith.constant 0 : index
    %c0_121 = arith.constant 0 : index
    %357 = vector.load %arg1[%c1_119, %c0_120, %c0_121] : memref<3x128x384xbf16, #tpu.memory_space<vmem>>, vector<1x128x384xbf16>
    %358 = vector.shape_cast %357 : vector<1x128x384xbf16> to vector<128x384xbf16>
    %cst_122 = arith.constant dense<0.000000e+00> : vector<8x384xf32>
    %359 = tpu.matmul %324, %358, %cst_122 {dimension_numbers = #tpu.dot_dimension_numbers<[1], [0], [0], [1], [0, 0, 1, 1], [], []>} : vector<8x128xbf16>, vector<128x384xbf16>, vector<8x384xf32> -> vector<8x384xf32>
    %360 = arith.addf %359, %12 : vector<8x384xf32>
    %c1_123 = arith.constant 1 : index
    %c0_124 = arith.constant 0 : index
    %c0_125 = arith.constant 0 : index
    %361 = vector.load %arg2[%c1_123, %c0_124, %c0_125] : memref<3x128x384xbf16, #tpu.memory_space<vmem>>, vector<1x128x384xbf16>
    %362 = vector.shape_cast %361 : vector<1x128x384xbf16> to vector<128x384xbf16>
    %cst_126 = arith.constant dense<0.000000e+00> : vector<8x384xf32>
    %363 = tpu.matmul %325, %362, %cst_126 {dimension_numbers = #tpu.dot_dimension_numbers<[1], [0], [0], [1], [0, 0, 1, 1], [], []>} : vector<8x128xbf16>, vector<128x384xbf16>, vector<8x384xf32> -> vector<8x384xf32>
    %364 = vector.extract_strided_slice %360 {offsets = [0, 0], sizes = [8, 256], strides = [1, 1]} : vector<8x384xf32> to vector<8x256xf32>
    %365 = vector.extract_strided_slice %363 {offsets = [0, 0], sizes = [8, 256], strides = [1, 1]} : vector<8x384xf32> to vector<8x256xf32>
    %366 = arith.addf %364, %365 : vector<8x256xf32>
    %367 = vector.extract_strided_slice %360 {offsets = [0, 256], sizes = [8, 128], strides = [1, 1]} : vector<8x384xf32> to vector<8x128xf32>
    %368 = vector.extract_strided_slice %363 {offsets = [0, 256], sizes = [8, 128], strides = [1, 1]} : vector<8x384xf32> to vector<8x128xf32>
    %369 = arith.addf %368, %24 : vector<8x128xf32>
    %370 = vector.extract_strided_slice %366 {offsets = [0, 0], sizes = [8, 128], strides = [1, 1]} : vector<8x256xf32> to vector<8x128xf32>
    %371 = arith.negf %370 : vector<8x128xf32>
    %372 = math.exp %371 : vector<8x128xf32>
    %cst_127 = arith.constant 1.000000e+00 : f32
    %373 = vector.broadcast %cst_127 : f32 to vector<8x128xf32>
    %374 = arith.addf %373, %372 : vector<8x128xf32>
    %375 = arith.divf %373, %374 : vector<8x128xf32>
    %376 = vector.extract_strided_slice %366 {offsets = [0, 128], sizes = [8, 128], strides = [1, 1]} : vector<8x256xf32> to vector<8x128xf32>
    %377 = arith.negf %376 : vector<8x128xf32>
    %378 = math.exp %377 : vector<8x128xf32>
    %cst_128 = arith.constant 1.000000e+00 : f32
    %379 = vector.broadcast %cst_128 : f32 to vector<8x128xf32>
    %380 = arith.addf %379, %378 : vector<8x128xf32>
    %381 = arith.divf %379, %380 : vector<8x128xf32>
    %382 = arith.mulf %375, %369 : vector<8x128xf32>
    %383 = arith.addf %367, %382 : vector<8x128xf32>
    %384 = math.tanh %383 : vector<8x128xf32>
    %cst_129 = arith.constant 1.000000e+00 : f32
    %385 = vector.broadcast %cst_129 : f32 to vector<8x128xf32>
    %386 = arith.subf %385, %381 : vector<8x128xf32>
    %387 = arith.mulf %386, %384 : vector<8x128xf32>
    %388 = arith.mulf %381, %290 : vector<8x128xf32>
    %389 = arith.addf %387, %388 : vector<8x128xf32>
    %c2_130 = arith.constant 2 : index
    %c0_131 = arith.constant 0 : index
    %c0_132 = arith.constant 0 : index
    %390 = vector.load %arg1[%c2_130, %c0_131, %c0_132] : memref<3x128x384xbf16, #tpu.memory_space<vmem>>, vector<1x128x384xbf16>
    %391 = vector.shape_cast %390 : vector<1x128x384xbf16> to vector<128x384xbf16>
    %cst_133 = arith.constant dense<0.000000e+00> : vector<8x384xf32>
    %392 = tpu.matmul %325, %391, %cst_133 {dimension_numbers = #tpu.dot_dimension_numbers<[1], [0], [0], [1], [0, 0, 1, 1], [], []>} : vector<8x128xbf16>, vector<128x384xbf16>, vector<8x384xf32> -> vector<8x384xf32>
    %393 = arith.addf %392, %16 : vector<8x384xf32>
    %c2_134 = arith.constant 2 : index
    %c0_135 = arith.constant 0 : index
    %c0_136 = arith.constant 0 : index
    %394 = vector.load %arg2[%c2_134, %c0_135, %c0_136] : memref<3x128x384xbf16, #tpu.memory_space<vmem>>, vector<1x128x384xbf16>
    %395 = vector.shape_cast %394 : vector<1x128x384xbf16> to vector<128x384xbf16>
    %cst_137 = arith.constant dense<0.000000e+00> : vector<8x384xf32>
    %396 = tpu.matmul %326, %395, %cst_137 {dimension_numbers = #tpu.dot_dimension_numbers<[1], [0], [0], [1], [0, 0, 1, 1], [], []>} : vector<8x128xbf16>, vector<128x384xbf16>, vector<8x384xf32> -> vector<8x384xf32>
    %397 = vector.extract_strided_slice %393 {offsets = [0, 0], sizes = [8, 256], strides = [1, 1]} : vector<8x384xf32> to vector<8x256xf32>
    %398 = vector.extract_strided_slice %396 {offsets = [0, 0], sizes = [8, 256], strides = [1, 1]} : vector<8x384xf32> to vector<8x256xf32>
    %399 = arith.addf %397, %398 : vector<8x256xf32>
    %400 = vector.extract_strided_slice %393 {offsets = [0, 256], sizes = [8, 128], strides = [1, 1]} : vector<8x384xf32> to vector<8x128xf32>
    %401 = vector.extract_strided_slice %396 {offsets = [0, 256], sizes = [8, 128], strides = [1, 1]} : vector<8x384xf32> to vector<8x128xf32>
    %402 = arith.addf %401, %28 : vector<8x128xf32>
    %403 = vector.extract_strided_slice %399 {offsets = [0, 0], sizes = [8, 128], strides = [1, 1]} : vector<8x256xf32> to vector<8x128xf32>
    %404 = arith.negf %403 : vector<8x128xf32>
    %405 = math.exp %404 : vector<8x128xf32>
    %cst_138 = arith.constant 1.000000e+00 : f32
    %406 = vector.broadcast %cst_138 : f32 to vector<8x128xf32>
    %407 = arith.addf %406, %405 : vector<8x128xf32>
    %408 = arith.divf %406, %407 : vector<8x128xf32>
    %409 = vector.extract_strided_slice %399 {offsets = [0, 128], sizes = [8, 128], strides = [1, 1]} : vector<8x256xf32> to vector<8x128xf32>
    %410 = arith.negf %409 : vector<8x128xf32>
    %411 = math.exp %410 : vector<8x128xf32>
    %cst_139 = arith.constant 1.000000e+00 : f32
    %412 = vector.broadcast %cst_139 : f32 to vector<8x128xf32>
    %413 = arith.addf %412, %411 : vector<8x128xf32>
    %414 = arith.divf %412, %413 : vector<8x128xf32>
    %415 = arith.mulf %408, %402 : vector<8x128xf32>
    %416 = arith.addf %400, %415 : vector<8x128xf32>
    %417 = math.tanh %416 : vector<8x128xf32>
    %cst_140 = arith.constant 1.000000e+00 : f32
    %418 = vector.broadcast %cst_140 : f32 to vector<8x128xf32>
    %419 = arith.subf %418, %414 : vector<8x128xf32>
    %420 = arith.mulf %419, %417 : vector<8x128xf32>
    %421 = arith.mulf %414, %323 : vector<8x128xf32>
    %422 = arith.addf %420, %421 : vector<8x128xf32>
    %423 = arith.truncf %356 : vector<8x128xf32> to vector<8x128xbf16>
    %424 = arith.truncf %389 : vector<8x128xf32> to vector<8x128xbf16>
    %425 = arith.truncf %422 : vector<8x128xf32> to vector<8x128xbf16>
    %c40 = arith.constant 40 : index
    %c0_141 = arith.constant 0 : index
    %426 = vector.load %arg8[%c40, %c0_141] : memref<64x384xf32, #tpu.memory_space<vmem>>, vector<8x384xf32>
    %c0_142 = arith.constant 0 : index
    %c0_143 = arith.constant 0 : index
    %c0_144 = arith.constant 0 : index
    %427 = vector.load %arg2[%c0_142, %c0_143, %c0_144] : memref<3x128x384xbf16, #tpu.memory_space<vmem>>, vector<1x128x384xbf16>
    %428 = vector.shape_cast %427 : vector<1x128x384xbf16> to vector<128x384xbf16>
    %cst_145 = arith.constant dense<0.000000e+00> : vector<8x384xf32>
    %429 = tpu.matmul %423, %428, %cst_145 {dimension_numbers = #tpu.dot_dimension_numbers<[1], [0], [0], [1], [0, 0, 1, 1], [], []>} : vector<8x128xbf16>, vector<128x384xbf16>, vector<8x384xf32> -> vector<8x384xf32>
    %430 = vector.extract_strided_slice %426 {offsets = [0, 0], sizes = [8, 256], strides = [1, 1]} : vector<8x384xf32> to vector<8x256xf32>
    %431 = vector.extract_strided_slice %429 {offsets = [0, 0], sizes = [8, 256], strides = [1, 1]} : vector<8x384xf32> to vector<8x256xf32>
    %432 = arith.addf %430, %431 : vector<8x256xf32>
    %433 = vector.extract_strided_slice %426 {offsets = [0, 256], sizes = [8, 128], strides = [1, 1]} : vector<8x384xf32> to vector<8x128xf32>
    %434 = vector.extract_strided_slice %429 {offsets = [0, 256], sizes = [8, 128], strides = [1, 1]} : vector<8x384xf32> to vector<8x128xf32>
    %435 = arith.addf %434, %20 : vector<8x128xf32>
    %436 = vector.extract_strided_slice %432 {offsets = [0, 0], sizes = [8, 128], strides = [1, 1]} : vector<8x256xf32> to vector<8x128xf32>
    %437 = arith.negf %436 : vector<8x128xf32>
    %438 = math.exp %437 : vector<8x128xf32>
    %cst_146 = arith.constant 1.000000e+00 : f32
    %439 = vector.broadcast %cst_146 : f32 to vector<8x128xf32>
    %440 = arith.addf %439, %438 : vector<8x128xf32>
    %441 = arith.divf %439, %440 : vector<8x128xf32>
    %442 = vector.extract_strided_slice %432 {offsets = [0, 128], sizes = [8, 128], strides = [1, 1]} : vector<8x256xf32> to vector<8x128xf32>
    %443 = arith.negf %442 : vector<8x128xf32>
    %444 = math.exp %443 : vector<8x128xf32>
    %cst_147 = arith.constant 1.000000e+00 : f32
    %445 = vector.broadcast %cst_147 : f32 to vector<8x128xf32>
    %446 = arith.addf %445, %444 : vector<8x128xf32>
    %447 = arith.divf %445, %446 : vector<8x128xf32>
    %448 = arith.mulf %441, %435 : vector<8x128xf32>
    %449 = arith.addf %433, %448 : vector<8x128xf32>
    %450 = math.tanh %449 : vector<8x128xf32>
    %cst_148 = arith.constant 1.000000e+00 : f32
    %451 = vector.broadcast %cst_148 : f32 to vector<8x128xf32>
    %452 = arith.subf %451, %447 : vector<8x128xf32>
    %453 = arith.mulf %452, %450 : vector<8x128xf32>
    %454 = arith.mulf %447, %356 : vector<8x128xf32>
    %455 = arith.addf %453, %454 : vector<8x128xf32>
    %c1_149 = arith.constant 1 : index
    %c0_150 = arith.constant 0 : index
    %c0_151 = arith.constant 0 : index
    %456 = vector.load %arg1[%c1_149, %c0_150, %c0_151] : memref<3x128x384xbf16, #tpu.memory_space<vmem>>, vector<1x128x384xbf16>
    %457 = vector.shape_cast %456 : vector<1x128x384xbf16> to vector<128x384xbf16>
    %cst_152 = arith.constant dense<0.000000e+00> : vector<8x384xf32>
    %458 = tpu.matmul %423, %457, %cst_152 {dimension_numbers = #tpu.dot_dimension_numbers<[1], [0], [0], [1], [0, 0, 1, 1], [], []>} : vector<8x128xbf16>, vector<128x384xbf16>, vector<8x384xf32> -> vector<8x384xf32>
    %459 = arith.addf %458, %12 : vector<8x384xf32>
    %c1_153 = arith.constant 1 : index
    %c0_154 = arith.constant 0 : index
    %c0_155 = arith.constant 0 : index
    %460 = vector.load %arg2[%c1_153, %c0_154, %c0_155] : memref<3x128x384xbf16, #tpu.memory_space<vmem>>, vector<1x128x384xbf16>
    %461 = vector.shape_cast %460 : vector<1x128x384xbf16> to vector<128x384xbf16>
    %cst_156 = arith.constant dense<0.000000e+00> : vector<8x384xf32>
    %462 = tpu.matmul %424, %461, %cst_156 {dimension_numbers = #tpu.dot_dimension_numbers<[1], [0], [0], [1], [0, 0, 1, 1], [], []>} : vector<8x128xbf16>, vector<128x384xbf16>, vector<8x384xf32> -> vector<8x384xf32>
    %463 = vector.extract_strided_slice %459 {offsets = [0, 0], sizes = [8, 256], strides = [1, 1]} : vector<8x384xf32> to vector<8x256xf32>
    %464 = vector.extract_strided_slice %462 {offsets = [0, 0], sizes = [8, 256], strides = [1, 1]} : vector<8x384xf32> to vector<8x256xf32>
    %465 = arith.addf %463, %464 : vector<8x256xf32>
    %466 = vector.extract_strided_slice %459 {offsets = [0, 256], sizes = [8, 128], strides = [1, 1]} : vector<8x384xf32> to vector<8x128xf32>
    %467 = vector.extract_strided_slice %462 {offsets = [0, 256], sizes = [8, 128], strides = [1, 1]} : vector<8x384xf32> to vector<8x128xf32>
    %468 = arith.addf %467, %24 : vector<8x128xf32>
    %469 = vector.extract_strided_slice %465 {offsets = [0, 0], sizes = [8, 128], strides = [1, 1]} : vector<8x256xf32> to vector<8x128xf32>
    %470 = arith.negf %469 : vector<8x128xf32>
    %471 = math.exp %470 : vector<8x128xf32>
    %cst_157 = arith.constant 1.000000e+00 : f32
    %472 = vector.broadcast %cst_157 : f32 to vector<8x128xf32>
    %473 = arith.addf %472, %471 : vector<8x128xf32>
    %474 = arith.divf %472, %473 : vector<8x128xf32>
    %475 = vector.extract_strided_slice %465 {offsets = [0, 128], sizes = [8, 128], strides = [1, 1]} : vector<8x256xf32> to vector<8x128xf32>
    %476 = arith.negf %475 : vector<8x128xf32>
    %477 = math.exp %476 : vector<8x128xf32>
    %cst_158 = arith.constant 1.000000e+00 : f32
    %478 = vector.broadcast %cst_158 : f32 to vector<8x128xf32>
    %479 = arith.addf %478, %477 : vector<8x128xf32>
    %480 = arith.divf %478, %479 : vector<8x128xf32>
    %481 = arith.mulf %474, %468 : vector<8x128xf32>
    %482 = arith.addf %466, %481 : vector<8x128xf32>
    %483 = math.tanh %482 : vector<8x128xf32>
    %cst_159 = arith.constant 1.000000e+00 : f32
    %484 = vector.broadcast %cst_159 : f32 to vector<8x128xf32>
    %485 = arith.subf %484, %480 : vector<8x128xf32>
    %486 = arith.mulf %485, %483 : vector<8x128xf32>
    %487 = arith.mulf %480, %389 : vector<8x128xf32>
    %488 = arith.addf %486, %487 : vector<8x128xf32>
    %c2_160 = arith.constant 2 : index
    %c0_161 = arith.constant 0 : index
    %c0_162 = arith.constant 0 : index
    %489 = vector.load %arg1[%c2_160, %c0_161, %c0_162] : memref<3x128x384xbf16, #tpu.memory_space<vmem>>, vector<1x128x384xbf16>
    %490 = vector.shape_cast %489 : vector<1x128x384xbf16> to vector<128x384xbf16>
    %cst_163 = arith.constant dense<0.000000e+00> : vector<8x384xf32>
    %491 = tpu.matmul %424, %490, %cst_163 {dimension_numbers = #tpu.dot_dimension_numbers<[1], [0], [0], [1], [0, 0, 1, 1], [], []>} : vector<8x128xbf16>, vector<128x384xbf16>, vector<8x384xf32> -> vector<8x384xf32>
    %492 = arith.addf %491, %16 : vector<8x384xf32>
    %c2_164 = arith.constant 2 : index
    %c0_165 = arith.constant 0 : index
    %c0_166 = arith.constant 0 : index
    %493 = vector.load %arg2[%c2_164, %c0_165, %c0_166] : memref<3x128x384xbf16, #tpu.memory_space<vmem>>, vector<1x128x384xbf16>
    %494 = vector.shape_cast %493 : vector<1x128x384xbf16> to vector<128x384xbf16>
    %cst_167 = arith.constant dense<0.000000e+00> : vector<8x384xf32>
    %495 = tpu.matmul %425, %494, %cst_167 {dimension_numbers = #tpu.dot_dimension_numbers<[1], [0], [0], [1], [0, 0, 1, 1], [], []>} : vector<8x128xbf16>, vector<128x384xbf16>, vector<8x384xf32> -> vector<8x384xf32>
    %496 = vector.extract_strided_slice %492 {offsets = [0, 0], sizes = [8, 256], strides = [1, 1]} : vector<8x384xf32> to vector<8x256xf32>
    %497 = vector.extract_strided_slice %495 {offsets = [0, 0], sizes = [8, 256], strides = [1, 1]} : vector<8x384xf32> to vector<8x256xf32>
    %498 = arith.addf %496, %497 : vector<8x256xf32>
    %499 = vector.extract_strided_slice %492 {offsets = [0, 256], sizes = [8, 128], strides = [1, 1]} : vector<8x384xf32> to vector<8x128xf32>
    %500 = vector.extract_strided_slice %495 {offsets = [0, 256], sizes = [8, 128], strides = [1, 1]} : vector<8x384xf32> to vector<8x128xf32>
    %501 = arith.addf %500, %28 : vector<8x128xf32>
    %502 = vector.extract_strided_slice %498 {offsets = [0, 0], sizes = [8, 128], strides = [1, 1]} : vector<8x256xf32> to vector<8x128xf32>
    %503 = arith.negf %502 : vector<8x128xf32>
    %504 = math.exp %503 : vector<8x128xf32>
    %cst_168 = arith.constant 1.000000e+00 : f32
    %505 = vector.broadcast %cst_168 : f32 to vector<8x128xf32>
    %506 = arith.addf %505, %504 : vector<8x128xf32>
    %507 = arith.divf %505, %506 : vector<8x128xf32>
    %508 = vector.extract_strided_slice %498 {offsets = [0, 128], sizes = [8, 128], strides = [1, 1]} : vector<8x256xf32> to vector<8x128xf32>
    %509 = arith.negf %508 : vector<8x128xf32>
    %510 = math.exp %509 : vector<8x128xf32>
    %cst_169 = arith.constant 1.000000e+00 : f32
    %511 = vector.broadcast %cst_169 : f32 to vector<8x128xf32>
    %512 = arith.addf %511, %510 : vector<8x128xf32>
    %513 = arith.divf %511, %512 : vector<8x128xf32>
    %514 = arith.mulf %507, %501 : vector<8x128xf32>
    %515 = arith.addf %499, %514 : vector<8x128xf32>
    %516 = math.tanh %515 : vector<8x128xf32>
    %cst_170 = arith.constant 1.000000e+00 : f32
    %517 = vector.broadcast %cst_170 : f32 to vector<8x128xf32>
    %518 = arith.subf %517, %513 : vector<8x128xf32>
    %519 = arith.mulf %518, %516 : vector<8x128xf32>
    %520 = arith.mulf %513, %422 : vector<8x128xf32>
    %521 = arith.addf %519, %520 : vector<8x128xf32>
    %522 = arith.truncf %455 : vector<8x128xf32> to vector<8x128xbf16>
    %523 = arith.truncf %488 : vector<8x128xf32> to vector<8x128xbf16>
    %524 = arith.truncf %521 : vector<8x128xf32> to vector<8x128xbf16>
    %c48 = arith.constant 48 : index
    %c0_171 = arith.constant 0 : index
    %525 = vector.load %arg8[%c48, %c0_171] : memref<64x384xf32, #tpu.memory_space<vmem>>, vector<8x384xf32>
    %c0_172 = arith.constant 0 : index
    %c0_173 = arith.constant 0 : index
    %c0_174 = arith.constant 0 : index
    %526 = vector.load %arg2[%c0_172, %c0_173, %c0_174] : memref<3x128x384xbf16, #tpu.memory_space<vmem>>, vector<1x128x384xbf16>
    %527 = vector.shape_cast %526 : vector<1x128x384xbf16> to vector<128x384xbf16>
    %cst_175 = arith.constant dense<0.000000e+00> : vector<8x384xf32>
    %528 = tpu.matmul %522, %527, %cst_175 {dimension_numbers = #tpu.dot_dimension_numbers<[1], [0], [0], [1], [0, 0, 1, 1], [], []>} : vector<8x128xbf16>, vector<128x384xbf16>, vector<8x384xf32> -> vector<8x384xf32>
    %529 = vector.extract_strided_slice %525 {offsets = [0, 0], sizes = [8, 256], strides = [1, 1]} : vector<8x384xf32> to vector<8x256xf32>
    %530 = vector.extract_strided_slice %528 {offsets = [0, 0], sizes = [8, 256], strides = [1, 1]} : vector<8x384xf32> to vector<8x256xf32>
    %531 = arith.addf %529, %530 : vector<8x256xf32>
    %532 = vector.extract_strided_slice %525 {offsets = [0, 256], sizes = [8, 128], strides = [1, 1]} : vector<8x384xf32> to vector<8x128xf32>
    %533 = vector.extract_strided_slice %528 {offsets = [0, 256], sizes = [8, 128], strides = [1, 1]} : vector<8x384xf32> to vector<8x128xf32>
    %534 = arith.addf %533, %20 : vector<8x128xf32>
    %535 = vector.extract_strided_slice %531 {offsets = [0, 0], sizes = [8, 128], strides = [1, 1]} : vector<8x256xf32> to vector<8x128xf32>
    %536 = arith.negf %535 : vector<8x128xf32>
    %537 = math.exp %536 : vector<8x128xf32>
    %cst_176 = arith.constant 1.000000e+00 : f32
    %538 = vector.broadcast %cst_176 : f32 to vector<8x128xf32>
    %539 = arith.addf %538, %537 : vector<8x128xf32>
    %540 = arith.divf %538, %539 : vector<8x128xf32>
    %541 = vector.extract_strided_slice %531 {offsets = [0, 128], sizes = [8, 128], strides = [1, 1]} : vector<8x256xf32> to vector<8x128xf32>
    %542 = arith.negf %541 : vector<8x128xf32>
    %543 = math.exp %542 : vector<8x128xf32>
    %cst_177 = arith.constant 1.000000e+00 : f32
    %544 = vector.broadcast %cst_177 : f32 to vector<8x128xf32>
    %545 = arith.addf %544, %543 : vector<8x128xf32>
    %546 = arith.divf %544, %545 : vector<8x128xf32>
    %547 = arith.mulf %540, %534 : vector<8x128xf32>
    %548 = arith.addf %532, %547 : vector<8x128xf32>
    %549 = math.tanh %548 : vector<8x128xf32>
    %cst_178 = arith.constant 1.000000e+00 : f32
    %550 = vector.broadcast %cst_178 : f32 to vector<8x128xf32>
    %551 = arith.subf %550, %546 : vector<8x128xf32>
    %552 = arith.mulf %551, %549 : vector<8x128xf32>
    %553 = arith.mulf %546, %455 : vector<8x128xf32>
    %554 = arith.addf %552, %553 : vector<8x128xf32>
    %c1_179 = arith.constant 1 : index
    %c0_180 = arith.constant 0 : index
    %c0_181 = arith.constant 0 : index
    %555 = vector.load %arg1[%c1_179, %c0_180, %c0_181] : memref<3x128x384xbf16, #tpu.memory_space<vmem>>, vector<1x128x384xbf16>
    %556 = vector.shape_cast %555 : vector<1x128x384xbf16> to vector<128x384xbf16>
    %cst_182 = arith.constant dense<0.000000e+00> : vector<8x384xf32>
    %557 = tpu.matmul %522, %556, %cst_182 {dimension_numbers = #tpu.dot_dimension_numbers<[1], [0], [0], [1], [0, 0, 1, 1], [], []>} : vector<8x128xbf16>, vector<128x384xbf16>, vector<8x384xf32> -> vector<8x384xf32>
    %558 = arith.addf %557, %12 : vector<8x384xf32>
    %c1_183 = arith.constant 1 : index
    %c0_184 = arith.constant 0 : index
    %c0_185 = arith.constant 0 : index
    %559 = vector.load %arg2[%c1_183, %c0_184, %c0_185] : memref<3x128x384xbf16, #tpu.memory_space<vmem>>, vector<1x128x384xbf16>
    %560 = vector.shape_cast %559 : vector<1x128x384xbf16> to vector<128x384xbf16>
    %cst_186 = arith.constant dense<0.000000e+00> : vector<8x384xf32>
    %561 = tpu.matmul %523, %560, %cst_186 {dimension_numbers = #tpu.dot_dimension_numbers<[1], [0], [0], [1], [0, 0, 1, 1], [], []>} : vector<8x128xbf16>, vector<128x384xbf16>, vector<8x384xf32> -> vector<8x384xf32>
    %562 = vector.extract_strided_slice %558 {offsets = [0, 0], sizes = [8, 256], strides = [1, 1]} : vector<8x384xf32> to vector<8x256xf32>
    %563 = vector.extract_strided_slice %561 {offsets = [0, 0], sizes = [8, 256], strides = [1, 1]} : vector<8x384xf32> to vector<8x256xf32>
    %564 = arith.addf %562, %563 : vector<8x256xf32>
    %565 = vector.extract_strided_slice %558 {offsets = [0, 256], sizes = [8, 128], strides = [1, 1]} : vector<8x384xf32> to vector<8x128xf32>
    %566 = vector.extract_strided_slice %561 {offsets = [0, 256], sizes = [8, 128], strides = [1, 1]} : vector<8x384xf32> to vector<8x128xf32>
    %567 = arith.addf %566, %24 : vector<8x128xf32>
    %568 = vector.extract_strided_slice %564 {offsets = [0, 0], sizes = [8, 128], strides = [1, 1]} : vector<8x256xf32> to vector<8x128xf32>
    %569 = arith.negf %568 : vector<8x128xf32>
    %570 = math.exp %569 : vector<8x128xf32>
    %cst_187 = arith.constant 1.000000e+00 : f32
    %571 = vector.broadcast %cst_187 : f32 to vector<8x128xf32>
    %572 = arith.addf %571, %570 : vector<8x128xf32>
    %573 = arith.divf %571, %572 : vector<8x128xf32>
    %574 = vector.extract_strided_slice %564 {offsets = [0, 128], sizes = [8, 128], strides = [1, 1]} : vector<8x256xf32> to vector<8x128xf32>
    %575 = arith.negf %574 : vector<8x128xf32>
    %576 = math.exp %575 : vector<8x128xf32>
    %cst_188 = arith.constant 1.000000e+00 : f32
    %577 = vector.broadcast %cst_188 : f32 to vector<8x128xf32>
    %578 = arith.addf %577, %576 : vector<8x128xf32>
    %579 = arith.divf %577, %578 : vector<8x128xf32>
    %580 = arith.mulf %573, %567 : vector<8x128xf32>
    %581 = arith.addf %565, %580 : vector<8x128xf32>
    %582 = math.tanh %581 : vector<8x128xf32>
    %cst_189 = arith.constant 1.000000e+00 : f32
    %583 = vector.broadcast %cst_189 : f32 to vector<8x128xf32>
    %584 = arith.subf %583, %579 : vector<8x128xf32>
    %585 = arith.mulf %584, %582 : vector<8x128xf32>
    %586 = arith.mulf %579, %488 : vector<8x128xf32>
    %587 = arith.addf %585, %586 : vector<8x128xf32>
    %c2_190 = arith.constant 2 : index
    %c0_191 = arith.constant 0 : index
    %c0_192 = arith.constant 0 : index
    %588 = vector.load %arg1[%c2_190, %c0_191, %c0_192] : memref<3x128x384xbf16, #tpu.memory_space<vmem>>, vector<1x128x384xbf16>
    %589 = vector.shape_cast %588 : vector<1x128x384xbf16> to vector<128x384xbf16>
    %cst_193 = arith.constant dense<0.000000e+00> : vector<8x384xf32>
    %590 = tpu.matmul %523, %589, %cst_193 {dimension_numbers = #tpu.dot_dimension_numbers<[1], [0], [0], [1], [0, 0, 1, 1], [], []>} : vector<8x128xbf16>, vector<128x384xbf16>, vector<8x384xf32> -> vector<8x384xf32>
    %591 = arith.addf %590, %16 : vector<8x384xf32>
    %c2_194 = arith.constant 2 : index
    %c0_195 = arith.constant 0 : index
    %c0_196 = arith.constant 0 : index
    %592 = vector.load %arg2[%c2_194, %c0_195, %c0_196] : memref<3x128x384xbf16, #tpu.memory_space<vmem>>, vector<1x128x384xbf16>
    %593 = vector.shape_cast %592 : vector<1x128x384xbf16> to vector<128x384xbf16>
    %cst_197 = arith.constant dense<0.000000e+00> : vector<8x384xf32>
    %594 = tpu.matmul %524, %593, %cst_197 {dimension_numbers = #tpu.dot_dimension_numbers<[1], [0], [0], [1], [0, 0, 1, 1], [], []>} : vector<8x128xbf16>, vector<128x384xbf16>, vector<8x384xf32> -> vector<8x384xf32>
    %595 = vector.extract_strided_slice %591 {offsets = [0, 0], sizes = [8, 256], strides = [1, 1]} : vector<8x384xf32> to vector<8x256xf32>
    %596 = vector.extract_strided_slice %594 {offsets = [0, 0], sizes = [8, 256], strides = [1, 1]} : vector<8x384xf32> to vector<8x256xf32>
    %597 = arith.addf %595, %596 : vector<8x256xf32>
    %598 = vector.extract_strided_slice %591 {offsets = [0, 256], sizes = [8, 128], strides = [1, 1]} : vector<8x384xf32> to vector<8x128xf32>
    %599 = vector.extract_strided_slice %594 {offsets = [0, 256], sizes = [8, 128], strides = [1, 1]} : vector<8x384xf32> to vector<8x128xf32>
    %600 = arith.addf %599, %28 : vector<8x128xf32>
    %601 = vector.extract_strided_slice %597 {offsets = [0, 0], sizes = [8, 128], strides = [1, 1]} : vector<8x256xf32> to vector<8x128xf32>
    %602 = arith.negf %601 : vector<8x128xf32>
    %603 = math.exp %602 : vector<8x128xf32>
    %cst_198 = arith.constant 1.000000e+00 : f32
    %604 = vector.broadcast %cst_198 : f32 to vector<8x128xf32>
    %605 = arith.addf %604, %603 : vector<8x128xf32>
    %606 = arith.divf %604, %605 : vector<8x128xf32>
    %607 = vector.extract_strided_slice %597 {offsets = [0, 128], sizes = [8, 128], strides = [1, 1]} : vector<8x256xf32> to vector<8x128xf32>
    %608 = arith.negf %607 : vector<8x128xf32>
    %609 = math.exp %608 : vector<8x128xf32>
    %cst_199 = arith.constant 1.000000e+00 : f32
    %610 = vector.broadcast %cst_199 : f32 to vector<8x128xf32>
    %611 = arith.addf %610, %609 : vector<8x128xf32>
    %612 = arith.divf %610, %611 : vector<8x128xf32>
    %613 = arith.mulf %606, %600 : vector<8x128xf32>
    %614 = arith.addf %598, %613 : vector<8x128xf32>
    %615 = math.tanh %614 : vector<8x128xf32>
    %cst_200 = arith.constant 1.000000e+00 : f32
    %616 = vector.broadcast %cst_200 : f32 to vector<8x128xf32>
    %617 = arith.subf %616, %612 : vector<8x128xf32>
    %618 = arith.mulf %617, %615 : vector<8x128xf32>
    %619 = arith.mulf %612, %521 : vector<8x128xf32>
    %620 = arith.addf %618, %619 : vector<8x128xf32>
    %621 = arith.truncf %554 : vector<8x128xf32> to vector<8x128xbf16>
    %622 = arith.truncf %587 : vector<8x128xf32> to vector<8x128xbf16>
    %623 = arith.truncf %620 : vector<8x128xf32> to vector<8x128xbf16>
    %c56 = arith.constant 56 : index
    %c0_201 = arith.constant 0 : index
    %624 = vector.load %arg8[%c56, %c0_201] : memref<64x384xf32, #tpu.memory_space<vmem>>, vector<8x384xf32>
    %c0_202 = arith.constant 0 : index
    %c0_203 = arith.constant 0 : index
    %c0_204 = arith.constant 0 : index
    %625 = vector.load %arg2[%c0_202, %c0_203, %c0_204] : memref<3x128x384xbf16, #tpu.memory_space<vmem>>, vector<1x128x384xbf16>
    %626 = vector.shape_cast %625 : vector<1x128x384xbf16> to vector<128x384xbf16>
    %cst_205 = arith.constant dense<0.000000e+00> : vector<8x384xf32>
    %627 = tpu.matmul %621, %626, %cst_205 {dimension_numbers = #tpu.dot_dimension_numbers<[1], [0], [0], [1], [0, 0, 1, 1], [], []>} : vector<8x128xbf16>, vector<128x384xbf16>, vector<8x384xf32> -> vector<8x384xf32>
    %628 = vector.extract_strided_slice %624 {offsets = [0, 0], sizes = [8, 256], strides = [1, 1]} : vector<8x384xf32> to vector<8x256xf32>
    %629 = vector.extract_strided_slice %627 {offsets = [0, 0], sizes = [8, 256], strides = [1, 1]} : vector<8x384xf32> to vector<8x256xf32>
    %630 = arith.addf %628, %629 : vector<8x256xf32>
    %631 = vector.extract_strided_slice %624 {offsets = [0, 256], sizes = [8, 128], strides = [1, 1]} : vector<8x384xf32> to vector<8x128xf32>
    %632 = vector.extract_strided_slice %627 {offsets = [0, 256], sizes = [8, 128], strides = [1, 1]} : vector<8x384xf32> to vector<8x128xf32>
    %633 = arith.addf %632, %20 : vector<8x128xf32>
    %634 = vector.extract_strided_slice %630 {offsets = [0, 0], sizes = [8, 128], strides = [1, 1]} : vector<8x256xf32> to vector<8x128xf32>
    %635 = arith.negf %634 : vector<8x128xf32>
    %636 = math.exp %635 : vector<8x128xf32>
    %cst_206 = arith.constant 1.000000e+00 : f32
    %637 = vector.broadcast %cst_206 : f32 to vector<8x128xf32>
    %638 = arith.addf %637, %636 : vector<8x128xf32>
    %639 = arith.divf %637, %638 : vector<8x128xf32>
    %640 = vector.extract_strided_slice %630 {offsets = [0, 128], sizes = [8, 128], strides = [1, 1]} : vector<8x256xf32> to vector<8x128xf32>
    %641 = arith.negf %640 : vector<8x128xf32>
    %642 = math.exp %641 : vector<8x128xf32>
    %cst_207 = arith.constant 1.000000e+00 : f32
    %643 = vector.broadcast %cst_207 : f32 to vector<8x128xf32>
    %644 = arith.addf %643, %642 : vector<8x128xf32>
    %645 = arith.divf %643, %644 : vector<8x128xf32>
    %646 = arith.mulf %639, %633 : vector<8x128xf32>
    %647 = arith.addf %631, %646 : vector<8x128xf32>
    %648 = math.tanh %647 : vector<8x128xf32>
    %cst_208 = arith.constant 1.000000e+00 : f32
    %649 = vector.broadcast %cst_208 : f32 to vector<8x128xf32>
    %650 = arith.subf %649, %645 : vector<8x128xf32>
    %651 = arith.mulf %650, %648 : vector<8x128xf32>
    %652 = arith.mulf %645, %554 : vector<8x128xf32>
    %653 = arith.addf %651, %652 : vector<8x128xf32>
    %c1_209 = arith.constant 1 : index
    %c0_210 = arith.constant 0 : index
    %c0_211 = arith.constant 0 : index
    %654 = vector.load %arg1[%c1_209, %c0_210, %c0_211] : memref<3x128x384xbf16, #tpu.memory_space<vmem>>, vector<1x128x384xbf16>
    %655 = vector.shape_cast %654 : vector<1x128x384xbf16> to vector<128x384xbf16>
    %cst_212 = arith.constant dense<0.000000e+00> : vector<8x384xf32>
    %656 = tpu.matmul %621, %655, %cst_212 {dimension_numbers = #tpu.dot_dimension_numbers<[1], [0], [0], [1], [0, 0, 1, 1], [], []>} : vector<8x128xbf16>, vector<128x384xbf16>, vector<8x384xf32> -> vector<8x384xf32>
    %657 = arith.addf %656, %12 : vector<8x384xf32>
    %c1_213 = arith.constant 1 : index
    %c0_214 = arith.constant 0 : index
    %c0_215 = arith.constant 0 : index
    %658 = vector.load %arg2[%c1_213, %c0_214, %c0_215] : memref<3x128x384xbf16, #tpu.memory_space<vmem>>, vector<1x128x384xbf16>
    %659 = vector.shape_cast %658 : vector<1x128x384xbf16> to vector<128x384xbf16>
    %cst_216 = arith.constant dense<0.000000e+00> : vector<8x384xf32>
    %660 = tpu.matmul %622, %659, %cst_216 {dimension_numbers = #tpu.dot_dimension_numbers<[1], [0], [0], [1], [0, 0, 1, 1], [], []>} : vector<8x128xbf16>, vector<128x384xbf16>, vector<8x384xf32> -> vector<8x384xf32>
    %661 = vector.extract_strided_slice %657 {offsets = [0, 0], sizes = [8, 256], strides = [1, 1]} : vector<8x384xf32> to vector<8x256xf32>
    %662 = vector.extract_strided_slice %660 {offsets = [0, 0], sizes = [8, 256], strides = [1, 1]} : vector<8x384xf32> to vector<8x256xf32>
    %663 = arith.addf %661, %662 : vector<8x256xf32>
    %664 = vector.extract_strided_slice %657 {offsets = [0, 256], sizes = [8, 128], strides = [1, 1]} : vector<8x384xf32> to vector<8x128xf32>
    %665 = vector.extract_strided_slice %660 {offsets = [0, 256], sizes = [8, 128], strides = [1, 1]} : vector<8x384xf32> to vector<8x128xf32>
    %666 = arith.addf %665, %24 : vector<8x128xf32>
    %667 = vector.extract_strided_slice %663 {offsets = [0, 0], sizes = [8, 128], strides = [1, 1]} : vector<8x256xf32> to vector<8x128xf32>
    %668 = arith.negf %667 : vector<8x128xf32>
    %669 = math.exp %668 : vector<8x128xf32>
    %cst_217 = arith.constant 1.000000e+00 : f32
    %670 = vector.broadcast %cst_217 : f32 to vector<8x128xf32>
    %671 = arith.addf %670, %669 : vector<8x128xf32>
    %672 = arith.divf %670, %671 : vector<8x128xf32>
    %673 = vector.extract_strided_slice %663 {offsets = [0, 128], sizes = [8, 128], strides = [1, 1]} : vector<8x256xf32> to vector<8x128xf32>
    %674 = arith.negf %673 : vector<8x128xf32>
    %675 = math.exp %674 : vector<8x128xf32>
    %cst_218 = arith.constant 1.000000e+00 : f32
    %676 = vector.broadcast %cst_218 : f32 to vector<8x128xf32>
    %677 = arith.addf %676, %675 : vector<8x128xf32>
    %678 = arith.divf %676, %677 : vector<8x128xf32>
    %679 = arith.mulf %672, %666 : vector<8x128xf32>
    %680 = arith.addf %664, %679 : vector<8x128xf32>
    %681 = math.tanh %680 : vector<8x128xf32>
    %cst_219 = arith.constant 1.000000e+00 : f32
    %682 = vector.broadcast %cst_219 : f32 to vector<8x128xf32>
    %683 = arith.subf %682, %678 : vector<8x128xf32>
    %684 = arith.mulf %683, %681 : vector<8x128xf32>
    %685 = arith.mulf %678, %587 : vector<8x128xf32>
    %686 = arith.addf %684, %685 : vector<8x128xf32>
    %c2_220 = arith.constant 2 : index
    %c0_221 = arith.constant 0 : index
    %c0_222 = arith.constant 0 : index
    %687 = vector.load %arg1[%c2_220, %c0_221, %c0_222] : memref<3x128x384xbf16, #tpu.memory_space<vmem>>, vector<1x128x384xbf16>
    %688 = vector.shape_cast %687 : vector<1x128x384xbf16> to vector<128x384xbf16>
    %cst_223 = arith.constant dense<0.000000e+00> : vector<8x384xf32>
    %689 = tpu.matmul %622, %688, %cst_223 {dimension_numbers = #tpu.dot_dimension_numbers<[1], [0], [0], [1], [0, 0, 1, 1], [], []>} : vector<8x128xbf16>, vector<128x384xbf16>, vector<8x384xf32> -> vector<8x384xf32>
    %690 = arith.addf %689, %16 : vector<8x384xf32>
    %c2_224 = arith.constant 2 : index
    %c0_225 = arith.constant 0 : index
    %c0_226 = arith.constant 0 : index
    %691 = vector.load %arg2[%c2_224, %c0_225, %c0_226] : memref<3x128x384xbf16, #tpu.memory_space<vmem>>, vector<1x128x384xbf16>
    %692 = vector.shape_cast %691 : vector<1x128x384xbf16> to vector<128x384xbf16>
    %cst_227 = arith.constant dense<0.000000e+00> : vector<8x384xf32>
    %693 = tpu.matmul %623, %692, %cst_227 {dimension_numbers = #tpu.dot_dimension_numbers<[1], [0], [0], [1], [0, 0, 1, 1], [], []>} : vector<8x128xbf16>, vector<128x384xbf16>, vector<8x384xf32> -> vector<8x384xf32>
    %694 = vector.extract_strided_slice %690 {offsets = [0, 0], sizes = [8, 256], strides = [1, 1]} : vector<8x384xf32> to vector<8x256xf32>
    %695 = vector.extract_strided_slice %693 {offsets = [0, 0], sizes = [8, 256], strides = [1, 1]} : vector<8x384xf32> to vector<8x256xf32>
    %696 = arith.addf %694, %695 : vector<8x256xf32>
    %697 = vector.extract_strided_slice %690 {offsets = [0, 256], sizes = [8, 128], strides = [1, 1]} : vector<8x384xf32> to vector<8x128xf32>
    %698 = vector.extract_strided_slice %693 {offsets = [0, 256], sizes = [8, 128], strides = [1, 1]} : vector<8x384xf32> to vector<8x128xf32>
    %699 = arith.addf %698, %28 : vector<8x128xf32>
    %700 = vector.extract_strided_slice %696 {offsets = [0, 0], sizes = [8, 128], strides = [1, 1]} : vector<8x256xf32> to vector<8x128xf32>
    %701 = arith.negf %700 : vector<8x128xf32>
    %702 = math.exp %701 : vector<8x128xf32>
    %cst_228 = arith.constant 1.000000e+00 : f32
    %703 = vector.broadcast %cst_228 : f32 to vector<8x128xf32>
    %704 = arith.addf %703, %702 : vector<8x128xf32>
    %705 = arith.divf %703, %704 : vector<8x128xf32>
    %706 = vector.extract_strided_slice %696 {offsets = [0, 128], sizes = [8, 128], strides = [1, 1]} : vector<8x256xf32> to vector<8x128xf32>
    %707 = arith.negf %706 : vector<8x128xf32>
    %708 = math.exp %707 : vector<8x128xf32>
    %cst_229 = arith.constant 1.000000e+00 : f32
    %709 = vector.broadcast %cst_229 : f32 to vector<8x128xf32>
    %710 = arith.addf %709, %708 : vector<8x128xf32>
    %711 = arith.divf %709, %710 : vector<8x128xf32>
    %712 = arith.mulf %705, %699 : vector<8x128xf32>
    %713 = arith.addf %697, %712 : vector<8x128xf32>
    %714 = math.tanh %713 : vector<8x128xf32>
    %cst_230 = arith.constant 1.000000e+00 : f32
    %715 = vector.broadcast %cst_230 : f32 to vector<8x128xf32>
    %716 = arith.subf %715, %711 : vector<8x128xf32>
    %717 = arith.mulf %716, %714 : vector<8x128xf32>
    %718 = arith.mulf %711, %620 : vector<8x128xf32>
    %719 = arith.addf %717, %718 : vector<8x128xf32>
    %720 = arith.truncf %653 : vector<8x128xf32> to vector<8x128xbf16>
    %721 = arith.truncf %686 : vector<8x128xf32> to vector<8x128xbf16>
    %722 = arith.truncf %719 : vector<8x128xf32> to vector<8x128xbf16>
    %c1_231 = arith.constant 1 : index
    %c0_232 = arith.constant 0 : index
    %c0_233 = arith.constant 0 : index
    %723 = vector.load %arg1[%c1_231, %c0_232, %c0_233] : memref<3x128x384xbf16, #tpu.memory_space<vmem>>, vector<1x128x384xbf16>
    %724 = vector.shape_cast %723 : vector<1x128x384xbf16> to vector<128x384xbf16>
    %cst_234 = arith.constant dense<0.000000e+00> : vector<8x384xf32>
    %725 = tpu.matmul %720, %724, %cst_234 {dimension_numbers = #tpu.dot_dimension_numbers<[1], [0], [0], [1], [0, 0, 1, 1], [], []>} : vector<8x128xbf16>, vector<128x384xbf16>, vector<8x384xf32> -> vector<8x384xf32>
    %726 = arith.addf %725, %12 : vector<8x384xf32>
    %c1_235 = arith.constant 1 : index
    %c0_236 = arith.constant 0 : index
    %c0_237 = arith.constant 0 : index
    %727 = vector.load %arg2[%c1_235, %c0_236, %c0_237] : memref<3x128x384xbf16, #tpu.memory_space<vmem>>, vector<1x128x384xbf16>
    %728 = vector.shape_cast %727 : vector<1x128x384xbf16> to vector<128x384xbf16>
    %cst_238 = arith.constant dense<0.000000e+00> : vector<8x384xf32>
    %729 = tpu.matmul %721, %728, %cst_238 {dimension_numbers = #tpu.dot_dimension_numbers<[1], [0], [0], [1], [0, 0, 1, 1], [], []>} : vector<8x128xbf16>, vector<128x384xbf16>, vector<8x384xf32> -> vector<8x384xf32>
    %730 = vector.extract_strided_slice %726 {offsets = [0, 0], sizes = [8, 256], strides = [1, 1]} : vector<8x384xf32> to vector<8x256xf32>
    %731 = vector.extract_strided_slice %729 {offsets = [0, 0], sizes = [8, 256], strides = [1, 1]} : vector<8x384xf32> to vector<8x256xf32>
    %732 = arith.addf %730, %731 : vector<8x256xf32>
    %733 = vector.extract_strided_slice %726 {offsets = [0, 256], sizes = [8, 128], strides = [1, 1]} : vector<8x384xf32> to vector<8x128xf32>
    %734 = vector.extract_strided_slice %729 {offsets = [0, 256], sizes = [8, 128], strides = [1, 1]} : vector<8x384xf32> to vector<8x128xf32>
    %735 = arith.addf %734, %24 : vector<8x128xf32>
    %736 = vector.extract_strided_slice %732 {offsets = [0, 0], sizes = [8, 128], strides = [1, 1]} : vector<8x256xf32> to vector<8x128xf32>
    %737 = arith.negf %736 : vector<8x128xf32>
    %738 = math.exp %737 : vector<8x128xf32>
    %cst_239 = arith.constant 1.000000e+00 : f32
    %739 = vector.broadcast %cst_239 : f32 to vector<8x128xf32>
    %740 = arith.addf %739, %738 : vector<8x128xf32>
    %741 = arith.divf %739, %740 : vector<8x128xf32>
    %742 = vector.extract_strided_slice %732 {offsets = [0, 128], sizes = [8, 128], strides = [1, 1]} : vector<8x256xf32> to vector<8x128xf32>
    %743 = arith.negf %742 : vector<8x128xf32>
    %744 = math.exp %743 : vector<8x128xf32>
    %cst_240 = arith.constant 1.000000e+00 : f32
    %745 = vector.broadcast %cst_240 : f32 to vector<8x128xf32>
    %746 = arith.addf %745, %744 : vector<8x128xf32>
    %747 = arith.divf %745, %746 : vector<8x128xf32>
    %748 = arith.mulf %741, %735 : vector<8x128xf32>
    %749 = arith.addf %733, %748 : vector<8x128xf32>
    %750 = math.tanh %749 : vector<8x128xf32>
    %cst_241 = arith.constant 1.000000e+00 : f32
    %751 = vector.broadcast %cst_241 : f32 to vector<8x128xf32>
    %752 = arith.subf %751, %747 : vector<8x128xf32>
    %753 = arith.mulf %752, %750 : vector<8x128xf32>
    %754 = arith.mulf %747, %686 : vector<8x128xf32>
    %755 = arith.addf %753, %754 : vector<8x128xf32>
    %c2_242 = arith.constant 2 : index
    %c0_243 = arith.constant 0 : index
    %c0_244 = arith.constant 0 : index
    %756 = vector.load %arg1[%c2_242, %c0_243, %c0_244] : memref<3x128x384xbf16, #tpu.memory_space<vmem>>, vector<1x128x384xbf16>
    %757 = vector.shape_cast %756 : vector<1x128x384xbf16> to vector<128x384xbf16>
    %cst_245 = arith.constant dense<0.000000e+00> : vector<8x384xf32>
    %758 = tpu.matmul %721, %757, %cst_245 {dimension_numbers = #tpu.dot_dimension_numbers<[1], [0], [0], [1], [0, 0, 1, 1], [], []>} : vector<8x128xbf16>, vector<128x384xbf16>, vector<8x384xf32> -> vector<8x384xf32>
    %759 = arith.addf %758, %16 : vector<8x384xf32>
    %c2_246 = arith.constant 2 : index
    %c0_247 = arith.constant 0 : index
    %c0_248 = arith.constant 0 : index
    %760 = vector.load %arg2[%c2_246, %c0_247, %c0_248] : memref<3x128x384xbf16, #tpu.memory_space<vmem>>, vector<1x128x384xbf16>
    %761 = vector.shape_cast %760 : vector<1x128x384xbf16> to vector<128x384xbf16>
    %cst_249 = arith.constant dense<0.000000e+00> : vector<8x384xf32>
    %762 = tpu.matmul %722, %761, %cst_249 {dimension_numbers = #tpu.dot_dimension_numbers<[1], [0], [0], [1], [0, 0, 1, 1], [], []>} : vector<8x128xbf16>, vector<128x384xbf16>, vector<8x384xf32> -> vector<8x384xf32>
    %763 = vector.extract_strided_slice %759 {offsets = [0, 0], sizes = [8, 256], strides = [1, 1]} : vector<8x384xf32> to vector<8x256xf32>
    %764 = vector.extract_strided_slice %762 {offsets = [0, 0], sizes = [8, 256], strides = [1, 1]} : vector<8x384xf32> to vector<8x256xf32>
    %765 = arith.addf %763, %764 : vector<8x256xf32>
    %766 = vector.extract_strided_slice %759 {offsets = [0, 256], sizes = [8, 128], strides = [1, 1]} : vector<8x384xf32> to vector<8x128xf32>
    %767 = vector.extract_strided_slice %762 {offsets = [0, 256], sizes = [8, 128], strides = [1, 1]} : vector<8x384xf32> to vector<8x128xf32>
    %768 = arith.addf %767, %28 : vector<8x128xf32>
    %769 = vector.extract_strided_slice %765 {offsets = [0, 0], sizes = [8, 128], strides = [1, 1]} : vector<8x256xf32> to vector<8x128xf32>
    %770 = arith.negf %769 : vector<8x128xf32>
    %771 = math.exp %770 : vector<8x128xf32>
    %cst_250 = arith.constant 1.000000e+00 : f32
    %772 = vector.broadcast %cst_250 : f32 to vector<8x128xf32>
    %773 = arith.addf %772, %771 : vector<8x128xf32>
    %774 = arith.divf %772, %773 : vector<8x128xf32>
    %775 = vector.extract_strided_slice %765 {offsets = [0, 128], sizes = [8, 128], strides = [1, 1]} : vector<8x256xf32> to vector<8x128xf32>
    %776 = arith.negf %775 : vector<8x128xf32>
    %777 = math.exp %776 : vector<8x128xf32>
    %cst_251 = arith.constant 1.000000e+00 : f32
    %778 = vector.broadcast %cst_251 : f32 to vector<8x128xf32>
    %779 = arith.addf %778, %777 : vector<8x128xf32>
    %780 = arith.divf %778, %779 : vector<8x128xf32>
    %781 = arith.mulf %774, %768 : vector<8x128xf32>
    %782 = arith.addf %766, %781 : vector<8x128xf32>
    %783 = math.tanh %782 : vector<8x128xf32>
    %cst_252 = arith.constant 1.000000e+00 : f32
    %784 = vector.broadcast %cst_252 : f32 to vector<8x128xf32>
    %785 = arith.subf %784, %780 : vector<8x128xf32>
    %786 = arith.mulf %785, %783 : vector<8x128xf32>
    %787 = arith.mulf %780, %719 : vector<8x128xf32>
    %788 = arith.addf %786, %787 : vector<8x128xf32>
    %789 = arith.truncf %755 : vector<8x128xf32> to vector<8x128xbf16>
    %790 = arith.truncf %788 : vector<8x128xf32> to vector<8x128xbf16>
    %c2_253 = arith.constant 2 : index
    %c0_254 = arith.constant 0 : index
    %c0_255 = arith.constant 0 : index
    %791 = vector.load %arg1[%c2_253, %c0_254, %c0_255] : memref<3x128x384xbf16, #tpu.memory_space<vmem>>, vector<1x128x384xbf16>
    %792 = vector.shape_cast %791 : vector<1x128x384xbf16> to vector<128x384xbf16>
    %cst_256 = arith.constant dense<0.000000e+00> : vector<8x384xf32>
    %793 = tpu.matmul %789, %792, %cst_256 {dimension_numbers = #tpu.dot_dimension_numbers<[1], [0], [0], [1], [0, 0, 1, 1], [], []>} : vector<8x128xbf16>, vector<128x384xbf16>, vector<8x384xf32> -> vector<8x384xf32>
    %794 = arith.addf %793, %16 : vector<8x384xf32>
    %c2_257 = arith.constant 2 : index
    %c0_258 = arith.constant 0 : index
    %c0_259 = arith.constant 0 : index
    %795 = vector.load %arg2[%c2_257, %c0_258, %c0_259] : memref<3x128x384xbf16, #tpu.memory_space<vmem>>, vector<1x128x384xbf16>
    %796 = vector.shape_cast %795 : vector<1x128x384xbf16> to vector<128x384xbf16>
    %cst_260 = arith.constant dense<0.000000e+00> : vector<8x384xf32>
    %797 = tpu.matmul %790, %796, %cst_260 {dimension_numbers = #tpu.dot_dimension_numbers<[1], [0], [0], [1], [0, 0, 1, 1], [], []>} : vector<8x128xbf16>, vector<128x384xbf16>, vector<8x384xf32> -> vector<8x384xf32>
    %798 = vector.extract_strided_slice %794 {offsets = [0, 0], sizes = [8, 256], strides = [1, 1]} : vector<8x384xf32> to vector<8x256xf32>
    %799 = vector.extract_strided_slice %797 {offsets = [0, 0], sizes = [8, 256], strides = [1, 1]} : vector<8x384xf32> to vector<8x256xf32>
    %800 = arith.addf %798, %799 : vector<8x256xf32>
    %801 = vector.extract_strided_slice %794 {offsets = [0, 256], sizes = [8, 128], strides = [1, 1]} : vector<8x384xf32> to vector<8x128xf32>
    %802 = vector.extract_strided_slice %797 {offsets = [0, 256], sizes = [8, 128], strides = [1, 1]} : vector<8x384xf32> to vector<8x128xf32>
    %803 = arith.addf %802, %28 : vector<8x128xf32>
    %804 = vector.extract_strided_slice %800 {offsets = [0, 0], sizes = [8, 128], strides = [1, 1]} : vector<8x256xf32> to vector<8x128xf32>
    %805 = arith.negf %804 : vector<8x128xf32>
    %806 = math.exp %805 : vector<8x128xf32>
    %cst_261 = arith.constant 1.000000e+00 : f32
    %807 = vector.broadcast %cst_261 : f32 to vector<8x128xf32>
    %808 = arith.addf %807, %806 : vector<8x128xf32>
    %809 = arith.divf %807, %808 : vector<8x128xf32>
    %810 = vector.extract_strided_slice %800 {offsets = [0, 128], sizes = [8, 128], strides = [1, 1]} : vector<8x256xf32> to vector<8x128xf32>
    %811 = arith.negf %810 : vector<8x128xf32>
    %812 = math.exp %811 : vector<8x128xf32>
    %cst_262 = arith.constant 1.000000e+00 : f32
    %813 = vector.broadcast %cst_262 : f32 to vector<8x128xf32>
    %814 = arith.addf %813, %812 : vector<8x128xf32>
    %815 = arith.divf %813, %814 : vector<8x128xf32>
    %816 = arith.mulf %809, %803 : vector<8x128xf32>
    %817 = arith.addf %801, %816 : vector<8x128xf32>
    %818 = math.tanh %817 : vector<8x128xf32>
    %cst_263 = arith.constant 1.000000e+00 : f32
    %819 = vector.broadcast %cst_263 : f32 to vector<8x128xf32>
    %820 = arith.subf %819, %815 : vector<8x128xf32>
    %821 = arith.mulf %820, %818 : vector<8x128xf32>
    %822 = arith.mulf %815, %788 : vector<8x128xf32>
    %823 = arith.addf %821, %822 : vector<8x128xf32>
    %c0_264 = arith.constant 0 : index
    %c0_265 = arith.constant 0 : index
    %824 = vector.load %arg5[%c0_264, %c0_265] : memref<128x128xf32, #tpu.memory_space<vmem>>, vector<128x128xf32>
    %cst_266 = arith.constant dense<0.000000e+00> : vector<8x128xf32>
    %825 = tpu.matmul %823, %824, %cst_266 {dimension_numbers = #tpu.dot_dimension_numbers<[1], [0], [0], [1], [0, 0, 1, 1], [], []>} : vector<8x128xf32>, vector<128x128xf32>, vector<8x128xf32> -> vector<8x128xf32>
    %c0_267 = arith.constant 0 : index
    %c0_268 = arith.constant 0 : index
    %826 = vector.load %arg6[%c0_267, %c0_268] : memref<1x128xf32, #tpu.memory_space<vmem>>, vector<1x128xf32>
    %827 = vector.broadcast %826 : vector<1x128xf32> to vector<8x128xf32>
    %828 = arith.addf %825, %827 : vector<8x128xf32>
    %c0_269 = arith.constant 0 : index
    %c0_270 = arith.constant 0 : index
    %829 = vector.load %arg7[%c0_269, %c0_270] : memref<8x128xf32, #tpu.memory_space<vmem>>, vector<8x128xf32>
    tpu.vector_store %arg7[%c0_269, %c0_270], %828 {strides = array<i32>} : memref<8x128xf32, #tpu.memory_space<vmem>>, vector<8x128xf32>,
    return
  }
}

</mosaic_0001>

<llo_original>
// kernel: gru_forward.1
$region0: #{gru_forward.1}
  #allocation0 [shape = 'u32[]', space=smem, size = 0x4, offset = 0x4, fixed_abs, tag = 'smem constant byte address 0x4 - core index']
  #allocation1 [shape = 'u32[144,128]{1,0:T(1,128)}', space=vmem, size = 0x12000, scoped, tag = 'internal scratch']
  #allocation2 [shape = 'f32[64,384]{1,0:T(8,128)}', space=vmem, size = 0x18000, scoped, tag = 'scratch operand']
  %s0 = inlined_call_operand.vmem [shape: bf16[64,128], index: 0, kind: input, shape index: {}]
  %s1 = inlined_call_operand.vmem [shape: bf16[3,128,384], index: 1, kind: input, shape index: {}]
  %s2 = inlined_call_operand.vmem [shape: bf16[3,128,384], index: 2, kind: input, shape index: {}]
  %s3 = inlined_call_operand.vmem [shape: f32[3,1,384], index: 3, kind: input, shape index: {}]
  %s4 = inlined_call_operand.vmem [shape: f32[3,1,128], index: 4, kind: input, shape index: {}]
  %s5 = inlined_call_operand.vmem [shape: f32[128,128], index: 5, kind: input, shape index: {}]
  %s6 = inlined_call_operand.vmem [shape: f32[1,128], index: 6, kind: input, shape index: {}]
  %s7 = inlined_call_operand.vmem [shape: f32[8,128], index: 7, kind: output, shape index: {}]
  %s8 = sld [smem:[#allocation0]]
  $region38: #{gru_forward.1} parent=0
    _
  %s10 = ssub.s32 1, %s8
  %s11 = scalar_select 0, %s10, %s8
  // Predicated region
  $region2: #{gru_forward.1} parent=0 // pred_check
    _
  $region3: #{gru_forward.1} parent=0 // pred_check_branch
    %13 = sbr.rel (0) target = $region5
  $region4: #{gru_forward.1} parent=0 // pred_region
    _
  $region5: #{gru_forward.1} parent=0 // pred_fallthru
    _
  // Predicated region
  $region6: #{gru_forward.1} parent=0 // pred_check
    _
  $region7: #{gru_forward.1} parent=0 // pred_check_branch
    %15 = sbr.rel (0) target = $region9
  $region8: #{gru_forward.1} parent=0 // pred_region
    _
  $region9: #{gru_forward.1} parent=0 // pred_fallthru
    _
  // Predicated region
  $region10: #{gru_forward.1} parent=0 // pred_check
    _
  $region11: #{gru_forward.1} parent=0 // pred_check_branch
    %17 = sbr.rel (0) target = $region13
  $region12: #{gru_forward.1} parent=0 // pred_region
    _
  $region13: #{gru_forward.1} parent=0 // pred_fallthru
    _
  // Predicated region
  $region14: #{gru_forward.1} parent=0 // pred_check
    _
  $region15: #{gru_forward.1} parent=0 // pred_check_branch
    %19 = sbr.rel (0) target = $region17
  $region16: #{gru_forward.1} parent=0 // pred_region
    _
  $region17: #{gru_forward.1} parent=0 // pred_fallthru
    _
  // Predicated region
  $region18: #{gru_forward.1} parent=0 // pred_check
    _
  $region19: #{gru_forward.1} parent=0 // pred_check_branch
    %21 = sbr.rel (0) target = $region21
  $region20: #{gru_forward.1} parent=0 // pred_region
    _
  $region21: #{gru_forward.1} parent=0 // pred_fallthru
    _
  // Predicated region
  $region22: #{gru_forward.1} parent=0 // pred_check
    _
  $region23: #{gru_forward.1} parent=0 // pred_check_branch
    %23 = sbr.rel (0) target = $region25
  $region24: #{gru_forward.1} parent=0 // pred_region
    _
  $region25: #{gru_forward.1} parent=0 // pred_fallthru
    _
  // Predicated region
  $region26: #{gru_forward.1} parent=0 // pred_check
    _
  $region27: #{gru_forward.1} parent=0 // pred_check_branch
    %25 = sbr.rel (0) target = $region29
  $region28: #{gru_forward.1} parent=0 // pred_region
    _
  $region29: #{gru_forward.1} parent=0 // pred_fallthru
    _
  %v27 = vld [vmem:[%s0] sm:$0xf]
  %v28 = vld [vmem:[%s0 + $0x4] sm:$0xf]
  %v29 = vld [vmem:[%s0 + $0x8] sm:$0xf]
  %v30 = vld [vmem:[%s0 + $0xc] sm:$0xf]
  %v31 = vld [vmem:[%s0 + $0x10] sm:$0xf]
  %v32 = vld [vmem:[%s0 + $0x14] sm:$0xf]
  %v33 = vld [vmem:[%s0 + $0x18] sm:$0xf]
  %v34 = vld [vmem:[%s0 + $0x1c] sm:$0xf]
  %v35 = vld [vmem:[%s1] sm:$0xff]
  %v36 = vld [vmem:[%s1 + $0x8] sm:$0xf]
  %v37 = vld [vmem:[%s1 + $0xc] sm:$0xff]
  %v38 = vld [vmem:[%s1 + $0x14] sm:$0xf]
  %v39 = vld [vmem:[%s1 + $0x18] sm:$0xff]
  %v40 = vld [vmem:[%s1 + $0x20] sm:$0xf]
  %v41 = vld [vmem:[%s1 + $0x24] sm:$0xff]
  %v42 = vld [vmem:[%s1 + $0x2c] sm:$0xf]
  %v43 = vld [vmem:[%s1 + $0x30] sm:$0xff]
  %v44 = vld [vmem:[%s1 + $0x38] sm:$0xf]
  %v45 = vld [vmem:[%s1 + $0x3c] sm:$0xff]
  %v46 = vld [vmem:[%s1 + $0x44] sm:$0xf]
  %v47 = vld [vmem:[%s1 + $0x48] sm:$0xff]
  %v48 = vld [vmem:[%s1 + $0x50] sm:$0xf]
  %v49 = vld [vmem:[%s1 + $0x54] sm:$0xff]
  %v50 = vld [vmem:[%s1 + $0x5c] sm:$0xf]
  %v51 = vld [vmem:[%s1 + $0x60] sm:$0xff]
  %v52 = vld [vmem:[%s1 + $0x68] sm:$0xf]
  %v53 = vld [vmem:[%s1 + $0x6c] sm:$0xff]
  %v54 = vld [vmem:[%s1 + $0x74] sm:$0xf]
  %v55 = vld [vmem:[%s1 + $0x78] sm:$0xff]
  %v56 = vld [vmem:[%s1 + $0x80] sm:$0xf]
  %v57 = vld [vmem:[%s1 + $0x84] sm:$0xff]
  %v58 = vld [vmem:[%s1 + $0x8c] sm:$0xf]
  %v59 = vld [vmem:[%s1 + $0x90] sm:$0xff]
  %v60 = vld [vmem:[%s1 + $0x98] sm:$0xf]
  %v61 = vld [vmem:[%s1 + $0x9c] sm:$0xff]
  %v62 = vld [vmem:[%s1 + $0xa4] sm:$0xf]
  %v63 = vld [vmem:[%s1 + $0xa8] sm:$0xff]
  %v64 = vld [vmem:[%s1 + $0xb0] sm:$0xf]
  %v65 = vld [vmem:[%s1 + $0xb4] sm:$0xff]
  %v66 = vld [vmem:[%s1 + $0xbc] sm:$0xf]
  %v67 = vld [vmem:[%s3] sm:$0x7]
  %v69 = vlaneseq
  %v70 = vshrl.u32 %v69, 7
  %v71 = vsub.s32 0, %v70
  %v72 = vrot.slane %v67, %v71
  %v73 = vlaneseq
  %v74 = vshrl.u32 %v73, 7
  %v75 = vsub.s32 1, %v74
  %v76 = vrot.slane %v67, %v75
  %v77 = vlaneseq
  %v78 = vshrl.u32 %v77, 7
  %v79 = vsub.s32 2, %v78
  %v80 = vrot.slane %v67, %v79
  %v92 = vunpack.c.l.b16 %v27
  %v93 = vunpack.c.l.b16 %v28
  %v94 = vunpack.c.l.b16 %v29
  %v95 = vunpack.c.l.b16 %v30
  %v96 = vunpack.c.l.b16 %v31
  %v97 = vunpack.c.l.b16 %v32
  %v98 = vunpack.c.l.b16 %v33
  %v99 = vunpack.c.l.b16 %v34
  %v100 = vpack.c.b16 %v93, %v92
  %v101 = vpack.c.b16 %v95, %v94
  %v102 = vpack.c.b16 %v97, %v96
  %v103 = vpack.c.b16 %v99, %v98
  %v140 = vunpack.c.l.b16 %v35
  %v141 = vunpack.c.h.b16 %v35
  %v142 = vunpack.c.l.b16 %v36
  %v143 = vunpack.c.l.b16 %v37
  %v144 = vunpack.c.h.b16 %v37
  %v145 = vunpack.c.l.b16 %v38
  %v146 = vunpack.c.l.b16 %v39
  %v147 = vunpack.c.h.b16 %v39
  %v148 = vunpack.c.l.b16 %v40
  %v149 = vunpack.c.l.b16 %v41
  %v150 = vunpack.c.h.b16 %v41
  %v151 = vunpack.c.l.b16 %v42
  %v152 = vunpack.c.l.b16 %v43
  %v153 = vunpack.c.h.b16 %v43
  %v154 = vunpack.c.l.b16 %v44
  %v155 = vunpack.c.l.b16 %v45
  %v156 = vunpack.c.h.b16 %v45
  %v157 = vunpack.c.l.b16 %v46
  %v158 = vunpack.c.l.b16 %v47
  %v159 = vunpack.c.h.b16 %v47
  %v160 = vunpack.c.l.b16 %v48
  %v161 = vunpack.c.l.b16 %v49
  %v162 = vunpack.c.h.b16 %v49
  %v163 = vunpack.c.l.b16 %v50
  %v164 = vunpack.c.l.b16 %v51
  %v165 = vunpack.c.h.b16 %v51
  %v166 = vunpack.c.l.b16 %v52
  %v167 = vunpack.c.l.b16 %v53
  %v168 = vunpack.c.h.b16 %v53
  %v169 = vunpack.c.l.b16 %v54
  %v170 = vunpack.c.l.b16 %v55
  %v171 = vunpack.c.h.b16 %v55
  %v172 = vunpack.c.l.b16 %v56
  %v173 = vunpack.c.l.b16 %v57
  %v174 = vunpack.c.h.b16 %v57
  %v175 = vunpack.c.l.b16 %v58
  %v176 = vunpack.c.l.b16 %v59
  %v177 = vunpack.c.h.b16 %v59
  %v178 = vunpack.c.l.b16 %v60
  %v179 = vunpack.c.l.b16 %v61
  %v180 = vunpack.c.h.b16 %v61
  %v181 = vunpack.c.l.b16 %v62
  %v182 = vunpack.c.l.b16 %v63
  %v183 = vunpack.c.h.b16 %v63
  %v184 = vunpack.c.l.b16 %v64
  %v185 = vunpack.c.l.b16 %v65
  %v186 = vunpack.c.h.b16 %v65
  %v187 = vunpack.c.l.b16 %v66
  %v188 = vpack.c.b16 %v143, %v140
  %v189 = vpack.c.b16 %v144, %v141
  %v190 = vpack.c.b16 %v145, %v142
  %v191 = vpack.c.b16 %v149, %v146
  %v192 = vpack.c.b16 %v150, %v147
  %v193 = vpack.c.b16 %v151, %v148
  %v194 = vpack.c.b16 %v155, %v152
  %v195 = vpack.c.b16 %v156, %v153
  %v196 = vpack.c.b16 %v157, %v154
  %v197 = vpack.c.b16 %v161, %v158
  %v198 = vpack.c.b16 %v162, %v159
  %v199 = vpack.c.b16 %v163, %v160
  %v200 = vpack.c.b16 %v167, %v164
  %v201 = vpack.c.b16 %v168, %v165
  %v202 = vpack.c.b16 %v169, %v166
  %v203 = vpack.c.b16 %v173, %v170
  %v204 = vpack.c.b16 %v174, %v171
  %v205 = vpack.c.b16 %v175, %v172
  %v206 = vpack.c.b16 %v179, %v176
  %v207 = vpack.c.b16 %v180, %v177
  %v208 = vpack.c.b16 %v181, %v178
  %v209 = vpack.c.b16 %v185, %v182
  %v210 = vpack.c.b16 %v186, %v183
  %v211 = vpack.c.b16 %v187, %v184
  %236 = vmatprep.subr.bf16.mxu0 %v189
  %237 = vmatpush1.bf16.msra.mxu0 %v188
  %238 = vmatprep.subr.bf16.mxu0 %v192
  %239 = vmatpush1.bf16.msra.mxu0 %v191
  %240 = vmatprep.subr.bf16.mxu0 %v195
  %241 = vmatpush1.bf16.msra.mxu0 %v194
  %242 = vmatprep.subr.bf16.mxu0 %v198
  %243 = vmatpush1.bf16.msra.mxu0 %v197
  %244 = vmatprep.subr.bf16.mxu0 %v201
  %245 = vmatpush1.bf16.msra.mxu0 %v200
  %246 = vmatprep.subr.bf16.mxu0 %v204
  %247 = vmatpush1.bf16.msra.mxu0 %v203
  %248 = vmatprep.subr.bf16.mxu0 %v207
  %249 = vmatpush1.bf16.msra.mxu0 %v206
  %250 = vmatprep.subr.bf16.mxu0 %v210
  %251 = vmatpush1.bf16.msra.mxu0 %v209
  %252 = vmatprep.subr.bf16.mxu0 0
  %253 = vmatpush1.bf16.msra.mxu0 0
  %254 = vmatprep.subr.bf16.mxu0 0
  %255 = vmatpush1.bf16.msra.mxu0 0
  %256 = vmatprep.subr.bf16.mxu0 0
  %257 = vmatpush1.bf16.msra.mxu0 0
  %258 = vmatprep.subr.bf16.mxu0 0
  %259 = vmatpush1.bf16.msra.mxu0 0
  %260 = vmatprep.subr.bf16.mxu0 0
  %261 = vmatpush1.bf16.msra.mxu0 0
  %262 = vmatprep.subr.bf16.mxu0 0
  %263 = vmatpush1.bf16.msra.mxu0 0
  %264 = vmatprep.subr.bf16.mxu0 0
  %265 = vmatpush1.bf16.msra.mxu0 0
  %266 = vmatprep.subr.bf16.mxu0 0
  %267 = vmatpush1.bf16.msra.mxu0 0
  %268 = vmatprep.mubr.bf16.mxu0 0
  %269 = vmatmul.mubr.bf16.gmra.mrb[0].mxu0 %v100
  %v270 = vpop.f32.mrb[0].mxu0
  %v271 = vadd.f32 %v72, %v270
  %v272 = vpop.f32.mrb[0].mxu0
  %v273 = vadd.f32 %v76, %v272
  %v274 = vpop.f32.mrb[0].mxu0
  %v275 = vadd.f32 %v72, %v274
  %v276 = vpop.f32.mrb[0].mxu0
  %v277 = vadd.f32 %v76, %v276
  %278 = vmatprep.mubr.bf16.mxu0 0
  %279 = vmatmul.mubr.bf16.gmra.mrb[0].mxu0 %v101
  %v280 = vpop.f32.mrb[0].mxu0
  %v281 = vadd.f32 %v72, %v280
  %v282 = vpop.f32.mrb[0].mxu0
  %v283 = vadd.f32 %v76, %v282
  %v284 = vpop.f32.mrb[0].mxu0
  %v285 = vadd.f32 %v72, %v284
  %v286 = vpop.f32.mrb[0].mxu0
  %v287 = vadd.f32 %v76, %v286
  %288 = vmatprep.mubr.bf16.mxu0 0
  %289 = vmatmul.mubr.bf16.gmra.mrb[0].mxu0 %v102
  %v290 = vpop.f32.mrb[0].mxu0
  %v291 = vadd.f32 %v72, %v290
  %v292 = vpop.f32.mrb[0].mxu0
  %v293 = vadd.f32 %v76, %v292
  %v294 = vpop.f32.mrb[0].mxu0
  %v295 = vadd.f32 %v72, %v294
  %v296 = vpop.f32.mrb[0].mxu0
  %v297 = vadd.f32 %v76, %v296
  %298 = vmatprep.mubr.bf16.mxu0 0
  %299 = vmatmul.mubr.bf16.gmra.mrb[0].mxu0 %v103
  %v300 = vpop.f32.mrb[0].mxu0
  %v301 = vadd.f32 %v72, %v300
  %v302 = vpop.f32.mrb[0].mxu0
  %v303 = vadd.f32 %v76, %v302
  %v304 = vpop.f32.mrb[0].mxu0
  %v305 = vadd.f32 %v72, %v304
  %v306 = vpop.f32.mrb[0].mxu0
  %v307 = vadd.f32 %v76, %v306
  %308 = vdwg.mxu0
  %309 = vmatprep.subr.bf16.mxu0 0
  %310 = vmatpush1.bf16.msra.mxu0 %v190
  %311 = vmatprep.subr.bf16.mxu0 0
  %312 = vmatpush1.bf16.msra.mxu0 %v193
  %313 = vmatprep.subr.bf16.mxu0 0
  %314 = vmatpush1.bf16.msra.mxu0 %v196
  %315 = vmatprep.subr.bf16.mxu0 0
  %316 = vmatpush1.bf16.msra.mxu0 %v199
  %317 = vmatprep.subr.bf16.mxu0 0
  %318 = vmatpush1.bf16.msra.mxu0 %v202
  %319 = vmatprep.subr.bf16.mxu0 0
  %320 = vmatpush1.bf16.msra.mxu0 %v205
  %321 = vmatprep.subr.bf16.mxu0 0
  %322 = vmatpush1.bf16.msra.mxu0 %v208
  %323 = vmatprep.subr.bf16.mxu0 0
  %324 = vmatpush1.bf16.msra.mxu0 %v211
  %325 = vmatprep.subr.bf16.mxu0 0
  %326 = vmatpush1.bf16.msra.mxu0 0
  %327 = vmatprep.subr.bf16.mxu0 0
  %328 = vmatpush1.bf16.msra.mxu0 0
  %329 = vmatprep.subr.bf16.mxu0 0
  %330 = vmatpush1.bf16.msra.mxu0 0
  %331 = vmatprep.subr.bf16.mxu0 0
  %332 = vmatpush1.bf16.msra.mxu0 0
  %333 = vmatprep.subr.bf16.mxu0 0
  %334 = vmatpush1.bf16.msra.mxu0 0
  %335 = vmatprep.subr.bf16.mxu0 0
  %336 = vmatpush1.bf16.msra.mxu0 0
  %337 = vmatprep.subr.bf16.mxu0 0
  %338 = vmatpush1.bf16.msra.mxu0 0
  %339 = vmatprep.subr.bf16.mxu0 0
  %340 = vmatpush1.bf16.msra.mxu0 0
  %341 = vmatprep.mubr.bf16.mxu0 0
  %342 = vmatmul.mubr.bf16.gmra.mrb[0].mxu0 %v100
  %v343 = vpop.f32.mrb[0].mxu0
  %v344 = vadd.f32 %v80, %v343
  %v345 = vpop.f32.mrb[0].mxu0
  %v346 = vpop.f32.mrb[0].mxu0
  %v347 = vadd.f32 %v80, %v346
  %v348 = vpop.f32.mrb[0].mxu0
  %349 = vmatprep.mubr.bf16.mxu0 0
  %350 = vmatmul.mubr.bf16.gmra.mrb[0].mxu0 %v101
  %v351 = vpop.f32.mrb[0].mxu0
  %v352 = vadd.f32 %v80, %v351
  %v353 = vpop.f32.mrb[0].mxu0
  %v354 = vpop.f32.mrb[0].mxu0
  %v355 = vadd.f32 %v80, %v354
  %v356 = vpop.f32.mrb[0].mxu0
  %357 = vmatprep.mubr.bf16.mxu0 0
  %358 = vmatmul.mubr.bf16.gmra.mrb[0].mxu0 %v102
  %v359 = vpop.f32.mrb[0].mxu0
  %v360 = vadd.f32 %v80, %v359
  %v361 = vpop.f32.mrb[0].mxu0
  %v362 = vpop.f32.mrb[0].mxu0
  %v363 = vadd.f32 %v80, %v362
  %v364 = vpop.f32.mrb[0].mxu0
  %365 = vmatprep.mubr.bf16.mxu0 0
  %366 = vmatmul.mubr.bf16.gmra.mrb[0].mxu0 %v103
  %v367 = vpop.f32.mrb[0].mxu0
  %v368 = vadd.f32 %v80, %v367
  %v369 = vpop.f32.mrb[0].mxu0
  %v370 = vpop.f32.mrb[0].mxu0
  %v371 = vadd.f32 %v80, %v370
  %v372 = vpop.f32.mrb[0].mxu0
  %373 = vdwg.mxu0
  %374 = vst [vmem:[#allocation2] sm:$0xff] %v271
  %375 = vst [vmem:[#allocation2 + $0x8] sm:$0xff] %v273
  %376 = vst [vmem:[#allocation2 + $0x10] sm:$0xff] %v344
  %377 = vst [vmem:[#allocation2 + $0x18] sm:$0xff] %v275
  %378 = vst [vmem:[#allocation2 + $0x20] sm:$0xff] %v277
  %379 = vst [vmem:[#allocation2 + $0x28] sm:$0xff] %v347
  %380 = vst [vmem:[#allocation2 + $0x30] sm:$0xff] %v281
  %381 = vst [vmem:[#allocation2 + $0x38] sm:$0xff] %v283
  %382 = vst [vmem:[#allocation2 + $0x40] sm:$0xff] %v352
  %383 = vst [vmem:[#allocation2 + $0x48] sm:$0xff] %v285
  %384 = vst [vmem:[#allocation2 + $0x50] sm:$0xff] %v287
  %385 = vst [vmem:[#allocation2 + $0x58] sm:$0xff] %v355
  %386 = vst [vmem:[#allocation2 + $0x60] sm:$0xff] %v291
  %387 = vst [vmem:[#allocation2 + $0x68] sm:$0xff] %v293
  %388 = vst [vmem:[#allocation2 + $0x70] sm:$0xff] %v360
  %389 = vst [vmem:[#allocation2 + $0x78] sm:$0xff] %v295
  %390 = vst [vmem:[#allocation2 + $0x80] sm:$0xff] %v297
  %391 = vst [vmem:[#allocation2 + $0x88] sm:$0xff] %v363
  %392 = vst [vmem:[#allocation2 + $0x90] sm:$0xff] %v301
  %393 = vst [vmem:[#allocation2 + $0x98] sm:$0xff] %v303
  %394 = vst [vmem:[#allocation2 + $0xa0] sm:$0xff] %v368
  %395 = vst [vmem:[#allocation2 + $0xa8] sm:$0xff] %v305
  %396 = vst [vmem:[#allocation2 + $0xb0] sm:$0xff] %v307
  %397 = vst [vmem:[#allocation2 + $0xb8] sm:$0xff] %v371
  %s398 = scalar_lea.vmem %s3, 3
  %v399 = vld [vmem:[%s398] sm:$0x7]
  %v401 = vlaneseq
  %v402 = vshrl.u32 %v401, 7
  %v403 = vsub.s32 0, %v402
  %v404 = vrot.slane %v399, %v403
  %v405 = vlaneseq
  %v406 = vshrl.u32 %v405, 7
  %v407 = vsub.s32 1, %v406
  %v408 = vrot.slane %v399, %v407
  %v409 = vlaneseq
  %v410 = vshrl.u32 %v409, 7
  %v411 = vsub.s32 2, %v410
  %v412 = vrot.slane %v399, %v411
  %s416 = scalar_lea.vmem %s3, 6
  %v417 = vld [vmem:[%s416] sm:$0x7]
  %v419 = vlaneseq
  %v420 = vshrl.u32 %v419, 7
  %v421 = vsub.s32 0, %v420
  %v422 = vrot.slane %v417, %v421
  %v423 = vlaneseq
  %v424 = vshrl.u32 %v423, 7
  %v425 = vsub.s32 1, %v424
  %v426 = vrot.slane %v417, %v425
  %v427 = vlaneseq
  %v428 = vshrl.u32 %v427, 7
  %v429 = vsub.s32 2, %v428
  %v430 = vrot.slane %v417, %v429
  %v434 = vld [vmem:[%s4] sm:$0x1]
  %v436 = vlaneseq
  %v437 = vshrl.u32 %v436, 7
  %v438 = vsub.s32 0, %v437
  %v439 = vrot.slane %v434, %v438
  %s441 = scalar_lea.vmem %s4, 1
  %v442 = vld [vmem:[%s441] sm:$0x1]
  %v444 = vlaneseq
  %v445 = vshrl.u32 %v444, 7
  %v446 = vsub.s32 0, %v445
  %v447 = vrot.slane %v442, %v446
  %s449 = scalar_lea.vmem %s4, 2
  %v450 = vld [vmem:[%s449] sm:$0x1]
  %v452 = vlaneseq
  %v453 = vshrl.u32 %v452, 7
  %v454 = vsub.s32 0, %v453
  %v455 = vrot.slane %v450, %v454
  %v457 = vld [vmem:[#allocation2] sm:$0xff]
  %v458 = vld [vmem:[#allocation2 + $0x8] sm:$0xff]
  %v459 = vld [vmem:[#allocation2 + $0x10] sm:$0xff]
  %v460 = vld [vmem:[%s2] sm:$0xff]
  %v461 = vld [vmem:[%s2 + $0x8] sm:$0xf]
  %v462 = vld [vmem:[%s2 + $0xc] sm:$0xff]
  %v463 = vld [vmem:[%s2 + $0x14] sm:$0xf]
  %v464 = vld [vmem:[%s2 + $0x18] sm:$0xff]
  %v465 = vld [vmem:[%s2 + $0x20] sm:$0xf]
  %v466 = vld [vmem:[%s2 + $0x24] sm:$0xff]
  %v467 = vld [vmem:[%s2 + $0x2c] sm:$0xf]
  %v468 = vld [vmem:[%s2 + $0x30] sm:$0xff]
  %v469 = vld [vmem:[%s2 + $0x38] sm:$0xf]
  %v470 = vld [vmem:[%s2 + $0x3c] sm:$0xff]
  %v471 = vld [vmem:[%s2 + $0x44] sm:$0xf]
  %v472 = vld [vmem:[%s2 + $0x48] sm:$0xff]
  %v473 = vld [vmem:[%s2 + $0x50] sm:$0xf]
  %v474 = vld [vmem:[%s2 + $0x54] sm:$0xff]
  %v475 = vld [vmem:[%s2 + $0x5c] sm:$0xf]
  %v476 = vld [vmem:[%s2 + $0x60] sm:$0xff]
  %v477 = vld [vmem:[%s2 + $0x68] sm:$0xf]
  %v478 = vld [vmem:[%s2 + $0x6c] sm:$0xff]
  %v479 = vld [vmem:[%s2 + $0x74] sm:$0xf]
  %v480 = vld [vmem:[%s2 + $0x78] sm:$0xff]
  %v481 = vld [vmem:[%s2 + $0x80] sm:$0xf]
  %v482 = vld [vmem:[%s2 + $0x84] sm:$0xff]
  %v483 = vld [vmem:[%s2 + $0x8c] sm:$0xf]
  %v484 = vld [vmem:[%s2 + $0x90] sm:$0xff]
  %v485 = vld [vmem:[%s2 + $0x98] sm:$0xf]
  %v486 = vld [vmem:[%s2 + $0x9c] sm:$0xff]
  %v487 = vld [vmem:[%s2 + $0xa4] sm:$0xf]
  %v488 = vld [vmem:[%s2 + $0xa8] sm:$0xff]
  %v489 = vld [vmem:[%s2 + $0xb0] sm:$0xf]
  %v490 = vld [vmem:[%s2 + $0xb4] sm:$0xff]
  %v491 = vld [vmem:[%s2 + $0xbc] sm:$0xf]
  %v524 = vunpack.c.l.b16 %v460
  %v525 = vunpack.c.h.b16 %v460
  %v526 = vunpack.c.l.b16 %v461
  %v527 = vunpack.c.l.b16 %v462
  %v528 = vunpack.c.h.b16 %v462
  %v529 = vunpack.c.l.b16 %v463
  %v530 = vunpack.c.l.b16 %v464
  %v531 = vunpack.c.h.b16 %v464
  %v532 = vunpack.c.l.b16 %v465
  %v533 = vunpack.c.l.b16 %v466
  %v534 = vunpack.c.h.b16 %v466
  %v535 = vunpack.c.l.b16 %v467
  %v536 = vunpack.c.l.b16 %v468
  %v537 = vunpack.c.h.b16 %v468
  %v538 = vunpack.c.l.b16 %v469
  %v539 = vunpack.c.l.b16 %v470
  %v540 = vunpack.c.h.b16 %v470
  %v541 = vunpack.c.l.b16 %v471
  %v542 = vunpack.c.l.b16 %v472
  %v543 = vunpack.c.h.b16 %v472
  %v544 = vunpack.c.l.b16 %v473
  %v545 = vunpack.c.l.b16 %v474
  %v546 = vunpack.c.h.b16 %v474
  %v547 = vunpack.c.l.b16 %v475
  %v548 = vunpack.c.l.b16 %v476
  %v549 = vunpack.c.h.b16 %v476
  %v550 = vunpack.c.l.b16 %v477
  %v551 = vunpack.c.l.b16 %v478
  %v552 = vunpack.c.h.b16 %v478
  %v553 = vunpack.c.l.b16 %v479
  %v554 = vunpack.c.l.b16 %v480
  %v555 = vunpack.c.h.b16 %v480
  %v556 = vunpack.c.l.b16 %v481
  %v557 = vunpack.c.l.b16 %v482
  %v558 = vunpack.c.h.b16 %v482
  %v559 = vunpack.c.l.b16 %v483
  %v560 = vunpack.c.l.b16 %v484
  %v561 = vunpack.c.h.b16 %v484
  %v562 = vunpack.c.l.b16 %v485
  %v563 = vunpack.c.l.b16 %v486
  %v564 = vunpack.c.h.b16 %v486
  %v565 = vunpack.c.l.b16 %v487
  %v566 = vunpack.c.l.b16 %v488
  %v567 = vunpack.c.h.b16 %v488
  %v568 = vunpack.c.l.b16 %v489
  %v569 = vunpack.c.l.b16 %v490
  %v570 = vunpack.c.h.b16 %v490
  %v571 = vunpack.c.l.b16 %v491
  %v572 = vpack.c.b16 %v527, %v524
  %v573 = vpack.c.b16 %v528, %v525
  %v574 = vpack.c.b16 %v529, %v526
  %v575 = vpack.c.b16 %v533, %v530
  %v576 = vpack.c.b16 %v534, %v531
  %v577 = vpack.c.b16 %v535, %v532
  %v578 = vpack.c.b16 %v539, %v536
  %v579 = vpack.c.b16 %v540, %v537
  %v580 = vpack.c.b16 %v541, %v538
  %v581 = vpack.c.b16 %v545, %v542
  %v582 = vpack.c.b16 %v546, %v543
  %v583 = vpack.c.b16 %v547, %v544
  %v584 = vpack.c.b16 %v551, %v548
  %v585 = vpack.c.b16 %v552, %v549
  %v586 = vpack.c.b16 %v553, %v550
  %v587 = vpack.c.b16 %v557, %v554
  %v588 = vpack.c.b16 %v558, %v555
  %v589 = vpack.c.b16 %v559, %v556
  %v590 = vpack.c.b16 %v563, %v560
  %v591 = vpack.c.b16 %v564, %v561
  %v592 = vpack.c.b16 %v565, %v562
  %v593 = vpack.c.b16 %v569, %v566
  %v594 = vpack.c.b16 %v570, %v567
  %v595 = vpack.c.b16 %v571, %v568
  %620 = vmatprep.subr.bf16.mxu0 %v573
  %621 = vmatpush1.bf16.msra.mxu0 %v572
  %622 = vmatprep.subr.bf16.mxu0 %v576
  %623 = vmatpush1.bf16.msra.mxu0 %v575
  %624 = vmatprep.subr.bf16.mxu0 %v579
  %625 = vmatpush1.bf16.msra.mxu0 %v578
  %626 = vmatprep.subr.bf16.mxu0 %v582
  %627 = vmatpush1.bf16.msra.mxu0 %v581
  %628 = vmatprep.subr.bf16.mxu0 %v585
  %629 = vmatpush1.bf16.msra.mxu0 %v584
  %630 = vmatprep.subr.bf16.mxu0 %v588
  %631 = vmatpush1.bf16.msra.mxu0 %v587
  %632 = vmatprep.subr.bf16.mxu0 %v591
  %633 = vmatpush1.bf16.msra.mxu0 %v590
  %634 = vmatprep.subr.bf16.mxu0 %v594
  %635 = vmatpush1.bf16.msra.mxu0 %v593
  %636 = vmatprep.subr.bf16.mxu0 0
  %637 = vmatpush1.bf16.msra.mxu0 0
  %638 = vmatprep.subr.bf16.mxu0 0
  %639 = vmatpush1.bf16.msra.mxu0 0
  %640 = vmatprep.subr.bf16.mxu0 0
  %641 = vmatpush1.bf16.msra.mxu0 0
  %642 = vmatprep.subr.bf16.mxu0 0
  %643 = vmatpush1.bf16.msra.mxu0 0
  %644 = vmatprep.subr.bf16.mxu0 0
  %645 = vmatpush1.bf16.msra.mxu0 0
  %646 = vmatprep.subr.bf16.mxu0 0
  %647 = vmatpush1.bf16.msra.mxu0 0
  %648 = vmatprep.subr.bf16.mxu0 0
  %649 = vmatpush1.bf16.msra.mxu0 0
  %650 = vmatprep.subr.bf16.mxu0 0
  %651 = vmatpush1.bf16.msra.mxu0 0
  %652 = vmatprep.mubr.bf16.mxu0 0
  %653 = vmatmul.mubr.bf16.gmra.mrb[0].mxu0 0
  %v654 = vpop.f32.mrb[0].mxu0
  %v655 = vadd.f32 0.0, %v654
  %v656 = vpop.f32.mrb[0].mxu0
  %v657 = vadd.f32 0.0, %v656
  %v658 = vpop.f32.mrb[0].mxu0
  %v659 = vpop.f32.mrb[0].mxu0
  %660 = vdwg.mxu0
  %661 = vmatprep.subr.bf16.mxu0 0
  %662 = vmatpush1.bf16.msra.mxu0 %v574
  %663 = vmatprep.subr.bf16.mxu0 0
  %664 = vmatpush1.bf16.msra.mxu0 %v577
  %665 = vmatprep.subr.bf16.mxu0 0
  %666 = vmatpush1.bf16.msra.mxu0 %v580
  %667 = vmatprep.subr.bf16.mxu0 0
  %668 = vmatpush1.bf16.msra.mxu0 %v583
  %669 = vmatprep.subr.bf16.mxu0 0
  %670 = vmatpush1.bf16.msra.mxu0 %v586
  %671 = vmatprep.subr.bf16.mxu0 0
  %672 = vmatpush1.bf16.msra.mxu0 %v589
  %673 = vmatprep.subr.bf16.mxu0 0
  %674 = vmatpush1.bf16.msra.mxu0 %v592
  %675 = vmatprep.subr.bf16.mxu0 0
  %676 = vmatpush1.bf16.msra.mxu0 %v595
  %677 = vmatprep.subr.bf16.mxu0 0
  %678 = vmatpush1.bf16.msra.mxu0 0
  %679 = vmatprep.subr.bf16.mxu0 0
  %680 = vmatpush1.bf16.msra.mxu0 0
  %681 = vmatprep.subr.bf16.mxu0 0
  %682 = vmatpush1.bf16.msra.mxu0 0
  %683 = vmatprep.subr.bf16.mxu0 0
  %684 = vmatpush1.bf16.msra.mxu0 0
  %685 = vmatprep.subr.bf16.mxu0 0
  %686 = vmatpush1.bf16.msra.mxu0 0
  %687 = vmatprep.subr.bf16.mxu0 0
  %688 = vmatpush1.bf16.msra.mxu0 0
  %689 = vmatprep.subr.bf16.mxu0 0
  %690 = vmatpush1.bf16.msra.mxu0 0
  %691 = vmatprep.subr.bf16.mxu0 0
  %692 = vmatpush1.bf16.msra.mxu0 0
  %693 = vmatprep.mubr.bf16.mxu0 0
  %694 = vmatmul.mubr.bf16.gmra.mrb[0].mxu0 0
  %v695 = vpop.f32.mrb[0].mxu0
  %v696 = vadd.f32 0.0, %v695
  %v697 = vpop.f32.mrb[0].mxu0
  %v698 = vpop.f32.mrb[0].mxu0
  %v699 = vpop.f32.mrb[0].mxu0
  %700 = vdwg.mxu0
  %v701 = vadd.f32 %v457, %v655
  %v702 = vadd.f32 %v458, %v657
  %v703 = vadd.f32 %v696, %v439
  %v704 = vxor.u32 %v701, 2147483648
  %v705 = vmul.f32 %v704, 1.442695
  %v706 = vpow.pop %v705
  %v707 = vadd.f32 %v706, 1.0
  %v708 = vrcp.pop %v707
  %v709 = vmul.f32 1.0, %v708
  %v710 = vxor.u32 %v702, 2147483648
  %v711 = vmul.f32 %v710, 1.442695
  %v712 = vpow.pop %v711
  %v713 = vadd.f32 %v712, 1.0
  %v714 = vrcp.pop %v713
  %v715 = vmul.f32 1.0, %v714
  %v716 = vmul.f32 %v709, %v703
  %v717 = vadd.f32 %v459, %v716
  %v718 = vtanh.pop %v717
  %v719 = vsub.f32 1.0, %v715
  %v720 = vmul.f32 %v719, %v718
  %v721 = vmul.f32 %v715, 0.0
  %v722 = vadd.f32 %v720, %v721
  %v723 = vpack.c.bf16 %v722, %v722
  %v724 = vld [vmem:[#allocation2 + $0x18] sm:$0xff]
  %v725 = vld [vmem:[#allocation2 + $0x20] sm:$0xff]
  %v726 = vld [vmem:[#allocation2 + $0x28] sm:$0xff]
  %727 = vmatprep.subr.bf16.mxu0 %v573
  %728 = vmatpush1.bf16.msra.mxu0 %v572
  %729 = vmatprep.subr.bf16.mxu0 %v576
  %730 = vmatpush1.bf16.msra.mxu0 %v575
  %731 = vmatprep.subr.bf16.mxu0 %v579
  %732 = vmatpush1.bf16.msra.mxu0 %v578
  %733 = vmatprep.subr.bf16.mxu0 %v582
  %734 = vmatpush1.bf16.msra.mxu0 %v581
  %735 = vmatprep.subr.bf16.mxu0 %v585
  %736 = vmatpush1.bf16.msra.mxu0 %v584
  %737 = vmatprep.subr.bf16.mxu0 %v588
  %738 = vmatpush1.bf16.msra.mxu0 %v587
  %739 = vmatprep.subr.bf16.mxu0 %v591
  %740 = vmatpush1.bf16.msra.mxu0 %v590
  %741 = vmatprep.subr.bf16.mxu0 %v594
  %742 = vmatpush1.bf16.msra.mxu0 %v593
  %743 = vmatprep.subr.bf16.mxu0 0
  %744 = vmatpush1.bf16.msra.mxu0 0
  %745 = vmatprep.subr.bf16.mxu0 0
  %746 = vmatpush1.bf16.msra.mxu0 0
  %747 = vmatprep.subr.bf16.mxu0 0
  %748 = vmatpush1.bf16.msra.mxu0 0
  %749 = vmatprep.subr.bf16.mxu0 0
  %750 = vmatpush1.bf16.msra.mxu0 0
  %751 = vmatprep.subr.bf16.mxu0 0
  %752 = vmatpush1.bf16.msra.mxu0 0
  %753 = vmatprep.subr.bf16.mxu0 0
  %754 = vmatpush1.bf16.msra.mxu0 0
  %755 = vmatprep.subr.bf16.mxu0 0
  %756 = vmatpush1.bf16.msra.mxu0 0
  %757 = vmatprep.subr.bf16.mxu0 0
  %758 = vmatpush1.bf16.msra.mxu0 0
  %759 = vmatprep.mubr.bf16.mxu0 0
  %760 = vmatmul.mubr.bf16.gmra.mrb[0].mxu0 %v723
  %v761 = vpop.f32.mrb[0].mxu0
  %v762 = vadd.f32 0.0, %v761
  %v763 = vpop.f32.mrb[0].mxu0
  %v764 = vadd.f32 0.0, %v763
  %v765 = vpop.f32.mrb[0].mxu0
  %v766 = vpop.f32.mrb[0].mxu0
  %767 = vdwg.mxu0
  %768 = vmatprep.subr.bf16.mxu0 0
  %769 = vmatpush1.bf16.msra.mxu0 %v574
  %770 = vmatprep.subr.bf16.mxu0 0
  %771 = vmatpush1.bf16.msra.mxu0 %v577
  %772 = vmatprep.subr.bf16.mxu0 0
  %773 = vmatpush1.bf16.msra.mxu0 %v580
  %774 = vmatprep.subr.bf16.mxu0 0
  %775 = vmatpush1.bf16.msra.mxu0 %v583
  %776 = vmatprep.subr.bf16.mxu0 0
  %777 = vmatpush1.bf16.msra.mxu0 %v586
  %778 = vmatprep.subr.bf16.mxu0 0
  %779 = vmatpush1.bf16.msra.mxu0 %v589
  %780 = vmatprep.subr.bf16.mxu0 0
  %781 = vmatpush1.bf16.msra.mxu0 %v592
  %782 = vmatprep.subr.bf16.mxu0 0
  %783 = vmatpush1.bf16.msra.mxu0 %v595
  %784 = vmatprep.subr.bf16.mxu0 0
  %785 = vmatpush1.bf16.msra.mxu0 0
  %786 = vmatprep.subr.bf16.mxu0 0
  %787 = vmatpush1.bf16.msra.mxu0 0
  %788 = vmatprep.subr.bf16.mxu0 0
  %789 = vmatpush1.bf16.msra.mxu0 0
  %790 = vmatprep.subr.bf16.mxu0 0
  %791 = vmatpush1.bf16.msra.mxu0 0
  %792 = vmatprep.subr.bf16.mxu0 0
  %793 = vmatpush1.bf16.msra.mxu0 0
  %794 = vmatprep.subr.bf16.mxu0 0
  %795 = vmatpush1.bf16.msra.mxu0 0
  %796 = vmatprep.subr.bf16.mxu0 0
  %797 = vmatpush1.bf16.msra.mxu0 0
  %798 = vmatprep.subr.bf16.mxu0 0
  %799 = vmatpush1.bf16.msra.mxu0 0
  %800 = vmatprep.mubr.bf16.mxu0 0
  %801 = vmatmul.mubr.bf16.gmra.mrb[0].mxu0 %v723
  %v802 = vpop.f32.mrb[0].mxu0
  %v803 = vadd.f32 0.0, %v802
  %v804 = vpop.f32.mrb[0].mxu0
  %v805 = vpop.f32.mrb[0].mxu0
  %v806 = vpop.f32.mrb[0].mxu0
  %807 = vdwg.mxu0
  %v808 = vadd.f32 %v724, %v762
  %v809 = vadd.f32 %v725, %v764
  %v810 = vadd.f32 %v803, %v439
  %v811 = vxor.u32 %v808, 2147483648
  %v812 = vmul.f32 %v811, 1.442695
  %v813 = vpow.pop %v812
  %v814 = vadd.f32 %v813, 1.0
  %v815 = vrcp.pop %v814
  %v816 = vmul.f32 1.0, %v815
  %v817 = vxor.u32 %v809, 2147483648
  %v818 = vmul.f32 %v817, 1.442695
  %v819 = vpow.pop %v818
  %v820 = vadd.f32 %v819, 1.0
  %v821 = vrcp.pop %v820
  %v822 = vmul.f32 1.0, %v821
  %v823 = vmul.f32 %v816, %v810
  %v824 = vadd.f32 %v726, %v823
  %v825 = vtanh.pop %v824
  %v826 = vsub.f32 1.0, %v822
  %v827 = vmul.f32 %v826, %v825
  %v828 = vmul.f32 %v822, %v722
  %v829 = vadd.f32 %v827, %v828
  %s830 = scalar_lea.vmem %s1, 192
  %v831 = vld [vmem:[%s830] sm:$0xff]
  %v832 = vld [vmem:[%s830 + $0x8] sm:$0xf]
  %v833 = vld [vmem:[%s830 + $0xc] sm:$0xff]
  %v834 = vld [vmem:[%s830 + $0x14] sm:$0xf]
  %v835 = vld [vmem:[%s830 + $0x18] sm:$0xff]
  %v836 = vld [vmem:[%s830 + $0x20] sm:$0xf]
  %v837 = vld [vmem:[%s830 + $0x24] sm:$0xff]
  %v838 = vld [vmem:[%s830 + $0x2c] sm:$0xf]
  %v839 = vld [vmem:[%s830 + $0x30] sm:$0xff]
  %v840 = vld [vmem:[%s830 + $0x38] sm:$0xf]
  %v841 = vld [vmem:[%s830 + $0x3c] sm:$0xff]
  %v842 = vld [vmem:[%s830 + $0x44] sm:$0xf]
  %v843 = vld [vmem:[%s830 + $0x48] sm:$0xff]
  %v844 = vld [vmem:[%s830 + $0x50] sm:$0xf]
  %v845 = vld [vmem:[%s830 + $0x54] sm:$0xff]
  %v846 = vld [vmem:[%s830 + $0x5c] sm:$0xf]
  %v847 = vld [vmem:[%s830 + $0x60] sm:$0xff]
  %v848 = vld [vmem:[%s830 + $0x68] sm:$0xf]
  %v849 = vld [vmem:[%s830 + $0x6c] sm:$0xff]
  %v850 = vld [vmem:[%s830 + $0x74] sm:$0xf]
  %v851 = vld [vmem:[%s830 + $0x78] sm:$0xff]
  %v852 = vld [vmem:[%s830 + $0x80] sm:$0xf]
  %v853 = vld [vmem:[%s830 + $0x84] sm:$0xff]
  %v854 = vld [vmem:[%s830 + $0x8c] sm:$0xf]
  %v855 = vld [vmem:[%s830 + $0x90] sm:$0xff]
  %v856 = vld [vmem:[%s830 + $0x98] sm:$0xf]
  %v857 = vld [vmem:[%s830 + $0x9c] sm:$0xff]
  %v858 = vld [vmem:[%s830 + $0xa4] sm:$0xf]
  %v859 = vld [vmem:[%s830 + $0xa8] sm:$0xff]
  %v860 = vld [vmem:[%s830 + $0xb0] sm:$0xf]
  %v861 = vld [vmem:[%s830 + $0xb4] sm:$0xff]
  %v862 = vld [vmem:[%s830 + $0xbc] sm:$0xf]
  %v895 = vunpack.c.l.b16 %v831
  %v896 = vunpack.c.h.b16 %v831
  %v897 = vunpack.c.l.b16 %v832
  %v898 = vunpack.c.l.b16 %v833
  %v899 = vunpack.c.h.b16 %v833
  %v900 = vunpack.c.l.b16 %v834
  %v901 = vunpack.c.l.b16 %v835
  %v902 = vunpack.c.h.b16 %v835
  %v903 = vunpack.c.l.b16 %v836
  %v904 = vunpack.c.l.b16 %v837
  %v905 = vunpack.c.h.b16 %v837
  %v906 = vunpack.c.l.b16 %v838
  %v907 = vunpack.c.l.b16 %v839
  %v908 = vunpack.c.h.b16 %v839
  %v909 = vunpack.c.l.b16 %v840
  %v910 = vunpack.c.l.b16 %v841
  %v911 = vunpack.c.h.b16 %v841
  %v912 = vunpack.c.l.b16 %v842
  %v913 = vunpack.c.l.b16 %v843
  %v914 = vunpack.c.h.b16 %v843
  %v915 = vunpack.c.l.b16 %v844
  %v916 = vunpack.c.l.b16 %v845
  %v917 = vunpack.c.h.b16 %v845
  %v918 = vunpack.c.l.b16 %v846
  %v919 = vunpack.c.l.b16 %v847
  %v920 = vunpack.c.h.b16 %v847
  %v921 = vunpack.c.l.b16 %v848
  %v922 = vunpack.c.l.b16 %v849
  %v923 = vunpack.c.h.b16 %v849
  %v924 = vunpack.c.l.b16 %v850
  %v925 = vunpack.c.l.b16 %v851
  %v926 = vunpack.c.h.b16 %v851
  %v927 = vunpack.c.l.b16 %v852
  %v928 = vunpack.c.l.b16 %v853
  %v929 = vunpack.c.h.b16 %v853
  %v930 = vunpack.c.l.b16 %v854
  %v931 = vunpack.c.l.b16 %v855
  %v932 = vunpack.c.h.b16 %v855
  %v933 = vunpack.c.l.b16 %v856
  %v934 = vunpack.c.l.b16 %v857
  %v935 = vunpack.c.h.b16 %v857
  %v936 = vunpack.c.l.b16 %v858
  %v937 = vunpack.c.l.b16 %v859
  %v938 = vunpack.c.h.b16 %v859
  %v939 = vunpack.c.l.b16 %v860
  %v940 = vunpack.c.l.b16 %v861
  %v941 = vunpack.c.h.b16 %v861
  %v942 = vunpack.c.l.b16 %v862
  %v943 = vpack.c.b16 %v898, %v895
  %v944 = vpack.c.b16 %v899, %v896
  %v945 = vpack.c.b16 %v900, %v897
  %v946 = vpack.c.b16 %v904, %v901
  %v947 = vpack.c.b16 %v905, %v902
  %v948 = vpack.c.b16 %v906, %v903
  %v949 = vpack.c.b16 %v910, %v907
  %v950 = vpack.c.b16 %v911, %v908
  %v951 = vpack.c.b16 %v912, %v909
  %v952 = vpack.c.b16 %v916, %v913
  %v953 = vpack.c.b16 %v917, %v914
  %v954 = vpack.c.b16 %v918, %v915
  %v955 = vpack.c.b16 %v922, %v919
  %v956 = vpack.c.b16 %v923, %v920
  %v957 = vpack.c.b16 %v924, %v921
  %v958 = vpack.c.b16 %v928, %v925
  %v959 = vpack.c.b16 %v929, %v926
  %v960 = vpack.c.b16 %v930, %v927
  %v961 = vpack.c.b16 %v934, %v931
  %v962 = vpack.c.b16 %v935, %v932
  %v963 = vpack.c.b16 %v936, %v933
  %v964 = vpack.c.b16 %v940, %v937
  %v965 = vpack.c.b16 %v941, %v938
  %v966 = vpack.c.b16 %v942, %v939
  %991 = vmatprep.subr.bf16.mxu0 %v944
  %992 = vmatpush1.bf16.msra.mxu0 %v943
  %993 = vmatprep.subr.bf16.mxu0 %v947
  %994 = vmatpush1.bf16.msra.mxu0 %v946
  %995 = vmatprep.subr.bf16.mxu0 %v950
  %996 = vmatpush1.bf16.msra.mxu0 %v949
  %997 = vmatprep.subr.bf16.mxu0 %v953
  %998 = vmatpush1.bf16.msra.mxu0 %v952
  %999 = vmatprep.subr.bf16.mxu0 %v956
  %1000 = vmatpush1.bf16.msra.mxu0 %v955
  %1001 = vmatprep.subr.bf16.mxu0 %v959
  %1002 = vmatpush1.bf16.msra.mxu0 %v958
  %1003 = vmatprep.subr.bf16.mxu0 %v962
  %1004 = vmatpush1.bf16.msra.mxu0 %v961
  %1005 = vmatprep.subr.bf16.mxu0 %v965
  %1006 = vmatpush1.bf16.msra.mxu0 %v964
  %1007 = vmatprep.subr.bf16.mxu0 0
  %1008 = vmatpush1.bf16.msra.mxu0 0
  %1009 = vmatprep.subr.bf16.mxu0 0
  %1010 = vmatpush1.bf16.msra.mxu0 0
  %1011 = vmatprep.subr.bf16.mxu0 0
  %1012 = vmatpush1.bf16.msra.mxu0 0
  %1013 = vmatprep.subr.bf16.mxu0 0
  %1014 = vmatpush1.bf16.msra.mxu0 0
  %1015 = vmatprep.subr.bf16.mxu0 0
  %1016 = vmatpush1.bf16.msra.mxu0 0
  %1017 = vmatprep.subr.bf16.mxu0 0
  %1018 = vmatpush1.bf16.msra.mxu0 0
  %1019 = vmatprep.subr.bf16.mxu0 0
  %1020 = vmatpush1.bf16.msra.mxu0 0
  %1021 = vmatprep.subr.bf16.mxu0 0
  %1022 = vmatpush1.bf16.msra.mxu0 0
  %1023 = vmatprep.mubr.bf16.mxu0 0
  %1024 = vmatmul.mubr.bf16.gmra.mrb[0].mxu0 %v723
  %v1025 = vpop.f32.mrb[0].mxu0
  %v1026 = vadd.f32 %v404, %v1025
  %v1027 = vpop.f32.mrb[0].mxu0
  %v1028 = vadd.f32 %v408, %v1027
  %v1029 = vpop.f32.mrb[0].mxu0
  %v1030 = vpop.f32.mrb[0].mxu0
  %1031 = vdwg.mxu0
  %1032 = vmatprep.subr.bf16.mxu0 0
  %1033 = vmatpush1.bf16.msra.mxu0 %v945
  %1034 = vmatprep.subr.bf16.mxu0 0
  %1035 = vmatpush1.bf16.msra.mxu0 %v948
  %1036 = vmatprep.subr.bf16.mxu0 0
  %1037 = vmatpush1.bf16.msra.mxu0 %v951
  %1038 = vmatprep.subr.bf16.mxu0 0
  %1039 = vmatpush1.bf16.msra.mxu0 %v954
  %1040 = vmatprep.subr.bf16.mxu0 0
  %1041 = vmatpush1.bf16.msra.mxu0 %v957
  %1042 = vmatprep.subr.bf16.mxu0 0
  %1043 = vmatpush1.bf16.msra.mxu0 %v960
  %1044 = vmatprep.subr.bf16.mxu0 0
  %1045 = vmatpush1.bf16.msra.mxu0 %v963
  %1046 = vmatprep.subr.bf16.mxu0 0
  %1047 = vmatpush1.bf16.msra.mxu0 %v966
  %1048 = vmatprep.subr.bf16.mxu0 0
  %1049 = vmatpush1.bf16.msra.mxu0 0
  %1050 = vmatprep.subr.bf16.mxu0 0
  %1051 = vmatpush1.bf16.msra.mxu0 0
  %1052 = vmatprep.subr.bf16.mxu0 0
  %1053 = vmatpush1.bf16.msra.mxu0 0
  %1054 = vmatprep.subr.bf16.mxu0 0
  %1055 = vmatpush1.bf16.msra.mxu0 0
  %1056 = vmatprep.subr.bf16.mxu0 0
  %1057 = vmatpush1.bf16.msra.mxu0 0
  %1058 = vmatprep.subr.bf16.mxu0 0
  %1059 = vmatpush1.bf16.msra.mxu0 0
  %1060 = vmatprep.subr.bf16.mxu0 0
  %1061 = vmatpush1.bf16.msra.mxu0 0
  %1062 = vmatprep.subr.bf16.mxu0 0
  %1063 = vmatpush1.bf16.msra.mxu0 0
  %1064 = vmatprep.mubr.bf16.mxu0 0
  %1065 = vmatmul.mubr.bf16.gmra.mrb[0].mxu0 %v723
  %v1066 = vpop.f32.mrb[0].mxu0
  %v1067 = vadd.f32 %v412, %v1066
  %v1068 = vpop.f32.mrb[0].mxu0
  %v1069 = vpop.f32.mrb[0].mxu0
  %v1070 = vpop.f32.mrb[0].mxu0
  %1071 = vdwg.mxu0
  %s1072 = scalar_lea.vmem %s2, 192
  %v1073 = vld [vmem:[%s1072] sm:$0xff]
  %v1074 = vld [vmem:[%s1072 + $0x8] sm:$0xf]
  %v1075 = vld [vmem:[%s1072 + $0xc] sm:$0xff]
  %v1076 = vld [vmem:[%s1072 + $0x14] sm:$0xf]
  %v1077 = vld [vmem:[%s1072 + $0x18] sm:$0xff]
  %v1078 = vld [vmem:[%s1072 + $0x20] sm:$0xf]
  %v1079 = vld [vmem:[%s1072 + $0x24] sm:$0xff]
  %v1080 = vld [vmem:[%s1072 + $0x2c] sm:$0xf]
  %v1081 = vld [vmem:[%s1072 + $0x30] sm:$0xff]
  %v1082 = vld [vmem:[%s1072 + $0x38] sm:$0xf]
  %v1083 = vld [vmem:[%s1072 + $0x3c] sm:$0xff]
  %v1084 = vld [vmem:[%s1072 + $0x44] sm:$0xf]
  %v1085 = vld [vmem:[%s1072 + $0x48] sm:$0xff]
  %v1086 = vld [vmem:[%s1072 + $0x50] sm:$0xf]
  %v1087 = vld [vmem:[%s1072 + $0x54] sm:$0xff]
  %v1088 = vld [vmem:[%s1072 + $0x5c] sm:$0xf]
  %v1089 = vld [vmem:[%s1072 + $0x60] sm:$0xff]
  %v1090 = vld [vmem:[%s1072 + $0x68] sm:$0xf]
  %v1091 = vld [vmem:[%s1072 + $0x6c] sm:$0xff]
  %v1092 = vld [vmem:[%s1072 + $0x74] sm:$0xf]
  %v1093 = vld [vmem:[%s1072 + $0x78] sm:$0xff]
  %v1094 = vld [vmem:[%s1072 + $0x80] sm:$0xf]
  %v1095 = vld [vmem:[%s1072 + $0x84] sm:$0xff]
  %v1096 = vld [vmem:[%s1072 + $0x8c] sm:$0xf]
  %v1097 = vld [vmem:[%s1072 + $0x90] sm:$0xff]
  %v1098 = vld [vmem:[%s1072 + $0x98] sm:$0xf]
  %v1099 = vld [vmem:[%s1072 + $0x9c] sm:$0xff]
  %v1100 = vld [vmem:[%s1072 + $0xa4] sm:$0xf]
  %v1101 = vld [vmem:[%s1072 + $0xa8] sm:$0xff]
  %v1102 = vld [vmem:[%s1072 + $0xb0] sm:$0xf]
  %v1103 = vld [vmem:[%s1072 + $0xb4] sm:$0xff]
  %v1104 = vld [vmem:[%s1072 + $0xbc] sm:$0xf]
  %v1137 = vunpack.c.l.b16 %v1073
  %v1138 = vunpack.c.h.b16 %v1073
  %v1139 = vunpack.c.l.b16 %v1074
  %v1140 = vunpack.c.l.b16 %v1075
  %v1141 = vunpack.c.h.b16 %v1075
  %v1142 = vunpack.c.l.b16 %v1076
  %v1143 = vunpack.c.l.b16 %v1077
  %v1144 = vunpack.c.h.b16 %v1077
  %v1145 = vunpack.c.l.b16 %v1078
  %v1146 = vunpack.c.l.b16 %v1079
  %v1147 = vunpack.c.h.b16 %v1079
  %v1148 = vunpack.c.l.b16 %v1080
  %v1149 = vunpack.c.l.b16 %v1081
  %v1150 = vunpack.c.h.b16 %v1081
  %v1151 = vunpack.c.l.b16 %v1082
  %v1152 = vunpack.c.l.b16 %v1083
  %v1153 = vunpack.c.h.b16 %v1083
  %v1154 = vunpack.c.l.b16 %v1084
  %v1155 = vunpack.c.l.b16 %v1085
  %v1156 = vunpack.c.h.b16 %v1085
  %v1157 = vunpack.c.l.b16 %v1086
  %v1158 = vunpack.c.l.b16 %v1087
  %v1159 = vunpack.c.h.b16 %v1087
  %v1160 = vunpack.c.l.b16 %v1088
  %v1161 = vunpack.c.l.b16 %v1089
  %v1162 = vunpack.c.h.b16 %v1089
  %v1163 = vunpack.c.l.b16 %v1090
  %v1164 = vunpack.c.l.b16 %v1091
  %v1165 = vunpack.c.h.b16 %v1091
  %v1166 = vunpack.c.l.b16 %v1092
  %v1167 = vunpack.c.l.b16 %v1093
  %v1168 = vunpack.c.h.b16 %v1093
  %v1169 = vunpack.c.l.b16 %v1094
  %v1170 = vunpack.c.l.b16 %v1095
  %v1171 = vunpack.c.h.b16 %v1095
  %v1172 = vunpack.c.l.b16 %v1096
  %v1173 = vunpack.c.l.b16 %v1097
  %v1174 = vunpack.c.h.b16 %v1097
  %v1175 = vunpack.c.l.b16 %v1098
  %v1176 = vunpack.c.l.b16 %v1099
  %v1177 = vunpack.c.h.b16 %v1099
  %v1178 = vunpack.c.l.b16 %v1100
  %v1179 = vunpack.c.l.b16 %v1101
  %v1180 = vunpack.c.h.b16 %v1101
  %v1181 = vunpack.c.l.b16 %v1102
  %v1182 = vunpack.c.l.b16 %v1103
  %v1183 = vunpack.c.h.b16 %v1103
  %v1184 = vunpack.c.l.b16 %v1104
  %v1185 = vpack.c.b16 %v1140, %v1137
  %v1186 = vpack.c.b16 %v1141, %v1138
  %v1187 = vpack.c.b16 %v1142, %v1139
  %v1188 = vpack.c.b16 %v1146, %v1143
  %v1189 = vpack.c.b16 %v1147, %v1144
  %v1190 = vpack.c.b16 %v1148, %v1145
  %v1191 = vpack.c.b16 %v1152, %v1149
  %v1192 = vpack.c.b16 %v1153, %v1150
  %v1193 = vpack.c.b16 %v1154, %v1151
  %v1194 = vpack.c.b16 %v1158, %v1155
  %v1195 = vpack.c.b16 %v1159, %v1156
  %v1196 = vpack.c.b16 %v1160, %v1157
  %v1197 = vpack.c.b16 %v1164, %v1161
  %v1198 = vpack.c.b16 %v1165, %v1162
  %v1199 = vpack.c.b16 %v1166, %v1163
  %v1200 = vpack.c.b16 %v1170, %v1167
  %v1201 = vpack.c.b16 %v1171, %v1168
  %v1202 = vpack.c.b16 %v1172, %v1169
  %v1203 = vpack.c.b16 %v1176, %v1173
  %v1204 = vpack.c.b16 %v1177, %v1174
  %v1205 = vpack.c.b16 %v1178, %v1175
  %v1206 = vpack.c.b16 %v1182, %v1179
  %v1207 = vpack.c.b16 %v1183, %v1180
  %v1208 = vpack.c.b16 %v1184, %v1181
  %1233 = vmatprep.subr.bf16.mxu0 %v1186
  %1234 = vmatpush1.bf16.msra.mxu0 %v1185
  %1235 = vmatprep.subr.bf16.mxu0 %v1189
  %1236 = vmatpush1.bf16.msra.mxu0 %v1188
  %1237 = vmatprep.subr.bf16.mxu0 %v1192
  %1238 = vmatpush1.bf16.msra.mxu0 %v1191
  %1239 = vmatprep.subr.bf16.mxu0 %v1195
  %1240 = vmatpush1.bf16.msra.mxu0 %v1194
  %1241 = vmatprep.subr.bf16.mxu0 %v1198
  %1242 = vmatpush1.bf16.msra.mxu0 %v1197
  %1243 = vmatprep.subr.bf16.mxu0 %v1201
  %1244 = vmatpush1.bf16.msra.mxu0 %v1200
  %1245 = vmatprep.subr.bf16.mxu0 %v1204
  %1246 = vmatpush1.bf16.msra.mxu0 %v1203
  %1247 = vmatprep.subr.bf16.mxu0 %v1207
  %1248 = vmatpush1.bf16.msra.mxu0 %v1206
  %1249 = vmatprep.subr.bf16.mxu0 0
  %1250 = vmatpush1.bf16.msra.mxu0 0
  %1251 = vmatprep.subr.bf16.mxu0 0
  %1252 = vmatpush1.bf16.msra.mxu0 0
  %1253 = vmatprep.subr.bf16.mxu0 0
  %1254 = vmatpush1.bf16.msra.mxu0 0
  %1255 = vmatprep.subr.bf16.mxu0 0
  %1256 = vmatpush1.bf16.msra.mxu0 0
  %1257 = vmatprep.subr.bf16.mxu0 0
  %1258 = vmatpush1.bf16.msra.mxu0 0
  %1259 = vmatprep.subr.bf16.mxu0 0
  %1260 = vmatpush1.bf16.msra.mxu0 0
  %1261 = vmatprep.subr.bf16.mxu0 0
  %1262 = vmatpush1.bf16.msra.mxu0 0
  %1263 = vmatprep.subr.bf16.mxu0 0
  %1264 = vmatpush1.bf16.msra.mxu0 0
  %1265 = vmatprep.mubr.bf16.mxu0 0
  %1266 = vmatmul.mubr.bf16.gmra.mrb[0].mxu0 0
  %v1267 = vpop.f32.mrb[0].mxu0
  %v1268 = vadd.f32 0.0, %v1267
  %v1269 = vpop.f32.mrb[0].mxu0
  %v1270 = vadd.f32 0.0, %v1269
  %v1271 = vpop.f32.mrb[0].mxu0
  %v1272 = vpop.f32.mrb[0].mxu0
  %1273 = vdwg.mxu0
  %1274 = vmatprep.subr.bf16.mxu0 0
  %1275 = vmatpush1.bf16.msra.mxu0 %v1187
  %1276 = vmatprep.subr.bf16.mxu0 0
  %1277 = vmatpush1.bf16.msra.mxu0 %v1190
  %1278 = vmatprep.subr.bf16.mxu0 0
  %1279 = vmatpush1.bf16.msra.mxu0 %v1193
  %1280 = vmatprep.subr.bf16.mxu0 0
  %1281 = vmatpush1.bf16.msra.mxu0 %v1196
  %1282 = vmatprep.subr.bf16.mxu0 0
  %1283 = vmatpush1.bf16.msra.mxu0 %v1199
  %1284 = vmatprep.subr.bf16.mxu0 0
  %1285 = vmatpush1.bf16.msra.mxu0 %v1202
  %1286 = vmatprep.subr.bf16.mxu0 0
  %1287 = vmatpush1.bf16.msra.mxu0 %v1205
  %1288 = vmatprep.subr.bf16.mxu0 0
  %1289 = vmatpush1.bf16.msra.mxu0 %v1208
  %1290 = vmatprep.subr.bf16.mxu0 0
  %1291 = vmatpush1.bf16.msra.mxu0 0
  %1292 = vmatprep.subr.bf16.mxu0 0
  %1293 = vmatpush1.bf16.msra.mxu0 0
  %1294 = vmatprep.subr.bf16.mxu0 0
  %1295 = vmatpush1.bf16.msra.mxu0 0
  %1296 = vmatprep.subr.bf16.mxu0 0
  %1297 = vmatpush1.bf16.msra.mxu0 0
  %1298 = vmatprep.subr.bf16.mxu0 0
  %1299 = vmatpush1.bf16.msra.mxu0 0
  %1300 = vmatprep.subr.bf16.mxu0 0
  %1301 = vmatpush1.bf16.msra.mxu0 0
  %1302 = vmatprep.subr.bf16.mxu0 0
  %1303 = vmatpush1.bf16.msra.mxu0 0
  %1304 = vmatprep.subr.bf16.mxu0 0
  %1305 = vmatpush1.bf16.msra.mxu0 0
  %1306 = vmatprep.mubr.bf16.mxu0 0
  %1307 = vmatmul.mubr.bf16.gmra.mrb[0].mxu0 0
  %v1308 = vpop.f32.mrb[0].mxu0
  %v1309 = vadd.f32 0.0, %v1308
  %v1310 = vpop.f32.mrb[0].mxu0
  %v1311 = vpop.f32.mrb[0].mxu0
  %v1312 = vpop.f32.mrb[0].mxu0
  %1313 = vdwg.mxu0
  %v1314 = vadd.f32 %v1026, %v1268
  %v1315 = vadd.f32 %v1028, %v1270
  %v1316 = vadd.f32 %v1309, %v447
  %v1317 = vxor.u32 %v1314, 2147483648
  %v1318 = vmul.f32 %v1317, 1.442695
  %v1319 = vpow.pop %v1318
  %v1320 = vadd.f32 %v1319, 1.0
  %v1321 = vrcp.pop %v1320
  %v1322 = vmul.f32 1.0, %v1321
  %v1323 = vxor.u32 %v1315, 2147483648
  %v1324 = vmul.f32 %v1323, 1.442695
  %v1325 = vpow.pop %v1324
  %v1326 = vadd.f32 %v1325, 1.0
  %v1327 = vrcp.pop %v1326
  %v1328 = vmul.f32 1.0, %v1327
  %v1329 = vmul.f32 %v1322, %v1316
  %v1330 = vadd.f32 %v1067, %v1329
  %v1331 = vtanh.pop %v1330
  %v1332 = vsub.f32 1.0, %v1328
  %v1333 = vmul.f32 %v1332, %v1331
  %v1334 = vmul.f32 %v1328, 0.0
  %v1335 = vadd.f32 %v1333, %v1334
  %v1336 = vpack.c.bf16 %v829, %v829
  %v1337 = vpack.c.bf16 %v1335, %v1335
  %v1338 = vld [vmem:[#allocation2 + $0x30] sm:$0xff]
  %v1339 = vld [vmem:[#allocation2 + $0x38] sm:$0xff]
  %v1340 = vld [vmem:[#allocation2 + $0x40] sm:$0xff]
  %1341 = vmatprep.subr.bf16.mxu0 %v573
  %1342 = vmatpush1.bf16.msra.mxu0 %v572
  %1343 = vmatprep.subr.bf16.mxu0 %v576
  %1344 = vmatpush1.bf16.msra.mxu0 %v575
  %1345 = vmatprep.subr.bf16.mxu0 %v579
  %1346 = vmatpush1.bf16.msra.mxu0 %v578
  %1347 = vmatprep.subr.bf16.mxu0 %v582
  %1348 = vmatpush1.bf16.msra.mxu0 %v581
  %1349 = vmatprep.subr.bf16.mxu0 %v585
  %1350 = vmatpush1.bf16.msra.mxu0 %v584
  %1351 = vmatprep.subr.bf16.mxu0 %v588
  %1352 = vmatpush1.bf16.msra.mxu0 %v587
  %1353 = vmatprep.subr.bf16.mxu0 %v591
  %1354 = vmatpush1.bf16.msra.mxu0 %v590
  %1355 = vmatprep.subr.bf16.mxu0 %v594
  %1356 = vmatpush1.bf16.msra.mxu0 %v593
  %1357 = vmatprep.subr.bf16.mxu0 0
  %1358 = vmatpush1.bf16.msra.mxu0 0
  %1359 = vmatprep.subr.bf16.mxu0 0
  %1360 = vmatpush1.bf16.msra.mxu0 0
  %1361 = vmatprep.subr.bf16.mxu0 0
  %1362 = vmatpush1.bf16.msra.mxu0 0
  %1363 = vmatprep.subr.bf16.mxu0 0
  %1364 = vmatpush1.bf16.msra.mxu0 0
  %1365 = vmatprep.subr.bf16.mxu0 0
  %1366 = vmatpush1.bf16.msra.mxu0 0
  %1367 = vmatprep.subr.bf16.mxu0 0
  %1368 = vmatpush1.bf16.msra.mxu0 0
  %1369 = vmatprep.subr.bf16.mxu0 0
  %1370 = vmatpush1.bf16.msra.mxu0 0
  %1371 = vmatprep.subr.bf16.mxu0 0
  %1372 = vmatpush1.bf16.msra.mxu0 0
  %1373 = vmatprep.mubr.bf16.mxu0 0
  %1374 = vmatmul.mubr.bf16.gmra.mrb[0].mxu0 %v1336
  %v1375 = vpop.f32.mrb[0].mxu0
  %v1376 = vadd.f32 0.0, %v1375
  %v1377 = vpop.f32.mrb[0].mxu0
  %v1378 = vadd.f32 0.0, %v1377
  %v1379 = vpop.f32.mrb[0].mxu0
  %v1380 = vpop.f32.mrb[0].mxu0
  %1381 = vdwg.mxu0
  %1382 = vmatprep.subr.bf16.mxu0 0
  %1383 = vmatpush1.bf16.msra.mxu0 %v574
  %1384 = vmatprep.subr.bf16.mxu0 0
  %1385 = vmatpush1.bf16.msra.mxu0 %v577
  %1386 = vmatprep.subr.bf16.mxu0 0
  %1387 = vmatpush1.bf16.msra.mxu0 %v580
  %1388 = vmatprep.subr.bf16.mxu0 0
  %1389 = vmatpush1.bf16.msra.mxu0 %v583
  %1390 = vmatprep.subr.bf16.mxu0 0
  %1391 = vmatpush1.bf16.msra.mxu0 %v586
  %1392 = vmatprep.subr.bf16.mxu0 0
  %1393 = vmatpush1.bf16.msra.mxu0 %v589
  %1394 = vmatprep.subr.bf16.mxu0 0
  %1395 = vmatpush1.bf16.msra.mxu0 %v592
  %1396 = vmatprep.subr.bf16.mxu0 0
  %1397 = vmatpush1.bf16.msra.mxu0 %v595
  %1398 = vmatprep.subr.bf16.mxu0 0
  %1399 = vmatpush1.bf16.msra.mxu0 0
  %1400 = vmatprep.subr.bf16.mxu0 0
  %1401 = vmatpush1.bf16.msra.mxu0 0
  %1402 = vmatprep.subr.bf16.mxu0 0
  %1403 = vmatpush1.bf16.msra.mxu0 0
  %1404 = vmatprep.subr.bf16.mxu0 0
  %1405 = vmatpush1.bf16.msra.mxu0 0
  %1406 = vmatprep.subr.bf16.mxu0 0
  %1407 = vmatpush1.bf16.msra.mxu0 0
  %1408 = vmatprep.subr.bf16.mxu0 0
  %1409 = vmatpush1.bf16.msra.mxu0 0
  %1410 = vmatprep.subr.bf16.mxu0 0
  %1411 = vmatpush1.bf16.msra.mxu0 0
  %1412 = vmatprep.subr.bf16.mxu0 0
  %1413 = vmatpush1.bf16.msra.mxu0 0
  %1414 = vmatprep.mubr.bf16.mxu0 0
  %1415 = vmatmul.mubr.bf16.gmra.mrb[0].mxu0 %v1336
  %v1416 = vpop.f32.mrb[0].mxu0
  %v1417 = vadd.f32 0.0, %v1416
  %v1418 = vpop.f32.mrb[0].mxu0
  %v1419 = vpop.f32.mrb[0].mxu0
  %v1420 = vpop.f32.mrb[0].mxu0
  %1421 = vdwg.mxu0
  %v1422 = vadd.f32 %v1338, %v1376
  %v1423 = vadd.f32 %v1339, %v1378
  %v1424 = vadd.f32 %v1417, %v439
  %v1425 = vxor.u32 %v1422, 2147483648
  %v1426 = vmul.f32 %v1425, 1.442695
  %v1427 = vpow.pop %v1426
  %v1428 = vadd.f32 %v1427, 1.0
  %v1429 = vrcp.pop %v1428
  %v1430 = vmul.f32 1.0, %v1429
  %v1431 = vxor.u32 %v1423, 2147483648
  %v1432 = vmul.f32 %v1431, 1.442695
  %v1433 = vpow.pop %v1432
  %v1434 = vadd.f32 %v1433, 1.0
  %v1435 = vrcp.pop %v1434
  %v1436 = vmul.f32 1.0, %v1435
  %v1437 = vmul.f32 %v1430, %v1424
  %v1438 = vadd.f32 %v1340, %v1437
  %v1439 = vtanh.pop %v1438
  %v1440 = vsub.f32 1.0, %v1436
  %v1441 = vmul.f32 %v1440, %v1439
  %v1442 = vmul.f32 %v1436, %v829
  %v1443 = vadd.f32 %v1441, %v1442
  %1444 = vmatprep.subr.bf16.mxu0 %v944
  %1445 = vmatpush1.bf16.msra.mxu0 %v943
  %1446 = vmatprep.subr.bf16.mxu0 %v947
  %1447 = vmatpush1.bf16.msra.mxu0 %v946
  %1448 = vmatprep.subr.bf16.mxu0 %v950
  %1449 = vmatpush1.bf16.msra.mxu0 %v949
  %1450 = vmatprep.subr.bf16.mxu0 %v953
  %1451 = vmatpush1.bf16.msra.mxu0 %v952
  %1452 = vmatprep.subr.bf16.mxu0 %v956
  %1453 = vmatpush1.bf16.msra.mxu0 %v955
  %1454 = vmatprep.subr.bf16.mxu0 %v959
  %1455 = vmatpush1.bf16.msra.mxu0 %v958
  %1456 = vmatprep.subr.bf16.mxu0 %v962
  %1457 = vmatpush1.bf16.msra.mxu0 %v961
  %1458 = vmatprep.subr.bf16.mxu0 %v965
  %1459 = vmatpush1.bf16.msra.mxu0 %v964
  %1460 = vmatprep.subr.bf16.mxu0 0
  %1461 = vmatpush1.bf16.msra.mxu0 0
  %1462 = vmatprep.subr.bf16.mxu0 0
  %1463 = vmatpush1.bf16.msra.mxu0 0
  %1464 = vmatprep.subr.bf16.mxu0 0
  %1465 = vmatpush1.bf16.msra.mxu0 0
  %1466 = vmatprep.subr.bf16.mxu0 0
  %1467 = vmatpush1.bf16.msra.mxu0 0
  %1468 = vmatprep.subr.bf16.mxu0 0
  %1469 = vmatpush1.bf16.msra.mxu0 0
  %1470 = vmatprep.subr.bf16.mxu0 0
  %1471 = vmatpush1.bf16.msra.mxu0 0
  %1472 = vmatprep.subr.bf16.mxu0 0
  %1473 = vmatpush1.bf16.msra.mxu0 0
  %1474 = vmatprep.subr.bf16.mxu0 0
  %1475 = vmatpush1.bf16.msra.mxu0 0
  %1476 = vmatprep.mubr.bf16.mxu0 0
  %1477 = vmatmul.mubr.bf16.gmra.mrb[0].mxu0 %v1336
  %v1478 = vpop.f32.mrb[0].mxu0
  %v1479 = vadd.f32 %v404, %v1478
  %v1480 = vpop.f32.mrb[0].mxu0
  %v1481 = vadd.f32 %v408, %v1480
  %v1482 = vpop.f32.mrb[0].mxu0
  %v1483 = vpop.f32.mrb[0].mxu0
  %1484 = vdwg.mxu0
  %1485 = vmatprep.subr.bf16.mxu0 0
  %1486 = vmatpush1.bf16.msra.mxu0 %v945
  %1487 = vmatprep.subr.bf16.mxu0 0
  %1488 = vmatpush1.bf16.msra.mxu0 %v948
  %1489 = vmatprep.subr.bf16.mxu0 0
  %1490 = vmatpush1.bf16.msra.mxu0 %v951
  %1491 = vmatprep.subr.bf16.mxu0 0
  %1492 = vmatpush1.bf16.msra.mxu0 %v954
  %1493 = vmatprep.subr.bf16.mxu0 0
  %1494 = vmatpush1.bf16.msra.mxu0 %v957
  %1495 = vmatprep.subr.bf16.mxu0 0
  %1496 = vmatpush1.bf16.msra.mxu0 %v960
  %1497 = vmatprep.subr.bf16.mxu0 0
  %1498 = vmatpush1.bf16.msra.mxu0 %v963
  %1499 = vmatprep.subr.bf16.mxu0 0
  %1500 = vmatpush1.bf16.msra.mxu0 %v966
  %1501 = vmatprep.subr.bf16.mxu0 0
  %1502 = vmatpush1.bf16.msra.mxu0 0
  %1503 = vmatprep.subr.bf16.mxu0 0
  %1504 = vmatpush1.bf16.msra.mxu0 0
  %1505 = vmatprep.subr.bf16.mxu0 0
  %1506 = vmatpush1.bf16.msra.mxu0 0
  %1507 = vmatprep.subr.bf16.mxu0 0
  %1508 = vmatpush1.bf16.msra.mxu0 0
  %1509 = vmatprep.subr.bf16.mxu0 0
  %1510 = vmatpush1.bf16.msra.mxu0 0
  %1511 = vmatprep.subr.bf16.mxu0 0
  %1512 = vmatpush1.bf16.msra.mxu0 0
  %1513 = vmatprep.subr.bf16.mxu0 0
  %1514 = vmatpush1.bf16.msra.mxu0 0
  %1515 = vmatprep.subr.bf16.mxu0 0
  %1516 = vmatpush1.bf16.msra.mxu0 0
  %1517 = vmatprep.mubr.bf16.mxu0 0
  %1518 = vmatmul.mubr.bf16.gmra.mrb[0].mxu0 %v1336
  %v1519 = vpop.f32.mrb[0].mxu0
  %v1520 = vadd.f32 %v412, %v1519
  %v1521 = vpop.f32.mrb[0].mxu0
  %v1522 = vpop.f32.mrb[0].mxu0
  %v1523 = vpop.f32.mrb[0].mxu0
  %1524 = vdwg.mxu0
  %1525 = vmatprep.subr.bf16.mxu0 %v1186
  %1526 = vmatpush1.bf16.msra.mxu0 %v1185
  %1527 = vmatprep.subr.bf16.mxu0 %v1189
  %1528 = vmatpush1.bf16.msra.mxu0 %v1188
  %1529 = vmatprep.subr.bf16.mxu0 %v1192
  %1530 = vmatpush1.bf16.msra.mxu0 %v1191
  %1531 = vmatprep.subr.bf16.mxu0 %v1195
  %1532 = vmatpush1.bf16.msra.mxu0 %v1194
  %1533 = vmatprep.subr.bf16.mxu0 %v1198
  %1534 = vmatpush1.bf16.msra.mxu0 %v1197
  %1535 = vmatprep.subr.bf16.mxu0 %v1201
  %1536 = vmatpush1.bf16.msra.mxu0 %v1200
  %1537 = vmatprep.subr.bf16.mxu0 %v1204
  %1538 = vmatpush1.bf16.msra.mxu0 %v1203
  %1539 = vmatprep.subr.bf16.mxu0 %v1207
  %1540 = vmatpush1.bf16.msra.mxu0 %v1206
  %1541 = vmatprep.subr.bf16.mxu0 0
  %1542 = vmatpush1.bf16.msra.mxu0 0
  %1543 = vmatprep.subr.bf16.mxu0 0
  %1544 = vmatpush1.bf16.msra.mxu0 0
  %1545 = vmatprep.subr.bf16.mxu0 0
  %1546 = vmatpush1.bf16.msra.mxu0 0
  %1547 = vmatprep.subr.bf16.mxu0 0
  %1548 = vmatpush1.bf16.msra.mxu0 0
  %1549 = vmatprep.subr.bf16.mxu0 0
  %1550 = vmatpush1.bf16.msra.mxu0 0
  %1551 = vmatprep.subr.bf16.mxu0 0
  %1552 = vmatpush1.bf16.msra.mxu0 0
  %1553 = vmatprep.subr.bf16.mxu0 0
  %1554 = vmatpush1.bf16.msra.mxu0 0
  %1555 = vmatprep.subr.bf16.mxu0 0
  %1556 = vmatpush1.bf16.msra.mxu0 0
  %1557 = vmatprep.mubr.bf16.mxu0 0
  %1558 = vmatmul.mubr.bf16.gmra.mrb[0].mxu0 %v1337
  %v1559 = vpop.f32.mrb[0].mxu0
  %v1560 = vadd.f32 0.0, %v1559
  %v1561 = vpop.f32.mrb[0].mxu0
  %v1562 = vadd.f32 0.0, %v1561
  %v1563 = vpop.f32.mrb[0].mxu0
  %v1564 = vpop.f32.mrb[0].mxu0
  %1565 = vdwg.mxu0
  %1566 = vmatprep.subr.bf16.mxu0 0
  %1567 = vmatpush1.bf16.msra.mxu0 %v1187
  %1568 = vmatprep.subr.bf16.mxu0 0
  %1569 = vmatpush1.bf16.msra.mxu0 %v1190
  %1570 = vmatprep.subr.bf16.mxu0 0
  %1571 = vmatpush1.bf16.msra.mxu0 %v1193
  %1572 = vmatprep.subr.bf16.mxu0 0
  %1573 = vmatpush1.bf16.msra.mxu0 %v1196
  %1574 = vmatprep.subr.bf16.mxu0 0
  %1575 = vmatpush1.bf16.msra.mxu0 %v1199
  %1576 = vmatprep.subr.bf16.mxu0 0
  %1577 = vmatpush1.bf16.msra.mxu0 %v1202
  %1578 = vmatprep.subr.bf16.mxu0 0
  %1579 = vmatpush1.bf16.msra.mxu0 %v1205
  %1580 = vmatprep.subr.bf16.mxu0 0
  %1581 = vmatpush1.bf16.msra.mxu0 %v1208
  %1582 = vmatprep.subr.bf16.mxu0 0
  %1583 = vmatpush1.bf16.msra.mxu0 0
  %1584 = vmatprep.subr.bf16.mxu0 0
  %1585 = vmatpush1.bf16.msra.mxu0 0
  %1586 = vmatprep.subr.bf16.mxu0 0
  %1587 = vmatpush1.bf16.msra.mxu0 0
  %1588 = vmatprep.subr.bf16.mxu0 0
  %1589 = vmatpush1.bf16.msra.mxu0 0
  %1590 = vmatprep.subr.bf16.mxu0 0
  %1591 = vmatpush1.bf16.msra.mxu0 0
  %1592 = vmatprep.subr.bf16.mxu0 0
  %1593 = vmatpush1.bf16.msra.mxu0 0
  %1594 = vmatprep.subr.bf16.mxu0 0
  %1595 = vmatpush1.bf16.msra.mxu0 0
  %1596 = vmatprep.subr.bf16.mxu0 0
  %1597 = vmatpush1.bf16.msra.mxu0 0
  %1598 = vmatprep.mubr.bf16.mxu0 0
  %1599 = vmatmul.mubr.bf16.gmra.mrb[0].mxu0 %v1337
  %v1600 = vpop.f32.mrb[0].mxu0
  %v1601 = vadd.f32 0.0, %v1600
  %v1602 = vpop.f32.mrb[0].mxu0
  %v1603 = vpop.f32.mrb[0].mxu0
  %v1604 = vpop.f32.mrb[0].mxu0
  %1605 = vdwg.mxu0
  %v1606 = vadd.f32 %v1479, %v1560
  %v1607 = vadd.f32 %v1481, %v1562
  %v1608 = vadd.f32 %v1601, %v447
  %v1609 = vxor.u32 %v1606, 2147483648
  %v1610 = vmul.f32 %v1609, 1.442695
  %v1611 = vpow.pop %v1610
  %v1612 = vadd.f32 %v1611, 1.0
  %v1613 = vrcp.pop %v1612
  %v1614 = vmul.f32 1.0, %v1613
  %v1615 = vxor.u32 %v1607, 2147483648
  %v1616 = vmul.f32 %v1615, 1.442695
  %v1617 = vpow.pop %v1616
  %v1618 = vadd.f32 %v1617, 1.0
  %v1619 = vrcp.pop %v1618
  %v1620 = vmul.f32 1.0, %v1619
  %v1621 = vmul.f32 %v1614, %v1608
  %v1622 = vadd.f32 %v1520, %v1621
  %v1623 = vtanh.pop %v1622
  %v1624 = vsub.f32 1.0, %v1620
  %v1625 = vmul.f32 %v1624, %v1623
  %v1626 = vmul.f32 %v1620, %v1335
  %v1627 = vadd.f32 %v1625, %v1626
  %s1628 = scalar_lea.vmem %s1, 384
  %v1629 = vld [vmem:[%s1628] sm:$0xff]
  %v1630 = vld [vmem:[%s1628 + $0x8] sm:$0xf]
  %v1631 = vld [vmem:[%s1628 + $0xc] sm:$0xff]
  %v1632 = vld [vmem:[%s1628 + $0x14] sm:$0xf]
  %v1633 = vld [vmem:[%s1628 + $0x18] sm:$0xff]
  %v1634 = vld [vmem:[%s1628 + $0x20] sm:$0xf]
  %v1635 = vld [vmem:[%s1628 + $0x24] sm:$0xff]
  %v1636 = vld [vmem:[%s1628 + $0x2c] sm:$0xf]
  %v1637 = vld [vmem:[%s1628 + $0x30] sm:$0xff]
  %v1638 = vld [vmem:[%s1628 + $0x38] sm:$0xf]
  %v1639 = vld [vmem:[%s1628 + $0x3c] sm:$0xff]
  %v1640 = vld [vmem:[%s1628 + $0x44] sm:$0xf]
  %v1641 = vld [vmem:[%s1628 + $0x48] sm:$0xff]
  %v1642 = vld [vmem:[%s1628 + $0x50] sm:$0xf]
  %v1643 = vld [vmem:[%s1628 + $0x54] sm:$0xff]
  %v1644 = vld [vmem:[%s1628 + $0x5c] sm:$0xf]
  %v1645 = vld [vmem:[%s1628 + $0x60] sm:$0xff]
  %v1646 = vld [vmem:[%s1628 + $0x68] sm:$0xf]
  %v1647 = vld [vmem:[%s1628 + $0x6c] sm:$0xff]
  %v1648 = vld [vmem:[%s1628 + $0x74] sm:$0xf]
  %v1649 = vld [vmem:[%s1628 + $0x78] sm:$0xff]
  %v1650 = vld [vmem:[%s1628 + $0x80] sm:$0xf]
  %v1651 = vld [vmem:[%s1628 + $0x84] sm:$0xff]
  %v1652 = vld [vmem:[%s1628 + $0x8c] sm:$0xf]
  %v1653 = vld [vmem:[%s1628 + $0x90] sm:$0xff]
  %v1654 = vld [vmem:[%s1628 + $0x98] sm:$0xf]
  %v1655 = vld [vmem:[%s1628 + $0x9c] sm:$0xff]
  %v1656 = vld [vmem:[%s1628 + $0xa4] sm:$0xf]
  %v1657 = vld [vmem:[%s1628 + $0xa8] sm:$0xff]
  %v1658 = vld [vmem:[%s1628 + $0xb0] sm:$0xf]
  %v1659 = vld [vmem:[%s1628 + $0xb4] sm:$0xff]
  %v1660 = vld [vmem:[%s1628 + $0xbc] sm:$0xf]
  %v1693 = vunpack.c.l.b16 %v1629
  %v1694 = vunpack.c.h.b16 %v1629
  %v1695 = vunpack.c.l.b16 %v1630
  %v1696 = vunpack.c.l.b16 %v1631
  %v1697 = vunpack.c.h.b16 %v1631
  %v1698 = vunpack.c.l.b16 %v1632
  %v1699 = vunpack.c.l.b16 %v1633
  %v1700 = vunpack.c.h.b16 %v1633
  %v1701 = vunpack.c.l.b16 %v1634
  %v1702 = vunpack.c.l.b16 %v1635
  %v1703 = vunpack.c.h.b16 %v1635
  %v1704 = vunpack.c.l.b16 %v1636
  %v1705 = vunpack.c.l.b16 %v1637
  %v1706 = vunpack.c.h.b16 %v1637
  %v1707 = vunpack.c.l.b16 %v1638
  %v1708 = vunpack.c.l.b16 %v1639
  %v1709 = vunpack.c.h.b16 %v1639
  %v1710 = vunpack.c.l.b16 %v1640
  %v1711 = vunpack.c.l.b16 %v1641
  %v1712 = vunpack.c.h.b16 %v1641
  %v1713 = vunpack.c.l.b16 %v1642
  %v1714 = vunpack.c.l.b16 %v1643
  %v1715 = vunpack.c.h.b16 %v1643
  %v1716 = vunpack.c.l.b16 %v1644
  %v1717 = vunpack.c.l.b16 %v1645
  %v1718 = vunpack.c.h.b16 %v1645
  %v1719 = vunpack.c.l.b16 %v1646
  %v1720 = vunpack.c.l.b16 %v1647
  %v1721 = vunpack.c.h.b16 %v1647
  %v1722 = vunpack.c.l.b16 %v1648
  %v1723 = vunpack.c.l.b16 %v1649
  %v1724 = vunpack.c.h.b16 %v1649
  %v1725 = vunpack.c.l.b16 %v1650
  %v1726 = vunpack.c.l.b16 %v1651
  %v1727 = vunpack.c.h.b16 %v1651
  %v1728 = vunpack.c.l.b16 %v1652
  %v1729 = vunpack.c.l.b16 %v1653
  %v1730 = vunpack.c.h.b16 %v1653
  %v1731 = vunpack.c.l.b16 %v1654
  %v1732 = vunpack.c.l.b16 %v1655
  %v1733 = vunpack.c.h.b16 %v1655
  %v1734 = vunpack.c.l.b16 %v1656
  %v1735 = vunpack.c.l.b16 %v1657
  %v1736 = vunpack.c.h.b16 %v1657
  %v1737 = vunpack.c.l.b16 %v1658
  %v1738 = vunpack.c.l.b16 %v1659
  %v1739 = vunpack.c.h.b16 %v1659
  %v1740 = vunpack.c.l.b16 %v1660
  %v1741 = vpack.c.b16 %v1696, %v1693
  %v1742 = vpack.c.b16 %v1697, %v1694
  %v1743 = vpack.c.b16 %v1698, %v1695
  %v1744 = vpack.c.b16 %v1702, %v1699
  %v1745 = vpack.c.b16 %v1703, %v1700
  %v1746 = vpack.c.b16 %v1704, %v1701
  %v1747 = vpack.c.b16 %v1708, %v1705
  %v1748 = vpack.c.b16 %v1709, %v1706
  %v1749 = vpack.c.b16 %v1710, %v1707
  %v1750 = vpack.c.b16 %v1714, %v1711
  %v1751 = vpack.c.b16 %v1715, %v1712
  %v1752 = vpack.c.b16 %v1716, %v1713
  %v1753 = vpack.c.b16 %v1720, %v1717
  %v1754 = vpack.c.b16 %v1721, %v1718
  %v1755 = vpack.c.b16 %v1722, %v1719
  %v1756 = vpack.c.b16 %v1726, %v1723
  %v1757 = vpack.c.b16 %v1727, %v1724
  %v1758 = vpack.c.b16 %v1728, %v1725
  %v1759 = vpack.c.b16 %v1732, %v1729
  %v1760 = vpack.c.b16 %v1733, %v1730
  %v1761 = vpack.c.b16 %v1734, %v1731
  %v1762 = vpack.c.b16 %v1738, %v1735
  %v1763 = vpack.c.b16 %v1739, %v1736
  %v1764 = vpack.c.b16 %v1740, %v1737
  %1789 = vmatprep.subr.bf16.mxu0 %v1742
  %1790 = vmatpush1.bf16.msra.mxu0 %v1741
  %1791 = vmatprep.subr.bf16.mxu0 %v1745
  %1792 = vmatpush1.bf16.msra.mxu0 %v1744
  %1793 = vmatprep.subr.bf16.mxu0 %v1748
  %1794 = vmatpush1.bf16.msra.mxu0 %v1747
  %1795 = vmatprep.subr.bf16.mxu0 %v1751
  %1796 = vmatpush1.bf16.msra.mxu0 %v1750
  %1797 = vmatprep.subr.bf16.mxu0 %v1754
  %1798 = vmatpush1.bf16.msra.mxu0 %v1753
  %1799 = vmatprep.subr.bf16.mxu0 %v1757
  %1800 = vmatpush1.bf16.msra.mxu0 %v1756
  %1801 = vmatprep.subr.bf16.mxu0 %v1760
  %1802 = vmatpush1.bf16.msra.mxu0 %v1759
  %1803 = vmatprep.subr.bf16.mxu0 %v1763
  %1804 = vmatpush1.bf16.msra.mxu0 %v1762
  %1805 = vmatprep.subr.bf16.mxu0 0
  %1806 = vmatpush1.bf16.msra.mxu0 0
  %1807 = vmatprep.subr.bf16.mxu0 0
  %1808 = vmatpush1.bf16.msra.mxu0 0
  %1809 = vmatprep.subr.bf16.mxu0 0
  %1810 = vmatpush1.bf16.msra.mxu0 0
  %1811 = vmatprep.subr.bf16.mxu0 0
  %1812 = vmatpush1.bf16.msra.mxu0 0
  %1813 = vmatprep.subr.bf16.mxu0 0
  %1814 = vmatpush1.bf16.msra.mxu0 0
  %1815 = vmatprep.subr.bf16.mxu0 0
  %1816 = vmatpush1.bf16.msra.mxu0 0
  %1817 = vmatprep.subr.bf16.mxu0 0
  %1818 = vmatpush1.bf16.msra.mxu0 0
  %1819 = vmatprep.subr.bf16.mxu0 0
  %1820 = vmatpush1.bf16.msra.mxu0 0
  %1821 = vmatprep.mubr.bf16.mxu0 0
  %1822 = vmatmul.mubr.bf16.gmra.mrb[0].mxu0 %v1337
  %v1823 = vpop.f32.mrb[0].mxu0
  %v1824 = vadd.f32 %v422, %v1823
  %v1825 = vpop.f32.mrb[0].mxu0
  %v1826 = vadd.f32 %v426, %v1825
  %v1827 = vpop.f32.mrb[0].mxu0
  %v1828 = vpop.f32.mrb[0].mxu0
  %1829 = vdwg.mxu0
  %1830 = vmatprep.subr.bf16.mxu0 0
  %1831 = vmatpush1.bf16.msra.mxu0 %v1743
  %1832 = vmatprep.subr.bf16.mxu0 0
  %1833 = vmatpush1.bf16.msra.mxu0 %v1746
  %1834 = vmatprep.subr.bf16.mxu0 0
  %1835 = vmatpush1.bf16.msra.mxu0 %v1749
  %1836 = vmatprep.subr.bf16.mxu0 0
  %1837 = vmatpush1.bf16.msra.mxu0 %v1752
  %1838 = vmatprep.subr.bf16.mxu0 0
  %1839 = vmatpush1.bf16.msra.mxu0 %v1755
  %1840 = vmatprep.subr.bf16.mxu0 0
  %1841 = vmatpush1.bf16.msra.mxu0 %v1758
  %1842 = vmatprep.subr.bf16.mxu0 0
  %1843 = vmatpush1.bf16.msra.mxu0 %v1761
  %1844 = vmatprep.subr.bf16.mxu0 0
  %1845 = vmatpush1.bf16.msra.mxu0 %v1764
  %1846 = vmatprep.subr.bf16.mxu0 0
  %1847 = vmatpush1.bf16.msra.mxu0 0
  %1848 = vmatprep.subr.bf16.mxu0 0
  %1849 = vmatpush1.bf16.msra.mxu0 0
  %1850 = vmatprep.subr.bf16.mxu0 0
  %1851 = vmatpush1.bf16.msra.mxu0 0
  %1852 = vmatprep.subr.bf16.mxu0 0
  %1853 = vmatpush1.bf16.msra.mxu0 0
  %1854 = vmatprep.subr.bf16.mxu0 0
  %1855 = vmatpush1.bf16.msra.mxu0 0
  %1856 = vmatprep.subr.bf16.mxu0 0
  %1857 = vmatpush1.bf16.msra.mxu0 0
  %1858 = vmatprep.subr.bf16.mxu0 0
  %1859 = vmatpush1.bf16.msra.mxu0 0
  %1860 = vmatprep.subr.bf16.mxu0 0
  %1861 = vmatpush1.bf16.msra.mxu0 0
  %1862 = vmatprep.mubr.bf16.mxu0 0
  %1863 = vmatmul.mubr.bf16.gmra.mrb[0].mxu0 %v1337
  %v1864 = vpop.f32.mrb[0].mxu0
  %v1865 = vadd.f32 %v430, %v1864
  %v1866 = vpop.f32.mrb[0].mxu0
  %v1867 = vpop.f32.mrb[0].mxu0
  %v1868 = vpop.f32.mrb[0].mxu0
  %1869 = vdwg.mxu0
  %s1870 = scalar_lea.vmem %s2, 384
  %v1871 = vld [vmem:[%s1870] sm:$0xff]
  %v1872 = vld [vmem:[%s1870 + $0x8] sm:$0xf]
  %v1873 = vld [vmem:[%s1870 + $0xc] sm:$0xff]
  %v1874 = vld [vmem:[%s1870 + $0x14] sm:$0xf]
  %v1875 = vld [vmem:[%s1870 + $0x18] sm:$0xff]
  %v1876 = vld [vmem:[%s1870 + $0x20] sm:$0xf]
  %v1877 = vld [vmem:[%s1870 + $0x24] sm:$0xff]
  %v1878 = vld [vmem:[%s1870 + $0x2c] sm:$0xf]
  %v1879 = vld [vmem:[%s1870 + $0x30] sm:$0xff]
  %v1880 = vld [vmem:[%s1870 + $0x38] sm:$0xf]
  %v1881 = vld [vmem:[%s1870 + $0x3c] sm:$0xff]
  %v1882 = vld [vmem:[%s1870 + $0x44] sm:$0xf]
  %v1883 = vld [vmem:[%s1870 + $0x48] sm:$0xff]
  %v1884 = vld [vmem:[%s1870 + $0x50] sm:$0xf]
  %v1885 = vld [vmem:[%s1870 + $0x54] sm:$0xff]
  %v1886 = vld [vmem:[%s1870 + $0x5c] sm:$0xf]
  %v1887 = vld [vmem:[%s1870 + $0x60] sm:$0xff]
  %v1888 = vld [vmem:[%s1870 + $0x68] sm:$0xf]
  %v1889 = vld [vmem:[%s1870 + $0x6c] sm:$0xff]
  %v1890 = vld [vmem:[%s1870 + $0x74] sm:$0xf]
  %v1891 = vld [vmem:[%s1870 + $0x78] sm:$0xff]
  %v1892 = vld [vmem:[%s1870 + $0x80] sm:$0xf]
  %v1893 = vld [vmem:[%s1870 + $0x84] sm:$0xff]
  %v1894 = vld [vmem:[%s1870 + $0x8c] sm:$0xf]
  %v1895 = vld [vmem:[%s1870 + $0x90] sm:$0xff]
  %v1896 = vld [vmem:[%s1870 + $0x98] sm:$0xf]
  %v1897 = vld [vmem:[%s1870 + $0x9c] sm:$0xff]
  %v1898 = vld [vmem:[%s1870 + $0xa4] sm:$0xf]
  %v1899 = vld [vmem:[%s1870 + $0xa8] sm:$0xff]
  %v1900 = vld [vmem:[%s1870 + $0xb0] sm:$0xf]
  %v1901 = vld [vmem:[%s1870 + $0xb4] sm:$0xff]
  %v1902 = vld [vmem:[%s1870 + $0xbc] sm:$0xf]
  %v1935 = vunpack.c.l.b16 %v1871
  %v1936 = vunpack.c.h.b16 %v1871
  %v1937 = vunpack.c.l.b16 %v1872
  %v1938 = vunpack.c.l.b16 %v1873
  %v1939 = vunpack.c.h.b16 %v1873
  %v1940 = vunpack.c.l.b16 %v1874
  %v1941 = vunpack.c.l.b16 %v1875
  %v1942 = vunpack.c.h.b16 %v1875
  %v1943 = vunpack.c.l.b16 %v1876
  %v1944 = vunpack.c.l.b16 %v1877
  %v1945 = vunpack.c.h.b16 %v1877
  %v1946 = vunpack.c.l.b16 %v1878
  %v1947 = vunpack.c.l.b16 %v1879
  %v1948 = vunpack.c.h.b16 %v1879
  %v1949 = vunpack.c.l.b16 %v1880
  %v1950 = vunpack.c.l.b16 %v1881
  %v1951 = vunpack.c.h.b16 %v1881
  %v1952 = vunpack.c.l.b16 %v1882
  %v1953 = vunpack.c.l.b16 %v1883
  %v1954 = vunpack.c.h.b16 %v1883
  %v1955 = vunpack.c.l.b16 %v1884
  %v1956 = vunpack.c.l.b16 %v1885
  %v1957 = vunpack.c.h.b16 %v1885
  %v1958 = vunpack.c.l.b16 %v1886
  %v1959 = vunpack.c.l.b16 %v1887
  %v1960 = vunpack.c.h.b16 %v1887
  %v1961 = vunpack.c.l.b16 %v1888
  %v1962 = vunpack.c.l.b16 %v1889
  %v1963 = vunpack.c.h.b16 %v1889
  %v1964 = vunpack.c.l.b16 %v1890
  %v1965 = vunpack.c.l.b16 %v1891
  %v1966 = vunpack.c.h.b16 %v1891
  %v1967 = vunpack.c.l.b16 %v1892
  %v1968 = vunpack.c.l.b16 %v1893
  %v1969 = vunpack.c.h.b16 %v1893
  %v1970 = vunpack.c.l.b16 %v1894
  %v1971 = vunpack.c.l.b16 %v1895
  %v1972 = vunpack.c.h.b16 %v1895
  %v1973 = vunpack.c.l.b16 %v1896
  %v1974 = vunpack.c.l.b16 %v1897
  %v1975 = vunpack.c.h.b16 %v1897
  %v1976 = vunpack.c.l.b16 %v1898
  %v1977 = vunpack.c.l.b16 %v1899
  %v1978 = vunpack.c.h.b16 %v1899
  %v1979 = vunpack.c.l.b16 %v1900
  %v1980 = vunpack.c.l.b16 %v1901
  %v1981 = vunpack.c.h.b16 %v1901
  %v1982 = vunpack.c.l.b16 %v1902
  %v1983 = vpack.c.b16 %v1938, %v1935
  %v1984 = vpack.c.b16 %v1939, %v1936
  %v1985 = vpack.c.b16 %v1940, %v1937
  %v1986 = vpack.c.b16 %v1944, %v1941
  %v1987 = vpack.c.b16 %v1945, %v1942
  %v1988 = vpack.c.b16 %v1946, %v1943
  %v1989 = vpack.c.b16 %v1950, %v1947
  %v1990 = vpack.c.b16 %v1951, %v1948
  %v1991 = vpack.c.b16 %v1952, %v1949
  %v1992 = vpack.c.b16 %v1956, %v1953
  %v1993 = vpack.c.b16 %v1957, %v1954
  %v1994 = vpack.c.b16 %v1958, %v1955
  %v1995 = vpack.c.b16 %v1962, %v1959
  %v1996 = vpack.c.b16 %v1963, %v1960
  %v1997 = vpack.c.b16 %v1964, %v1961
  %v1998 = vpack.c.b16 %v1968, %v1965
  %v1999 = vpack.c.b16 %v1969, %v1966
  %v2000 = vpack.c.b16 %v1970, %v1967
  %v2001 = vpack.c.b16 %v1974, %v1971
  %v2002 = vpack.c.b16 %v1975, %v1972
  %v2003 = vpack.c.b16 %v1976, %v1973
  %v2004 = vpack.c.b16 %v1980, %v1977
  %v2005 = vpack.c.b16 %v1981, %v1978
  %v2006 = vpack.c.b16 %v1982, %v1979
  %2031 = vmatprep.subr.bf16.mxu0 %v1984
  %2032 = vmatpush1.bf16.msra.mxu0 %v1983
  %2033 = vmatprep.subr.bf16.mxu0 %v1987
  %2034 = vmatpush1.bf16.msra.mxu0 %v1986
  %2035 = vmatprep.subr.bf16.mxu0 %v1990
  %2036 = vmatpush1.bf16.msra.mxu0 %v1989
  %2037 = vmatprep.subr.bf16.mxu0 %v1993
  %2038 = vmatpush1.bf16.msra.mxu0 %v1992
  %2039 = vmatprep.subr.bf16.mxu0 %v1996
  %2040 = vmatpush1.bf16.msra.mxu0 %v1995
  %2041 = vmatprep.subr.bf16.mxu0 %v1999
  %2042 = vmatpush1.bf16.msra.mxu0 %v1998
  %2043 = vmatprep.subr.bf16.mxu0 %v2002
  %2044 = vmatpush1.bf16.msra.mxu0 %v2001
  %2045 = vmatprep.subr.bf16.mxu0 %v2005
  %2046 = vmatpush1.bf16.msra.mxu0 %v2004
  %2047 = vmatprep.subr.bf16.mxu0 0
  %2048 = vmatpush1.bf16.msra.mxu0 0
  %2049 = vmatprep.subr.bf16.mxu0 0
  %2050 = vmatpush1.bf16.msra.mxu0 0
  %2051 = vmatprep.subr.bf16.mxu0 0
  %2052 = vmatpush1.bf16.msra.mxu0 0
  %2053 = vmatprep.subr.bf16.mxu0 0
  %2054 = vmatpush1.bf16.msra.mxu0 0
  %2055 = vmatprep.subr.bf16.mxu0 0
  %2056 = vmatpush1.bf16.msra.mxu0 0
  %2057 = vmatprep.subr.bf16.mxu0 0
  %2058 = vmatpush1.bf16.msra.mxu0 0
  %2059 = vmatprep.subr.bf16.mxu0 0
  %2060 = vmatpush1.bf16.msra.mxu0 0
  %2061 = vmatprep.subr.bf16.mxu0 0
  %2062 = vmatpush1.bf16.msra.mxu0 0
  %2063 = vmatprep.mubr.bf16.mxu0 0
  %2064 = vmatmul.mubr.bf16.gmra.mrb[0].mxu0 0
  %v2065 = vpop.f32.mrb[0].mxu0
  %v2066 = vadd.f32 0.0, %v2065
  %v2067 = vpop.f32.mrb[0].mxu0
  %v2068 = vadd.f32 0.0, %v2067
  %v2069 = vpop.f32.mrb[0].mxu0
  %v2070 = vpop.f32.mrb[0].mxu0
  %2071 = vdwg.mxu0
  %2072 = vmatprep.subr.bf16.mxu0 0
  %2073 = vmatpush1.bf16.msra.mxu0 %v1985
  %2074 = vmatprep.subr.bf16.mxu0 0
  %2075 = vmatpush1.bf16.msra.mxu0 %v1988
  %2076 = vmatprep.subr.bf16.mxu0 0
  %2077 = vmatpush1.bf16.msra.mxu0 %v1991
  %2078 = vmatprep.subr.bf16.mxu0 0
  %2079 = vmatpush1.bf16.msra.mxu0 %v1994
  %2080 = vmatprep.subr.bf16.mxu0 0
  %2081 = vmatpush1.bf16.msra.mxu0 %v1997
  %2082 = vmatprep.subr.bf16.mxu0 0
  %2083 = vmatpush1.bf16.msra.mxu0 %v2000
  %2084 = vmatprep.subr.bf16.mxu0 0
  %2085 = vmatpush1.bf16.msra.mxu0 %v2003
  %2086 = vmatprep.subr.bf16.mxu0 0
  %2087 = vmatpush1.bf16.msra.mxu0 %v2006
  %2088 = vmatprep.subr.bf16.mxu0 0
  %2089 = vmatpush1.bf16.msra.mxu0 0
  %2090 = vmatprep.subr.bf16.mxu0 0
  %2091 = vmatpush1.bf16.msra.mxu0 0
  %2092 = vmatprep.subr.bf16.mxu0 0
  %2093 = vmatpush1.bf16.msra.mxu0 0
  %2094 = vmatprep.subr.bf16.mxu0 0
  %2095 = vmatpush1.bf16.msra.mxu0 0
  %2096 = vmatprep.subr.bf16.mxu0 0
  %2097 = vmatpush1.bf16.msra.mxu0 0
  %2098 = vmatprep.subr.bf16.mxu0 0
  %2099 = vmatpush1.bf16.msra.mxu0 0
  %2100 = vmatprep.subr.bf16.mxu0 0
  %2101 = vmatpush1.bf16.msra.mxu0 0
  %2102 = vmatprep.subr.bf16.mxu0 0
  %2103 = vmatpush1.bf16.msra.mxu0 0
  %2104 = vmatprep.mubr.bf16.mxu0 0
  %2105 = vmatmul.mubr.bf16.gmra.mrb[0].mxu0 0
  %v2106 = vpop.f32.mrb[0].mxu0
  %v2107 = vadd.f32 0.0, %v2106
  %v2108 = vpop.f32.mrb[0].mxu0
  %v2109 = vpop.f32.mrb[0].mxu0
  %v2110 = vpop.f32.mrb[0].mxu0
  %2111 = vdwg.mxu0
  %v2112 = vadd.f32 %v1824, %v2066
  %v2113 = vadd.f32 %v1826, %v2068
  %v2114 = vadd.f32 %v2107, %v455
  %v2115 = vxor.u32 %v2112, 2147483648
  %v2116 = vmul.f32 %v2115, 1.442695
  %v2117 = vpow.pop %v2116
  %v2118 = vadd.f32 %v2117, 1.0
  %v2119 = vrcp.pop %v2118
  %v2120 = vmul.f32 1.0, %v2119
  %v2121 = vxor.u32 %v2113, 2147483648
  %v2122 = vmul.f32 %v2121, 1.442695
  %v2123 = vpow.pop %v2122
  %v2124 = vadd.f32 %v2123, 1.0
  %v2125 = vrcp.pop %v2124
  %v2126 = vmul.f32 1.0, %v2125
  %v2127 = vmul.f32 %v2120, %v2114
  %v2128 = vadd.f32 %v1865, %v2127
  %v2129 = vtanh.pop %v2128
  %v2130 = vsub.f32 1.0, %v2126
  %v2131 = vmul.f32 %v2130, %v2129
  %v2132 = vmul.f32 %v2126, 0.0
  %v2133 = vadd.f32 %v2131, %v2132
  %v2134 = vpack.c.bf16 %v1443, %v1443
  %v2135 = vpack.c.bf16 %v1627, %v1627
  %v2136 = vpack.c.bf16 %v2133, %v2133
  %v2137 = vld [vmem:[#allocation2 + $0x48] sm:$0xff]
  %v2138 = vld [vmem:[#allocation2 + $0x50] sm:$0xff]
  %v2139 = vld [vmem:[#allocation2 + $0x58] sm:$0xff]
  %2140 = vmatprep.subr.bf16.mxu0 %v573
  %2141 = vmatpush1.bf16.msra.mxu0 %v572
  %2142 = vmatprep.subr.bf16.mxu0 %v576
  %2143 = vmatpush1.bf16.msra.mxu0 %v575
  %2144 = vmatprep.subr.bf16.mxu0 %v579
  %2145 = vmatpush1.bf16.msra.mxu0 %v578
  %2146 = vmatprep.subr.bf16.mxu0 %v582
  %2147 = vmatpush1.bf16.msra.mxu0 %v581
  %2148 = vmatprep.subr.bf16.mxu0 %v585
  %2149 = vmatpush1.bf16.msra.mxu0 %v584
  %2150 = vmatprep.subr.bf16.mxu0 %v588
  %2151 = vmatpush1.bf16.msra.mxu0 %v587
  %2152 = vmatprep.subr.bf16.mxu0 %v591
  %2153 = vmatpush1.bf16.msra.mxu0 %v590
  %2154 = vmatprep.subr.bf16.mxu0 %v594
  %2155 = vmatpush1.bf16.msra.mxu0 %v593
  %2156 = vmatprep.subr.bf16.mxu0 0
  %2157 = vmatpush1.bf16.msra.mxu0 0
  %2158 = vmatprep.subr.bf16.mxu0 0
  %2159 = vmatpush1.bf16.msra.mxu0 0
  %2160 = vmatprep.subr.bf16.mxu0 0
  %2161 = vmatpush1.bf16.msra.mxu0 0
  %2162 = vmatprep.subr.bf16.mxu0 0
  %2163 = vmatpush1.bf16.msra.mxu0 0
  %2164 = vmatprep.subr.bf16.mxu0 0
  %2165 = vmatpush1.bf16.msra.mxu0 0
  %2166 = vmatprep.subr.bf16.mxu0 0
  %2167 = vmatpush1.bf16.msra.mxu0 0
  %2168 = vmatprep.subr.bf16.mxu0 0
  %2169 = vmatpush1.bf16.msra.mxu0 0
  %2170 = vmatprep.subr.bf16.mxu0 0
  %2171 = vmatpush1.bf16.msra.mxu0 0
  %2172 = vmatprep.mubr.bf16.mxu0 0
  %2173 = vmatmul.mubr.bf16.gmra.mrb[0].mxu0 %v2134
  %v2174 = vpop.f32.mrb[0].mxu0
  %v2175 = vadd.f32 0.0, %v2174
  %v2176 = vpop.f32.mrb[0].mxu0
  %v2177 = vadd.f32 0.0, %v2176
  %v2178 = vpop.f32.mrb[0].mxu0
  %v2179 = vpop.f32.mrb[0].mxu0
  %2180 = vdwg.mxu0
  %2181 = vmatprep.subr.bf16.mxu0 0
  %2182 = vmatpush1.bf16.msra.mxu0 %v574
  %2183 = vmatprep.subr.bf16.mxu0 0
  %2184 = vmatpush1.bf16.msra.mxu0 %v577
  %2185 = vmatprep.subr.bf16.mxu0 0
  %2186 = vmatpush1.bf16.msra.mxu0 %v580
  %2187 = vmatprep.subr.bf16.mxu0 0
  %2188 = vmatpush1.bf16.msra.mxu0 %v583
  %2189 = vmatprep.subr.bf16.mxu0 0
  %2190 = vmatpush1.bf16.msra.mxu0 %v586
  %2191 = vmatprep.subr.bf16.mxu0 0
  %2192 = vmatpush1.bf16.msra.mxu0 %v589
  %2193 = vmatprep.subr.bf16.mxu0 0
  %2194 = vmatpush1.bf16.msra.mxu0 %v592
  %2195 = vmatprep.subr.bf16.mxu0 0
  %2196 = vmatpush1.bf16.msra.mxu0 %v595
  %2197 = vmatprep.subr.bf16.mxu0 0
  %2198 = vmatpush1.bf16.msra.mxu0 0
  %2199 = vmatprep.subr.bf16.mxu0 0
  %2200 = vmatpush1.bf16.msra.mxu0 0
  %2201 = vmatprep.subr.bf16.mxu0 0
  %2202 = vmatpush1.bf16.msra.mxu0 0
  %2203 = vmatprep.subr.bf16.mxu0 0
  %2204 = vmatpush1.bf16.msra.mxu0 0
  %2205 = vmatprep.subr.bf16.mxu0 0
  %2206 = vmatpush1.bf16.msra.mxu0 0
  %2207 = vmatprep.subr.bf16.mxu0 0
  %2208 = vmatpush1.bf16.msra.mxu0 0
  %2209 = vmatprep.subr.bf16.mxu0 0
  %2210 = vmatpush1.bf16.msra.mxu0 0
  %2211 = vmatprep.subr.bf16.mxu0 0
  %2212 = vmatpush1.bf16.msra.mxu0 0
  %2213 = vmatprep.mubr.bf16.mxu0 0
  %2214 = vmatmul.mubr.bf16.gmra.mrb[0].mxu0 %v2134
  %v2215 = vpop.f32.mrb[0].mxu0
  %v2216 = vadd.f32 0.0, %v2215
  %v2217 = vpop.f32.mrb[0].mxu0
  %v2218 = vpop.f32.mrb[0].mxu0
  %v2219 = vpop.f32.mrb[0].mxu0
  %2220 = vdwg.mxu0
  %v2221 = vadd.f32 %v2137, %v2175
  %v2222 = vadd.f32 %v2138, %v2177
  %v2223 = vadd.f32 %v2216, %v439
  %v2224 = vxor.u32 %v2221, 2147483648
  %v2225 = vmul.f32 %v2224, 1.442695
  %v2226 = vpow.pop %v2225
  %v2227 = vadd.f32 %v2226, 1.0
  %v2228 = vrcp.pop %v2227
  %v2229 = vmul.f32 1.0, %v2228
  %v2230 = vxor.u32 %v2222, 2147483648
  %v2231 = vmul.f32 %v2230, 1.442695
  %v2232 = vpow.pop %v2231
  %v2233 = vadd.f32 %v2232, 1.0
  %v2234 = vrcp.pop %v2233
  %v2235 = vmul.f32 1.0, %v2234
  %v2236 = vmul.f32 %v2229, %v2223
  %v2237 = vadd.f32 %v2139, %v2236
  %v2238 = vtanh.pop %v2237
  %v2239 = vsub.f32 1.0, %v2235
  %v2240 = vmul.f32 %v2239, %v2238
  %v2241 = vmul.f32 %v2235, %v1443
  %v2242 = vadd.f32 %v2240, %v2241
  %2243 = vmatprep.subr.bf16.mxu0 %v944
  %2244 = vmatpush1.bf16.msra.mxu0 %v943
  %2245 = vmatprep.subr.bf16.mxu0 %v947
  %2246 = vmatpush1.bf16.msra.mxu0 %v946
  %2247 = vmatprep.subr.bf16.mxu0 %v950
  %2248 = vmatpush1.bf16.msra.mxu0 %v949
  %2249 = vmatprep.subr.bf16.mxu0 %v953
  %2250 = vmatpush1.bf16.msra.mxu0 %v952
  %2251 = vmatprep.subr.bf16.mxu0 %v956
  %2252 = vmatpush1.bf16.msra.mxu0 %v955
  %2253 = vmatprep.subr.bf16.mxu0 %v959
  %2254 = vmatpush1.bf16.msra.mxu0 %v958
  %2255 = vmatprep.subr.bf16.mxu0 %v962
  %2256 = vmatpush1.bf16.msra.mxu0 %v961
  %2257 = vmatprep.subr.bf16.mxu0 %v965
  %2258 = vmatpush1.bf16.msra.mxu0 %v964
  %2259 = vmatprep.subr.bf16.mxu0 0
  %2260 = vmatpush1.bf16.msra.mxu0 0
  %2261 = vmatprep.subr.bf16.mxu0 0
  %2262 = vmatpush1.bf16.msra.mxu0 0
  %2263 = vmatprep.subr.bf16.mxu0 0
  %2264 = vmatpush1.bf16.msra.mxu0 0
  %2265 = vmatprep.subr.bf16.mxu0 0
  %2266 = vmatpush1.bf16.msra.mxu0 0
  %2267 = vmatprep.subr.bf16.mxu0 0
  %2268 = vmatpush1.bf16.msra.mxu0 0
  %2269 = vmatprep.subr.bf16.mxu0 0
  %2270 = vmatpush1.bf16.msra.mxu0 0
  %2271 = vmatprep.subr.bf16.mxu0 0
  %2272 = vmatpush1.bf16.msra.mxu0 0
  %2273 = vmatprep.subr.bf16.mxu0 0
  %2274 = vmatpush1.bf16.msra.mxu0 0
  %2275 = vmatprep.mubr.bf16.mxu0 0
  %2276 = vmatmul.mubr.bf16.gmra.mrb[0].mxu0 %v2134
  %v2277 = vpop.f32.mrb[0].mxu0
  %v2278 = vadd.f32 %v404, %v2277
  %v2279 = vpop.f32.mrb[0].mxu0
  %v2280 = vadd.f32 %v408, %v2279
  %v2281 = vpop.f32.mrb[0].mxu0
  %v2282 = vpop.f32.mrb[0].mxu0
  %2283 = vdwg.mxu0
  %2284 = vmatprep.subr.bf16.mxu0 0
  %2285 = vmatpush1.bf16.msra.mxu0 %v945
  %2286 = vmatprep.subr.bf16.mxu0 0
  %2287 = vmatpush1.bf16.msra.mxu0 %v948
  %2288 = vmatprep.subr.bf16.mxu0 0
  %2289 = vmatpush1.bf16.msra.mxu0 %v951
  %2290 = vmatprep.subr.bf16.mxu0 0
  %2291 = vmatpush1.bf16.msra.mxu0 %v954
  %2292 = vmatprep.subr.bf16.mxu0 0
  %2293 = vmatpush1.bf16.msra.mxu0 %v957
  %2294 = vmatprep.subr.bf16.mxu0 0
  %2295 = vmatpush1.bf16.msra.mxu0 %v960
  %2296 = vmatprep.subr.bf16.mxu0 0
  %2297 = vmatpush1.bf16.msra.mxu0 %v963
  %2298 = vmatprep.subr.bf16.mxu0 0
  %2299 = vmatpush1.bf16.msra.mxu0 %v966
  %2300 = vmatprep.subr.bf16.mxu0 0
  %2301 = vmatpush1.bf16.msra.mxu0 0
  %2302 = vmatprep.subr.bf16.mxu0 0
  %2303 = vmatpush1.bf16.msra.mxu0 0
  %2304 = vmatprep.subr.bf16.mxu0 0
  %2305 = vmatpush1.bf16.msra.mxu0 0
  %2306 = vmatprep.subr.bf16.mxu0 0
  %2307 = vmatpush1.bf16.msra.mxu0 0
  %2308 = vmatprep.subr.bf16.mxu0 0
  %2309 = vmatpush1.bf16.msra.mxu0 0
  %2310 = vmatprep.subr.bf16.mxu0 0
  %2311 = vmatpush1.bf16.msra.mxu0 0
  %2312 = vmatprep.subr.bf16.mxu0 0
  %2313 = vmatpush1.bf16.msra.mxu0 0
  %2314 = vmatprep.subr.bf16.mxu0 0
  %2315 = vmatpush1.bf16.msra.mxu0 0
  %2316 = vmatprep.mubr.bf16.mxu0 0
  %2317 = vmatmul.mubr.bf16.gmra.mrb[0].mxu0 %v2134
  %v2318 = vpop.f32.mrb[0].mxu0
  %v2319 = vadd.f32 %v412, %v2318
  %v2320 = vpop.f32.mrb[0].mxu0
  %v2321 = vpop.f32.mrb[0].mxu0
  %v2322 = vpop.f32.mrb[0].mxu0
  %2323 = vdwg.mxu0
  %2324 = vmatprep.subr.bf16.mxu0 %v1186
  %2325 = vmatpush1.bf16.msra.mxu0 %v1185
  %2326 = vmatprep.subr.bf16.mxu0 %v1189
  %2327 = vmatpush1.bf16.msra.mxu0 %v1188
  %2328 = vmatprep.subr.bf16.mxu0 %v1192
  %2329 = vmatpush1.bf16.msra.mxu0 %v1191
  %2330 = vmatprep.subr.bf16.mxu0 %v1195
  %2331 = vmatpush1.bf16.msra.mxu0 %v1194
  %2332 = vmatprep.subr.bf16.mxu0 %v1198
  %2333 = vmatpush1.bf16.msra.mxu0 %v1197
  %2334 = vmatprep.subr.bf16.mxu0 %v1201
  %2335 = vmatpush1.bf16.msra.mxu0 %v1200
  %2336 = vmatprep.subr.bf16.mxu0 %v1204
  %2337 = vmatpush1.bf16.msra.mxu0 %v1203
  %2338 = vmatprep.subr.bf16.mxu0 %v1207
  %2339 = vmatpush1.bf16.msra.mxu0 %v1206
  %2340 = vmatprep.subr.bf16.mxu0 0
  %2341 = vmatpush1.bf16.msra.mxu0 0
  %2342 = vmatprep.subr.bf16.mxu0 0
  %2343 = vmatpush1.bf16.msra.mxu0 0
  %2344 = vmatprep.subr.bf16.mxu0 0
  %2345 = vmatpush1.bf16.msra.mxu0 0
  %2346 = vmatprep.subr.bf16.mxu0 0
  %2347 = vmatpush1.bf16.msra.mxu0 0
  %2348 = vmatprep.subr.bf16.mxu0 0
  %2349 = vmatpush1.bf16.msra.mxu0 0
  %2350 = vmatprep.subr.bf16.mxu0 0
  %2351 = vmatpush1.bf16.msra.mxu0 0
  %2352 = vmatprep.subr.bf16.mxu0 0
  %2353 = vmatpush1.bf16.msra.mxu0 0
  %2354 = vmatprep.subr.bf16.mxu0 0
  %2355 = vmatpush1.bf16.msra.mxu0 0
  %2356 = vmatprep.mubr.bf16.mxu0 0
  %2357 = vmatmul.mubr.bf16.gmra.mrb[0].mxu0 %v2135
  %v2358 = vpop.f32.mrb[0].mxu0
  %v2359 = vadd.f32 0.0, %v2358
  %v2360 = vpop.f32.mrb[0].mxu0
  %v2361 = vadd.f32 0.0, %v2360
  %v2362 = vpop.f32.mrb[0].mxu0
  %v2363 = vpop.f32.mrb[0].mxu0
  %2364 = vdwg.mxu0
  %2365 = vmatprep.subr.bf16.mxu0 0
  %2366 = vmatpush1.bf16.msra.mxu0 %v1187
  %2367 = vmatprep.subr.bf16.mxu0 0
  %2368 = vmatpush1.bf16.msra.mxu0 %v1190
  %2369 = vmatprep.subr.bf16.mxu0 0
  %2370 = vmatpush1.bf16.msra.mxu0 %v1193
  %2371 = vmatprep.subr.bf16.mxu0 0
  %2372 = vmatpush1.bf16.msra.mxu0 %v1196
  %2373 = vmatprep.subr.bf16.mxu0 0
  %2374 = vmatpush1.bf16.msra.mxu0 %v1199
  %2375 = vmatprep.subr.bf16.mxu0 0
  %2376 = vmatpush1.bf16.msra.mxu0 %v1202
  %2377 = vmatprep.subr.bf16.mxu0 0
  %2378 = vmatpush1.bf16.msra.mxu0 %v1205
  %2379 = vmatprep.subr.bf16.mxu0 0
  %2380 = vmatpush1.bf16.msra.mxu0 %v1208
  %2381 = vmatprep.subr.bf16.mxu0 0
  %2382 = vmatpush1.bf16.msra.mxu0 0
  %2383 = vmatprep.subr.bf16.mxu0 0
  %2384 = vmatpush1.bf16.msra.mxu0 0
  %2385 = vmatprep.subr.bf16.mxu0 0
  %2386 = vmatpush1.bf16.msra.mxu0 0
  %2387 = vmatprep.subr.bf16.mxu0 0
  %2388 = vmatpush1.bf16.msra.mxu0 0
  %2389 = vmatprep.subr.bf16.mxu0 0
  %2390 = vmatpush1.bf16.msra.mxu0 0
  %2391 = vmatprep.subr.bf16.mxu0 0
  %2392 = vmatpush1.bf16.msra.mxu0 0
  %2393 = vmatprep.subr.bf16.mxu0 0
  %2394 = vmatpush1.bf16.msra.mxu0 0
  %2395 = vmatprep.subr.bf16.mxu0 0
  %2396 = vmatpush1.bf16.msra.mxu0 0
  %2397 = vmatprep.mubr.bf16.mxu0 0
  %2398 = vmatmul.mubr.bf16.gmra.mrb[0].mxu0 %v2135
  %v2399 = vpop.f32.mrb[0].mxu0
  %v2400 = vadd.f32 0.0, %v2399
  %v2401 = vpop.f32.mrb[0].mxu0
  %v2402 = vpop.f32.mrb[0].mxu0
  %v2403 = vpop.f32.mrb[0].mxu0
  %2404 = vdwg.mxu0
  %v2405 = vadd.f32 %v2278, %v2359
  %v2406 = vadd.f32 %v2280, %v2361
  %v2407 = vadd.f32 %v2400, %v447
  %v2408 = vxor.u32 %v2405, 2147483648
  %v2409 = vmul.f32 %v2408, 1.442695
  %v2410 = vpow.pop %v2409
  %v2411 = vadd.f32 %v2410, 1.0
  %v2412 = vrcp.pop %v2411
  %v2413 = vmul.f32 1.0, %v2412
  %v2414 = vxor.u32 %v2406, 2147483648
  %v2415 = vmul.f32 %v2414, 1.442695
  %v2416 = vpow.pop %v2415
  %v2417 = vadd.f32 %v2416, 1.0
  %v2418 = vrcp.pop %v2417
  %v2419 = vmul.f32 1.0, %v2418
  %v2420 = vmul.f32 %v2413, %v2407
  %v2421 = vadd.f32 %v2319, %v2420
  %v2422 = vtanh.pop %v2421
  %v2423 = vsub.f32 1.0, %v2419
  %v2424 = vmul.f32 %v2423, %v2422
  %v2425 = vmul.f32 %v2419, %v1627
  %v2426 = vadd.f32 %v2424, %v2425
  %2427 = vmatprep.subr.bf16.mxu0 %v1742
  %2428 = vmatpush1.bf16.msra.mxu0 %v1741
  %2429 = vmatprep.subr.bf16.mxu0 %v1745
  %2430 = vmatpush1.bf16.msra.mxu0 %v1744
  %2431 = vmatprep.subr.bf16.mxu0 %v1748
  %2432 = vmatpush1.bf16.msra.mxu0 %v1747
  %2433 = vmatprep.subr.bf16.mxu0 %v1751
  %2434 = vmatpush1.bf16.msra.mxu0 %v1750
  %2435 = vmatprep.subr.bf16.mxu0 %v1754
  %2436 = vmatpush1.bf16.msra.mxu0 %v1753
  %2437 = vmatprep.subr.bf16.mxu0 %v1757
  %2438 = vmatpush1.bf16.msra.mxu0 %v1756
  %2439 = vmatprep.subr.bf16.mxu0 %v1760
  %2440 = vmatpush1.bf16.msra.mxu0 %v1759
  %2441 = vmatprep.subr.bf16.mxu0 %v1763
  %2442 = vmatpush1.bf16.msra.mxu0 %v1762
  %2443 = vmatprep.subr.bf16.mxu0 0
  %2444 = vmatpush1.bf16.msra.mxu0 0
  %2445 = vmatprep.subr.bf16.mxu0 0
  %2446 = vmatpush1.bf16.msra.mxu0 0
  %2447 = vmatprep.subr.bf16.mxu0 0
  %2448 = vmatpush1.bf16.msra.mxu0 0
  %2449 = vmatprep.subr.bf16.mxu0 0
  %2450 = vmatpush1.bf16.msra.mxu0 0
  %2451 = vmatprep.subr.bf16.mxu0 0
  %2452 = vmatpush1.bf16.msra.mxu0 0
  %2453 = vmatprep.subr.bf16.mxu0 0
  %2454 = vmatpush1.bf16.msra.mxu0 0
  %2455 = vmatprep.subr.bf16.mxu0 0
  %2456 = vmatpush1.bf16.msra.mxu0 0
  %2457 = vmatprep.subr.bf16.mxu0 0
  %2458 = vmatpush1.bf16.msra.mxu0 0
  %2459 = vmatprep.mubr.bf16.mxu0 0
  %2460 = vmatmul.mubr.bf16.gmra.mrb[0].mxu0 %v2135
  %v2461 = vpop.f32.mrb[0].mxu0
  %v2462 = vadd.f32 %v422, %v2461
  %v2463 = vpop.f32.mrb[0].mxu0
  %v2464 = vadd.f32 %v426, %v2463
  %v2465 = vpop.f32.mrb[0].mxu0
  %v2466 = vpop.f32.mrb[0].mxu0
  %2467 = vdwg.mxu0
  %2468 = vmatprep.subr.bf16.mxu0 0
  %2469 = vmatpush1.bf16.msra.mxu0 %v1743
  %2470 = vmatprep.subr.bf16.mxu0 0
  %2471 = vmatpush1.bf16.msra.mxu0 %v1746
  %2472 = vmatprep.subr.bf16.mxu0 0
  %2473 = vmatpush1.bf16.msra.mxu0 %v1749
  %2474 = vmatprep.subr.bf16.mxu0 0
  %2475 = vmatpush1.bf16.msra.mxu0 %v1752
  %2476 = vmatprep.subr.bf16.mxu0 0
  %2477 = vmatpush1.bf16.msra.mxu0 %v1755
  %2478 = vmatprep.subr.bf16.mxu0 0
  %2479 = vmatpush1.bf16.msra.mxu0 %v1758
  %2480 = vmatprep.subr.bf16.mxu0 0
  %2481 = vmatpush1.bf16.msra.mxu0 %v1761
  %2482 = vmatprep.subr.bf16.mxu0 0
  %2483 = vmatpush1.bf16.msra.mxu0 %v1764
  %2484 = vmatprep.subr.bf16.mxu0 0
  %2485 = vmatpush1.bf16.msra.mxu0 0
  %2486 = vmatprep.subr.bf16.mxu0 0
  %2487 = vmatpush1.bf16.msra.mxu0 0
  %2488 = vmatprep.subr.bf16.mxu0 0
  %2489 = vmatpush1.bf16.msra.mxu0 0
  %2490 = vmatprep.subr.bf16.mxu0 0
  %2491 = vmatpush1.bf16.msra.mxu0 0
  %2492 = vmatprep.subr.bf16.mxu0 0
  %2493 = vmatpush1.bf16.msra.mxu0 0
  %2494 = vmatprep.subr.bf16.mxu0 0
  %2495 = vmatpush1.bf16.msra.mxu0 0
  %2496 = vmatprep.subr.bf16.mxu0 0
  %2497 = vmatpush1.bf16.msra.mxu0 0
  %2498 = vmatprep.subr.bf16.mxu0 0
  %2499 = vmatpush1.bf16.msra.mxu0 0
  %2500 = vmatprep.mubr.bf16.mxu0 0
  %2501 = vmatmul.mubr.bf16.gmra.mrb[0].mxu0 %v2135
  %v2502 = vpop.f32.mrb[0].mxu0
  %v2503 = vadd.f32 %v430, %v2502
  %v2504 = vpop.f32.mrb[0].mxu0
  %v2505 = vpop.f32.mrb[0].mxu0
  %v2506 = vpop.f32.mrb[0].mxu0
  %2507 = vdwg.mxu0
  %2508 = vmatprep.subr.bf16.mxu0 %v1984
  %2509 = vmatpush1.bf16.msra.mxu0 %v1983
  %2510 = vmatprep.subr.bf16.mxu0 %v1987
  %2511 = vmatpush1.bf16.msra.mxu0 %v1986
  %2512 = vmatprep.subr.bf16.mxu0 %v1990
  %2513 = vmatpush1.bf16.msra.mxu0 %v1989
  %2514 = vmatprep.subr.bf16.mxu0 %v1993
  %2515 = vmatpush1.bf16.msra.mxu0 %v1992
  %2516 = vmatprep.subr.bf16.mxu0 %v1996
  %2517 = vmatpush1.bf16.msra.mxu0 %v1995
  %2518 = vmatprep.subr.bf16.mxu0 %v1999
  %2519 = vmatpush1.bf16.msra.mxu0 %v1998
  %2520 = vmatprep.subr.bf16.mxu0 %v2002
  %2521 = vmatpush1.bf16.msra.mxu0 %v2001
  %2522 = vmatprep.subr.bf16.mxu0 %v2005
  %2523 = vmatpush1.bf16.msra.mxu0 %v2004
  %2524 = vmatprep.subr.bf16.mxu0 0
  %2525 = vmatpush1.bf16.msra.mxu0 0
  %2526 = vmatprep.subr.bf16.mxu0 0
  %2527 = vmatpush1.bf16.msra.mxu0 0
  %2528 = vmatprep.subr.bf16.mxu0 0
  %2529 = vmatpush1.bf16.msra.mxu0 0
  %2530 = vmatprep.subr.bf16.mxu0 0
  %2531 = vmatpush1.bf16.msra.mxu0 0
  %2532 = vmatprep.subr.bf16.mxu0 0
  %2533 = vmatpush1.bf16.msra.mxu0 0
  %2534 = vmatprep.subr.bf16.mxu0 0
  %2535 = vmatpush1.bf16.msra.mxu0 0
  %2536 = vmatprep.subr.bf16.mxu0 0
  %2537 = vmatpush1.bf16.msra.mxu0 0
  %2538 = vmatprep.subr.bf16.mxu0 0
  %2539 = vmatpush1.bf16.msra.mxu0 0
  %2540 = vmatprep.mubr.bf16.mxu0 0
  %2541 = vmatmul.mubr.bf16.gmra.mrb[0].mxu0 %v2136
  %v2542 = vpop.f32.mrb[0].mxu0
  %v2543 = vadd.f32 0.0, %v2542
  %v2544 = vpop.f32.mrb[0].mxu0
  %v2545 = vadd.f32 0.0, %v2544
  %v2546 = vpop.f32.mrb[0].mxu0
  %v2547 = vpop.f32.mrb[0].mxu0
  %2548 = vdwg.mxu0
  %2549 = vmatprep.subr.bf16.mxu0 0
  %2550 = vmatpush1.bf16.msra.mxu0 %v1985
  %2551 = vmatprep.subr.bf16.mxu0 0
  %2552 = vmatpush1.bf16.msra.mxu0 %v1988
  %2553 = vmatprep.subr.bf16.mxu0 0
  %2554 = vmatpush1.bf16.msra.mxu0 %v1991
  %2555 = vmatprep.subr.bf16.mxu0 0
  %2556 = vmatpush1.bf16.msra.mxu0 %v1994
  %2557 = vmatprep.subr.bf16.mxu0 0
  %2558 = vmatpush1.bf16.msra.mxu0 %v1997
  %2559 = vmatprep.subr.bf16.mxu0 0
  %2560 = vmatpush1.bf16.msra.mxu0 %v2000
  %2561 = vmatprep.subr.bf16.mxu0 0
  %2562 = vmatpush1.bf16.msra.mxu0 %v2003
  %2563 = vmatprep.subr.bf16.mxu0 0
  %2564 = vmatpush1.bf16.msra.mxu0 %v2006
  %2565 = vmatprep.subr.bf16.mxu0 0
  %2566 = vmatpush1.bf16.msra.mxu0 0
  %2567 = vmatprep.subr.bf16.mxu0 0
  %2568 = vmatpush1.bf16.msra.mxu0 0
  %2569 = vmatprep.subr.bf16.mxu0 0
  %2570 = vmatpush1.bf16.msra.mxu0 0
  %2571 = vmatprep.subr.bf16.mxu0 0
  %2572 = vmatpush1.bf16.msra.mxu0 0
  %2573 = vmatprep.subr.bf16.mxu0 0
  %2574 = vmatpush1.bf16.msra.mxu0 0
  %2575 = vmatprep.subr.bf16.mxu0 0
  %2576 = vmatpush1.bf16.msra.mxu0 0
  %2577 = vmatprep.subr.bf16.mxu0 0
  %2578 = vmatpush1.bf16.msra.mxu0 0
  %2579 = vmatprep.subr.bf16.mxu0 0
  %2580 = vmatpush1.bf16.msra.mxu0 0
  %2581 = vmatprep.mubr.bf16.mxu0 0
  %2582 = vmatmul.mubr.bf16.gmra.mrb[0].mxu0 %v2136
  %v2583 = vpop.f32.mrb[0].mxu0
  %v2584 = vadd.f32 0.0, %v2583
  %v2585 = vpop.f32.mrb[0].mxu0
  %v2586 = vpop.f32.mrb[0].mxu0
  %v2587 = vpop.f32.mrb[0].mxu0
  %2588 = vdwg.mxu0
  %v2589 = vadd.f32 %v2462, %v2543
  %v2590 = vadd.f32 %v2464, %v2545
  %v2591 = vadd.f32 %v2584, %v455
  %v2592 = vxor.u32 %v2589, 2147483648
  %v2593 = vmul.f32 %v2592, 1.442695
  %v2594 = vpow.pop %v2593
  %v2595 = vadd.f32 %v2594, 1.0
  %v2596 = vrcp.pop %v2595
  %v2597 = vmul.f32 1.0, %v2596
  %v2598 = vxor.u32 %v2590, 2147483648
  %v2599 = vmul.f32 %v2598, 1.442695
  %v2600 = vpow.pop %v2599
  %v2601 = vadd.f32 %v2600, 1.0
  %v2602 = vrcp.pop %v2601
  %v2603 = vmul.f32 1.0, %v2602
  %v2604 = vmul.f32 %v2597, %v2591
  %v2605 = vadd.f32 %v2503, %v2604
  %v2606 = vtanh.pop %v2605
  %v2607 = vsub.f32 1.0, %v2603
  %v2608 = vmul.f32 %v2607, %v2606
  %v2609 = vmul.f32 %v2603, %v2133
  %v2610 = vadd.f32 %v2608, %v2609
  %v2611 = vpack.c.bf16 %v2242, %v2242
  %v2612 = vpack.c.bf16 %v2426, %v2426
  %v2613 = vpack.c.bf16 %v2610, %v2610
  %v2614 = vld [vmem:[#allocation2 + $0x60] sm:$0xff]
  %v2615 = vld [vmem:[#allocation2 + $0x68] sm:$0xff]
  %v2616 = vld [vmem:[#allocation2 + $0x70] sm:$0xff]
  %2617 = vmatprep.subr.bf16.mxu0 %v573
  %2618 = vmatpush1.bf16.msra.mxu0 %v572
  %2619 = vmatprep.subr.bf16.mxu0 %v576
  %2620 = vmatpush1.bf16.msra.mxu0 %v575
  %2621 = vmatprep.subr.bf16.mxu0 %v579
  %2622 = vmatpush1.bf16.msra.mxu0 %v578
  %2623 = vmatprep.subr.bf16.mxu0 %v582
  %2624 = vmatpush1.bf16.msra.mxu0 %v581
  %2625 = vmatprep.subr.bf16.mxu0 %v585
  %2626 = vmatpush1.bf16.msra.mxu0 %v584
  %2627 = vmatprep.subr.bf16.mxu0 %v588
  %2628 = vmatpush1.bf16.msra.mxu0 %v587
  %2629 = vmatprep.subr.bf16.mxu0 %v591
  %2630 = vmatpush1.bf16.msra.mxu0 %v590
  %2631 = vmatprep.subr.bf16.mxu0 %v594
  %2632 = vmatpush1.bf16.msra.mxu0 %v593
  %2633 = vmatprep.subr.bf16.mxu0 0
  %2634 = vmatpush1.bf16.msra.mxu0 0
  %2635 = vmatprep.subr.bf16.mxu0 0
  %2636 = vmatpush1.bf16.msra.mxu0 0
  %2637 = vmatprep.subr.bf16.mxu0 0
  %2638 = vmatpush1.bf16.msra.mxu0 0
  %2639 = vmatprep.subr.bf16.mxu0 0
  %2640 = vmatpush1.bf16.msra.mxu0 0
  %2641 = vmatprep.subr.bf16.mxu0 0
  %2642 = vmatpush1.bf16.msra.mxu0 0
  %2643 = vmatprep.subr.bf16.mxu0 0
  %2644 = vmatpush1.bf16.msra.mxu0 0
  %2645 = vmatprep.subr.bf16.mxu0 0
  %2646 = vmatpush1.bf16.msra.mxu0 0
  %2647 = vmatprep.subr.bf16.mxu0 0
  %2648 = vmatpush1.bf16.msra.mxu0 0
  %2649 = vmatprep.mubr.bf16.mxu0 0
  %2650 = vmatmul.mubr.bf16.gmra.mrb[0].mxu0 %v2611
  %v2651 = vpop.f32.mrb[0].mxu0
  %v2652 = vadd.f32 0.0, %v2651
  %v2653 = vpop.f32.mrb[0].mxu0
  %v2654 = vadd.f32 0.0, %v2653
  %v2655 = vpop.f32.mrb[0].mxu0
  %v2656 = vpop.f32.mrb[0].mxu0
  %2657 = vdwg.mxu0
  %2658 = vmatprep.subr.bf16.mxu0 0
  %2659 = vmatpush1.bf16.msra.mxu0 %v574
  %2660 = vmatprep.subr.bf16.mxu0 0
  %2661 = vmatpush1.bf16.msra.mxu0 %v577
  %2662 = vmatprep.subr.bf16.mxu0 0
  %2663 = vmatpush1.bf16.msra.mxu0 %v580
  %2664 = vmatprep.subr.bf16.mxu0 0
  %2665 = vmatpush1.bf16.msra.mxu0 %v583
  %2666 = vmatprep.subr.bf16.mxu0 0
  %2667 = vmatpush1.bf16.msra.mxu0 %v586
  %2668 = vmatprep.subr.bf16.mxu0 0
  %2669 = vmatpush1.bf16.msra.mxu0 %v589
  %2670 = vmatprep.subr.bf16.mxu0 0
  %2671 = vmatpush1.bf16.msra.mxu0 %v592
  %2672 = vmatprep.subr.bf16.mxu0 0
  %2673 = vmatpush1.bf16.msra.mxu0 %v595
  %2674 = vmatprep.subr.bf16.mxu0 0
  %2675 = vmatpush1.bf16.msra.mxu0 0
  %2676 = vmatprep.subr.bf16.mxu0 0
  %2677 = vmatpush1.bf16.msra.mxu0 0
  %2678 = vmatprep.subr.bf16.mxu0 0
  %2679 = vmatpush1.bf16.msra.mxu0 0
  %2680 = vmatprep.subr.bf16.mxu0 0
  %2681 = vmatpush1.bf16.msra.mxu0 0
  %2682 = vmatprep.subr.bf16.mxu0 0
  %2683 = vmatpush1.bf16.msra.mxu0 0
  %2684 = vmatprep.subr.bf16.mxu0 0
  %2685 = vmatpush1.bf16.msra.mxu0 0
  %2686 = vmatprep.subr.bf16.mxu0 0
  %2687 = vmatpush1.bf16.msra.mxu0 0
  %2688 = vmatprep.subr.bf16.mxu0 0
  %2689 = vmatpush1.bf16.msra.mxu0 0
  %2690 = vmatprep.mubr.bf16.mxu0 0
  %2691 = vmatmul.mubr.bf16.gmra.mrb[0].mxu0 %v2611
  %v2692 = vpop.f32.mrb[0].mxu0
  %v2693 = vadd.f32 0.0, %v2692
  %v2694 = vpop.f32.mrb[0].mxu0
  %v2695 = vpop.f32.mrb[0].mxu0
  %v2696 = vpop.f32.mrb[0].mxu0
  %2697 = vdwg.mxu0
  %v2698 = vadd.f32 %v2614, %v2652
  %v2699 = vadd.f32 %v2615, %v2654
  %v2700 = vadd.f32 %v2693, %v439
  %v2701 = vxor.u32 %v2698, 2147483648
  %v2702 = vmul.f32 %v2701, 1.442695
  %v2703 = vpow.pop %v2702
  %v2704 = vadd.f32 %v2703, 1.0
  %v2705 = vrcp.pop %v2704
  %v2706 = vmul.f32 1.0, %v2705
  %v2707 = vxor.u32 %v2699, 2147483648
  %v2708 = vmul.f32 %v2707, 1.442695
  %v2709 = vpow.pop %v2708
  %v2710 = vadd.f32 %v2709, 1.0
  %v2711 = vrcp.pop %v2710
  %v2712 = vmul.f32 1.0, %v2711
  %v2713 = vmul.f32 %v2706, %v2700
  %v2714 = vadd.f32 %v2616, %v2713
  %v2715 = vtanh.pop %v2714
  %v2716 = vsub.f32 1.0, %v2712
  %v2717 = vmul.f32 %v2716, %v2715
  %v2718 = vmul.f32 %v2712, %v2242
  %v2719 = vadd.f32 %v2717, %v2718
  %2720 = vmatprep.subr.bf16.mxu0 %v944
  %2721 = vmatpush1.bf16.msra.mxu0 %v943
  %2722 = vmatprep.subr.bf16.mxu0 %v947
  %2723 = vmatpush1.bf16.msra.mxu0 %v946
  %2724 = vmatprep.subr.bf16.mxu0 %v950
  %2725 = vmatpush1.bf16.msra.mxu0 %v949
  %2726 = vmatprep.subr.bf16.mxu0 %v953
  %2727 = vmatpush1.bf16.msra.mxu0 %v952
  %2728 = vmatprep.subr.bf16.mxu0 %v956
  %2729 = vmatpush1.bf16.msra.mxu0 %v955
  %2730 = vmatprep.subr.bf16.mxu0 %v959
  %2731 = vmatpush1.bf16.msra.mxu0 %v958
  %2732 = vmatprep.subr.bf16.mxu0 %v962
  %2733 = vmatpush1.bf16.msra.mxu0 %v961
  %2734 = vmatprep.subr.bf16.mxu0 %v965
  %2735 = vmatpush1.bf16.msra.mxu0 %v964
  %2736 = vmatprep.subr.bf16.mxu0 0
  %2737 = vmatpush1.bf16.msra.mxu0 0
  %2738 = vmatprep.subr.bf16.mxu0 0
  %2739 = vmatpush1.bf16.msra.mxu0 0
  %2740 = vmatprep.subr.bf16.mxu0 0
  %2741 = vmatpush1.bf16.msra.mxu0 0
  %2742 = vmatprep.subr.bf16.mxu0 0
  %2743 = vmatpush1.bf16.msra.mxu0 0
  %2744 = vmatprep.subr.bf16.mxu0 0
  %2745 = vmatpush1.bf16.msra.mxu0 0
  %2746 = vmatprep.subr.bf16.mxu0 0
  %2747 = vmatpush1.bf16.msra.mxu0 0
  %2748 = vmatprep.subr.bf16.mxu0 0
  %2749 = vmatpush1.bf16.msra.mxu0 0
  %2750 = vmatprep.subr.bf16.mxu0 0
  %2751 = vmatpush1.bf16.msra.mxu0 0
  %2752 = vmatprep.mubr.bf16.mxu0 0
  %2753 = vmatmul.mubr.bf16.gmra.mrb[0].mxu0 %v2611
  %v2754 = vpop.f32.mrb[0].mxu0
  %v2755 = vadd.f32 %v404, %v2754
  %v2756 = vpop.f32.mrb[0].mxu0
  %v2757 = vadd.f32 %v408, %v2756
  %v2758 = vpop.f32.mrb[0].mxu0
  %v2759 = vpop.f32.mrb[0].mxu0
  %2760 = vdwg.mxu0
  %2761 = vmatprep.subr.bf16.mxu0 0
  %2762 = vmatpush1.bf16.msra.mxu0 %v945
  %2763 = vmatprep.subr.bf16.mxu0 0
  %2764 = vmatpush1.bf16.msra.mxu0 %v948
  %2765 = vmatprep.subr.bf16.mxu0 0
  %2766 = vmatpush1.bf16.msra.mxu0 %v951
  %2767 = vmatprep.subr.bf16.mxu0 0
  %2768 = vmatpush1.bf16.msra.mxu0 %v954
  %2769 = vmatprep.subr.bf16.mxu0 0
  %2770 = vmatpush1.bf16.msra.mxu0 %v957
  %2771 = vmatprep.subr.bf16.mxu0 0
  %2772 = vmatpush1.bf16.msra.mxu0 %v960
  %2773 = vmatprep.subr.bf16.mxu0 0
  %2774 = vmatpush1.bf16.msra.mxu0 %v963
  %2775 = vmatprep.subr.bf16.mxu0 0
  %2776 = vmatpush1.bf16.msra.mxu0 %v966
  %2777 = vmatprep.subr.bf16.mxu0 0
  %2778 = vmatpush1.bf16.msra.mxu0 0
  %2779 = vmatprep.subr.bf16.mxu0 0
  %2780 = vmatpush1.bf16.msra.mxu0 0
  %2781 = vmatprep.subr.bf16.mxu0 0
  %2782 = vmatpush1.bf16.msra.mxu0 0
  %2783 = vmatprep.subr.bf16.mxu0 0
  %2784 = vmatpush1.bf16.msra.mxu0 0
  %2785 = vmatprep.subr.bf16.mxu0 0
  %2786 = vmatpush1.bf16.msra.mxu0 0
  %2787 = vmatprep.subr.bf16.mxu0 0
  %2788 = vmatpush1.bf16.msra.mxu0 0
  %2789 = vmatprep.subr.bf16.mxu0 0
  %2790 = vmatpush1.bf16.msra.mxu0 0
  %2791 = vmatprep.subr.bf16.mxu0 0
  %2792 = vmatpush1.bf16.msra.mxu0 0
  %2793 = vmatprep.mubr.bf16.mxu0 0
  %2794 = vmatmul.mubr.bf16.gmra.mrb[0].mxu0 %v2611
  %v2795 = vpop.f32.mrb[0].mxu0
  %v2796 = vadd.f32 %v412, %v2795
  %v2797 = vpop.f32.mrb[0].mxu0
  %v2798 = vpop.f32.mrb[0].mxu0
  %v2799 = vpop.f32.mrb[0].mxu0
  %2800 = vdwg.mxu0
  %2801 = vmatprep.subr.bf16.mxu0 %v1186
  %2802 = vmatpush1.bf16.msra.mxu0 %v1185
  %2803 = vmatprep.subr.bf16.mxu0 %v1189
  %2804 = vmatpush1.bf16.msra.mxu0 %v1188
  %2805 = vmatprep.subr.bf16.mxu0 %v1192
  %2806 = vmatpush1.bf16.msra.mxu0 %v1191
  %2807 = vmatprep.subr.bf16.mxu0 %v1195
  %2808 = vmatpush1.bf16.msra.mxu0 %v1194
  %2809 = vmatprep.subr.bf16.mxu0 %v1198
  %2810 = vmatpush1.bf16.msra.mxu0 %v1197
  %2811 = vmatprep.subr.bf16.mxu0 %v1201
  %2812 = vmatpush1.bf16.msra.mxu0 %v1200
  %2813 = vmatprep.subr.bf16.mxu0 %v1204
  %2814 = vmatpush1.bf16.msra.mxu0 %v1203
  %2815 = vmatprep.subr.bf16.mxu0 %v1207
  %2816 = vmatpush1.bf16.msra.mxu0 %v1206
  %2817 = vmatprep.subr.bf16.mxu0 0
  %2818 = vmatpush1.bf16.msra.mxu0 0
  %2819 = vmatprep.subr.bf16.mxu0 0
  %2820 = vmatpush1.bf16.msra.mxu0 0
  %2821 = vmatprep.subr.bf16.mxu0 0
  %2822 = vmatpush1.bf16.msra.mxu0 0
  %2823 = vmatprep.subr.bf16.mxu0 0
  %2824 = vmatpush1.bf16.msra.mxu0 0
  %2825 = vmatprep.subr.bf16.mxu0 0
  %2826 = vmatpush1.bf16.msra.mxu0 0
  %2827 = vmatprep.subr.bf16.mxu0 0
  %2828 = vmatpush1.bf16.msra.mxu0 0
  %2829 = vmatprep.subr.bf16.mxu0 0
  %2830 = vmatpush1.bf16.msra.mxu0 0
  %2831 = vmatprep.subr.bf16.mxu0 0
  %2832 = vmatpush1.bf16.msra.mxu0 0
  %2833 = vmatprep.mubr.bf16.mxu0 0
  %2834 = vmatmul.mubr.bf16.gmra.mrb[0].mxu0 %v2612
  %v2835 = vpop.f32.mrb[0].mxu0
  %v2836 = vadd.f32 0.0, %v2835
  %v2837 = vpop.f32.mrb[0].mxu0
  %v2838 = vadd.f32 0.0, %v2837
  %v2839 = vpop.f32.mrb[0].mxu0
  %v2840 = vpop.f32.mrb[0].mxu0
  %2841 = vdwg.mxu0
  %2842 = vmatprep.subr.bf16.mxu0 0
  %2843 = vmatpush1.bf16.msra.mxu0 %v1187
  %2844 = vmatprep.subr.bf16.mxu0 0
  %2845 = vmatpush1.bf16.msra.mxu0 %v1190
  %2846 = vmatprep.subr.bf16.mxu0 0
  %2847 = vmatpush1.bf16.msra.mxu0 %v1193
  %2848 = vmatprep.subr.bf16.mxu0 0
  %2849 = vmatpush1.bf16.msra.mxu0 %v1196
  %2850 = vmatprep.subr.bf16.mxu0 0
  %2851 = vmatpush1.bf16.msra.mxu0 %v1199
  %2852 = vmatprep.subr.bf16.mxu0 0
  %2853 = vmatpush1.bf16.msra.mxu0 %v1202
  %2854 = vmatprep.subr.bf16.mxu0 0
  %2855 = vmatpush1.bf16.msra.mxu0 %v1205
  %2856 = vmatprep.subr.bf16.mxu0 0
  %2857 = vmatpush1.bf16.msra.mxu0 %v1208
  %2858 = vmatprep.subr.bf16.mxu0 0
  %2859 = vmatpush1.bf16.msra.mxu0 0
  %2860 = vmatprep.subr.bf16.mxu0 0
  %2861 = vmatpush1.bf16.msra.mxu0 0
  %2862 = vmatprep.subr.bf16.mxu0 0
  %2863 = vmatpush1.bf16.msra.mxu0 0
  %2864 = vmatprep.subr.bf16.mxu0 0
  %2865 = vmatpush1.bf16.msra.mxu0 0
  %2866 = vmatprep.subr.bf16.mxu0 0
  %2867 = vmatpush1.bf16.msra.mxu0 0
  %2868 = vmatprep.subr.bf16.mxu0 0
  %2869 = vmatpush1.bf16.msra.mxu0 0
  %2870 = vmatprep.subr.bf16.mxu0 0
  %2871 = vmatpush1.bf16.msra.mxu0 0
  %2872 = vmatprep.subr.bf16.mxu0 0
  %2873 = vmatpush1.bf16.msra.mxu0 0
  %2874 = vmatprep.mubr.bf16.mxu0 0
  %2875 = vmatmul.mubr.bf16.gmra.mrb[0].mxu0 %v2612
  %v2876 = vpop.f32.mrb[0].mxu0
  %v2877 = vadd.f32 0.0, %v2876
  %v2878 = vpop.f32.mrb[0].mxu0
  %v2879 = vpop.f32.mrb[0].mxu0
  %v2880 = vpop.f32.mrb[0].mxu0
  %2881 = vdwg.mxu0
  %v2882 = vadd.f32 %v2755, %v2836
  %v2883 = vadd.f32 %v2757, %v2838
  %v2884 = vadd.f32 %v2877, %v447
  %v2885 = vxor.u32 %v2882, 2147483648
  %v2886 = vmul.f32 %v2885, 1.442695
  %v2887 = vpow.pop %v2886
  %v2888 = vadd.f32 %v2887, 1.0
  %v2889 = vrcp.pop %v2888
  %v2890 = vmul.f32 1.0, %v2889
  %v2891 = vxor.u32 %v2883, 2147483648
  %v2892 = vmul.f32 %v2891, 1.442695
  %v2893 = vpow.pop %v2892
  %v2894 = vadd.f32 %v2893, 1.0
  %v2895 = vrcp.pop %v2894
  %v2896 = vmul.f32 1.0, %v2895
  %v2897 = vmul.f32 %v2890, %v2884
  %v2898 = vadd.f32 %v2796, %v2897
  %v2899 = vtanh.pop %v2898
  %v2900 = vsub.f32 1.0, %v2896
  %v2901 = vmul.f32 %v2900, %v2899
  %v2902 = vmul.f32 %v2896, %v2426
  %v2903 = vadd.f32 %v2901, %v2902
  %2904 = vmatprep.subr.bf16.mxu0 %v1742
  %2905 = vmatpush1.bf16.msra.mxu0 %v1741
  %2906 = vmatprep.subr.bf16.mxu0 %v1745
  %2907 = vmatpush1.bf16.msra.mxu0 %v1744
  %2908 = vmatprep.subr.bf16.mxu0 %v1748
  %2909 = vmatpush1.bf16.msra.mxu0 %v1747
  %2910 = vmatprep.subr.bf16.mxu0 %v1751
  %2911 = vmatpush1.bf16.msra.mxu0 %v1750
  %2912 = vmatprep.subr.bf16.mxu0 %v1754
  %2913 = vmatpush1.bf16.msra.mxu0 %v1753
  %2914 = vmatprep.subr.bf16.mxu0 %v1757
  %2915 = vmatpush1.bf16.msra.mxu0 %v1756
  %2916 = vmatprep.subr.bf16.mxu0 %v1760
  %2917 = vmatpush1.bf16.msra.mxu0 %v1759
  %2918 = vmatprep.subr.bf16.mxu0 %v1763
  %2919 = vmatpush1.bf16.msra.mxu0 %v1762
  %2920 = vmatprep.subr.bf16.mxu0 0
  %2921 = vmatpush1.bf16.msra.mxu0 0
  %2922 = vmatprep.subr.bf16.mxu0 0
  %2923 = vmatpush1.bf16.msra.mxu0 0
  %2924 = vmatprep.subr.bf16.mxu0 0
  %2925 = vmatpush1.bf16.msra.mxu0 0
  %2926 = vmatprep.subr.bf16.mxu0 0
  %2927 = vmatpush1.bf16.msra.mxu0 0
  %2928 = vmatprep.subr.bf16.mxu0 0
  %2929 = vmatpush1.bf16.msra.mxu0 0
  %2930 = vmatprep.subr.bf16.mxu0 0
  %2931 = vmatpush1.bf16.msra.mxu0 0
  %2932 = vmatprep.subr.bf16.mxu0 0
  %2933 = vmatpush1.bf16.msra.mxu0 0
  %2934 = vmatprep.subr.bf16.mxu0 0
  %2935 = vmatpush1.bf16.msra.mxu0 0
  %2936 = vmatprep.mubr.bf16.mxu0 0
  %2937 = vmatmul.mubr.bf16.gmra.mrb[0].mxu0 %v2612
  %v2938 = vpop.f32.mrb[0].mxu0
  %v2939 = vadd.f32 %v422, %v2938
  %v2940 = vpop.f32.mrb[0].mxu0
  %v2941 = vadd.f32 %v426, %v2940
  %v2942 = vpop.f32.mrb[0].mxu0
  %v2943 = vpop.f32.mrb[0].mxu0
  %2944 = vdwg.mxu0
  %2945 = vmatprep.subr.bf16.mxu0 0
  %2946 = vmatpush1.bf16.msra.mxu0 %v1743
  %2947 = vmatprep.subr.bf16.mxu0 0
  %2948 = vmatpush1.bf16.msra.mxu0 %v1746
  %2949 = vmatprep.subr.bf16.mxu0 0
  %2950 = vmatpush1.bf16.msra.mxu0 %v1749
  %2951 = vmatprep.subr.bf16.mxu0 0
  %2952 = vmatpush1.bf16.msra.mxu0 %v1752
  %2953 = vmatprep.subr.bf16.mxu0 0
  %2954 = vmatpush1.bf16.msra.mxu0 %v1755
  %2955 = vmatprep.subr.bf16.mxu0 0
  %2956 = vmatpush1.bf16.msra.mxu0 %v1758
  %2957 = vmatprep.subr.bf16.mxu0 0
  %2958 = vmatpush1.bf16.msra.mxu0 %v1761
  %2959 = vmatprep.subr.bf16.mxu0 0
  %2960 = vmatpush1.bf16.msra.mxu0 %v1764
  %2961 = vmatprep.subr.bf16.mxu0 0
  %2962 = vmatpush1.bf16.msra.mxu0 0
  %2963 = vmatprep.subr.bf16.mxu0 0
  %2964 = vmatpush1.bf16.msra.mxu0 0
  %2965 = vmatprep.subr.bf16.mxu0 0
  %2966 = vmatpush1.bf16.msra.mxu0 0
  %2967 = vmatprep.subr.bf16.mxu0 0
  %2968 = vmatpush1.bf16.msra.mxu0 0
  %2969 = vmatprep.subr.bf16.mxu0 0
  %2970 = vmatpush1.bf16.msra.mxu0 0
  %2971 = vmatprep.subr.bf16.mxu0 0
  %2972 = vmatpush1.bf16.msra.mxu0 0
  %2973 = vmatprep.subr.bf16.mxu0 0
  %2974 = vmatpush1.bf16.msra.mxu0 0
  %2975 = vmatprep.subr.bf16.mxu0 0
  %2976 = vmatpush1.bf16.msra.mxu0 0
  %2977 = vmatprep.mubr.bf16.mxu0 0
  %2978 = vmatmul.mubr.bf16.gmra.mrb[0].mxu0 %v2612
  %v2979 = vpop.f32.mrb[0].mxu0
  %v2980 = vadd.f32 %v430, %v2979
  %v2981 = vpop.f32.mrb[0].mxu0
  %v2982 = vpop.f32.mrb[0].mxu0
  %v2983 = vpop.f32.mrb[0].mxu0
  %2984 = vdwg.mxu0
  %2985 = vmatprep.subr.bf16.mxu0 %v1984
  %2986 = vmatpush1.bf16.msra.mxu0 %v1983
  %2987 = vmatprep.subr.bf16.mxu0 %v1987
  %2988 = vmatpush1.bf16.msra.mxu0 %v1986
  %2989 = vmatprep.subr.bf16.mxu0 %v1990
  %2990 = vmatpush1.bf16.msra.mxu0 %v1989
  %2991 = vmatprep.subr.bf16.mxu0 %v1993
  %2992 = vmatpush1.bf16.msra.mxu0 %v1992
  %2993 = vmatprep.subr.bf16.mxu0 %v1996
  %2994 = vmatpush1.bf16.msra.mxu0 %v1995
  %2995 = vmatprep.subr.bf16.mxu0 %v1999
  %2996 = vmatpush1.bf16.msra.mxu0 %v1998
  %2997 = vmatprep.subr.bf16.mxu0 %v2002
  %2998 = vmatpush1.bf16.msra.mxu0 %v2001
  %2999 = vmatprep.subr.bf16.mxu0 %v2005
  %3000 = vmatpush1.bf16.msra.mxu0 %v2004
  %3001 = vmatprep.subr.bf16.mxu0 0
  %3002 = vmatpush1.bf16.msra.mxu0 0
  %3003 = vmatprep.subr.bf16.mxu0 0
  %3004 = vmatpush1.bf16.msra.mxu0 0
  %3005 = vmatprep.subr.bf16.mxu0 0
  %3006 = vmatpush1.bf16.msra.mxu0 0
  %3007 = vmatprep.subr.bf16.mxu0 0
  %3008 = vmatpush1.bf16.msra.mxu0 0
  %3009 = vmatprep.subr.bf16.mxu0 0
  %3010 = vmatpush1.bf16.msra.mxu0 0
  %3011 = vmatprep.subr.bf16.mxu0 0
  %3012 = vmatpush1.bf16.msra.mxu0 0
  %3013 = vmatprep.subr.bf16.mxu0 0
  %3014 = vmatpush1.bf16.msra.mxu0 0
  %3015 = vmatprep.subr.bf16.mxu0 0
  %3016 = vmatpush1.bf16.msra.mxu0 0
  %3017 = vmatprep.mubr.bf16.mxu0 0
  %3018 = vmatmul.mubr.bf16.gmra.mrb[0].mxu0 %v2613
  %v3019 = vpop.f32.mrb[0].mxu0
  %v3020 = vadd.f32 0.0, %v3019
  %v3021 = vpop.f32.mrb[0].mxu0
  %v3022 = vadd.f32 0.0, %v3021
  %v3023 = vpop.f32.mrb[0].mxu0
  %v3024 = vpop.f32.mrb[0].mxu0
  %3025 = vdwg.mxu0
  %3026 = vmatprep.subr.bf16.mxu0 0
  %3027 = vmatpush1.bf16.msra.mxu0 %v1985
  %3028 = vmatprep.subr.bf16.mxu0 0
  %3029 = vmatpush1.bf16.msra.mxu0 %v1988
  %3030 = vmatprep.subr.bf16.mxu0 0
  %3031 = vmatpush1.bf16.msra.mxu0 %v1991
  %3032 = vmatprep.subr.bf16.mxu0 0
  %3033 = vmatpush1.bf16.msra.mxu0 %v1994
  %3034 = vmatprep.subr.bf16.mxu0 0
  %3035 = vmatpush1.bf16.msra.mxu0 %v1997
  %3036 = vmatprep.subr.bf16.mxu0 0
  %3037 = vmatpush1.bf16.msra.mxu0 %v2000
  %3038 = vmatprep.subr.bf16.mxu0 0
  %3039 = vmatpush1.bf16.msra.mxu0 %v2003
  %3040 = vmatprep.subr.bf16.mxu0 0
  %3041 = vmatpush1.bf16.msra.mxu0 %v2006
  %3042 = vmatprep.subr.bf16.mxu0 0
  %3043 = vmatpush1.bf16.msra.mxu0 0
  %3044 = vmatprep.subr.bf16.mxu0 0
  %3045 = vmatpush1.bf16.msra.mxu0 0
  %3046 = vmatprep.subr.bf16.mxu0 0
  %3047 = vmatpush1.bf16.msra.mxu0 0
  %3048 = vmatprep.subr.bf16.mxu0 0
  %3049 = vmatpush1.bf16.msra.mxu0 0
  %3050 = vmatprep.subr.bf16.mxu0 0
  %3051 = vmatpush1.bf16.msra.mxu0 0
  %3052 = vmatprep.subr.bf16.mxu0 0
  %3053 = vmatpush1.bf16.msra.mxu0 0
  %3054 = vmatprep.subr.bf16.mxu0 0
  %3055 = vmatpush1.bf16.msra.mxu0 0
  %3056 = vmatprep.subr.bf16.mxu0 0
  %3057 = vmatpush1.bf16.msra.mxu0 0
  %3058 = vmatprep.mubr.bf16.mxu0 0
  %3059 = vmatmul.mubr.bf16.gmra.mrb[0].mxu0 %v2613
  %v3060 = vpop.f32.mrb[0].mxu0
  %v3061 = vadd.f32 0.0, %v3060
  %v3062 = vpop.f32.mrb[0].mxu0
  %v3063 = vpop.f32.mrb[0].mxu0
  %v3064 = vpop.f32.mrb[0].mxu0
  %3065 = vdwg.mxu0
  %v3066 = vadd.f32 %v2939, %v3020
  %v3067 = vadd.f32 %v2941, %v3022
  %v3068 = vadd.f32 %v3061, %v455
  %v3069 = vxor.u32 %v3066, 2147483648
  %v3070 = vmul.f32 %v3069, 1.442695
  %v3071 = vpow.pop %v3070
  %v3072 = vadd.f32 %v3071, 1.0
  %v3073 = vrcp.pop %v3072
  %v3074 = vmul.f32 1.0, %v3073
  %v3075 = vxor.u32 %v3067, 2147483648
  %v3076 = vmul.f32 %v3075, 1.442695
  %v3077 = vpow.pop %v3076
  %v3078 = vadd.f32 %v3077, 1.0
  %v3079 = vrcp.pop %v3078
  %v3080 = vmul.f32 1.0, %v3079
  %v3081 = vmul.f32 %v3074, %v3068
  %v3082 = vadd.f32 %v2980, %v3081
  %v3083 = vtanh.pop %v3082
  %v3084 = vsub.f32 1.0, %v3080
  %v3085 = vmul.f32 %v3084, %v3083
  %v3086 = vmul.f32 %v3080, %v2610
  %v3087 = vadd.f32 %v3085, %v3086
  %v3088 = vpack.c.bf16 %v2719, %v2719
  %v3089 = vpack.c.bf16 %v2903, %v2903
  %v3090 = vpack.c.bf16 %v3087, %v3087
  %v3091 = vld [vmem:[#allocation2 + $0x78] sm:$0xff]
  %v3092 = vld [vmem:[#allocation2 + $0x80] sm:$0xff]
  %v3093 = vld [vmem:[#allocation2 + $0x88] sm:$0xff]
  %3094 = vmatprep.subr.bf16.mxu0 %v573
  %3095 = vmatpush1.bf16.msra.mxu0 %v572
  %3096 = vmatprep.subr.bf16.mxu0 %v576
  %3097 = vmatpush1.bf16.msra.mxu0 %v575
  %3098 = vmatprep.subr.bf16.mxu0 %v579
  %3099 = vmatpush1.bf16.msra.mxu0 %v578
  %3100 = vmatprep.subr.bf16.mxu0 %v582
  %3101 = vmatpush1.bf16.msra.mxu0 %v581
  %3102 = vmatprep.subr.bf16.mxu0 %v585
  %3103 = vmatpush1.bf16.msra.mxu0 %v584
  %3104 = vmatprep.subr.bf16.mxu0 %v588
  %3105 = vmatpush1.bf16.msra.mxu0 %v587
  %3106 = vmatprep.subr.bf16.mxu0 %v591
  %3107 = vmatpush1.bf16.msra.mxu0 %v590
  %3108 = vmatprep.subr.bf16.mxu0 %v594
  %3109 = vmatpush1.bf16.msra.mxu0 %v593
  %3110 = vmatprep.subr.bf16.mxu0 0
  %3111 = vmatpush1.bf16.msra.mxu0 0
  %3112 = vmatprep.subr.bf16.mxu0 0
  %3113 = vmatpush1.bf16.msra.mxu0 0
  %3114 = vmatprep.subr.bf16.mxu0 0
  %3115 = vmatpush1.bf16.msra.mxu0 0
  %3116 = vmatprep.subr.bf16.mxu0 0
  %3117 = vmatpush1.bf16.msra.mxu0 0
  %3118 = vmatprep.subr.bf16.mxu0 0
  %3119 = vmatpush1.bf16.msra.mxu0 0
  %3120 = vmatprep.subr.bf16.mxu0 0
  %3121 = vmatpush1.bf16.msra.mxu0 0
  %3122 = vmatprep.subr.bf16.mxu0 0
  %3123 = vmatpush1.bf16.msra.mxu0 0
  %3124 = vmatprep.subr.bf16.mxu0 0
  %3125 = vmatpush1.bf16.msra.mxu0 0
  %3126 = vmatprep.mubr.bf16.mxu0 0
  %3127 = vmatmul.mubr.bf16.gmra.mrb[0].mxu0 %v3088
  %v3128 = vpop.f32.mrb[0].mxu0
  %v3129 = vadd.f32 0.0, %v3128
  %v3130 = vpop.f32.mrb[0].mxu0
  %v3131 = vadd.f32 0.0, %v3130
  %v3132 = vpop.f32.mrb[0].mxu0
  %v3133 = vpop.f32.mrb[0].mxu0
  %3134 = vdwg.mxu0
  %3135 = vmatprep.subr.bf16.mxu0 0
  %3136 = vmatpush1.bf16.msra.mxu0 %v574
  %3137 = vmatprep.subr.bf16.mxu0 0
  %3138 = vmatpush1.bf16.msra.mxu0 %v577
  %3139 = vmatprep.subr.bf16.mxu0 0
  %3140 = vmatpush1.bf16.msra.mxu0 %v580
  %3141 = vmatprep.subr.bf16.mxu0 0
  %3142 = vmatpush1.bf16.msra.mxu0 %v583
  %3143 = vmatprep.subr.bf16.mxu0 0
  %3144 = vmatpush1.bf16.msra.mxu0 %v586
  %3145 = vmatprep.subr.bf16.mxu0 0
  %3146 = vmatpush1.bf16.msra.mxu0 %v589
  %3147 = vmatprep.subr.bf16.mxu0 0
  %3148 = vmatpush1.bf16.msra.mxu0 %v592
  %3149 = vmatprep.subr.bf16.mxu0 0
  %3150 = vmatpush1.bf16.msra.mxu0 %v595
  %3151 = vmatprep.subr.bf16.mxu0 0
  %3152 = vmatpush1.bf16.msra.mxu0 0
  %3153 = vmatprep.subr.bf16.mxu0 0
  %3154 = vmatpush1.bf16.msra.mxu0 0
  %3155 = vmatprep.subr.bf16.mxu0 0
  %3156 = vmatpush1.bf16.msra.mxu0 0
  %3157 = vmatprep.subr.bf16.mxu0 0
  %3158 = vmatpush1.bf16.msra.mxu0 0
  %3159 = vmatprep.subr.bf16.mxu0 0
  %3160 = vmatpush1.bf16.msra.mxu0 0
  %3161 = vmatprep.subr.bf16.mxu0 0
  %3162 = vmatpush1.bf16.msra.mxu0 0
  %3163 = vmatprep.subr.bf16.mxu0 0
  %3164 = vmatpush1.bf16.msra.mxu0 0
  %3165 = vmatprep.subr.bf16.mxu0 0
  %3166 = vmatpush1.bf16.msra.mxu0 0
  %3167 = vmatprep.mubr.bf16.mxu0 0
  %3168 = vmatmul.mubr.bf16.gmra.mrb[0].mxu0 %v3088
  %v3169 = vpop.f32.mrb[0].mxu0
  %v3170 = vadd.f32 0.0, %v3169
  %v3171 = vpop.f32.mrb[0].mxu0
  %v3172 = vpop.f32.mrb[0].mxu0
  %v3173 = vpop.f32.mrb[0].mxu0
  %3174 = vdwg.mxu0
  %v3175 = vadd.f32 %v3091, %v3129
  %v3176 = vadd.f32 %v3092, %v3131
  %v3177 = vadd.f32 %v3170, %v439
  %v3178 = vxor.u32 %v3175, 2147483648
  %v3179 = vmul.f32 %v3178, 1.442695
  %v3180 = vpow.pop %v3179
  %v3181 = vadd.f32 %v3180, 1.0
  %v3182 = vrcp.pop %v3181
  %v3183 = vmul.f32 1.0, %v3182
  %v3184 = vxor.u32 %v3176, 2147483648
  %v3185 = vmul.f32 %v3184, 1.442695
  %v3186 = vpow.pop %v3185
  %v3187 = vadd.f32 %v3186, 1.0
  %v3188 = vrcp.pop %v3187
  %v3189 = vmul.f32 1.0, %v3188
  %v3190 = vmul.f32 %v3183, %v3177
  %v3191 = vadd.f32 %v3093, %v3190
  %v3192 = vtanh.pop %v3191
  %v3193 = vsub.f32 1.0, %v3189
  %v3194 = vmul.f32 %v3193, %v3192
  %v3195 = vmul.f32 %v3189, %v2719
  %v3196 = vadd.f32 %v3194, %v3195
  %3197 = vmatprep.subr.bf16.mxu0 %v944
  %3198 = vmatpush1.bf16.msra.mxu0 %v943
  %3199 = vmatprep.subr.bf16.mxu0 %v947
  %3200 = vmatpush1.bf16.msra.mxu0 %v946
  %3201 = vmatprep.subr.bf16.mxu0 %v950
  %3202 = vmatpush1.bf16.msra.mxu0 %v949
  %3203 = vmatprep.subr.bf16.mxu0 %v953
  %3204 = vmatpush1.bf16.msra.mxu0 %v952
  %3205 = vmatprep.subr.bf16.mxu0 %v956
  %3206 = vmatpush1.bf16.msra.mxu0 %v955
  %3207 = vmatprep.subr.bf16.mxu0 %v959
  %3208 = vmatpush1.bf16.msra.mxu0 %v958
  %3209 = vmatprep.subr.bf16.mxu0 %v962
  %3210 = vmatpush1.bf16.msra.mxu0 %v961
  %3211 = vmatprep.subr.bf16.mxu0 %v965
  %3212 = vmatpush1.bf16.msra.mxu0 %v964
  %3213 = vmatprep.subr.bf16.mxu0 0
  %3214 = vmatpush1.bf16.msra.mxu0 0
  %3215 = vmatprep.subr.bf16.mxu0 0
  %3216 = vmatpush1.bf16.msra.mxu0 0
  %3217 = vmatprep.subr.bf16.mxu0 0
  %3218 = vmatpush1.bf16.msra.mxu0 0
  %3219 = vmatprep.subr.bf16.mxu0 0
  %3220 = vmatpush1.bf16.msra.mxu0 0
  %3221 = vmatprep.subr.bf16.mxu0 0
  %3222 = vmatpush1.bf16.msra.mxu0 0
  %3223 = vmatprep.subr.bf16.mxu0 0
  %3224 = vmatpush1.bf16.msra.mxu0 0
  %3225 = vmatprep.subr.bf16.mxu0 0
  %3226 = vmatpush1.bf16.msra.mxu0 0
  %3227 = vmatprep.subr.bf16.mxu0 0
  %3228 = vmatpush1.bf16.msra.mxu0 0
  %3229 = vmatprep.mubr.bf16.mxu0 0
  %3230 = vmatmul.mubr.bf16.gmra.mrb[0].mxu0 %v3088
  %v3231 = vpop.f32.mrb[0].mxu0
  %v3232 = vadd.f32 %v404, %v3231
  %v3233 = vpop.f32.mrb[0].mxu0
  %v3234 = vadd.f32 %v408, %v3233
  %v3235 = vpop.f32.mrb[0].mxu0
  %v3236 = vpop.f32.mrb[0].mxu0
  %3237 = vdwg.mxu0
  %3238 = vmatprep.subr.bf16.mxu0 0
  %3239 = vmatpush1.bf16.msra.mxu0 %v945
  %3240 = vmatprep.subr.bf16.mxu0 0
  %3241 = vmatpush1.bf16.msra.mxu0 %v948
  %3242 = vmatprep.subr.bf16.mxu0 0
  %3243 = vmatpush1.bf16.msra.mxu0 %v951
  %3244 = vmatprep.subr.bf16.mxu0 0
  %3245 = vmatpush1.bf16.msra.mxu0 %v954
  %3246 = vmatprep.subr.bf16.mxu0 0
  %3247 = vmatpush1.bf16.msra.mxu0 %v957
  %3248 = vmatprep.subr.bf16.mxu0 0
  %3249 = vmatpush1.bf16.msra.mxu0 %v960
  %3250 = vmatprep.subr.bf16.mxu0 0
  %3251 = vmatpush1.bf16.msra.mxu0 %v963
  %3252 = vmatprep.subr.bf16.mxu0 0
  %3253 = vmatpush1.bf16.msra.mxu0 %v966
  %3254 = vmatprep.subr.bf16.mxu0 0
  %3255 = vmatpush1.bf16.msra.mxu0 0
  %3256 = vmatprep.subr.bf16.mxu0 0
  %3257 = vmatpush1.bf16.msra.mxu0 0
  %3258 = vmatprep.subr.bf16.mxu0 0
  %3259 = vmatpush1.bf16.msra.mxu0 0
  %3260 = vmatprep.subr.bf16.mxu0 0
  %3261 = vmatpush1.bf16.msra.mxu0 0
  %3262 = vmatprep.subr.bf16.mxu0 0
  %3263 = vmatpush1.bf16.msra.mxu0 0
  %3264 = vmatprep.subr.bf16.mxu0 0
  %3265 = vmatpush1.bf16.msra.mxu0 0
  %3266 = vmatprep.subr.bf16.mxu0 0
  %3267 = vmatpush1.bf16.msra.mxu0 0
  %3268 = vmatprep.subr.bf16.mxu0 0
  %3269 = vmatpush1.bf16.msra.mxu0 0
  %3270 = vmatprep.mubr.bf16.mxu0 0
  %3271 = vmatmul.mubr.bf16.gmra.mrb[0].mxu0 %v3088
  %v3272 = vpop.f32.mrb[0].mxu0
  %v3273 = vadd.f32 %v412, %v3272
  %v3274 = vpop.f32.mrb[0].mxu0
  %v3275 = vpop.f32.mrb[0].mxu0
  %v3276 = vpop.f32.mrb[0].mxu0
  %3277 = vdwg.mxu0
  %3278 = vmatprep.subr.bf16.mxu0 %v1186
  %3279 = vmatpush1.bf16.msra.mxu0 %v1185
  %3280 = vmatprep.subr.bf16.mxu0 %v1189
  %3281 = vmatpush1.bf16.msra.mxu0 %v1188
  %3282 = vmatprep.subr.bf16.mxu0 %v1192
  %3283 = vmatpush1.bf16.msra.mxu0 %v1191
  %3284 = vmatprep.subr.bf16.mxu0 %v1195
  %3285 = vmatpush1.bf16.msra.mxu0 %v1194
  %3286 = vmatprep.subr.bf16.mxu0 %v1198
  %3287 = vmatpush1.bf16.msra.mxu0 %v1197
  %3288 = vmatprep.subr.bf16.mxu0 %v1201
  %3289 = vmatpush1.bf16.msra.mxu0 %v1200
  %3290 = vmatprep.subr.bf16.mxu0 %v1204
  %3291 = vmatpush1.bf16.msra.mxu0 %v1203
  %3292 = vmatprep.subr.bf16.mxu0 %v1207
  %3293 = vmatpush1.bf16.msra.mxu0 %v1206
  %3294 = vmatprep.subr.bf16.mxu0 0
  %3295 = vmatpush1.bf16.msra.mxu0 0
  %3296 = vmatprep.subr.bf16.mxu0 0
  %3297 = vmatpush1.bf16.msra.mxu0 0
  %3298 = vmatprep.subr.bf16.mxu0 0
  %3299 = vmatpush1.bf16.msra.mxu0 0
  %3300 = vmatprep.subr.bf16.mxu0 0
  %3301 = vmatpush1.bf16.msra.mxu0 0
  %3302 = vmatprep.subr.bf16.mxu0 0
  %3303 = vmatpush1.bf16.msra.mxu0 0
  %3304 = vmatprep.subr.bf16.mxu0 0
  %3305 = vmatpush1.bf16.msra.mxu0 0
  %3306 = vmatprep.subr.bf16.mxu0 0
  %3307 = vmatpush1.bf16.msra.mxu0 0
  %3308 = vmatprep.subr.bf16.mxu0 0
  %3309 = vmatpush1.bf16.msra.mxu0 0
  %3310 = vmatprep.mubr.bf16.mxu0 0
  %3311 = vmatmul.mubr.bf16.gmra.mrb[0].mxu0 %v3089
  %v3312 = vpop.f32.mrb[0].mxu0
  %v3313 = vadd.f32 0.0, %v3312
  %v3314 = vpop.f32.mrb[0].mxu0
  %v3315 = vadd.f32 0.0, %v3314
  %v3316 = vpop.f32.mrb[0].mxu0
  %v3317 = vpop.f32.mrb[0].mxu0
  %3318 = vdwg.mxu0
  %3319 = vmatprep.subr.bf16.mxu0 0
  %3320 = vmatpush1.bf16.msra.mxu0 %v1187
  %3321 = vmatprep.subr.bf16.mxu0 0
  %3322 = vmatpush1.bf16.msra.mxu0 %v1190
  %3323 = vmatprep.subr.bf16.mxu0 0
  %3324 = vmatpush1.bf16.msra.mxu0 %v1193
  %3325 = vmatprep.subr.bf16.mxu0 0
  %3326 = vmatpush1.bf16.msra.mxu0 %v1196
  %3327 = vmatprep.subr.bf16.mxu0 0
  %3328 = vmatpush1.bf16.msra.mxu0 %v1199
  %3329 = vmatprep.subr.bf16.mxu0 0
  %3330 = vmatpush1.bf16.msra.mxu0 %v1202
  %3331 = vmatprep.subr.bf16.mxu0 0
  %3332 = vmatpush1.bf16.msra.mxu0 %v1205
  %3333 = vmatprep.subr.bf16.mxu0 0
  %3334 = vmatpush1.bf16.msra.mxu0 %v1208
  %3335 = vmatprep.subr.bf16.mxu0 0
  %3336 = vmatpush1.bf16.msra.mxu0 0
  %3337 = vmatprep.subr.bf16.mxu0 0
  %3338 = vmatpush1.bf16.msra.mxu0 0
  %3339 = vmatprep.subr.bf16.mxu0 0
  %3340 = vmatpush1.bf16.msra.mxu0 0
  %3341 = vmatprep.subr.bf16.mxu0 0
  %3342 = vmatpush1.bf16.msra.mxu0 0
  %3343 = vmatprep.subr.bf16.mxu0 0
  %3344 = vmatpush1.bf16.msra.mxu0 0
  %3345 = vmatprep.subr.bf16.mxu0 0
  %3346 = vmatpush1.bf16.msra.mxu0 0
  %3347 = vmatprep.subr.bf16.mxu0 0
  %3348 = vmatpush1.bf16.msra.mxu0 0
  %3349 = vmatprep.subr.bf16.mxu0 0
  %3350 = vmatpush1.bf16.msra.mxu0 0
  %3351 = vmatprep.mubr.bf16.mxu0 0
  %3352 = vmatmul.mubr.bf16.gmra.mrb[0].mxu0 %v3089
  %v3353 = vpop.f32.mrb[0].mxu0
  %v3354 = vadd.f32 0.0, %v3353
  %v3355 = vpop.f32.mrb[0].mxu0
  %v3356 = vpop.f32.mrb[0].mxu0
  %v3357 = vpop.f32.mrb[0].mxu0
  %3358 = vdwg.mxu0
  %v3359 = vadd.f32 %v3232, %v3313
  %v3360 = vadd.f32 %v3234, %v3315
  %v3361 = vadd.f32 %v3354, %v447
  %v3362 = vxor.u32 %v3359, 2147483648
  %v3363 = vmul.f32 %v3362, 1.442695
  %v3364 = vpow.pop %v3363
  %v3365 = vadd.f32 %v3364, 1.0
  %v3366 = vrcp.pop %v3365
  %v3367 = vmul.f32 1.0, %v3366
  %v3368 = vxor.u32 %v3360, 2147483648
  %v3369 = vmul.f32 %v3368, 1.442695
  %v3370 = vpow.pop %v3369
  %v3371 = vadd.f32 %v3370, 1.0
  %v3372 = vrcp.pop %v3371
  %v3373 = vmul.f32 1.0, %v3372
  %v3374 = vmul.f32 %v3367, %v3361
  %v3375 = vadd.f32 %v3273, %v3374
  %v3376 = vtanh.pop %v3375
  %v3377 = vsub.f32 1.0, %v3373
  %v3378 = vmul.f32 %v3377, %v3376
  %v3379 = vmul.f32 %v3373, %v2903
  %v3380 = vadd.f32 %v3378, %v3379
  %3381 = vmatprep.subr.bf16.mxu0 %v1742
  %3382 = vmatpush1.bf16.msra.mxu0 %v1741
  %3383 = vmatprep.subr.bf16.mxu0 %v1745
  %3384 = vmatpush1.bf16.msra.mxu0 %v1744
  %3385 = vmatprep.subr.bf16.mxu0 %v1748
  %3386 = vmatpush1.bf16.msra.mxu0 %v1747
  %3387 = vmatprep.subr.bf16.mxu0 %v1751
  %3388 = vmatpush1.bf16.msra.mxu0 %v1750
  %3389 = vmatprep.subr.bf16.mxu0 %v1754
  %3390 = vmatpush1.bf16.msra.mxu0 %v1753
  %3391 = vmatprep.subr.bf16.mxu0 %v1757
  %3392 = vmatpush1.bf16.msra.mxu0 %v1756
  %3393 = vmatprep.subr.bf16.mxu0 %v1760
  %3394 = vmatpush1.bf16.msra.mxu0 %v1759
  %3395 = vmatprep.subr.bf16.mxu0 %v1763
  %3396 = vmatpush1.bf16.msra.mxu0 %v1762
  %3397 = vmatprep.subr.bf16.mxu0 0
  %3398 = vmatpush1.bf16.msra.mxu0 0
  %3399 = vmatprep.subr.bf16.mxu0 0
  %3400 = vmatpush1.bf16.msra.mxu0 0
  %3401 = vmatprep.subr.bf16.mxu0 0
  %3402 = vmatpush1.bf16.msra.mxu0 0
  %3403 = vmatprep.subr.bf16.mxu0 0
  %3404 = vmatpush1.bf16.msra.mxu0 0
  %3405 = vmatprep.subr.bf16.mxu0 0
  %3406 = vmatpush1.bf16.msra.mxu0 0
  %3407 = vmatprep.subr.bf16.mxu0 0
  %3408 = vmatpush1.bf16.msra.mxu0 0
  %3409 = vmatprep.subr.bf16.mxu0 0
  %3410 = vmatpush1.bf16.msra.mxu0 0
  %3411 = vmatprep.subr.bf16.mxu0 0
  %3412 = vmatpush1.bf16.msra.mxu0 0
  %3413 = vmatprep.mubr.bf16.mxu0 0
  %3414 = vmatmul.mubr.bf16.gmra.mrb[0].mxu0 %v3089
  %v3415 = vpop.f32.mrb[0].mxu0
  %v3416 = vadd.f32 %v422, %v3415
  %v3417 = vpop.f32.mrb[0].mxu0
  %v3418 = vadd.f32 %v426, %v3417
  %v3419 = vpop.f32.mrb[0].mxu0
  %v3420 = vpop.f32.mrb[0].mxu0
  %3421 = vdwg.mxu0
  %3422 = vmatprep.subr.bf16.mxu0 0
  %3423 = vmatpush1.bf16.msra.mxu0 %v1743
  %3424 = vmatprep.subr.bf16.mxu0 0
  %3425 = vmatpush1.bf16.msra.mxu0 %v1746
  %3426 = vmatprep.subr.bf16.mxu0 0
  %3427 = vmatpush1.bf16.msra.mxu0 %v1749
  %3428 = vmatprep.subr.bf16.mxu0 0
  %3429 = vmatpush1.bf16.msra.mxu0 %v1752
  %3430 = vmatprep.subr.bf16.mxu0 0
  %3431 = vmatpush1.bf16.msra.mxu0 %v1755
  %3432 = vmatprep.subr.bf16.mxu0 0
  %3433 = vmatpush1.bf16.msra.mxu0 %v1758
  %3434 = vmatprep.subr.bf16.mxu0 0
  %3435 = vmatpush1.bf16.msra.mxu0 %v1761
  %3436 = vmatprep.subr.bf16.mxu0 0
  %3437 = vmatpush1.bf16.msra.mxu0 %v1764
  %3438 = vmatprep.subr.bf16.mxu0 0
  %3439 = vmatpush1.bf16.msra.mxu0 0
  %3440 = vmatprep.subr.bf16.mxu0 0
  %3441 = vmatpush1.bf16.msra.mxu0 0
  %3442 = vmatprep.subr.bf16.mxu0 0
  %3443 = vmatpush1.bf16.msra.mxu0 0
  %3444 = vmatprep.subr.bf16.mxu0 0
  %3445 = vmatpush1.bf16.msra.mxu0 0
  %3446 = vmatprep.subr.bf16.mxu0 0
  %3447 = vmatpush1.bf16.msra.mxu0 0
  %3448 = vmatprep.subr.bf16.mxu0 0
  %3449 = vmatpush1.bf16.msra.mxu0 0
  %3450 = vmatprep.subr.bf16.mxu0 0
  %3451 = vmatpush1.bf16.msra.mxu0 0
  %3452 = vmatprep.subr.bf16.mxu0 0
  %3453 = vmatpush1.bf16.msra.mxu0 0
  %3454 = vmatprep.mubr.bf16.mxu0 0
  %3455 = vmatmul.mubr.bf16.gmra.mrb[0].mxu0 %v3089
  %v3456 = vpop.f32.mrb[0].mxu0
  %v3457 = vadd.f32 %v430, %v3456
  %v3458 = vpop.f32.mrb[0].mxu0
  %v3459 = vpop.f32.mrb[0].mxu0
  %v3460 = vpop.f32.mrb[0].mxu0
  %3461 = vdwg.mxu0
  %3462 = vmatprep.subr.bf16.mxu0 %v1984
  %3463 = vmatpush1.bf16.msra.mxu0 %v1983
  %3464 = vmatprep.subr.bf16.mxu0 %v1987
  %3465 = vmatpush1.bf16.msra.mxu0 %v1986
  %3466 = vmatprep.subr.bf16.mxu0 %v1990
  %3467 = vmatpush1.bf16.msra.mxu0 %v1989
  %3468 = vmatprep.subr.bf16.mxu0 %v1993
  %3469 = vmatpush1.bf16.msra.mxu0 %v1992
  %3470 = vmatprep.subr.bf16.mxu0 %v1996
  %3471 = vmatpush1.bf16.msra.mxu0 %v1995
  %3472 = vmatprep.subr.bf16.mxu0 %v1999
  %3473 = vmatpush1.bf16.msra.mxu0 %v1998
  %3474 = vmatprep.subr.bf16.mxu0 %v2002
  %3475 = vmatpush1.bf16.msra.mxu0 %v2001
  %3476 = vmatprep.subr.bf16.mxu0 %v2005
  %3477 = vmatpush1.bf16.msra.mxu0 %v2004
  %3478 = vmatprep.subr.bf16.mxu0 0
  %3479 = vmatpush1.bf16.msra.mxu0 0
  %3480 = vmatprep.subr.bf16.mxu0 0
  %3481 = vmatpush1.bf16.msra.mxu0 0
  %3482 = vmatprep.subr.bf16.mxu0 0
  %3483 = vmatpush1.bf16.msra.mxu0 0
  %3484 = vmatprep.subr.bf16.mxu0 0
  %3485 = vmatpush1.bf16.msra.mxu0 0
  %3486 = vmatprep.subr.bf16.mxu0 0
  %3487 = vmatpush1.bf16.msra.mxu0 0
  %3488 = vmatprep.subr.bf16.mxu0 0
  %3489 = vmatpush1.bf16.msra.mxu0 0
  %3490 = vmatprep.subr.bf16.mxu0 0
  %3491 = vmatpush1.bf16.msra.mxu0 0
  %3492 = vmatprep.subr.bf16.mxu0 0
  %3493 = vmatpush1.bf16.msra.mxu0 0
  %3494 = vmatprep.mubr.bf16.mxu0 0
  %3495 = vmatmul.mubr.bf16.gmra.mrb[0].mxu0 %v3090
  %v3496 = vpop.f32.mrb[0].mxu0
  %v3497 = vadd.f32 0.0, %v3496
  %v3498 = vpop.f32.mrb[0].mxu0
  %v3499 = vadd.f32 0.0, %v3498
  %v3500 = vpop.f32.mrb[0].mxu0
  %v3501 = vpop.f32.mrb[0].mxu0
  %3502 = vdwg.mxu0
  %3503 = vmatprep.subr.bf16.mxu0 0
  %3504 = vmatpush1.bf16.msra.mxu0 %v1985
  %3505 = vmatprep.subr.bf16.mxu0 0
  %3506 = vmatpush1.bf16.msra.mxu0 %v1988
  %3507 = vmatprep.subr.bf16.mxu0 0
  %3508 = vmatpush1.bf16.msra.mxu0 %v1991
  %3509 = vmatprep.subr.bf16.mxu0 0
  %3510 = vmatpush1.bf16.msra.mxu0 %v1994
  %3511 = vmatprep.subr.bf16.mxu0 0
  %3512 = vmatpush1.bf16.msra.mxu0 %v1997
  %3513 = vmatprep.subr.bf16.mxu0 0
  %3514 = vmatpush1.bf16.msra.mxu0 %v2000
  %3515 = vmatprep.subr.bf16.mxu0 0
  %3516 = vmatpush1.bf16.msra.mxu0 %v2003
  %3517 = vmatprep.subr.bf16.mxu0 0
  %3518 = vmatpush1.bf16.msra.mxu0 %v2006
  %3519 = vmatprep.subr.bf16.mxu0 0
  %3520 = vmatpush1.bf16.msra.mxu0 0
  %3521 = vmatprep.subr.bf16.mxu0 0
  %3522 = vmatpush1.bf16.msra.mxu0 0
  %3523 = vmatprep.subr.bf16.mxu0 0
  %3524 = vmatpush1.bf16.msra.mxu0 0
  %3525 = vmatprep.subr.bf16.mxu0 0
  %3526 = vmatpush1.bf16.msra.mxu0 0
  %3527 = vmatprep.subr.bf16.mxu0 0
  %3528 = vmatpush1.bf16.msra.mxu0 0
  %3529 = vmatprep.subr.bf16.mxu0 0
  %3530 = vmatpush1.bf16.msra.mxu0 0
  %3531 = vmatprep.subr.bf16.mxu0 0
  %3532 = vmatpush1.bf16.msra.mxu0 0
  %3533 = vmatprep.subr.bf16.mxu0 0
  %3534 = vmatpush1.bf16.msra.mxu0 0
  %3535 = vmatprep.mubr.bf16.mxu0 0
  %3536 = vmatmul.mubr.bf16.gmra.mrb[0].mxu0 %v3090
  %v3537 = vpop.f32.mrb[0].mxu0
  %v3538 = vadd.f32 0.0, %v3537
  %v3539 = vpop.f32.mrb[0].mxu0
  %v3540 = vpop.f32.mrb[0].mxu0
  %v3541 = vpop.f32.mrb[0].mxu0
  %3542 = vdwg.mxu0
  %v3543 = vadd.f32 %v3416, %v3497
  %v3544 = vadd.f32 %v3418, %v3499
  %v3545 = vadd.f32 %v3538, %v455
  %v3546 = vxor.u32 %v3543, 2147483648
  %v3547 = vmul.f32 %v3546, 1.442695
  %v3548 = vpow.pop %v3547
  %v3549 = vadd.f32 %v3548, 1.0
  %v3550 = vrcp.pop %v3549
  %v3551 = vmul.f32 1.0, %v3550
  %v3552 = vxor.u32 %v3544, 2147483648
  %v3553 = vmul.f32 %v3552, 1.442695
  %v3554 = vpow.pop %v3553
  %v3555 = vadd.f32 %v3554, 1.0
  %v3556 = vrcp.pop %v3555
  %v3557 = vmul.f32 1.0, %v3556
  %v3558 = vmul.f32 %v3551, %v3545
  %v3559 = vadd.f32 %v3457, %v3558
  %v3560 = vtanh.pop %v3559
  %v3561 = vsub.f32 1.0, %v3557
  %v3562 = vmul.f32 %v3561, %v3560
  %v3563 = vmul.f32 %v3557, %v3087
  %v3564 = vadd.f32 %v3562, %v3563
  %v3565 = vpack.c.bf16 %v3196, %v3196
  %v3566 = vpack.c.bf16 %v3380, %v3380
  %v3567 = vpack.c.bf16 %v3564, %v3564
  %v3568 = vld [vmem:[#allocation2 + $0x90] sm:$0xff]
  %v3569 = vld [vmem:[#allocation2 + $0x98] sm:$0xff]
  %v3570 = vld [vmem:[#allocation2 + $0xa0] sm:$0xff]
  %3571 = vmatprep.subr.bf16.mxu0 %v573
  %3572 = vmatpush1.bf16.msra.mxu0 %v572
  %3573 = vmatprep.subr.bf16.mxu0 %v576
  %3574 = vmatpush1.bf16.msra.mxu0 %v575
  %3575 = vmatprep.subr.bf16.mxu0 %v579
  %3576 = vmatpush1.bf16.msra.mxu0 %v578
  %3577 = vmatprep.subr.bf16.mxu0 %v582
  %3578 = vmatpush1.bf16.msra.mxu0 %v581
  %3579 = vmatprep.subr.bf16.mxu0 %v585
  %3580 = vmatpush1.bf16.msra.mxu0 %v584
  %3581 = vmatprep.subr.bf16.mxu0 %v588
  %3582 = vmatpush1.bf16.msra.mxu0 %v587
  %3583 = vmatprep.subr.bf16.mxu0 %v591
  %3584 = vmatpush1.bf16.msra.mxu0 %v590
  %3585 = vmatprep.subr.bf16.mxu0 %v594
  %3586 = vmatpush1.bf16.msra.mxu0 %v593
  %3587 = vmatprep.subr.bf16.mxu0 0
  %3588 = vmatpush1.bf16.msra.mxu0 0
  %3589 = vmatprep.subr.bf16.mxu0 0
  %3590 = vmatpush1.bf16.msra.mxu0 0
  %3591 = vmatprep.subr.bf16.mxu0 0
  %3592 = vmatpush1.bf16.msra.mxu0 0
  %3593 = vmatprep.subr.bf16.mxu0 0
  %3594 = vmatpush1.bf16.msra.mxu0 0
  %3595 = vmatprep.subr.bf16.mxu0 0
  %3596 = vmatpush1.bf16.msra.mxu0 0
  %3597 = vmatprep.subr.bf16.mxu0 0
  %3598 = vmatpush1.bf16.msra.mxu0 0
  %3599 = vmatprep.subr.bf16.mxu0 0
  %3600 = vmatpush1.bf16.msra.mxu0 0
  %3601 = vmatprep.subr.bf16.mxu0 0
  %3602 = vmatpush1.bf16.msra.mxu0 0
  %3603 = vmatprep.mubr.bf16.mxu0 0
  %3604 = vmatmul.mubr.bf16.gmra.mrb[0].mxu0 %v3565
  %v3605 = vpop.f32.mrb[0].mxu0
  %v3606 = vadd.f32 0.0, %v3605
  %v3607 = vpop.f32.mrb[0].mxu0
  %v3608 = vadd.f32 0.0, %v3607
  %v3609 = vpop.f32.mrb[0].mxu0
  %v3610 = vpop.f32.mrb[0].mxu0
  %3611 = vdwg.mxu0
  %3612 = vmatprep.subr.bf16.mxu0 0
  %3613 = vmatpush1.bf16.msra.mxu0 %v574
  %3614 = vmatprep.subr.bf16.mxu0 0
  %3615 = vmatpush1.bf16.msra.mxu0 %v577
  %3616 = vmatprep.subr.bf16.mxu0 0
  %3617 = vmatpush1.bf16.msra.mxu0 %v580
  %3618 = vmatprep.subr.bf16.mxu0 0
  %3619 = vmatpush1.bf16.msra.mxu0 %v583
  %3620 = vmatprep.subr.bf16.mxu0 0
  %3621 = vmatpush1.bf16.msra.mxu0 %v586
  %3622 = vmatprep.subr.bf16.mxu0 0
  %3623 = vmatpush1.bf16.msra.mxu0 %v589
  %3624 = vmatprep.subr.bf16.mxu0 0
  %3625 = vmatpush1.bf16.msra.mxu0 %v592
  %3626 = vmatprep.subr.bf16.mxu0 0
  %3627 = vmatpush1.bf16.msra.mxu0 %v595
  %3628 = vmatprep.subr.bf16.mxu0 0
  %3629 = vmatpush1.bf16.msra.mxu0 0
  %3630 = vmatprep.subr.bf16.mxu0 0
  %3631 = vmatpush1.bf16.msra.mxu0 0
  %3632 = vmatprep.subr.bf16.mxu0 0
  %3633 = vmatpush1.bf16.msra.mxu0 0
  %3634 = vmatprep.subr.bf16.mxu0 0
  %3635 = vmatpush1.bf16.msra.mxu0 0
  %3636 = vmatprep.subr.bf16.mxu0 0
  %3637 = vmatpush1.bf16.msra.mxu0 0
  %3638 = vmatprep.subr.bf16.mxu0 0
  %3639 = vmatpush1.bf16.msra.mxu0 0
  %3640 = vmatprep.subr.bf16.mxu0 0
  %3641 = vmatpush1.bf16.msra.mxu0 0
  %3642 = vmatprep.subr.bf16.mxu0 0
  %3643 = vmatpush1.bf16.msra.mxu0 0
  %3644 = vmatprep.mubr.bf16.mxu0 0
  %3645 = vmatmul.mubr.bf16.gmra.mrb[0].mxu0 %v3565
  %v3646 = vpop.f32.mrb[0].mxu0
  %v3647 = vadd.f32 0.0, %v3646
  %v3648 = vpop.f32.mrb[0].mxu0
  %v3649 = vpop.f32.mrb[0].mxu0
  %v3650 = vpop.f32.mrb[0].mxu0
  %3651 = vdwg.mxu0
  %v3652 = vadd.f32 %v3568, %v3606
  %v3653 = vadd.f32 %v3569, %v3608
  %v3654 = vadd.f32 %v3647, %v439
  %v3655 = vxor.u32 %v3652, 2147483648
  %v3656 = vmul.f32 %v3655, 1.442695
  %v3657 = vpow.pop %v3656
  %v3658 = vadd.f32 %v3657, 1.0
  %v3659 = vrcp.pop %v3658
  %v3660 = vmul.f32 1.0, %v3659
  %v3661 = vxor.u32 %v3653, 2147483648
  %v3662 = vmul.f32 %v3661, 1.442695
  %v3663 = vpow.pop %v3662
  %v3664 = vadd.f32 %v3663, 1.0
  %v3665 = vrcp.pop %v3664
  %v3666 = vmul.f32 1.0, %v3665
  %v3667 = vmul.f32 %v3660, %v3654
  %v3668 = vadd.f32 %v3570, %v3667
  %v3669 = vtanh.pop %v3668
  %v3670 = vsub.f32 1.0, %v3666
  %v3671 = vmul.f32 %v3670, %v3669
  %v3672 = vmul.f32 %v3666, %v3196
  %v3673 = vadd.f32 %v3671, %v3672
  %3674 = vmatprep.subr.bf16.mxu0 %v944
  %3675 = vmatpush1.bf16.msra.mxu0 %v943
  %3676 = vmatprep.subr.bf16.mxu0 %v947
  %3677 = vmatpush1.bf16.msra.mxu0 %v946
  %3678 = vmatprep.subr.bf16.mxu0 %v950
  %3679 = vmatpush1.bf16.msra.mxu0 %v949
  %3680 = vmatprep.subr.bf16.mxu0 %v953
  %3681 = vmatpush1.bf16.msra.mxu0 %v952
  %3682 = vmatprep.subr.bf16.mxu0 %v956
  %3683 = vmatpush1.bf16.msra.mxu0 %v955
  %3684 = vmatprep.subr.bf16.mxu0 %v959
  %3685 = vmatpush1.bf16.msra.mxu0 %v958
  %3686 = vmatprep.subr.bf16.mxu0 %v962
  %3687 = vmatpush1.bf16.msra.mxu0 %v961
  %3688 = vmatprep.subr.bf16.mxu0 %v965
  %3689 = vmatpush1.bf16.msra.mxu0 %v964
  %3690 = vmatprep.subr.bf16.mxu0 0
  %3691 = vmatpush1.bf16.msra.mxu0 0
  %3692 = vmatprep.subr.bf16.mxu0 0
  %3693 = vmatpush1.bf16.msra.mxu0 0
  %3694 = vmatprep.subr.bf16.mxu0 0
  %3695 = vmatpush1.bf16.msra.mxu0 0
  %3696 = vmatprep.subr.bf16.mxu0 0
  %3697 = vmatpush1.bf16.msra.mxu0 0
  %3698 = vmatprep.subr.bf16.mxu0 0
  %3699 = vmatpush1.bf16.msra.mxu0 0
  %3700 = vmatprep.subr.bf16.mxu0 0
  %3701 = vmatpush1.bf16.msra.mxu0 0
  %3702 = vmatprep.subr.bf16.mxu0 0
  %3703 = vmatpush1.bf16.msra.mxu0 0
  %3704 = vmatprep.subr.bf16.mxu0 0
  %3705 = vmatpush1.bf16.msra.mxu0 0
  %3706 = vmatprep.mubr.bf16.mxu0 0
  %3707 = vmatmul.mubr.bf16.gmra.mrb[0].mxu0 %v3565
  %v3708 = vpop.f32.mrb[0].mxu0
  %v3709 = vadd.f32 %v404, %v3708
  %v3710 = vpop.f32.mrb[0].mxu0
  %v3711 = vadd.f32 %v408, %v3710
  %v3712 = vpop.f32.mrb[0].mxu0
  %v3713 = vpop.f32.mrb[0].mxu0
  %3714 = vdwg.mxu0
  %3715 = vmatprep.subr.bf16.mxu0 0
  %3716 = vmatpush1.bf16.msra.mxu0 %v945
  %3717 = vmatprep.subr.bf16.mxu0 0
  %3718 = vmatpush1.bf16.msra.mxu0 %v948
  %3719 = vmatprep.subr.bf16.mxu0 0
  %3720 = vmatpush1.bf16.msra.mxu0 %v951
  %3721 = vmatprep.subr.bf16.mxu0 0
  %3722 = vmatpush1.bf16.msra.mxu0 %v954
  %3723 = vmatprep.subr.bf16.mxu0 0
  %3724 = vmatpush1.bf16.msra.mxu0 %v957
  %3725 = vmatprep.subr.bf16.mxu0 0
  %3726 = vmatpush1.bf16.msra.mxu0 %v960
  %3727 = vmatprep.subr.bf16.mxu0 0
  %3728 = vmatpush1.bf16.msra.mxu0 %v963
  %3729 = vmatprep.subr.bf16.mxu0 0
  %3730 = vmatpush1.bf16.msra.mxu0 %v966
  %3731 = vmatprep.subr.bf16.mxu0 0
  %3732 = vmatpush1.bf16.msra.mxu0 0
  %3733 = vmatprep.subr.bf16.mxu0 0
  %3734 = vmatpush1.bf16.msra.mxu0 0
  %3735 = vmatprep.subr.bf16.mxu0 0
  %3736 = vmatpush1.bf16.msra.mxu0 0
  %3737 = vmatprep.subr.bf16.mxu0 0
  %3738 = vmatpush1.bf16.msra.mxu0 0
  %3739 = vmatprep.subr.bf16.mxu0 0
  %3740 = vmatpush1.bf16.msra.mxu0 0
  %3741 = vmatprep.subr.bf16.mxu0 0
  %3742 = vmatpush1.bf16.msra.mxu0 0
  %3743 = vmatprep.subr.bf16.mxu0 0
  %3744 = vmatpush1.bf16.msra.mxu0 0
  %3745 = vmatprep.subr.bf16.mxu0 0
  %3746 = vmatpush1.bf16.msra.mxu0 0
  %3747 = vmatprep.mubr.bf16.mxu0 0
  %3748 = vmatmul.mubr.bf16.gmra.mrb[0].mxu0 %v3565
  %v3749 = vpop.f32.mrb[0].mxu0
  %v3750 = vadd.f32 %v412, %v3749
  %v3751 = vpop.f32.mrb[0].mxu0
  %v3752 = vpop.f32.mrb[0].mxu0
  %v3753 = vpop.f32.mrb[0].mxu0
  %3754 = vdwg.mxu0
  %3755 = vmatprep.subr.bf16.mxu0 %v1186
  %3756 = vmatpush1.bf16.msra.mxu0 %v1185
  %3757 = vmatprep.subr.bf16.mxu0 %v1189
  %3758 = vmatpush1.bf16.msra.mxu0 %v1188
  %3759 = vmatprep.subr.bf16.mxu0 %v1192
  %3760 = vmatpush1.bf16.msra.mxu0 %v1191
  %3761 = vmatprep.subr.bf16.mxu0 %v1195
  %3762 = vmatpush1.bf16.msra.mxu0 %v1194
  %3763 = vmatprep.subr.bf16.mxu0 %v1198
  %3764 = vmatpush1.bf16.msra.mxu0 %v1197
  %3765 = vmatprep.subr.bf16.mxu0 %v1201
  %3766 = vmatpush1.bf16.msra.mxu0 %v1200
  %3767 = vmatprep.subr.bf16.mxu0 %v1204
  %3768 = vmatpush1.bf16.msra.mxu0 %v1203
  %3769 = vmatprep.subr.bf16.mxu0 %v1207
  %3770 = vmatpush1.bf16.msra.mxu0 %v1206
  %3771 = vmatprep.subr.bf16.mxu0 0
  %3772 = vmatpush1.bf16.msra.mxu0 0
  %3773 = vmatprep.subr.bf16.mxu0 0
  %3774 = vmatpush1.bf16.msra.mxu0 0
  %3775 = vmatprep.subr.bf16.mxu0 0
  %3776 = vmatpush1.bf16.msra.mxu0 0
  %3777 = vmatprep.subr.bf16.mxu0 0
  %3778 = vmatpush1.bf16.msra.mxu0 0
  %3779 = vmatprep.subr.bf16.mxu0 0
  %3780 = vmatpush1.bf16.msra.mxu0 0
  %3781 = vmatprep.subr.bf16.mxu0 0
  %3782 = vmatpush1.bf16.msra.mxu0 0
  %3783 = vmatprep.subr.bf16.mxu0 0
  %3784 = vmatpush1.bf16.msra.mxu0 0
  %3785 = vmatprep.subr.bf16.mxu0 0
  %3786 = vmatpush1.bf16.msra.mxu0 0
  %3787 = vmatprep.mubr.bf16.mxu0 0
  %3788 = vmatmul.mubr.bf16.gmra.mrb[0].mxu0 %v3566
  %v3789 = vpop.f32.mrb[0].mxu0
  %v3790 = vadd.f32 0.0, %v3789
  %v3791 = vpop.f32.mrb[0].mxu0
  %v3792 = vadd.f32 0.0, %v3791
  %v3793 = vpop.f32.mrb[0].mxu0
  %v3794 = vpop.f32.mrb[0].mxu0
  %3795 = vdwg.mxu0
  %3796 = vmatprep.subr.bf16.mxu0 0
  %3797 = vmatpush1.bf16.msra.mxu0 %v1187
  %3798 = vmatprep.subr.bf16.mxu0 0
  %3799 = vmatpush1.bf16.msra.mxu0 %v1190
  %3800 = vmatprep.subr.bf16.mxu0 0
  %3801 = vmatpush1.bf16.msra.mxu0 %v1193
  %3802 = vmatprep.subr.bf16.mxu0 0
  %3803 = vmatpush1.bf16.msra.mxu0 %v1196
  %3804 = vmatprep.subr.bf16.mxu0 0
  %3805 = vmatpush1.bf16.msra.mxu0 %v1199
  %3806 = vmatprep.subr.bf16.mxu0 0
  %3807 = vmatpush1.bf16.msra.mxu0 %v1202
  %3808 = vmatprep.subr.bf16.mxu0 0
  %3809 = vmatpush1.bf16.msra.mxu0 %v1205
  %3810 = vmatprep.subr.bf16.mxu0 0
  %3811 = vmatpush1.bf16.msra.mxu0 %v1208
  %3812 = vmatprep.subr.bf16.mxu0 0
  %3813 = vmatpush1.bf16.msra.mxu0 0
  %3814 = vmatprep.subr.bf16.mxu0 0
  %3815 = vmatpush1.bf16.msra.mxu0 0
  %3816 = vmatprep.subr.bf16.mxu0 0
  %3817 = vmatpush1.bf16.msra.mxu0 0
  %3818 = vmatprep.subr.bf16.mxu0 0
  %3819 = vmatpush1.bf16.msra.mxu0 0
  %3820 = vmatprep.subr.bf16.mxu0 0
  %3821 = vmatpush1.bf16.msra.mxu0 0
  %3822 = vmatprep.subr.bf16.mxu0 0
  %3823 = vmatpush1.bf16.msra.mxu0 0
  %3824 = vmatprep.subr.bf16.mxu0 0
  %3825 = vmatpush1.bf16.msra.mxu0 0
  %3826 = vmatprep.subr.bf16.mxu0 0
  %3827 = vmatpush1.bf16.msra.mxu0 0
  %3828 = vmatprep.mubr.bf16.mxu0 0
  %3829 = vmatmul.mubr.bf16.gmra.mrb[0].mxu0 %v3566
  %v3830 = vpop.f32.mrb[0].mxu0
  %v3831 = vadd.f32 0.0, %v3830
  %v3832 = vpop.f32.mrb[0].mxu0
  %v3833 = vpop.f32.mrb[0].mxu0
  %v3834 = vpop.f32.mrb[0].mxu0
  %3835 = vdwg.mxu0
  %v3836 = vadd.f32 %v3709, %v3790
  %v3837 = vadd.f32 %v3711, %v3792
  %v3838 = vadd.f32 %v3831, %v447
  %v3839 = vxor.u32 %v3836, 2147483648
  %v3840 = vmul.f32 %v3839, 1.442695
  %v3841 = vpow.pop %v3840
  %v3842 = vadd.f32 %v3841, 1.0
  %v3843 = vrcp.pop %v3842
  %v3844 = vmul.f32 1.0, %v3843
  %v3845 = vxor.u32 %v3837, 2147483648
  %v3846 = vmul.f32 %v3845, 1.442695
  %v3847 = vpow.pop %v3846
  %v3848 = vadd.f32 %v3847, 1.0
  %v3849 = vrcp.pop %v3848
  %v3850 = vmul.f32 1.0, %v3849
  %v3851 = vmul.f32 %v3844, %v3838
  %v3852 = vadd.f32 %v3750, %v3851
  %v3853 = vtanh.pop %v3852
  %v3854 = vsub.f32 1.0, %v3850
  %v3855 = vmul.f32 %v3854, %v3853
  %v3856 = vmul.f32 %v3850, %v3380
  %v3857 = vadd.f32 %v3855, %v3856
  %3858 = vmatprep.subr.bf16.mxu0 %v1742
  %3859 = vmatpush1.bf16.msra.mxu0 %v1741
  %3860 = vmatprep.subr.bf16.mxu0 %v1745
  %3861 = vmatpush1.bf16.msra.mxu0 %v1744
  %3862 = vmatprep.subr.bf16.mxu0 %v1748
  %3863 = vmatpush1.bf16.msra.mxu0 %v1747
  %3864 = vmatprep.subr.bf16.mxu0 %v1751
  %3865 = vmatpush1.bf16.msra.mxu0 %v1750
  %3866 = vmatprep.subr.bf16.mxu0 %v1754
  %3867 = vmatpush1.bf16.msra.mxu0 %v1753
  %3868 = vmatprep.subr.bf16.mxu0 %v1757
  %3869 = vmatpush1.bf16.msra.mxu0 %v1756
  %3870 = vmatprep.subr.bf16.mxu0 %v1760
  %3871 = vmatpush1.bf16.msra.mxu0 %v1759
  %3872 = vmatprep.subr.bf16.mxu0 %v1763
  %3873 = vmatpush1.bf16.msra.mxu0 %v1762
  %3874 = vmatprep.subr.bf16.mxu0 0
  %3875 = vmatpush1.bf16.msra.mxu0 0
  %3876 = vmatprep.subr.bf16.mxu0 0
  %3877 = vmatpush1.bf16.msra.mxu0 0
  %3878 = vmatprep.subr.bf16.mxu0 0
  %3879 = vmatpush1.bf16.msra.mxu0 0
  %3880 = vmatprep.subr.bf16.mxu0 0
  %3881 = vmatpush1.bf16.msra.mxu0 0
  %3882 = vmatprep.subr.bf16.mxu0 0
  %3883 = vmatpush1.bf16.msra.mxu0 0
  %3884 = vmatprep.subr.bf16.mxu0 0
  %3885 = vmatpush1.bf16.msra.mxu0 0
  %3886 = vmatprep.subr.bf16.mxu0 0
  %3887 = vmatpush1.bf16.msra.mxu0 0
  %3888 = vmatprep.subr.bf16.mxu0 0
  %3889 = vmatpush1.bf16.msra.mxu0 0
  %3890 = vmatprep.mubr.bf16.mxu0 0
  %3891 = vmatmul.mubr.bf16.gmra.mrb[0].mxu0 %v3566
  %v3892 = vpop.f32.mrb[0].mxu0
  %v3893 = vadd.f32 %v422, %v3892
  %v3894 = vpop.f32.mrb[0].mxu0
  %v3895 = vadd.f32 %v426, %v3894
  %v3896 = vpop.f32.mrb[0].mxu0
  %v3897 = vpop.f32.mrb[0].mxu0
  %3898 = vdwg.mxu0
  %3899 = vmatprep.subr.bf16.mxu0 0
  %3900 = vmatpush1.bf16.msra.mxu0 %v1743
  %3901 = vmatprep.subr.bf16.mxu0 0
  %3902 = vmatpush1.bf16.msra.mxu0 %v1746
  %3903 = vmatprep.subr.bf16.mxu0 0
  %3904 = vmatpush1.bf16.msra.mxu0 %v1749
  %3905 = vmatprep.subr.bf16.mxu0 0
  %3906 = vmatpush1.bf16.msra.mxu0 %v1752
  %3907 = vmatprep.subr.bf16.mxu0 0
  %3908 = vmatpush1.bf16.msra.mxu0 %v1755
  %3909 = vmatprep.subr.bf16.mxu0 0
  %3910 = vmatpush1.bf16.msra.mxu0 %v1758
  %3911 = vmatprep.subr.bf16.mxu0 0
  %3912 = vmatpush1.bf16.msra.mxu0 %v1761
  %3913 = vmatprep.subr.bf16.mxu0 0
  %3914 = vmatpush1.bf16.msra.mxu0 %v1764
  %3915 = vmatprep.subr.bf16.mxu0 0
  %3916 = vmatpush1.bf16.msra.mxu0 0
  %3917 = vmatprep.subr.bf16.mxu0 0
  %3918 = vmatpush1.bf16.msra.mxu0 0
  %3919 = vmatprep.subr.bf16.mxu0 0
  %3920 = vmatpush1.bf16.msra.mxu0 0
  %3921 = vmatprep.subr.bf16.mxu0 0
  %3922 = vmatpush1.bf16.msra.mxu0 0
  %3923 = vmatprep.subr.bf16.mxu0 0
  %3924 = vmatpush1.bf16.msra.mxu0 0
  %3925 = vmatprep.subr.bf16.mxu0 0
  %3926 = vmatpush1.bf16.msra.mxu0 0
  %3927 = vmatprep.subr.bf16.mxu0 0
  %3928 = vmatpush1.bf16.msra.mxu0 0
  %3929 = vmatprep.subr.bf16.mxu0 0
  %3930 = vmatpush1.bf16.msra.mxu0 0
  %3931 = vmatprep.mubr.bf16.mxu0 0
  %3932 = vmatmul.mubr.bf16.gmra.mrb[0].mxu0 %v3566
  %v3933 = vpop.f32.mrb[0].mxu0
  %v3934 = vadd.f32 %v430, %v3933
  %v3935 = vpop.f32.mrb[0].mxu0
  %v3936 = vpop.f32.mrb[0].mxu0
  %v3937 = vpop.f32.mrb[0].mxu0
  %3938 = vdwg.mxu0
  %3939 = vmatprep.subr.bf16.mxu0 %v1984
  %3940 = vmatpush1.bf16.msra.mxu0 %v1983
  %3941 = vmatprep.subr.bf16.mxu0 %v1987
  %3942 = vmatpush1.bf16.msra.mxu0 %v1986
  %3943 = vmatprep.subr.bf16.mxu0 %v1990
  %3944 = vmatpush1.bf16.msra.mxu0 %v1989
  %3945 = vmatprep.subr.bf16.mxu0 %v1993
  %3946 = vmatpush1.bf16.msra.mxu0 %v1992
  %3947 = vmatprep.subr.bf16.mxu0 %v1996
  %3948 = vmatpush1.bf16.msra.mxu0 %v1995
  %3949 = vmatprep.subr.bf16.mxu0 %v1999
  %3950 = vmatpush1.bf16.msra.mxu0 %v1998
  %3951 = vmatprep.subr.bf16.mxu0 %v2002
  %3952 = vmatpush1.bf16.msra.mxu0 %v2001
  %3953 = vmatprep.subr.bf16.mxu0 %v2005
  %3954 = vmatpush1.bf16.msra.mxu0 %v2004
  %3955 = vmatprep.subr.bf16.mxu0 0
  %3956 = vmatpush1.bf16.msra.mxu0 0
  %3957 = vmatprep.subr.bf16.mxu0 0
  %3958 = vmatpush1.bf16.msra.mxu0 0
  %3959 = vmatprep.subr.bf16.mxu0 0
  %3960 = vmatpush1.bf16.msra.mxu0 0
  %3961 = vmatprep.subr.bf16.mxu0 0
  %3962 = vmatpush1.bf16.msra.mxu0 0
  %3963 = vmatprep.subr.bf16.mxu0 0
  %3964 = vmatpush1.bf16.msra.mxu0 0
  %3965 = vmatprep.subr.bf16.mxu0 0
  %3966 = vmatpush1.bf16.msra.mxu0 0
  %3967 = vmatprep.subr.bf16.mxu0 0
  %3968 = vmatpush1.bf16.msra.mxu0 0
  %3969 = vmatprep.subr.bf16.mxu0 0
  %3970 = vmatpush1.bf16.msra.mxu0 0
  %3971 = vmatprep.mubr.bf16.mxu0 0
  %3972 = vmatmul.mubr.bf16.gmra.mrb[0].mxu0 %v3567
  %v3973 = vpop.f32.mrb[0].mxu0
  %v3974 = vadd.f32 0.0, %v3973
  %v3975 = vpop.f32.mrb[0].mxu0
  %v3976 = vadd.f32 0.0, %v3975
  %v3977 = vpop.f32.mrb[0].mxu0
  %v3978 = vpop.f32.mrb[0].mxu0
  %3979 = vdwg.mxu0
  %3980 = vmatprep.subr.bf16.mxu0 0
  %3981 = vmatpush1.bf16.msra.mxu0 %v1985
  %3982 = vmatprep.subr.bf16.mxu0 0
  %3983 = vmatpush1.bf16.msra.mxu0 %v1988
  %3984 = vmatprep.subr.bf16.mxu0 0
  %3985 = vmatpush1.bf16.msra.mxu0 %v1991
  %3986 = vmatprep.subr.bf16.mxu0 0
  %3987 = vmatpush1.bf16.msra.mxu0 %v1994
  %3988 = vmatprep.subr.bf16.mxu0 0
  %3989 = vmatpush1.bf16.msra.mxu0 %v1997
  %3990 = vmatprep.subr.bf16.mxu0 0
  %3991 = vmatpush1.bf16.msra.mxu0 %v2000
  %3992 = vmatprep.subr.bf16.mxu0 0
  %3993 = vmatpush1.bf16.msra.mxu0 %v2003
  %3994 = vmatprep.subr.bf16.mxu0 0
  %3995 = vmatpush1.bf16.msra.mxu0 %v2006
  %3996 = vmatprep.subr.bf16.mxu0 0
  %3997 = vmatpush1.bf16.msra.mxu0 0
  %3998 = vmatprep.subr.bf16.mxu0 0
  %3999 = vmatpush1.bf16.msra.mxu0 0
  %4000 = vmatprep.subr.bf16.mxu0 0
  %4001 = vmatpush1.bf16.msra.mxu0 0
  %4002 = vmatprep.subr.bf16.mxu0 0
  %4003 = vmatpush1.bf16.msra.mxu0 0
  %4004 = vmatprep.subr.bf16.mxu0 0
  %4005 = vmatpush1.bf16.msra.mxu0 0
  %4006 = vmatprep.subr.bf16.mxu0 0
  %4007 = vmatpush1.bf16.msra.mxu0 0
  %4008 = vmatprep.subr.bf16.mxu0 0
  %4009 = vmatpush1.bf16.msra.mxu0 0
  %4010 = vmatprep.subr.bf16.mxu0 0
  %4011 = vmatpush1.bf16.msra.mxu0 0
  %4012 = vmatprep.mubr.bf16.mxu0 0
  %4013 = vmatmul.mubr.bf16.gmra.mrb[0].mxu0 %v3567
  %v4014 = vpop.f32.mrb[0].mxu0
  %v4015 = vadd.f32 0.0, %v4014
  %v4016 = vpop.f32.mrb[0].mxu0
  %v4017 = vpop.f32.mrb[0].mxu0
  %v4018 = vpop.f32.mrb[0].mxu0
  %4019 = vdwg.mxu0
  %v4020 = vadd.f32 %v3893, %v3974
  %v4021 = vadd.f32 %v3895, %v3976
  %v4022 = vadd.f32 %v4015, %v455
  %v4023 = vxor.u32 %v4020, 2147483648
  %v4024 = vmul.f32 %v4023, 1.442695
  %v4025 = vpow.pop %v4024
  %v4026 = vadd.f32 %v4025, 1.0
  %v4027 = vrcp.pop %v4026
  %v4028 = vmul.f32 1.0, %v4027
  %v4029 = vxor.u32 %v4021, 2147483648
  %v4030 = vmul.f32 %v4029, 1.442695
  %v4031 = vpow.pop %v4030
  %v4032 = vadd.f32 %v4031, 1.0
  %v4033 = vrcp.pop %v4032
  %v4034 = vmul.f32 1.0, %v4033
  %v4035 = vmul.f32 %v4028, %v4022
  %v4036 = vadd.f32 %v3934, %v4035
  %v4037 = vtanh.pop %v4036
  %v4038 = vsub.f32 1.0, %v4034
  %v4039 = vmul.f32 %v4038, %v4037
  %v4040 = vmul.f32 %v4034, %v3564
  %v4041 = vadd.f32 %v4039, %v4040
  %v4042 = vpack.c.bf16 %v3673, %v3673
  %v4043 = vpack.c.bf16 %v3857, %v3857
  %v4044 = vpack.c.bf16 %v4041, %v4041
  %v4045 = vld [vmem:[#allocation2 + $0xa8] sm:$0xff]
  %v4046 = vld [vmem:[#allocation2 + $0xb0] sm:$0xff]
  %v4047 = vld [vmem:[#allocation2 + $0xb8] sm:$0xff]
  %4048 = vmatprep.subr.bf16.mxu0 %v573
  %4049 = vmatpush1.bf16.msra.mxu0 %v572
  %4050 = vmatprep.subr.bf16.mxu0 %v576
  %4051 = vmatpush1.bf16.msra.mxu0 %v575
  %4052 = vmatprep.subr.bf16.mxu0 %v579
  %4053 = vmatpush1.bf16.msra.mxu0 %v578
  %4054 = vmatprep.subr.bf16.mxu0 %v582
  %4055 = vmatpush1.bf16.msra.mxu0 %v581
  %4056 = vmatprep.subr.bf16.mxu0 %v585
  %4057 = vmatpush1.bf16.msra.mxu0 %v584
  %4058 = vmatprep.subr.bf16.mxu0 %v588
  %4059 = vmatpush1.bf16.msra.mxu0 %v587
  %4060 = vmatprep.subr.bf16.mxu0 %v591
  %4061 = vmatpush1.bf16.msra.mxu0 %v590
  %4062 = vmatprep.subr.bf16.mxu0 %v594
  %4063 = vmatpush1.bf16.msra.mxu0 %v593
  %4064 = vmatprep.subr.bf16.mxu0 0
  %4065 = vmatpush1.bf16.msra.mxu0 0
  %4066 = vmatprep.subr.bf16.mxu0 0
  %4067 = vmatpush1.bf16.msra.mxu0 0
  %4068 = vmatprep.subr.bf16.mxu0 0
  %4069 = vmatpush1.bf16.msra.mxu0 0
  %4070 = vmatprep.subr.bf16.mxu0 0
  %4071 = vmatpush1.bf16.msra.mxu0 0
  %4072 = vmatprep.subr.bf16.mxu0 0
  %4073 = vmatpush1.bf16.msra.mxu0 0
  %4074 = vmatprep.subr.bf16.mxu0 0
  %4075 = vmatpush1.bf16.msra.mxu0 0
  %4076 = vmatprep.subr.bf16.mxu0 0
  %4077 = vmatpush1.bf16.msra.mxu0 0
  %4078 = vmatprep.subr.bf16.mxu0 0
  %4079 = vmatpush1.bf16.msra.mxu0 0
  %4080 = vmatprep.mubr.bf16.mxu0 0
  %4081 = vmatmul.mubr.bf16.gmra.mrb[0].mxu0 %v4042
  %v4082 = vpop.f32.mrb[0].mxu0
  %v4083 = vadd.f32 0.0, %v4082
  %v4084 = vpop.f32.mrb[0].mxu0
  %v4085 = vadd.f32 0.0, %v4084
  %v4086 = vpop.f32.mrb[0].mxu0
  %v4087 = vpop.f32.mrb[0].mxu0
  %4088 = vdwg.mxu0
  %4089 = vmatprep.subr.bf16.mxu0 0
  %4090 = vmatpush1.bf16.msra.mxu0 %v574
  %4091 = vmatprep.subr.bf16.mxu0 0
  %4092 = vmatpush1.bf16.msra.mxu0 %v577
  %4093 = vmatprep.subr.bf16.mxu0 0
  %4094 = vmatpush1.bf16.msra.mxu0 %v580
  %4095 = vmatprep.subr.bf16.mxu0 0
  %4096 = vmatpush1.bf16.msra.mxu0 %v583
  %4097 = vmatprep.subr.bf16.mxu0 0
  %4098 = vmatpush1.bf16.msra.mxu0 %v586
  %4099 = vmatprep.subr.bf16.mxu0 0
  %4100 = vmatpush1.bf16.msra.mxu0 %v589
  %4101 = vmatprep.subr.bf16.mxu0 0
  %4102 = vmatpush1.bf16.msra.mxu0 %v592
  %4103 = vmatprep.subr.bf16.mxu0 0
  %4104 = vmatpush1.bf16.msra.mxu0 %v595
  %4105 = vmatprep.subr.bf16.mxu0 0
  %4106 = vmatpush1.bf16.msra.mxu0 0
  %4107 = vmatprep.subr.bf16.mxu0 0
  %4108 = vmatpush1.bf16.msra.mxu0 0
  %4109 = vmatprep.subr.bf16.mxu0 0
  %4110 = vmatpush1.bf16.msra.mxu0 0
  %4111 = vmatprep.subr.bf16.mxu0 0
  %4112 = vmatpush1.bf16.msra.mxu0 0
  %4113 = vmatprep.subr.bf16.mxu0 0
  %4114 = vmatpush1.bf16.msra.mxu0 0
  %4115 = vmatprep.subr.bf16.mxu0 0
  %4116 = vmatpush1.bf16.msra.mxu0 0
  %4117 = vmatprep.subr.bf16.mxu0 0
  %4118 = vmatpush1.bf16.msra.mxu0 0
  %4119 = vmatprep.subr.bf16.mxu0 0
  %4120 = vmatpush1.bf16.msra.mxu0 0
  %4121 = vmatprep.mubr.bf16.mxu0 0
  %4122 = vmatmul.mubr.bf16.gmra.mrb[0].mxu0 %v4042
  %v4123 = vpop.f32.mrb[0].mxu0
  %v4124 = vadd.f32 0.0, %v4123
  %v4125 = vpop.f32.mrb[0].mxu0
  %v4126 = vpop.f32.mrb[0].mxu0
  %v4127 = vpop.f32.mrb[0].mxu0
  %4128 = vdwg.mxu0
  %v4129 = vadd.f32 %v4045, %v4083
  %v4130 = vadd.f32 %v4046, %v4085
  %v4131 = vadd.f32 %v4124, %v439
  %v4132 = vxor.u32 %v4129, 2147483648
  %v4133 = vmul.f32 %v4132, 1.442695
  %v4134 = vpow.pop %v4133
  %v4135 = vadd.f32 %v4134, 1.0
  %v4136 = vrcp.pop %v4135
  %v4137 = vmul.f32 1.0, %v4136
  %v4138 = vxor.u32 %v4130, 2147483648
  %v4139 = vmul.f32 %v4138, 1.442695
  %v4140 = vpow.pop %v4139
  %v4141 = vadd.f32 %v4140, 1.0
  %v4142 = vrcp.pop %v4141
  %v4143 = vmul.f32 1.0, %v4142
  %v4144 = vmul.f32 %v4137, %v4131
  %v4145 = vadd.f32 %v4047, %v4144
  %v4146 = vtanh.pop %v4145
  %v4147 = vsub.f32 1.0, %v4143
  %v4148 = vmul.f32 %v4147, %v4146
  %v4149 = vmul.f32 %v4143, %v3673
  %v4150 = vadd.f32 %v4148, %v4149
  %4151 = vmatprep.subr.bf16.mxu0 %v944
  %4152 = vmatpush1.bf16.msra.mxu0 %v943
  %4153 = vmatprep.subr.bf16.mxu0 %v947
  %4154 = vmatpush1.bf16.msra.mxu0 %v946
  %4155 = vmatprep.subr.bf16.mxu0 %v950
  %4156 = vmatpush1.bf16.msra.mxu0 %v949
  %4157 = vmatprep.subr.bf16.mxu0 %v953
  %4158 = vmatpush1.bf16.msra.mxu0 %v952
  %4159 = vmatprep.subr.bf16.mxu0 %v956
  %4160 = vmatpush1.bf16.msra.mxu0 %v955
  %4161 = vmatprep.subr.bf16.mxu0 %v959
  %4162 = vmatpush1.bf16.msra.mxu0 %v958
  %4163 = vmatprep.subr.bf16.mxu0 %v962
  %4164 = vmatpush1.bf16.msra.mxu0 %v961
  %4165 = vmatprep.subr.bf16.mxu0 %v965
  %4166 = vmatpush1.bf16.msra.mxu0 %v964
  %4167 = vmatprep.subr.bf16.mxu0 0
  %4168 = vmatpush1.bf16.msra.mxu0 0
  %4169 = vmatprep.subr.bf16.mxu0 0
  %4170 = vmatpush1.bf16.msra.mxu0 0
  %4171 = vmatprep.subr.bf16.mxu0 0
  %4172 = vmatpush1.bf16.msra.mxu0 0
  %4173 = vmatprep.subr.bf16.mxu0 0
  %4174 = vmatpush1.bf16.msra.mxu0 0
  %4175 = vmatprep.subr.bf16.mxu0 0
  %4176 = vmatpush1.bf16.msra.mxu0 0
  %4177 = vmatprep.subr.bf16.mxu0 0
  %4178 = vmatpush1.bf16.msra.mxu0 0
  %4179 = vmatprep.subr.bf16.mxu0 0
  %4180 = vmatpush1.bf16.msra.mxu0 0
  %4181 = vmatprep.subr.bf16.mxu0 0
  %4182 = vmatpush1.bf16.msra.mxu0 0
  %4183 = vmatprep.mubr.bf16.mxu0 0
  %4184 = vmatmul.mubr.bf16.gmra.mrb[0].mxu0 %v4042
  %v4185 = vpop.f32.mrb[0].mxu0
  %v4186 = vadd.f32 %v404, %v4185
  %v4187 = vpop.f32.mrb[0].mxu0
  %v4188 = vadd.f32 %v408, %v4187
  %v4189 = vpop.f32.mrb[0].mxu0
  %v4190 = vpop.f32.mrb[0].mxu0
  %4191 = vdwg.mxu0
  %4192 = vmatprep.subr.bf16.mxu0 0
  %4193 = vmatpush1.bf16.msra.mxu0 %v945
  %4194 = vmatprep.subr.bf16.mxu0 0
  %4195 = vmatpush1.bf16.msra.mxu0 %v948
  %4196 = vmatprep.subr.bf16.mxu0 0
  %4197 = vmatpush1.bf16.msra.mxu0 %v951
  %4198 = vmatprep.subr.bf16.mxu0 0
  %4199 = vmatpush1.bf16.msra.mxu0 %v954
  %4200 = vmatprep.subr.bf16.mxu0 0
  %4201 = vmatpush1.bf16.msra.mxu0 %v957
  %4202 = vmatprep.subr.bf16.mxu0 0
  %4203 = vmatpush1.bf16.msra.mxu0 %v960
  %4204 = vmatprep.subr.bf16.mxu0 0
  %4205 = vmatpush1.bf16.msra.mxu0 %v963
  %4206 = vmatprep.subr.bf16.mxu0 0
  %4207 = vmatpush1.bf16.msra.mxu0 %v966
  %4208 = vmatprep.subr.bf16.mxu0 0
  %4209 = vmatpush1.bf16.msra.mxu0 0
  %4210 = vmatprep.subr.bf16.mxu0 0
  %4211 = vmatpush1.bf16.msra.mxu0 0
  %4212 = vmatprep.subr.bf16.mxu0 0
  %4213 = vmatpush1.bf16.msra.mxu0 0
  %4214 = vmatprep.subr.bf16.mxu0 0
  %4215 = vmatpush1.bf16.msra.mxu0 0
  %4216 = vmatprep.subr.bf16.mxu0 0
  %4217 = vmatpush1.bf16.msra.mxu0 0
  %4218 = vmatprep.subr.bf16.mxu0 0
  %4219 = vmatpush1.bf16.msra.mxu0 0
  %4220 = vmatprep.subr.bf16.mxu0 0
  %4221 = vmatpush1.bf16.msra.mxu0 0
  %4222 = vmatprep.subr.bf16.mxu0 0
  %4223 = vmatpush1.bf16.msra.mxu0 0
  %4224 = vmatprep.mubr.bf16.mxu0 0
  %4225 = vmatmul.mubr.bf16.gmra.mrb[0].mxu0 %v4042
  %v4226 = vpop.f32.mrb[0].mxu0
  %v4227 = vadd.f32 %v412, %v4226
  %v4228 = vpop.f32.mrb[0].mxu0
  %v4229 = vpop.f32.mrb[0].mxu0
  %v4230 = vpop.f32.mrb[0].mxu0
  %4231 = vdwg.mxu0
  %4232 = vmatprep.subr.bf16.mxu0 %v1186
  %4233 = vmatpush1.bf16.msra.mxu0 %v1185
  %4234 = vmatprep.subr.bf16.mxu0 %v1189
  %4235 = vmatpush1.bf16.msra.mxu0 %v1188
  %4236 = vmatprep.subr.bf16.mxu0 %v1192
  %4237 = vmatpush1.bf16.msra.mxu0 %v1191
  %4238 = vmatprep.subr.bf16.mxu0 %v1195
  %4239 = vmatpush1.bf16.msra.mxu0 %v1194
  %4240 = vmatprep.subr.bf16.mxu0 %v1198
  %4241 = vmatpush1.bf16.msra.mxu0 %v1197
  %4242 = vmatprep.subr.bf16.mxu0 %v1201
  %4243 = vmatpush1.bf16.msra.mxu0 %v1200
  %4244 = vmatprep.subr.bf16.mxu0 %v1204
  %4245 = vmatpush1.bf16.msra.mxu0 %v1203
  %4246 = vmatprep.subr.bf16.mxu0 %v1207
  %4247 = vmatpush1.bf16.msra.mxu0 %v1206
  %4248 = vmatprep.subr.bf16.mxu0 0
  %4249 = vmatpush1.bf16.msra.mxu0 0
  %4250 = vmatprep.subr.bf16.mxu0 0
  %4251 = vmatpush1.bf16.msra.mxu0 0
  %4252 = vmatprep.subr.bf16.mxu0 0
  %4253 = vmatpush1.bf16.msra.mxu0 0
  %4254 = vmatprep.subr.bf16.mxu0 0
  %4255 = vmatpush1.bf16.msra.mxu0 0
  %4256 = vmatprep.subr.bf16.mxu0 0
  %4257 = vmatpush1.bf16.msra.mxu0 0
  %4258 = vmatprep.subr.bf16.mxu0 0
  %4259 = vmatpush1.bf16.msra.mxu0 0
  %4260 = vmatprep.subr.bf16.mxu0 0
  %4261 = vmatpush1.bf16.msra.mxu0 0
  %4262 = vmatprep.subr.bf16.mxu0 0
  %4263 = vmatpush1.bf16.msra.mxu0 0
  %4264 = vmatprep.mubr.bf16.mxu0 0
  %4265 = vmatmul.mubr.bf16.gmra.mrb[0].mxu0 %v4043
  %v4266 = vpop.f32.mrb[0].mxu0
  %v4267 = vadd.f32 0.0, %v4266
  %v4268 = vpop.f32.mrb[0].mxu0
  %v4269 = vadd.f32 0.0, %v4268
  %v4270 = vpop.f32.mrb[0].mxu0
  %v4271 = vpop.f32.mrb[0].mxu0
  %4272 = vdwg.mxu0
  %4273 = vmatprep.subr.bf16.mxu0 0
  %4274 = vmatpush1.bf16.msra.mxu0 %v1187
  %4275 = vmatprep.subr.bf16.mxu0 0
  %4276 = vmatpush1.bf16.msra.mxu0 %v1190
  %4277 = vmatprep.subr.bf16.mxu0 0
  %4278 = vmatpush1.bf16.msra.mxu0 %v1193
  %4279 = vmatprep.subr.bf16.mxu0 0
  %4280 = vmatpush1.bf16.msra.mxu0 %v1196
  %4281 = vmatprep.subr.bf16.mxu0 0
  %4282 = vmatpush1.bf16.msra.mxu0 %v1199
  %4283 = vmatprep.subr.bf16.mxu0 0
  %4284 = vmatpush1.bf16.msra.mxu0 %v1202
  %4285 = vmatprep.subr.bf16.mxu0 0
  %4286 = vmatpush1.bf16.msra.mxu0 %v1205
  %4287 = vmatprep.subr.bf16.mxu0 0
  %4288 = vmatpush1.bf16.msra.mxu0 %v1208
  %4289 = vmatprep.subr.bf16.mxu0 0
  %4290 = vmatpush1.bf16.msra.mxu0 0
  %4291 = vmatprep.subr.bf16.mxu0 0
  %4292 = vmatpush1.bf16.msra.mxu0 0
  %4293 = vmatprep.subr.bf16.mxu0 0
  %4294 = vmatpush1.bf16.msra.mxu0 0
  %4295 = vmatprep.subr.bf16.mxu0 0
  %4296 = vmatpush1.bf16.msra.mxu0 0
  %4297 = vmatprep.subr.bf16.mxu0 0
  %4298 = vmatpush1.bf16.msra.mxu0 0
  %4299 = vmatprep.subr.bf16.mxu0 0
  %4300 = vmatpush1.bf16.msra.mxu0 0
  %4301 = vmatprep.subr.bf16.mxu0 0
  %4302 = vmatpush1.bf16.msra.mxu0 0
  %4303 = vmatprep.subr.bf16.mxu0 0
  %4304 = vmatpush1.bf16.msra.mxu0 0
  %4305 = vmatprep.mubr.bf16.mxu0 0
  %4306 = vmatmul.mubr.bf16.gmra.mrb[0].mxu0 %v4043
  %v4307 = vpop.f32.mrb[0].mxu0
  %v4308 = vadd.f32 0.0, %v4307
  %v4309 = vpop.f32.mrb[0].mxu0
  %v4310 = vpop.f32.mrb[0].mxu0
  %v4311 = vpop.f32.mrb[0].mxu0
  %4312 = vdwg.mxu0
  %v4313 = vadd.f32 %v4186, %v4267
  %v4314 = vadd.f32 %v4188, %v4269
  %v4315 = vadd.f32 %v4308, %v447
  %v4316 = vxor.u32 %v4313, 2147483648
  %v4317 = vmul.f32 %v4316, 1.442695
  %v4318 = vpow.pop %v4317
  %v4319 = vadd.f32 %v4318, 1.0
  %v4320 = vrcp.pop %v4319
  %v4321 = vmul.f32 1.0, %v4320
  %v4322 = vxor.u32 %v4314, 2147483648
  %v4323 = vmul.f32 %v4322, 1.442695
  %v4324 = vpow.pop %v4323
  %v4325 = vadd.f32 %v4324, 1.0
  %v4326 = vrcp.pop %v4325
  %v4327 = vmul.f32 1.0, %v4326
  %v4328 = vmul.f32 %v4321, %v4315
  %v4329 = vadd.f32 %v4227, %v4328
  %v4330 = vtanh.pop %v4329
  %v4331 = vsub.f32 1.0, %v4327
  %v4332 = vmul.f32 %v4331, %v4330
  %v4333 = vmul.f32 %v4327, %v3857
  %v4334 = vadd.f32 %v4332, %v4333
  %4335 = vmatprep.subr.bf16.mxu0 %v1742
  %4336 = vmatpush1.bf16.msra.mxu0 %v1741
  %4337 = vmatprep.subr.bf16.mxu0 %v1745
  %4338 = vmatpush1.bf16.msra.mxu0 %v1744
  %4339 = vmatprep.subr.bf16.mxu0 %v1748
  %4340 = vmatpush1.bf16.msra.mxu0 %v1747
  %4341 = vmatprep.subr.bf16.mxu0 %v1751
  %4342 = vmatpush1.bf16.msra.mxu0 %v1750
  %4343 = vmatprep.subr.bf16.mxu0 %v1754
  %4344 = vmatpush1.bf16.msra.mxu0 %v1753
  %4345 = vmatprep.subr.bf16.mxu0 %v1757
  %4346 = vmatpush1.bf16.msra.mxu0 %v1756
  %4347 = vmatprep.subr.bf16.mxu0 %v1760
  %4348 = vmatpush1.bf16.msra.mxu0 %v1759
  %4349 = vmatprep.subr.bf16.mxu0 %v1763
  %4350 = vmatpush1.bf16.msra.mxu0 %v1762
  %4351 = vmatprep.subr.bf16.mxu0 0
  %4352 = vmatpush1.bf16.msra.mxu0 0
  %4353 = vmatprep.subr.bf16.mxu0 0
  %4354 = vmatpush1.bf16.msra.mxu0 0
  %4355 = vmatprep.subr.bf16.mxu0 0
  %4356 = vmatpush1.bf16.msra.mxu0 0
  %4357 = vmatprep.subr.bf16.mxu0 0
  %4358 = vmatpush1.bf16.msra.mxu0 0
  %4359 = vmatprep.subr.bf16.mxu0 0
  %4360 = vmatpush1.bf16.msra.mxu0 0
  %4361 = vmatprep.subr.bf16.mxu0 0
  %4362 = vmatpush1.bf16.msra.mxu0 0
  %4363 = vmatprep.subr.bf16.mxu0 0
  %4364 = vmatpush1.bf16.msra.mxu0 0
  %4365 = vmatprep.subr.bf16.mxu0 0
  %4366 = vmatpush1.bf16.msra.mxu0 0
  %4367 = vmatprep.mubr.bf16.mxu0 0
  %4368 = vmatmul.mubr.bf16.gmra.mrb[0].mxu0 %v4043
  %v4369 = vpop.f32.mrb[0].mxu0
  %v4370 = vadd.f32 %v422, %v4369
  %v4371 = vpop.f32.mrb[0].mxu0
  %v4372 = vadd.f32 %v426, %v4371
  %v4373 = vpop.f32.mrb[0].mxu0
  %v4374 = vpop.f32.mrb[0].mxu0
  %4375 = vdwg.mxu0
  %4376 = vmatprep.subr.bf16.mxu0 0
  %4377 = vmatpush1.bf16.msra.mxu0 %v1743
  %4378 = vmatprep.subr.bf16.mxu0 0
  %4379 = vmatpush1.bf16.msra.mxu0 %v1746
  %4380 = vmatprep.subr.bf16.mxu0 0
  %4381 = vmatpush1.bf16.msra.mxu0 %v1749
  %4382 = vmatprep.subr.bf16.mxu0 0
  %4383 = vmatpush1.bf16.msra.mxu0 %v1752
  %4384 = vmatprep.subr.bf16.mxu0 0
  %4385 = vmatpush1.bf16.msra.mxu0 %v1755
  %4386 = vmatprep.subr.bf16.mxu0 0
  %4387 = vmatpush1.bf16.msra.mxu0 %v1758
  %4388 = vmatprep.subr.bf16.mxu0 0
  %4389 = vmatpush1.bf16.msra.mxu0 %v1761
  %4390 = vmatprep.subr.bf16.mxu0 0
  %4391 = vmatpush1.bf16.msra.mxu0 %v1764
  %4392 = vmatprep.subr.bf16.mxu0 0
  %4393 = vmatpush1.bf16.msra.mxu0 0
  %4394 = vmatprep.subr.bf16.mxu0 0
  %4395 = vmatpush1.bf16.msra.mxu0 0
  %4396 = vmatprep.subr.bf16.mxu0 0
  %4397 = vmatpush1.bf16.msra.mxu0 0
  %4398 = vmatprep.subr.bf16.mxu0 0
  %4399 = vmatpush1.bf16.msra.mxu0 0
  %4400 = vmatprep.subr.bf16.mxu0 0
  %4401 = vmatpush1.bf16.msra.mxu0 0
  %4402 = vmatprep.subr.bf16.mxu0 0
  %4403 = vmatpush1.bf16.msra.mxu0 0
  %4404 = vmatprep.subr.bf16.mxu0 0
  %4405 = vmatpush1.bf16.msra.mxu0 0
  %4406 = vmatprep.subr.bf16.mxu0 0
  %4407 = vmatpush1.bf16.msra.mxu0 0
  %4408 = vmatprep.mubr.bf16.mxu0 0
  %4409 = vmatmul.mubr.bf16.gmra.mrb[0].mxu0 %v4043
  %v4410 = vpop.f32.mrb[0].mxu0
  %v4411 = vadd.f32 %v430, %v4410
  %v4412 = vpop.f32.mrb[0].mxu0
  %v4413 = vpop.f32.mrb[0].mxu0
  %v4414 = vpop.f32.mrb[0].mxu0
  %4415 = vdwg.mxu0
  %4416 = vmatprep.subr.bf16.mxu0 %v1984
  %4417 = vmatpush1.bf16.msra.mxu0 %v1983
  %4418 = vmatprep.subr.bf16.mxu0 %v1987
  %4419 = vmatpush1.bf16.msra.mxu0 %v1986
  %4420 = vmatprep.subr.bf16.mxu0 %v1990
  %4421 = vmatpush1.bf16.msra.mxu0 %v1989
  %4422 = vmatprep.subr.bf16.mxu0 %v1993
  %4423 = vmatpush1.bf16.msra.mxu0 %v1992
  %4424 = vmatprep.subr.bf16.mxu0 %v1996
  %4425 = vmatpush1.bf16.msra.mxu0 %v1995
  %4426 = vmatprep.subr.bf16.mxu0 %v1999
  %4427 = vmatpush1.bf16.msra.mxu0 %v1998
  %4428 = vmatprep.subr.bf16.mxu0 %v2002
  %4429 = vmatpush1.bf16.msra.mxu0 %v2001
  %4430 = vmatprep.subr.bf16.mxu0 %v2005
  %4431 = vmatpush1.bf16.msra.mxu0 %v2004
  %4432 = vmatprep.subr.bf16.mxu0 0
  %4433 = vmatpush1.bf16.msra.mxu0 0
  %4434 = vmatprep.subr.bf16.mxu0 0
  %4435 = vmatpush1.bf16.msra.mxu0 0
  %4436 = vmatprep.subr.bf16.mxu0 0
  %4437 = vmatpush1.bf16.msra.mxu0 0
  %4438 = vmatprep.subr.bf16.mxu0 0
  %4439 = vmatpush1.bf16.msra.mxu0 0
  %4440 = vmatprep.subr.bf16.mxu0 0
  %4441 = vmatpush1.bf16.msra.mxu0 0
  %4442 = vmatprep.subr.bf16.mxu0 0
  %4443 = vmatpush1.bf16.msra.mxu0 0
  %4444 = vmatprep.subr.bf16.mxu0 0
  %4445 = vmatpush1.bf16.msra.mxu0 0
  %4446 = vmatprep.subr.bf16.mxu0 0
  %4447 = vmatpush1.bf16.msra.mxu0 0
  %4448 = vmatprep.mubr.bf16.mxu0 0
  %4449 = vmatmul.mubr.bf16.gmra.mrb[0].mxu0 %v4044
  %v4450 = vpop.f32.mrb[0].mxu0
  %v4451 = vadd.f32 0.0, %v4450
  %v4452 = vpop.f32.mrb[0].mxu0
  %v4453 = vadd.f32 0.0, %v4452
  %v4454 = vpop.f32.mrb[0].mxu0
  %v4455 = vpop.f32.mrb[0].mxu0
  %4456 = vdwg.mxu0
  %4457 = vmatprep.subr.bf16.mxu0 0
  %4458 = vmatpush1.bf16.msra.mxu0 %v1985
  %4459 = vmatprep.subr.bf16.mxu0 0
  %4460 = vmatpush1.bf16.msra.mxu0 %v1988
  %4461 = vmatprep.subr.bf16.mxu0 0
  %4462 = vmatpush1.bf16.msra.mxu0 %v1991
  %4463 = vmatprep.subr.bf16.mxu0 0
  %4464 = vmatpush1.bf16.msra.mxu0 %v1994
  %4465 = vmatprep.subr.bf16.mxu0 0
  %4466 = vmatpush1.bf16.msra.mxu0 %v1997
  %4467 = vmatprep.subr.bf16.mxu0 0
  %4468 = vmatpush1.bf16.msra.mxu0 %v2000
  %4469 = vmatprep.subr.bf16.mxu0 0
  %4470 = vmatpush1.bf16.msra.mxu0 %v2003
  %4471 = vmatprep.subr.bf16.mxu0 0
  %4472 = vmatpush1.bf16.msra.mxu0 %v2006
  %4473 = vmatprep.subr.bf16.mxu0 0
  %4474 = vmatpush1.bf16.msra.mxu0 0
  %4475 = vmatprep.subr.bf16.mxu0 0
  %4476 = vmatpush1.bf16.msra.mxu0 0
  %4477 = vmatprep.subr.bf16.mxu0 0
  %4478 = vmatpush1.bf16.msra.mxu0 0
  %4479 = vmatprep.subr.bf16.mxu0 0
  %4480 = vmatpush1.bf16.msra.mxu0 0
  %4481 = vmatprep.subr.bf16.mxu0 0
  %4482 = vmatpush1.bf16.msra.mxu0 0
  %4483 = vmatprep.subr.bf16.mxu0 0
  %4484 = vmatpush1.bf16.msra.mxu0 0
  %4485 = vmatprep.subr.bf16.mxu0 0
  %4486 = vmatpush1.bf16.msra.mxu0 0
  %4487 = vmatprep.subr.bf16.mxu0 0
  %4488 = vmatpush1.bf16.msra.mxu0 0
  %4489 = vmatprep.mubr.bf16.mxu0 0
  %4490 = vmatmul.mubr.bf16.gmra.mrb[0].mxu0 %v4044
  %v4491 = vpop.f32.mrb[0].mxu0
  %v4492 = vadd.f32 0.0, %v4491
  %v4493 = vpop.f32.mrb[0].mxu0
  %v4494 = vpop.f32.mrb[0].mxu0
  %v4495 = vpop.f32.mrb[0].mxu0
  %4496 = vdwg.mxu0
  %v4497 = vadd.f32 %v4370, %v4451
  %v4498 = vadd.f32 %v4372, %v4453
  %v4499 = vadd.f32 %v4492, %v455
  %v4500 = vxor.u32 %v4497, 2147483648
  %v4501 = vmul.f32 %v4500, 1.442695
  %v4502 = vpow.pop %v4501
  %v4503 = vadd.f32 %v4502, 1.0
  %v4504 = vrcp.pop %v4503
  %v4505 = vmul.f32 1.0, %v4504
  %v4506 = vxor.u32 %v4498, 2147483648
  %v4507 = vmul.f32 %v4506, 1.442695
  %v4508 = vpow.pop %v4507
  %v4509 = vadd.f32 %v4508, 1.0
  %v4510 = vrcp.pop %v4509
  %v4511 = vmul.f32 1.0, %v4510
  %v4512 = vmul.f32 %v4505, %v4499
  %v4513 = vadd.f32 %v4411, %v4512
  %v4514 = vtanh.pop %v4513
  %v4515 = vsub.f32 1.0, %v4511
  %v4516 = vmul.f32 %v4515, %v4514
  %v4517 = vmul.f32 %v4511, %v4041
  %v4518 = vadd.f32 %v4516, %v4517
  %v4519 = vpack.c.bf16 %v4150, %v4150
  %v4520 = vpack.c.bf16 %v4334, %v4334
  %v4521 = vpack.c.bf16 %v4518, %v4518
  %4522 = vmatprep.subr.bf16.mxu0 %v944
  %4523 = vmatpush1.bf16.msra.mxu0 %v943
  %4524 = vmatprep.subr.bf16.mxu0 %v947
  %4525 = vmatpush1.bf16.msra.mxu0 %v946
  %4526 = vmatprep.subr.bf16.mxu0 %v950
  %4527 = vmatpush1.bf16.msra.mxu0 %v949
  %4528 = vmatprep.subr.bf16.mxu0 %v953
  %4529 = vmatpush1.bf16.msra.mxu0 %v952
  %4530 = vmatprep.subr.bf16.mxu0 %v956
  %4531 = vmatpush1.bf16.msra.mxu0 %v955
  %4532 = vmatprep.subr.bf16.mxu0 %v959
  %4533 = vmatpush1.bf16.msra.mxu0 %v958
  %4534 = vmatprep.subr.bf16.mxu0 %v962
  %4535 = vmatpush1.bf16.msra.mxu0 %v961
  %4536 = vmatprep.subr.bf16.mxu0 %v965
  %4537 = vmatpush1.bf16.msra.mxu0 %v964
  %4538 = vmatprep.subr.bf16.mxu0 0
  %4539 = vmatpush1.bf16.msra.mxu0 0
  %4540 = vmatprep.subr.bf16.mxu0 0
  %4541 = vmatpush1.bf16.msra.mxu0 0
  %4542 = vmatprep.subr.bf16.mxu0 0
  %4543 = vmatpush1.bf16.msra.mxu0 0
  %4544 = vmatprep.subr.bf16.mxu0 0
  %4545 = vmatpush1.bf16.msra.mxu0 0
  %4546 = vmatprep.subr.bf16.mxu0 0
  %4547 = vmatpush1.bf16.msra.mxu0 0
  %4548 = vmatprep.subr.bf16.mxu0 0
  %4549 = vmatpush1.bf16.msra.mxu0 0
  %4550 = vmatprep.subr.bf16.mxu0 0
  %4551 = vmatpush1.bf16.msra.mxu0 0
  %4552 = vmatprep.subr.bf16.mxu0 0
  %4553 = vmatpush1.bf16.msra.mxu0 0
  %4554 = vmatprep.mubr.bf16.mxu0 0
  %4555 = vmatmul.mubr.bf16.gmra.mrb[0].mxu0 %v4519
  %v4556 = vpop.f32.mrb[0].mxu0
  %v4557 = vadd.f32 %v404, %v4556
  %v4558 = vpop.f32.mrb[0].mxu0
  %v4559 = vadd.f32 %v408, %v4558
  %v4560 = vpop.f32.mrb[0].mxu0
  %v4561 = vpop.f32.mrb[0].mxu0
  %4562 = vdwg.mxu0
  %4563 = vmatprep.subr.bf16.mxu0 0
  %4564 = vmatpush1.bf16.msra.mxu0 %v945
  %4565 = vmatprep.subr.bf16.mxu0 0
  %4566 = vmatpush1.bf16.msra.mxu0 %v948
  %4567 = vmatprep.subr.bf16.mxu0 0
  %4568 = vmatpush1.bf16.msra.mxu0 %v951
  %4569 = vmatprep.subr.bf16.mxu0 0
  %4570 = vmatpush1.bf16.msra.mxu0 %v954
  %4571 = vmatprep.subr.bf16.mxu0 0
  %4572 = vmatpush1.bf16.msra.mxu0 %v957
  %4573 = vmatprep.subr.bf16.mxu0 0
  %4574 = vmatpush1.bf16.msra.mxu0 %v960
  %4575 = vmatprep.subr.bf16.mxu0 0
  %4576 = vmatpush1.bf16.msra.mxu0 %v963
  %4577 = vmatprep.subr.bf16.mxu0 0
  %4578 = vmatpush1.bf16.msra.mxu0 %v966
  %4579 = vmatprep.subr.bf16.mxu0 0
  %4580 = vmatpush1.bf16.msra.mxu0 0
  %4581 = vmatprep.subr.bf16.mxu0 0
  %4582 = vmatpush1.bf16.msra.mxu0 0
  %4583 = vmatprep.subr.bf16.mxu0 0
  %4584 = vmatpush1.bf16.msra.mxu0 0
  %4585 = vmatprep.subr.bf16.mxu0 0
  %4586 = vmatpush1.bf16.msra.mxu0 0
  %4587 = vmatprep.subr.bf16.mxu0 0
  %4588 = vmatpush1.bf16.msra.mxu0 0
  %4589 = vmatprep.subr.bf16.mxu0 0
  %4590 = vmatpush1.bf16.msra.mxu0 0
  %4591 = vmatprep.subr.bf16.mxu0 0
  %4592 = vmatpush1.bf16.msra.mxu0 0
  %4593 = vmatprep.subr.bf16.mxu0 0
  %4594 = vmatpush1.bf16.msra.mxu0 0
  %4595 = vmatprep.mubr.bf16.mxu0 0
  %4596 = vmatmul.mubr.bf16.gmra.mrb[0].mxu0 %v4519
  %v4597 = vpop.f32.mrb[0].mxu0
  %v4598 = vadd.f32 %v412, %v4597
  %v4599 = vpop.f32.mrb[0].mxu0
  %v4600 = vpop.f32.mrb[0].mxu0
  %v4601 = vpop.f32.mrb[0].mxu0
  %4602 = vdwg.mxu0
  %4603 = vmatprep.subr.bf16.mxu0 %v1186
  %4604 = vmatpush1.bf16.msra.mxu0 %v1185
  %4605 = vmatprep.subr.bf16.mxu0 %v1189
  %4606 = vmatpush1.bf16.msra.mxu0 %v1188
  %4607 = vmatprep.subr.bf16.mxu0 %v1192
  %4608 = vmatpush1.bf16.msra.mxu0 %v1191
  %4609 = vmatprep.subr.bf16.mxu0 %v1195
  %4610 = vmatpush1.bf16.msra.mxu0 %v1194
  %4611 = vmatprep.subr.bf16.mxu0 %v1198
  %4612 = vmatpush1.bf16.msra.mxu0 %v1197
  %4613 = vmatprep.subr.bf16.mxu0 %v1201
  %4614 = vmatpush1.bf16.msra.mxu0 %v1200
  %4615 = vmatprep.subr.bf16.mxu0 %v1204
  %4616 = vmatpush1.bf16.msra.mxu0 %v1203
  %4617 = vmatprep.subr.bf16.mxu0 %v1207
  %4618 = vmatpush1.bf16.msra.mxu0 %v1206
  %4619 = vmatprep.subr.bf16.mxu0 0
  %4620 = vmatpush1.bf16.msra.mxu0 0
  %4621 = vmatprep.subr.bf16.mxu0 0
  %4622 = vmatpush1.bf16.msra.mxu0 0
  %4623 = vmatprep.subr.bf16.mxu0 0
  %4624 = vmatpush1.bf16.msra.mxu0 0
  %4625 = vmatprep.subr.bf16.mxu0 0
  %4626 = vmatpush1.bf16.msra.mxu0 0
  %4627 = vmatprep.subr.bf16.mxu0 0
  %4628 = vmatpush1.bf16.msra.mxu0 0
  %4629 = vmatprep.subr.bf16.mxu0 0
  %4630 = vmatpush1.bf16.msra.mxu0 0
  %4631 = vmatprep.subr.bf16.mxu0 0
  %4632 = vmatpush1.bf16.msra.mxu0 0
  %4633 = vmatprep.subr.bf16.mxu0 0
  %4634 = vmatpush1.bf16.msra.mxu0 0
  %4635 = vmatprep.mubr.bf16.mxu0 0
  %4636 = vmatmul.mubr.bf16.gmra.mrb[0].mxu0 %v4520
  %v4637 = vpop.f32.mrb[0].mxu0
  %v4638 = vadd.f32 0.0, %v4637
  %v4639 = vpop.f32.mrb[0].mxu0
  %v4640 = vadd.f32 0.0, %v4639
  %v4641 = vpop.f32.mrb[0].mxu0
  %v4642 = vpop.f32.mrb[0].mxu0
  %4643 = vdwg.mxu0
  %4644 = vmatprep.subr.bf16.mxu0 0
  %4645 = vmatpush1.bf16.msra.mxu0 %v1187
  %4646 = vmatprep.subr.bf16.mxu0 0
  %4647 = vmatpush1.bf16.msra.mxu0 %v1190
  %4648 = vmatprep.subr.bf16.mxu0 0
  %4649 = vmatpush1.bf16.msra.mxu0 %v1193
  %4650 = vmatprep.subr.bf16.mxu0 0
  %4651 = vmatpush1.bf16.msra.mxu0 %v1196
  %4652 = vmatprep.subr.bf16.mxu0 0
  %4653 = vmatpush1.bf16.msra.mxu0 %v1199
  %4654 = vmatprep.subr.bf16.mxu0 0
  %4655 = vmatpush1.bf16.msra.mxu0 %v1202
  %4656 = vmatprep.subr.bf16.mxu0 0
  %4657 = vmatpush1.bf16.msra.mxu0 %v1205
  %4658 = vmatprep.subr.bf16.mxu0 0
  %4659 = vmatpush1.bf16.msra.mxu0 %v1208
  %4660 = vmatprep.subr.bf16.mxu0 0
  %4661 = vmatpush1.bf16.msra.mxu0 0
  %4662 = vmatprep.subr.bf16.mxu0 0
  %4663 = vmatpush1.bf16.msra.mxu0 0
  %4664 = vmatprep.subr.bf16.mxu0 0
  %4665 = vmatpush1.bf16.msra.mxu0 0
  %4666 = vmatprep.subr.bf16.mxu0 0
  %4667 = vmatpush1.bf16.msra.mxu0 0
  %4668 = vmatprep.subr.bf16.mxu0 0
  %4669 = vmatpush1.bf16.msra.mxu0 0
  %4670 = vmatprep.subr.bf16.mxu0 0
  %4671 = vmatpush1.bf16.msra.mxu0 0
  %4672 = vmatprep.subr.bf16.mxu0 0
  %4673 = vmatpush1.bf16.msra.mxu0 0
  %4674 = vmatprep.subr.bf16.mxu0 0
  %4675 = vmatpush1.bf16.msra.mxu0 0
  %4676 = vmatprep.mubr.bf16.mxu0 0
  %4677 = vmatmul.mubr.bf16.gmra.mrb[0].mxu0 %v4520
  %v4678 = vpop.f32.mrb[0].mxu0
  %v4679 = vadd.f32 0.0, %v4678
  %v4680 = vpop.f32.mrb[0].mxu0
  %v4681 = vpop.f32.mrb[0].mxu0
  %v4682 = vpop.f32.mrb[0].mxu0
  %4683 = vdwg.mxu0
  %v4684 = vadd.f32 %v4557, %v4638
  %v4685 = vadd.f32 %v4559, %v4640
  %v4686 = vadd.f32 %v4679, %v447
  %v4687 = vxor.u32 %v4684, 2147483648
  %v4688 = vmul.f32 %v4687, 1.442695
  %v4689 = vpow.pop %v4688
  %v4690 = vadd.f32 %v4689, 1.0
  %v4691 = vrcp.pop %v4690
  %v4692 = vmul.f32 1.0, %v4691
  %v4693 = vxor.u32 %v4685, 2147483648
  %v4694 = vmul.f32 %v4693, 1.442695
  %v4695 = vpow.pop %v4694
  %v4696 = vadd.f32 %v4695, 1.0
  %v4697 = vrcp.pop %v4696
  %v4698 = vmul.f32 1.0, %v4697
  %v4699 = vmul.f32 %v4692, %v4686
  %v4700 = vadd.f32 %v4598, %v4699
  %v4701 = vtanh.pop %v4700
  %v4702 = vsub.f32 1.0, %v4698
  %v4703 = vmul.f32 %v4702, %v4701
  %v4704 = vmul.f32 %v4698, %v4334
  %v4705 = vadd.f32 %v4703, %v4704
  %4706 = vmatprep.subr.bf16.mxu0 %v1742
  %4707 = vmatpush1.bf16.msra.mxu0 %v1741
  %4708 = vmatprep.subr.bf16.mxu0 %v1745
  %4709 = vmatpush1.bf16.msra.mxu0 %v1744
  %4710 = vmatprep.subr.bf16.mxu0 %v1748
  %4711 = vmatpush1.bf16.msra.mxu0 %v1747
  %4712 = vmatprep.subr.bf16.mxu0 %v1751
  %4713 = vmatpush1.bf16.msra.mxu0 %v1750
  %4714 = vmatprep.subr.bf16.mxu0 %v1754
  %4715 = vmatpush1.bf16.msra.mxu0 %v1753
  %4716 = vmatprep.subr.bf16.mxu0 %v1757
  %4717 = vmatpush1.bf16.msra.mxu0 %v1756
  %4718 = vmatprep.subr.bf16.mxu0 %v1760
  %4719 = vmatpush1.bf16.msra.mxu0 %v1759
  %4720 = vmatprep.subr.bf16.mxu0 %v1763
  %4721 = vmatpush1.bf16.msra.mxu0 %v1762
  %4722 = vmatprep.subr.bf16.mxu0 0
  %4723 = vmatpush1.bf16.msra.mxu0 0
  %4724 = vmatprep.subr.bf16.mxu0 0
  %4725 = vmatpush1.bf16.msra.mxu0 0
  %4726 = vmatprep.subr.bf16.mxu0 0
  %4727 = vmatpush1.bf16.msra.mxu0 0
  %4728 = vmatprep.subr.bf16.mxu0 0
  %4729 = vmatpush1.bf16.msra.mxu0 0
  %4730 = vmatprep.subr.bf16.mxu0 0
  %4731 = vmatpush1.bf16.msra.mxu0 0
  %4732 = vmatprep.subr.bf16.mxu0 0
  %4733 = vmatpush1.bf16.msra.mxu0 0
  %4734 = vmatprep.subr.bf16.mxu0 0
  %4735 = vmatpush1.bf16.msra.mxu0 0
  %4736 = vmatprep.subr.bf16.mxu0 0
  %4737 = vmatpush1.bf16.msra.mxu0 0
  %4738 = vmatprep.mubr.bf16.mxu0 0
  %4739 = vmatmul.mubr.bf16.gmra.mrb[0].mxu0 %v4520
  %v4740 = vpop.f32.mrb[0].mxu0
  %v4741 = vadd.f32 %v422, %v4740
  %v4742 = vpop.f32.mrb[0].mxu0
  %v4743 = vadd.f32 %v426, %v4742
  %v4744 = vpop.f32.mrb[0].mxu0
  %v4745 = vpop.f32.mrb[0].mxu0
  %4746 = vdwg.mxu0
  %4747 = vmatprep.subr.bf16.mxu0 0
  %4748 = vmatpush1.bf16.msra.mxu0 %v1743
  %4749 = vmatprep.subr.bf16.mxu0 0
  %4750 = vmatpush1.bf16.msra.mxu0 %v1746
  %4751 = vmatprep.subr.bf16.mxu0 0
  %4752 = vmatpush1.bf16.msra.mxu0 %v1749
  %4753 = vmatprep.subr.bf16.mxu0 0
  %4754 = vmatpush1.bf16.msra.mxu0 %v1752
  %4755 = vmatprep.subr.bf16.mxu0 0
  %4756 = vmatpush1.bf16.msra.mxu0 %v1755
  %4757 = vmatprep.subr.bf16.mxu0 0
  %4758 = vmatpush1.bf16.msra.mxu0 %v1758
  %4759 = vmatprep.subr.bf16.mxu0 0
  %4760 = vmatpush1.bf16.msra.mxu0 %v1761
  %4761 = vmatprep.subr.bf16.mxu0 0
  %4762 = vmatpush1.bf16.msra.mxu0 %v1764
  %4763 = vmatprep.subr.bf16.mxu0 0
  %4764 = vmatpush1.bf16.msra.mxu0 0
  %4765 = vmatprep.subr.bf16.mxu0 0
  %4766 = vmatpush1.bf16.msra.mxu0 0
  %4767 = vmatprep.subr.bf16.mxu0 0
  %4768 = vmatpush1.bf16.msra.mxu0 0
  %4769 = vmatprep.subr.bf16.mxu0 0
  %4770 = vmatpush1.bf16.msra.mxu0 0
  %4771 = vmatprep.subr.bf16.mxu0 0
  %4772 = vmatpush1.bf16.msra.mxu0 0
  %4773 = vmatprep.subr.bf16.mxu0 0
  %4774 = vmatpush1.bf16.msra.mxu0 0
  %4775 = vmatprep.subr.bf16.mxu0 0
  %4776 = vmatpush1.bf16.msra.mxu0 0
  %4777 = vmatprep.subr.bf16.mxu0 0
  %4778 = vmatpush1.bf16.msra.mxu0 0
  %4779 = vmatprep.mubr.bf16.mxu0 0
  %4780 = vmatmul.mubr.bf16.gmra.mrb[0].mxu0 %v4520
  %v4781 = vpop.f32.mrb[0].mxu0
  %v4782 = vadd.f32 %v430, %v4781
  %v4783 = vpop.f32.mrb[0].mxu0
  %v4784 = vpop.f32.mrb[0].mxu0
  %v4785 = vpop.f32.mrb[0].mxu0
  %4786 = vdwg.mxu0
  %4787 = vmatprep.subr.bf16.mxu0 %v1984
  %4788 = vmatpush1.bf16.msra.mxu0 %v1983
  %4789 = vmatprep.subr.bf16.mxu0 %v1987
  %4790 = vmatpush1.bf16.msra.mxu0 %v1986
  %4791 = vmatprep.subr.bf16.mxu0 %v1990
  %4792 = vmatpush1.bf16.msra.mxu0 %v1989
  %4793 = vmatprep.subr.bf16.mxu0 %v1993
  %4794 = vmatpush1.bf16.msra.mxu0 %v1992
  %4795 = vmatprep.subr.bf16.mxu0 %v1996
  %4796 = vmatpush1.bf16.msra.mxu0 %v1995
  %4797 = vmatprep.subr.bf16.mxu0 %v1999
  %4798 = vmatpush1.bf16.msra.mxu0 %v1998
  %4799 = vmatprep.subr.bf16.mxu0 %v2002
  %4800 = vmatpush1.bf16.msra.mxu0 %v2001
  %4801 = vmatprep.subr.bf16.mxu0 %v2005
  %4802 = vmatpush1.bf16.msra.mxu0 %v2004
  %4803 = vmatprep.subr.bf16.mxu0 0
  %4804 = vmatpush1.bf16.msra.mxu0 0
  %4805 = vmatprep.subr.bf16.mxu0 0
  %4806 = vmatpush1.bf16.msra.mxu0 0
  %4807 = vmatprep.subr.bf16.mxu0 0
  %4808 = vmatpush1.bf16.msra.mxu0 0
  %4809 = vmatprep.subr.bf16.mxu0 0
  %4810 = vmatpush1.bf16.msra.mxu0 0
  %4811 = vmatprep.subr.bf16.mxu0 0
  %4812 = vmatpush1.bf16.msra.mxu0 0
  %4813 = vmatprep.subr.bf16.mxu0 0
  %4814 = vmatpush1.bf16.msra.mxu0 0
  %4815 = vmatprep.subr.bf16.mxu0 0
  %4816 = vmatpush1.bf16.msra.mxu0 0
  %4817 = vmatprep.subr.bf16.mxu0 0
  %4818 = vmatpush1.bf16.msra.mxu0 0
  %4819 = vmatprep.mubr.bf16.mxu0 0
  %4820 = vmatmul.mubr.bf16.gmra.mrb[0].mxu0 %v4521
  %v4821 = vpop.f32.mrb[0].mxu0
  %v4822 = vadd.f32 0.0, %v4821
  %v4823 = vpop.f32.mrb[0].mxu0
  %v4824 = vadd.f32 0.0, %v4823
  %v4825 = vpop.f32.mrb[0].mxu0
  %v4826 = vpop.f32.mrb[0].mxu0
  %4827 = vdwg.mxu0
  %4828 = vmatprep.subr.bf16.mxu0 0
  %4829 = vmatpush1.bf16.msra.mxu0 %v1985
  %4830 = vmatprep.subr.bf16.mxu0 0
  %4831 = vmatpush1.bf16.msra.mxu0 %v1988
  %4832 = vmatprep.subr.bf16.mxu0 0
  %4833 = vmatpush1.bf16.msra.mxu0 %v1991
  %4834 = vmatprep.subr.bf16.mxu0 0
  %4835 = vmatpush1.bf16.msra.mxu0 %v1994
  %4836 = vmatprep.subr.bf16.mxu0 0
  %4837 = vmatpush1.bf16.msra.mxu0 %v1997
  %4838 = vmatprep.subr.bf16.mxu0 0
  %4839 = vmatpush1.bf16.msra.mxu0 %v2000
  %4840 = vmatprep.subr.bf16.mxu0 0
  %4841 = vmatpush1.bf16.msra.mxu0 %v2003
  %4842 = vmatprep.subr.bf16.mxu0 0
  %4843 = vmatpush1.bf16.msra.mxu0 %v2006
  %4844 = vmatprep.subr.bf16.mxu0 0
  %4845 = vmatpush1.bf16.msra.mxu0 0
  %4846 = vmatprep.subr.bf16.mxu0 0
  %4847 = vmatpush1.bf16.msra.mxu0 0
  %4848 = vmatprep.subr.bf16.mxu0 0
  %4849 = vmatpush1.bf16.msra.mxu0 0
  %4850 = vmatprep.subr.bf16.mxu0 0
  %4851 = vmatpush1.bf16.msra.mxu0 0
  %4852 = vmatprep.subr.bf16.mxu0 0
  %4853 = vmatpush1.bf16.msra.mxu0 0
  %4854 = vmatprep.subr.bf16.mxu0 0
  %4855 = vmatpush1.bf16.msra.mxu0 0
  %4856 = vmatprep.subr.bf16.mxu0 0
  %4857 = vmatpush1.bf16.msra.mxu0 0
  %4858 = vmatprep.subr.bf16.mxu0 0
  %4859 = vmatpush1.bf16.msra.mxu0 0
  %4860 = vmatprep.mubr.bf16.mxu0 0
  %4861 = vmatmul.mubr.bf16.gmra.mrb[0].mxu0 %v4521
  %v4862 = vpop.f32.mrb[0].mxu0
  %v4863 = vadd.f32 0.0, %v4862
  %v4864 = vpop.f32.mrb[0].mxu0
  %v4865 = vpop.f32.mrb[0].mxu0
  %v4866 = vpop.f32.mrb[0].mxu0
  %4867 = vdwg.mxu0
  %v4868 = vadd.f32 %v4741, %v4822
  %v4869 = vadd.f32 %v4743, %v4824
  %v4870 = vadd.f32 %v4863, %v455
  %v4871 = vxor.u32 %v4868, 2147483648
  %v4872 = vmul.f32 %v4871, 1.442695
  %v4873 = vpow.pop %v4872
  %v4874 = vadd.f32 %v4873, 1.0
  %v4875 = vrcp.pop %v4874
  %v4876 = vmul.f32 1.0, %v4875
  %v4877 = vxor.u32 %v4869, 2147483648
  %v4878 = vmul.f32 %v4877, 1.442695
  %v4879 = vpow.pop %v4878
  %v4880 = vadd.f32 %v4879, 1.0
  %v4881 = vrcp.pop %v4880
  %v4882 = vmul.f32 1.0, %v4881
  %v4883 = vmul.f32 %v4876, %v4870
  %v4884 = vadd.f32 %v4782, %v4883
  %v4885 = vtanh.pop %v4884
  %v4886 = vsub.f32 1.0, %v4882
  %v4887 = vmul.f32 %v4886, %v4885
  %v4888 = vmul.f32 %v4882, %v4518
  %v4889 = vadd.f32 %v4887, %v4888
  %v4890 = vpack.c.bf16 %v4705, %v4705
  %v4891 = vpack.c.bf16 %v4889, %v4889
  %4892 = vmatprep.subr.bf16.mxu0 %v1742
  %4893 = vmatpush1.bf16.msra.mxu0 %v1741
  %4894 = vmatprep.subr.bf16.mxu0 %v1745
  %4895 = vmatpush1.bf16.msra.mxu0 %v1744
  %4896 = vmatprep.subr.bf16.mxu0 %v1748
  %4897 = vmatpush1.bf16.msra.mxu0 %v1747
  %4898 = vmatprep.subr.bf16.mxu0 %v1751
  %4899 = vmatpush1.bf16.msra.mxu0 %v1750
  %4900 = vmatprep.subr.bf16.mxu0 %v1754
  %4901 = vmatpush1.bf16.msra.mxu0 %v1753
  %4902 = vmatprep.subr.bf16.mxu0 %v1757
  %4903 = vmatpush1.bf16.msra.mxu0 %v1756
  %4904 = vmatprep.subr.bf16.mxu0 %v1760
  %4905 = vmatpush1.bf16.msra.mxu0 %v1759
  %4906 = vmatprep.subr.bf16.mxu0 %v1763
  %4907 = vmatpush1.bf16.msra.mxu0 %v1762
  %4908 = vmatprep.subr.bf16.mxu0 0
  %4909 = vmatpush1.bf16.msra.mxu0 0
  %4910 = vmatprep.subr.bf16.mxu0 0
  %4911 = vmatpush1.bf16.msra.mxu0 0
  %4912 = vmatprep.subr.bf16.mxu0 0
  %4913 = vmatpush1.bf16.msra.mxu0 0
  %4914 = vmatprep.subr.bf16.mxu0 0
  %4915 = vmatpush1.bf16.msra.mxu0 0
  %4916 = vmatprep.subr.bf16.mxu0 0
  %4917 = vmatpush1.bf16.msra.mxu0 0
  %4918 = vmatprep.subr.bf16.mxu0 0
  %4919 = vmatpush1.bf16.msra.mxu0 0
  %4920 = vmatprep.subr.bf16.mxu0 0
  %4921 = vmatpush1.bf16.msra.mxu0 0
  %4922 = vmatprep.subr.bf16.mxu0 0
  %4923 = vmatpush1.bf16.msra.mxu0 0
  %4924 = vmatprep.mubr.bf16.mxu0 0
  %4925 = vmatmul.mubr.bf16.gmra.mrb[0].mxu0 %v4890
  %v4926 = vpop.f32.mrb[0].mxu0
  %v4927 = vadd.f32 %v422, %v4926
  %v4928 = vpop.f32.mrb[0].mxu0
  %v4929 = vadd.f32 %v426, %v4928
  %v4930 = vpop.f32.mrb[0].mxu0
  %v4931 = vpop.f32.mrb[0].mxu0
  %4932 = vdwg.mxu0
  %4933 = vmatprep.subr.bf16.mxu0 0
  %4934 = vmatpush1.bf16.msra.mxu0 %v1743
  %4935 = vmatprep.subr.bf16.mxu0 0
  %4936 = vmatpush1.bf16.msra.mxu0 %v1746
  %4937 = vmatprep.subr.bf16.mxu0 0
  %4938 = vmatpush1.bf16.msra.mxu0 %v1749
  %4939 = vmatprep.subr.bf16.mxu0 0
  %4940 = vmatpush1.bf16.msra.mxu0 %v1752
  %4941 = vmatprep.subr.bf16.mxu0 0
  %4942 = vmatpush1.bf16.msra.mxu0 %v1755
  %4943 = vmatprep.subr.bf16.mxu0 0
  %4944 = vmatpush1.bf16.msra.mxu0 %v1758
  %4945 = vmatprep.subr.bf16.mxu0 0
  %4946 = vmatpush1.bf16.msra.mxu0 %v1761
  %4947 = vmatprep.subr.bf16.mxu0 0
  %4948 = vmatpush1.bf16.msra.mxu0 %v1764
  %4949 = vmatprep.subr.bf16.mxu0 0
  %4950 = vmatpush1.bf16.msra.mxu0 0
  %4951 = vmatprep.subr.bf16.mxu0 0
  %4952 = vmatpush1.bf16.msra.mxu0 0
  %4953 = vmatprep.subr.bf16.mxu0 0
  %4954 = vmatpush1.bf16.msra.mxu0 0
  %4955 = vmatprep.subr.bf16.mxu0 0
  %4956 = vmatpush1.bf16.msra.mxu0 0
  %4957 = vmatprep.subr.bf16.mxu0 0
  %4958 = vmatpush1.bf16.msra.mxu0 0
  %4959 = vmatprep.subr.bf16.mxu0 0
  %4960 = vmatpush1.bf16.msra.mxu0 0
  %4961 = vmatprep.subr.bf16.mxu0 0
  %4962 = vmatpush1.bf16.msra.mxu0 0
  %4963 = vmatprep.subr.bf16.mxu0 0
  %4964 = vmatpush1.bf16.msra.mxu0 0
  %4965 = vmatprep.mubr.bf16.mxu0 0
  %4966 = vmatmul.mubr.bf16.gmra.mrb[0].mxu0 %v4890
  %v4967 = vpop.f32.mrb[0].mxu0
  %v4968 = vadd.f32 %v430, %v4967
  %v4969 = vpop.f32.mrb[0].mxu0
  %v4970 = vpop.f32.mrb[0].mxu0
  %v4971 = vpop.f32.mrb[0].mxu0
  %4972 = vdwg.mxu0
  %4973 = vmatprep.subr.bf16.mxu0 %v1984
  %4974 = vmatpush1.bf16.msra.mxu0 %v1983
  %4975 = vmatprep.subr.bf16.mxu0 %v1987
  %4976 = vmatpush1.bf16.msra.mxu0 %v1986
  %4977 = vmatprep.subr.bf16.mxu0 %v1990
  %4978 = vmatpush1.bf16.msra.mxu0 %v1989
  %4979 = vmatprep.subr.bf16.mxu0 %v1993
  %4980 = vmatpush1.bf16.msra.mxu0 %v1992
  %4981 = vmatprep.subr.bf16.mxu0 %v1996
  %4982 = vmatpush1.bf16.msra.mxu0 %v1995
  %4983 = vmatprep.subr.bf16.mxu0 %v1999
  %4984 = vmatpush1.bf16.msra.mxu0 %v1998
  %4985 = vmatprep.subr.bf16.mxu0 %v2002
  %4986 = vmatpush1.bf16.msra.mxu0 %v2001
  %4987 = vmatprep.subr.bf16.mxu0 %v2005
  %4988 = vmatpush1.bf16.msra.mxu0 %v2004
  %4989 = vmatprep.subr.bf16.mxu0 0
  %4990 = vmatpush1.bf16.msra.mxu0 0
  %4991 = vmatprep.subr.bf16.mxu0 0
  %4992 = vmatpush1.bf16.msra.mxu0 0
  %4993 = vmatprep.subr.bf16.mxu0 0
  %4994 = vmatpush1.bf16.msra.mxu0 0
  %4995 = vmatprep.subr.bf16.mxu0 0
  %4996 = vmatpush1.bf16.msra.mxu0 0
  %4997 = vmatprep.subr.bf16.mxu0 0
  %4998 = vmatpush1.bf16.msra.mxu0 0
  %4999 = vmatprep.subr.bf16.mxu0 0
  %5000 = vmatpush1.bf16.msra.mxu0 0
  %5001 = vmatprep.subr.bf16.mxu0 0
  %5002 = vmatpush1.bf16.msra.mxu0 0
  %5003 = vmatprep.subr.bf16.mxu0 0
  %5004 = vmatpush1.bf16.msra.mxu0 0
  %5005 = vmatprep.mubr.bf16.mxu0 0
  %5006 = vmatmul.mubr.bf16.gmra.mrb[0].mxu0 %v4891
  %v5007 = vpop.f32.mrb[0].mxu0
  %v5008 = vadd.f32 0.0, %v5007
  %v5009 = vpop.f32.mrb[0].mxu0
  %v5010 = vadd.f32 0.0, %v5009
  %v5011 = vpop.f32.mrb[0].mxu0
  %v5012 = vpop.f32.mrb[0].mxu0
  %5013 = vdwg.mxu0
  %5014 = vmatprep.subr.bf16.mxu0 0
  %5015 = vmatpush1.bf16.msra.mxu0 %v1985
  %5016 = vmatprep.subr.bf16.mxu0 0
  %5017 = vmatpush1.bf16.msra.mxu0 %v1988
  %5018 = vmatprep.subr.bf16.mxu0 0
  %5019 = vmatpush1.bf16.msra.mxu0 %v1991
  %5020 = vmatprep.subr.bf16.mxu0 0
  %5021 = vmatpush1.bf16.msra.mxu0 %v1994
  %5022 = vmatprep.subr.bf16.mxu0 0
  %5023 = vmatpush1.bf16.msra.mxu0 %v1997
  %5024 = vmatprep.subr.bf16.mxu0 0
  %5025 = vmatpush1.bf16.msra.mxu0 %v2000
  %5026 = vmatprep.subr.bf16.mxu0 0
  %5027 = vmatpush1.bf16.msra.mxu0 %v2003
  %5028 = vmatprep.subr.bf16.mxu0 0
  %5029 = vmatpush1.bf16.msra.mxu0 %v2006
  %5030 = vmatprep.subr.bf16.mxu0 0
  %5031 = vmatpush1.bf16.msra.mxu0 0
  %5032 = vmatprep.subr.bf16.mxu0 0
  %5033 = vmatpush1.bf16.msra.mxu0 0
  %5034 = vmatprep.subr.bf16.mxu0 0
  %5035 = vmatpush1.bf16.msra.mxu0 0
  %5036 = vmatprep.subr.bf16.mxu0 0
  %5037 = vmatpush1.bf16.msra.mxu0 0
  %5038 = vmatprep.subr.bf16.mxu0 0
  %5039 = vmatpush1.bf16.msra.mxu0 0
  %5040 = vmatprep.subr.bf16.mxu0 0
  %5041 = vmatpush1.bf16.msra.mxu0 0
  %5042 = vmatprep.subr.bf16.mxu0 0
  %5043 = vmatpush1.bf16.msra.mxu0 0
  %5044 = vmatprep.subr.bf16.mxu0 0
  %5045 = vmatpush1.bf16.msra.mxu0 0
  %5046 = vmatprep.mubr.bf16.mxu0 0
  %5047 = vmatmul.mubr.bf16.gmra.mrb[0].mxu0 %v4891
  %v5048 = vpop.f32.mrb[0].mxu0
  %v5049 = vadd.f32 0.0, %v5048
  %v5050 = vpop.f32.mrb[0].mxu0
  %v5051 = vpop.f32.mrb[0].mxu0
  %v5052 = vpop.f32.mrb[0].mxu0
  %5053 = vdwg.mxu0
  %v5054 = vadd.f32 %v4927, %v5008
  %v5055 = vadd.f32 %v4929, %v5010
  %v5056 = vadd.f32 %v5049, %v455
  %v5057 = vxor.u32 %v5054, 2147483648
  %v5058 = vmul.f32 %v5057, 1.442695
  %v5059 = vpow.pop %v5058
  %v5060 = vadd.f32 %v5059, 1.0
  %v5061 = vrcp.pop %v5060
  %v5062 = vmul.f32 1.0, %v5061
  %v5063 = vxor.u32 %v5055, 2147483648
  %v5064 = vmul.f32 %v5063, 1.442695
  %v5065 = vpow.pop %v5064
  %v5066 = vadd.f32 %v5065, 1.0
  %v5067 = vrcp.pop %v5066
  %v5068 = vmul.f32 1.0, %v5067
  %v5069 = vmul.f32 %v5062, %v5056
  %v5070 = vadd.f32 %v4968, %v5069
  %v5071 = vtanh.pop %v5070
  %v5072 = vsub.f32 1.0, %v5068
  %v5073 = vmul.f32 %v5072, %v5071
  %v5074 = vmul.f32 %v5068, %v4889
  %v5075 = vadd.f32 %v5073, %v5074
  %v5076 = vld [vmem:[%s5] sm:$0xff]
  %v5077 = vld [vmem:[%s5 + $0x8] sm:$0xff]
  %v5078 = vld [vmem:[%s5 + $0x10] sm:$0xff]
  %v5079 = vld [vmem:[%s5 + $0x18] sm:$0xff]
  %v5080 = vld [vmem:[%s5 + $0x20] sm:$0xff]
  %v5081 = vld [vmem:[%s5 + $0x28] sm:$0xff]
  %v5082 = vld [vmem:[%s5 + $0x30] sm:$0xff]
  %v5083 = vld [vmem:[%s5 + $0x38] sm:$0xff]
  %v5084 = vld [vmem:[%s5 + $0x40] sm:$0xff]
  %v5085 = vld [vmem:[%s5 + $0x48] sm:$0xff]
  %v5086 = vld [vmem:[%s5 + $0x50] sm:$0xff]
  %v5087 = vld [vmem:[%s5 + $0x58] sm:$0xff]
  %v5088 = vld [vmem:[%s5 + $0x60] sm:$0xff]
  %v5089 = vld [vmem:[%s5 + $0x68] sm:$0xff]
  %v5090 = vld [vmem:[%s5 + $0x70] sm:$0xff]
  %v5091 = vld [vmem:[%s5 + $0x78] sm:$0xff]
  %v5092 = vld [vmem:[%s6] sm:$0x1]
  %v5094 = vlaneseq
  %v5095 = vshrl.u32 %v5094, 7
  %v5096 = vsub.s32 0, %v5095
  %v5097 = vrot.slane %v5092, %v5096
  %5099 = vmatprep.subr.mxu0 0.0
  %5100 = vmatpush1.msra.mxu0 %v5076
  %5101 = vmatprep.subr.mxu0 0.0
  %5102 = vmatpush1.msra.mxu0 %v5077
  %5103 = vmatprep.subr.mxu0 0.0
  %5104 = vmatpush1.msra.mxu0 %v5078
  %5105 = vmatprep.subr.mxu0 0.0
  %5106 = vmatpush1.msra.mxu0 %v5079
  %5107 = vmatprep.subr.mxu0 0.0
  %5108 = vmatpush1.msra.mxu0 %v5080
  %5109 = vmatprep.subr.mxu0 0.0
  %5110 = vmatpush1.msra.mxu0 %v5081
  %5111 = vmatprep.subr.mxu0 0.0
  %5112 = vmatpush1.msra.mxu0 %v5082
  %5113 = vmatprep.subr.mxu0 0.0
  %5114 = vmatpush1.msra.mxu0 %v5083
  %5115 = vmatprep.subr.mxu0 0.0
  %5116 = vmatpush1.msra.mxu0 %v5084
  %5117 = vmatprep.subr.mxu0 0.0
  %5118 = vmatpush1.msra.mxu0 %v5085
  %5119 = vmatprep.subr.mxu0 0.0
  %5120 = vmatpush1.msra.mxu0 %v5086
  %5121 = vmatprep.subr.mxu0 0.0
  %5122 = vmatpush1.msra.mxu0 %v5087
  %5123 = vmatprep.subr.mxu0 0.0
  %5124 = vmatpush1.msra.mxu0 %v5088
  %5125 = vmatprep.subr.mxu0 0.0
  %5126 = vmatpush1.msra.mxu0 %v5089
  %5127 = vmatprep.subr.mxu0 0.0
  %5128 = vmatpush1.msra.mxu0 %v5090
  %5129 = vmatprep.subr.mxu0 0.0
  %5130 = vmatpush1.msra.mxu0 %v5091
  %5131 = vmatprep.subr.mxu0 0.0
  %5132 = vmatpush1.msra.mxu0 0.0
  %5133 = vmatprep.subr.mxu0 0.0
  %5134 = vmatpush1.msra.mxu0 0.0
  %5135 = vmatprep.subr.mxu0 0.0
  %5136 = vmatpush1.msra.mxu0 0.0
  %5137 = vmatprep.subr.mxu0 0.0
  %5138 = vmatpush1.msra.mxu0 0.0
  %5139 = vmatprep.subr.mxu0 0.0
  %5140 = vmatpush1.msra.mxu0 0.0
  %5141 = vmatprep.subr.mxu0 0.0
  %5142 = vmatpush1.msra.mxu0 0.0
  %5143 = vmatprep.subr.mxu0 0.0
  %5144 = vmatpush1.msra.mxu0 0.0
  %5145 = vmatprep.subr.mxu0 0.0
  %5146 = vmatpush1.msra.mxu0 0.0
  %5147 = vmatprep.subr.mxu0 0.0
  %5148 = vmatpush1.msra.mxu0 0.0
  %5149 = vmatprep.subr.mxu0 0.0
  %5150 = vmatpush1.msra.mxu0 0.0
  %5151 = vmatprep.subr.mxu0 0.0
  %5152 = vmatpush1.msra.mxu0 0.0
  %5153 = vmatprep.subr.mxu0 0.0
  %5154 = vmatpush1.msra.mxu0 0.0
  %5155 = vmatprep.subr.mxu0 0.0
  %5156 = vmatpush1.msra.mxu0 0.0
  %5157 = vmatprep.subr.mxu0 0.0
  %5158 = vmatpush1.msra.mxu0 0.0
  %5159 = vmatprep.subr.mxu0 0.0
  %5160 = vmatpush1.msra.mxu0 0.0
  %5161 = vmatprep.subr.mxu0 0.0
  %5162 = vmatpush1.msra.mxu0 0.0
  %5163 = vmatprep.mubr.f32.mxu0 0.0
  %5164 = vmatmul.mubr.f32.gmra.mrb[0].mxu0 %v5075
  %v5165 = vpop.f32.mrb[0].mxu0
  %v5166 = vadd.f32 %v5097, %v5165
  %v5167 = vpop.f32.mrb[0].mxu0
  %5168 = vdwg.mxu0
  %5169 = vst [vmem:[%s7] sm:$0xff] %v5166
  // Predicated region
  $region30: #{gru_forward.1} parent=0 // pred_check
    _
  $region31: #{gru_forward.1} parent=0 // pred_check_branch
    %5171 = sbr.rel (0) target = $region33
  $region32: #{gru_forward.1} parent=0 // pred_region
    _
  $region33: #{gru_forward.1} parent=0 // pred_fallthru
    _
  // Predicated region
  $region34: #{gru_forward.1} parent=0 // pred_check
    _
  $region35: #{gru_forward.1} parent=0 // pred_check_branch
    %5173 = sbr.rel (0) target = $region37
  $region36: #{gru_forward.1} parent=0 // pred_region
    _
  $region37: #{gru_forward.1} parent=0 // pred_fallthru
    _

</llo_original>
